<compile_context>
chip_gen: v5e
topology: v5e:2x2
jax: 0.10.0
libtpu: 0.0.40
codegen_flags: <defaults>
</compile_context>

<pallas_src>
import math
from functools import partial

import jax
import jax.numpy as jnp
from jax.experimental import pallas as pl
from jax.experimental.pallas import tpu as pltpu

LANE = 128
SUB = 8


# ----------------------------- in-kernel math -------------------------------

def _gelu(x, use_erf):
    if use_erf:
        # Exact erf form: matches PyTorch nn.GELU() default.
        return 0.5 * x * (1.0 + jax.lax.erf(x * (1.0 / math.sqrt(2.0))))
    # tanh approximation fallback (~1e-3 divergence from the erf form).
    c = math.sqrt(2.0 / math.pi)
    return 0.5 * x * (1.0 + jnp.tanh(c * (x + 0.044715 * x * x * x)))


def _layernorm(x, w, b, eps=1e-5):
    # Single pass: var = E[x^2] - E[x]^2 (the two lane reductions are
    # independent, so the XLU can pipeline them back-to-back).
    mu = jnp.mean(x, axis=-1, keepdims=True)
    m2 = jnp.mean(x * x, axis=-1, keepdims=True)
    var = m2 - mu * mu
    return (x - mu) * jax.lax.rsqrt(var + eps) * w + b


# ------------------------------ fused kernel ---------------------------------

def policy_kernel(x_ref, w_ref, o_ref, h1_ref, *, idx, bs, ntasks, nqubits,
                  dim, depth, use_erf):
    # idx maps name -> list of static (row_off, rows, cols, contraction_off)
    # chunks inside the packed weight slab; all slices below are Python-int
    # static, sublane-aligned views (free at runtime).

    def view(name, chunk=0):
        off, r, c, _ = idx[name][chunk]
        return w_ref[off:off + r, 0:c]

    def left_dot(name, act):
        # (rows_out, K) @ (K, dim), K possibly split into <=128-lane chunks.
        out = None
        for off, r, c, k0 in idx[name]:
            part = jnp.dot(w_ref[off:off + r, 0:c], act[k0:k0 + c, :],
                           preferred_element_type=jnp.float32)
            out = part if out is None else out + part
        return out

    def mixer_blocks(prefix, h):
        # depth is tiny (2); fully unrolled.
        # TODO(synk): at scale, replace the O(B^2) block-diagonal token-mix
        # weights with a grid axis over batch rows (weights stay O(1) in B);
        # the block-diag form would exhaust v7x's 64 MiB VMEM first.
        for l in range(depth):
            p = f"{prefix}.l{l}"
            # --- token mixing (Conv1d kernel_size=1 over the qubit axis) ---
            y = _layernorm(h, view(p + ".ln1w"), view(p + ".ln1b"))
            t = left_dot(p + ".t1", y) + view(p + ".tb1")
            t = _gelu(t, use_erf)
            t = left_dot(p + ".t2", t) + view(p + ".tb2")
            h = h + t
            # --- channel mixing (Linear over the feature axis) ---
            y = _layernorm(h, view(p + ".ln2w"), view(p + ".ln2b"))
            c = jnp.dot(y, view(p + ".cw1"),
                        preferred_element_type=jnp.float32) + view(p + ".cb1")
            c = _gelu(c, use_erf)
            c = jnp.dot(c, view(p + ".cw2"),
                        preferred_element_type=jnp.float32) + view(p + ".cb2")
            h = h + c
        return _layernorm(h, view(prefix + ".lnfw"), view(prefix + ".lnfb"))

    # ---- mixer1: rows ordered (task, batch, qubit); lanes = board columns ----
    x = x_ref[...]                                                # (ntasks*bs*nq, board)
    h1 = jnp.dot(x, view("m1.pw"),
                 preferred_element_type=jnp.float32) + view("m1.pb")
    h1 = mixer_blocks("m1", h1)                                   # (ntasks*bs*nq, dim)
    h1_ref[...] = h1                                              # park in VMEM scratch

    # ---- inter-mixer permute + mixer2 patch embedding, fused ----
    # Reference: x2[b, q, t*dim + d] = mixer1_out[(b,t), q, d], then
    # Linear(ntasks*dim -> dim) == sum over tasks of per-task (dim x dim) dots.
    # The (task, batch, qubit) row order makes each task's rows a contiguous,
    # static, sublane-aligned slice of the scratch ref.
    rows2 = bs * nqubits
    pw2_off, _, pw2_cols, _ = idx["m2.pw"][0]
    h2 = None
    for t in range(ntasks):
        a = h1_ref[t * rows2:(t + 1) * rows2, :]                  # (bs*nq, dim)
        wt = w_ref[pw2_off + t * dim:pw2_off + (t + 1) * dim, 0:pw2_cols]
        part = jnp.dot(a, wt, preferred_element_type=jnp.float32)
        h2 = part if h2 is None else h2 + part
    h2 = h2 + view("m2.pb")
    h2 = mixer_blocks("m2", h2)                                   # (bs*nq, dim)

    # ---- policy head: W_pi (lane-padded to 128 outputs) + Softplus ----
    # (torch defaults: beta=1, threshold=20)
    z = jnp.dot(h2, view("head.w"),
                preferred_element_type=jnp.float32) + view("head.b")
    sp = jnp.maximum(z, 0.0) + jnp.log1p(jnp.exp(-jnp.abs(z)))
    o_ref[...] = jnp.where(z > 20.0, z, sp).astype(o_ref.dtype)


# --------------------------------- wrapper -----------------------------------

def policy_forward(grids, slab, idx, *, dim, depth, board, use_erf=True):
    bs, ntasks, board_size, nqubits = grids.shape
    # mixer1 pre-rearrange: per image (b,t): tokens = qubits, features = board
    # columns; rows ordered (task, batch, qubit).
    x1 = jnp.transpose(grids, (1, 0, 3, 2)).reshape(ntasks * bs * nqubits,
                                                    board_size)
    kernel = partial(policy_kernel, idx=idx, bs=bs, ntasks=ntasks,
                     nqubits=nqubits, dim=dim, depth=depth, use_erf=use_erf)
    # No grid: one invocation, two input DMAs (activations + weight slab),
    # everything lives as full blocks in VMEM (<1.5 MiB total).
    out = pl.pallas_call(
        kernel,
        out_shape=jax.ShapeDtypeStruct((bs * nqubits, LANE), jnp.float32),
        scratch_shapes=[pltpu.VMEM((ntasks * bs * nqubits, dim), jnp.float32)],
    )(x1, slab)
    return out[:, :board].reshape(bs, nqubits, board)


# --------------------------- parameter construction -------------------------

def linear_params(key, fan_in, fan_out, scale=1.0):
    # PyTorch-style uniform(-1/sqrt(fan_in), 1/sqrt(fan_in)) init (deterministic).
    bound = 1.0 / math.sqrt(fan_in)
    kw, kb = jax.random.split(key)
    w = jax.random.uniform(kw, (fan_out, fan_in), jnp.float32, -bound, bound) * scale
    b = jax.random.uniform(kb, (fan_out,), jnp.float32, -bound, bound) * scale
    return w, b


def init_mixer_logical(key, *, in_feat, dim, nqubits, depth,
                       expansion_factor=4, expansion_factor_token=0.5):
    """PyTorch-layout MLPMixer parameters (weights (out,in), biases (out,))."""
    inner_tok = int(nqubits * expansion_factor)
    inner_ch = int(dim * expansion_factor_token)
    keys = jax.random.split(key, 1 + depth)
    pw, pb = linear_params(keys[0], in_feat, dim)
    layers = []
    for l in range(depth):
        ks = jax.random.split(keys[1 + l], 4)
        w1, b1 = linear_params(ks[0], nqubits, inner_tok)   # Conv1d(nq -> inner, k=1)
        w2, b2 = linear_params(ks[1], inner_tok, nqubits)   # Conv1d(inner -> nq, k=1)
        w3, b3 = linear_params(ks[2], dim, inner_ch)        # Linear(dim -> inner_ch)
        w4, b4 = linear_params(ks[3], inner_ch, dim)        # Linear(inner_ch -> dim)
        layers.append(dict(
            w1=w1, b1=b1, w2=w2, b2=b2, w3=w3, b3=b3, w4=w4, b4=b4,
            ln1w=jnp.ones((dim,), jnp.float32), ln1b=jnp.zeros((dim,), jnp.float32),
            ln2w=jnp.ones((dim,), jnp.float32), ln2b=jnp.zeros((dim,), jnp.float32)))
    return dict(pw=pw, pb=pb, layers=layers,
                lnfw=jnp.ones((dim,), jnp.float32),
                lnfb=jnp.zeros((dim,), jnp.float32))


class SlabPacker:
    """Packs 2-D f32 tensors into one contiguous (rows, 128) slab.

    Rows of each tensor are padded up to a multiple of 8 (sublane alignment);
    tensors wider than 128 lanes are split into column chunks.  Records, per
    name, a list of static (row_offset, rows, cols, contraction_offset)."""

    def __init__(self):
        self.chunks = []
        self.idx = {}
        self.nrows = 0

    def add(self, name, arr):
        arr = jnp.asarray(arr, jnp.float32)
        assert arr.ndim == 2, name
        entries = []
        c0 = 0
        while c0 < arr.shape[1]:
            c1 = min(c0 + LANE, arr.shape[1])
            chunk = arr[:, c0:c1]
            r, c = chunk.shape
            rp = ((r + SUB - 1) // SUB) * SUB
            padded = jnp.zeros((rp, LANE), jnp.float32).at[:r, :c].set(chunk)
            entries.append((self.nrows, r, c, c0))
            self.chunks.append(padded)
            self.nrows += rp
            c0 = c1
        self.idx[name] = entries

    def finalize(self):
        return jnp.concatenate(self.chunks, axis=0), self.idx


def _block_diag(w, B):
    o, i = w.shape
    out = jnp.zeros((B * o, B * i), w.dtype)
    for b in range(B):
        out = out.at[b * o:(b + 1) * o, b * i:(b + 1) * i].set(w)
    return out


def _rows_bias(b, B, dim):
    # Pre-broadcast per-token bias -> lane-dense (B*len(b), dim) tile.
    return jnp.tile(jnp.broadcast_to(b[:, None], (b.shape[0], dim)), (B, 1))


def pack_policy_params(m1, m2, wpi, bpi, *, dim, batch1, batch2, board):
    """Host-side (once) packing of all parameters into a single weight slab."""
    packer = SlabPacker()

    def pack_mixer(prefix, logical, B):
        packer.add(prefix + ".pw", logical["pw"].T)
        packer.add(prefix + ".pb", logical["pb"][None, :])
        for l, lay in enumerate(logical["layers"]):
            p = f"{prefix}.l{l}"
            packer.add(p + ".ln1w", lay["ln1w"][None, :])
            packer.add(p + ".ln1b", lay["ln1b"][None, :])
            packer.add(p + ".t1", _block_diag(lay["w1"], B))      # block-diag token mix
            packer.add(p + ".tb1", _rows_bias(lay["b1"], B, dim))
            packer.add(p + ".t2", _block_diag(lay["w2"], B))      # auto lane-chunked
            packer.add(p + ".tb2", _rows_bias(lay["b2"], B, dim))
            packer.add(p + ".ln2w", lay["ln2w"][None, :])
            packer.add(p + ".ln2b", lay["ln2b"][None, :])
            packer.add(p + ".cw1", lay["w3"].T)
            packer.add(p + ".cb1", lay["b3"][None, :])
            packer.add(p + ".cw2", lay["w4"].T)
            packer.add(p + ".cb2", lay["b4"][None, :])
        packer.add(prefix + ".lnfw", logical["lnfw"][None, :])
        packer.add(prefix + ".lnfb", logical["lnfb"][None, :])

    pack_mixer("m1", m1, batch1)
    pack_mixer("m2", m2, batch2)
    # Policy head, zero-padded to 128 output lanes (lane-dense, unmasked store).
    # TODO(synk): generalize if board_size is ever > 128.
    wpad = jnp.zeros((dim, LANE), jnp.float32).at[:, :board].set(wpi.T)
    bpad = jnp.zeros((1, LANE), jnp.float32).at[:, :board].set(bpi[None, :])
    packer.add("head.w", wpad)
    packer.add("head.b", bpad)
    return packer.finalize()


# ----------------------------------- main ------------------------------------

if __name__ == "__main__":
    # cfg / task_specs stand-ins (small shapes)
    bs = 2
    num_tasks = 2
    ntasks = num_tasks + 1
    board_size = 4
    nqubits = 8
    p_hsize = 32
    mlp_depth = 2

    key = jax.random.PRNGKey(0)
    k_in, k_m1, k_m2, k_pi = jax.random.split(key, 4)

    grids = jax.random.normal(k_in, (bs, ntasks, board_size, nqubits), jnp.float32)

    m1 = init_mixer_logical(k_m1, in_feat=board_size, dim=p_hsize,
                            nqubits=nqubits, depth=mlp_depth)
    m2 = init_mixer_logical(k_m2, in_feat=ntasks * p_hsize, dim=p_hsize,
                            nqubits=nqubits, depth=mlp_depth)
    # W_pi: Linear(p_hsize, board_size) with weight & bias divided by 100.
    w_pi, b_pi = linear_params(k_pi, p_hsize, board_size, scale=0.01)

    # mixer1 processes bs*ntasks "images", mixer2 processes bs.
    slab, idx = pack_policy_params(m1, m2, w_pi, b_pi, dim=p_hsize,
                                   batch1=bs * ntasks, batch2=bs,
                                   board=board_size)

    run = partial(policy_forward, grids, slab, idx,
                  dim=p_hsize, depth=mlp_depth, board=board_size)
    try:
        out = jax.block_until_ready(run(use_erf=True))
    except Exception:
        # TODO(synk): exact-erf GELU failed to lower in this Mosaic build;
        # falling back to the tanh approximation (~1e-3 divergence).
        out = jax.block_until_ready(run(use_erf=False))

    assert out.shape == (bs, nqubits, board_size), out.shape
    assert bool(jnp.all(out >= 0.0))  # softplus output is non-negative
    print("KERNEL_OK")
</pallas_src>

<mosaic_0001>
module attributes {stable_mosaic.version = 11 : i64} {
  func.func @policy_kernel(%arg0: memref<48x4xf32, #tpu.memory_space<vmem>>, %arg1: memref<1952x128xf32, #tpu.memory_space<vmem>>, %arg2: memref<16x128xf32, #tpu.memory_space<vmem>>, %arg3: memref<48x32xf32, #tpu.memory_space<vmem>>) attributes {dimension_semantics = [], scalar_prefetch = 0 : i64, scratch_operands = 1 : i64, tpu.core_type = #tpu.core_type<tc>} {
    %c0 = arith.constant 0 : index
    %c0_0 = arith.constant 0 : index
    %0 = vector.load %arg0[%c0, %c0_0] : memref<48x4xf32, #tpu.memory_space<vmem>>, vector<48x4xf32>
    %c0_1 = arith.constant 0 : index
    %c0_2 = arith.constant 0 : index
    %1 = vector.load %arg1[%c0_1, %c0_2] : memref<1952x128xf32, #tpu.memory_space<vmem>>, vector<4x32xf32>
    %cst = arith.constant dense<0.000000e+00> : vector<48x32xf32>
    %2 = tpu.matmul %0, %1, %cst {dimension_numbers = #tpu.dot_dimension_numbers<[1], [0], [0], [1], [0, 0, 1, 1], [], []>} : vector<48x4xf32>, vector<4x32xf32>, vector<48x32xf32> -> vector<48x32xf32>
    %c8 = arith.constant 8 : index
    %c0_3 = arith.constant 0 : index
    %3 = vector.load %arg1[%c8, %c0_3] : memref<1952x128xf32, #tpu.memory_space<vmem>>, vector<1x32xf32>
    %4 = vector.broadcast %3 : vector<1x32xf32> to vector<48x32xf32>
    %5 = arith.addf %2, %4 : vector<48x32xf32>
    %c16 = arith.constant 16 : index
    %c0_4 = arith.constant 0 : index
    %6 = vector.load %arg1[%c16, %c0_4] : memref<1952x128xf32, #tpu.memory_space<vmem>>, vector<1x32xf32>
    %c24 = arith.constant 24 : index
    %c0_5 = arith.constant 0 : index
    %7 = vector.load %arg1[%c24, %c0_5] : memref<1952x128xf32, #tpu.memory_space<vmem>>, vector<1x32xf32>
    %cst_6 = arith.constant dense<0.000000e+00> : vector<48xf32>
    %8 = vector.multi_reduction <add>, %5, %cst_6 [1] : vector<48x32xf32> to vector<48xf32>
    %9 = vector.shape_cast %8 : vector<48xf32> to vector<48x1xf32>
    %cst_7 = arith.constant 3.200000e+01 : f32
    %10 = vector.broadcast %cst_7 : f32 to vector<48x1xf32>
    %11 = arith.divf %9, %10 : vector<48x1xf32>
    %12 = arith.mulf %5, %5 : vector<48x32xf32>
    %cst_8 = arith.constant dense<0.000000e+00> : vector<48xf32>
    %13 = vector.multi_reduction <add>, %12, %cst_8 [1] : vector<48x32xf32> to vector<48xf32>
    %14 = vector.shape_cast %13 : vector<48xf32> to vector<48x1xf32>
    %cst_9 = arith.constant 3.200000e+01 : f32
    %15 = vector.broadcast %cst_9 : f32 to vector<48x1xf32>
    %16 = arith.divf %14, %15 : vector<48x1xf32>
    %17 = arith.mulf %11, %11 : vector<48x1xf32>
    %18 = arith.subf %16, %17 : vector<48x1xf32>
    %19 = vector.broadcast %11 : vector<48x1xf32> to vector<48x32xf32>
    %20 = arith.subf %5, %19 : vector<48x32xf32>
    %cst_10 = arith.constant 9.99999974E-6 : f32
    %21 = vector.broadcast %cst_10 : f32 to vector<48x1xf32>
    %22 = arith.addf %18, %21 : vector<48x1xf32>
    %23 = math.rsqrt %22 : vector<48x1xf32>
    %24 = vector.broadcast %23 : vector<48x1xf32> to vector<48x32xf32>
    %25 = arith.mulf %20, %24 : vector<48x32xf32>
    %26 = vector.broadcast %6 : vector<1x32xf32> to vector<48x32xf32>
    %27 = arith.mulf %25, %26 : vector<48x32xf32>
    %28 = vector.broadcast %7 : vector<1x32xf32> to vector<48x32xf32>
    %29 = arith.addf %27, %28 : vector<48x32xf32>
    %c32 = arith.constant 32 : index
    %c0_11 = arith.constant 0 : index
    %30 = vector.load %arg1[%c32, %c0_11] : memref<1952x128xf32, #tpu.memory_space<vmem>>, vector<192x48xf32>
    %cst_12 = arith.constant dense<0.000000e+00> : vector<192x32xf32>
    %31 = tpu.matmul %30, %29, %cst_12 {dimension_numbers = #tpu.dot_dimension_numbers<[1], [0], [0], [1], [0, 0, 1, 1], [], []>} : vector<192x48xf32>, vector<48x32xf32>, vector<192x32xf32> -> vector<192x32xf32>
    %c224 = arith.constant 224 : index
    %c0_13 = arith.constant 0 : index
    %32 = vector.load %arg1[%c224, %c0_13] : memref<1952x128xf32, #tpu.memory_space<vmem>>, vector<192x32xf32>
    %33 = arith.addf %31, %32 : vector<192x32xf32>
    %cst_14 = arith.constant 5.000000e-01 : f32
    %34 = vector.broadcast %cst_14 : f32 to vector<192x32xf32>
    %35 = arith.mulf %34, %33 : vector<192x32xf32>
    %cst_15 = arith.constant 0.707106769 : f32
    %36 = vector.broadcast %cst_15 : f32 to vector<192x32xf32>
    %37 = arith.mulf %33, %36 : vector<192x32xf32>
    %38 = math.erf %37 : vector<192x32xf32>
    %cst_16 = arith.constant 1.000000e+00 : f32
    %39 = vector.broadcast %cst_16 : f32 to vector<192x32xf32>
    %40 = arith.addf %39, %38 : vector<192x32xf32>
    %41 = arith.mulf %35, %40 : vector<192x32xf32>
    %c416 = arith.constant 416 : index
    %c0_17 = arith.constant 0 : index
    %42 = vector.load %arg1[%c416, %c0_17] : memref<1952x128xf32, #tpu.memory_space<vmem>>, vector<48x128xf32>
    %43 = vector.extract_strided_slice %41 {offsets = [0, 0], sizes = [128, 32], strides = [1, 1]} : vector<192x32xf32> to vector<128x32xf32>
    %cst_18 = arith.constant dense<0.000000e+00> : vector<48x32xf32>
    %44 = tpu.matmul %42, %43, %cst_18 {dimension_numbers = #tpu.dot_dimension_numbers<[1], [0], [0], [1], [0, 0, 1, 1], [], []>} : vector<48x128xf32>, vector<128x32xf32>, vector<48x32xf32> -> vector<48x32xf32>
    %c464 = arith.constant 464 : index
    %c0_19 = arith.constant 0 : index
    %45 = vector.load %arg1[%c464, %c0_19] : memref<1952x128xf32, #tpu.memory_space<vmem>>, vector<48x64xf32>
    %46 = vector.extract_strided_slice %41 {offsets = [128, 0], sizes = [64, 32], strides = [1, 1]} : vector<192x32xf32> to vector<64x32xf32>
    %cst_20 = arith.constant dense<0.000000e+00> : vector<48x32xf32>
    %47 = tpu.matmul %45, %46, %cst_20 {dimension_numbers = #tpu.dot_dimension_numbers<[1], [0], [0], [1], [0, 0, 1, 1], [], []>} : vector<48x64xf32>, vector<64x32xf32>, vector<48x32xf32> -> vector<48x32xf32>
    %48 = arith.addf %44, %47 : vector<48x32xf32>
    %c512 = arith.constant 512 : index
    %c0_21 = arith.constant 0 : index
    %49 = vector.load %arg1[%c512, %c0_21] : memref<1952x128xf32, #tpu.memory_space<vmem>>, vector<48x32xf32>
    %50 = arith.addf %48, %49 : vector<48x32xf32>
    %51 = arith.addf %5, %50 : vector<48x32xf32>
    %c560 = arith.constant 560 : index
    %c0_22 = arith.constant 0 : index
    %52 = vector.load %arg1[%c560, %c0_22] : memref<1952x128xf32, #tpu.memory_space<vmem>>, vector<1x32xf32>
    %c568 = arith.constant 568 : index
    %c0_23 = arith.constant 0 : index
    %53 = vector.load %arg1[%c568, %c0_23] : memref<1952x128xf32, #tpu.memory_space<vmem>>, vector<1x32xf32>
    %cst_24 = arith.constant dense<0.000000e+00> : vector<48xf32>
    %54 = vector.multi_reduction <add>, %51, %cst_24 [1] : vector<48x32xf32> to vector<48xf32>
    %55 = vector.shape_cast %54 : vector<48xf32> to vector<48x1xf32>
    %cst_25 = arith.constant 3.200000e+01 : f32
    %56 = vector.broadcast %cst_25 : f32 to vector<48x1xf32>
    %57 = arith.divf %55, %56 : vector<48x1xf32>
    %58 = arith.mulf %51, %51 : vector<48x32xf32>
    %cst_26 = arith.constant dense<0.000000e+00> : vector<48xf32>
    %59 = vector.multi_reduction <add>, %58, %cst_26 [1] : vector<48x32xf32> to vector<48xf32>
    %60 = vector.shape_cast %59 : vector<48xf32> to vector<48x1xf32>
    %cst_27 = arith.constant 3.200000e+01 : f32
    %61 = vector.broadcast %cst_27 : f32 to vector<48x1xf32>
    %62 = arith.divf %60, %61 : vector<48x1xf32>
    %63 = arith.mulf %57, %57 : vector<48x1xf32>
    %64 = arith.subf %62, %63 : vector<48x1xf32>
    %65 = vector.broadcast %57 : vector<48x1xf32> to vector<48x32xf32>
    %66 = arith.subf %51, %65 : vector<48x32xf32>
    %cst_28 = arith.constant 9.99999974E-6 : f32
    %67 = vector.broadcast %cst_28 : f32 to vector<48x1xf32>
    %68 = arith.addf %64, %67 : vector<48x1xf32>
    %69 = math.rsqrt %68 : vector<48x1xf32>
    %70 = vector.broadcast %69 : vector<48x1xf32> to vector<48x32xf32>
    %71 = arith.mulf %66, %70 : vector<48x32xf32>
    %72 = vector.broadcast %52 : vector<1x32xf32> to vector<48x32xf32>
    %73 = arith.mulf %71, %72 : vector<48x32xf32>
    %74 = vector.broadcast %53 : vector<1x32xf32> to vector<48x32xf32>
    %75 = arith.addf %73, %74 : vector<48x32xf32>
    %c576 = arith.constant 576 : index
    %c0_29 = arith.constant 0 : index
    %76 = vector.load %arg1[%c576, %c0_29] : memref<1952x128xf32, #tpu.memory_space<vmem>>, vector<32x16xf32>
    %cst_30 = arith.constant dense<0.000000e+00> : vector<48x16xf32>
    %77 = tpu.matmul %75, %76, %cst_30 {dimension_numbers = #tpu.dot_dimension_numbers<[1], [0], [0], [1], [0, 0, 1, 1], [], []>} : vector<48x32xf32>, vector<32x16xf32>, vector<48x16xf32> -> vector<48x16xf32>
    %c608 = arith.constant 608 : index
    %c0_31 = arith.constant 0 : index
    %78 = vector.load %arg1[%c608, %c0_31] : memref<1952x128xf32, #tpu.memory_space<vmem>>, vector<1x16xf32>
    %79 = vector.broadcast %78 : vector<1x16xf32> to vector<48x16xf32>
    %80 = arith.addf %77, %79 : vector<48x16xf32>
    %cst_32 = arith.constant 5.000000e-01 : f32
    %81 = vector.broadcast %cst_32 : f32 to vector<48x16xf32>
    %82 = arith.mulf %81, %80 : vector<48x16xf32>
    %cst_33 = arith.constant 0.707106769 : f32
    %83 = vector.broadcast %cst_33 : f32 to vector<48x16xf32>
    %84 = arith.mulf %80, %83 : vector<48x16xf32>
    %85 = math.erf %84 : vector<48x16xf32>
    %cst_34 = arith.constant 1.000000e+00 : f32
    %86 = vector.broadcast %cst_34 : f32 to vector<48x16xf32>
    %87 = arith.addf %86, %85 : vector<48x16xf32>
    %88 = arith.mulf %82, %87 : vector<48x16xf32>
    %c616 = arith.constant 616 : index
    %c0_35 = arith.constant 0 : index
    %89 = vector.load %arg1[%c616, %c0_35] : memref<1952x128xf32, #tpu.memory_space<vmem>>, vector<16x32xf32>
    %cst_36 = arith.constant dense<0.000000e+00> : vector<48x32xf32>
    %90 = tpu.matmul %88, %89, %cst_36 {dimension_numbers = #tpu.dot_dimension_numbers<[1], [0], [0], [1], [0, 0, 1, 1], [], []>} : vector<48x16xf32>, vector<16x32xf32>, vector<48x32xf32> -> vector<48x32xf32>
    %c632 = arith.constant 632 : index
    %c0_37 = arith.constant 0 : index
    %91 = vector.load %arg1[%c632, %c0_37] : memref<1952x128xf32, #tpu.memory_space<vmem>>, vector<1x32xf32>
    %92 = vector.broadcast %91 : vector<1x32xf32> to vector<48x32xf32>
    %93 = arith.addf %90, %92 : vector<48x32xf32>
    %94 = arith.addf %51, %93 : vector<48x32xf32>
    %c640 = arith.constant 640 : index
    %c0_38 = arith.constant 0 : index
    %95 = vector.load %arg1[%c640, %c0_38] : memref<1952x128xf32, #tpu.memory_space<vmem>>, vector<1x32xf32>
    %c648 = arith.constant 648 : index
    %c0_39 = arith.constant 0 : index
    %96 = vector.load %arg1[%c648, %c0_39] : memref<1952x128xf32, #tpu.memory_space<vmem>>, vector<1x32xf32>
    %cst_40 = arith.constant dense<0.000000e+00> : vector<48xf32>
    %97 = vector.multi_reduction <add>, %94, %cst_40 [1] : vector<48x32xf32> to vector<48xf32>
    %98 = vector.shape_cast %97 : vector<48xf32> to vector<48x1xf32>
    %cst_41 = arith.constant 3.200000e+01 : f32
    %99 = vector.broadcast %cst_41 : f32 to vector<48x1xf32>
    %100 = arith.divf %98, %99 : vector<48x1xf32>
    %101 = arith.mulf %94, %94 : vector<48x32xf32>
    %cst_42 = arith.constant dense<0.000000e+00> : vector<48xf32>
    %102 = vector.multi_reduction <add>, %101, %cst_42 [1] : vector<48x32xf32> to vector<48xf32>
    %103 = vector.shape_cast %102 : vector<48xf32> to vector<48x1xf32>
    %cst_43 = arith.constant 3.200000e+01 : f32
    %104 = vector.broadcast %cst_43 : f32 to vector<48x1xf32>
    %105 = arith.divf %103, %104 : vector<48x1xf32>
    %106 = arith.mulf %100, %100 : vector<48x1xf32>
    %107 = arith.subf %105, %106 : vector<48x1xf32>
    %108 = vector.broadcast %100 : vector<48x1xf32> to vector<48x32xf32>
    %109 = arith.subf %94, %108 : vector<48x32xf32>
    %cst_44 = arith.constant 9.99999974E-6 : f32
    %110 = vector.broadcast %cst_44 : f32 to vector<48x1xf32>
    %111 = arith.addf %107, %110 : vector<48x1xf32>
    %112 = math.rsqrt %111 : vector<48x1xf32>
    %113 = vector.broadcast %112 : vector<48x1xf32> to vector<48x32xf32>
    %114 = arith.mulf %109, %113 : vector<48x32xf32>
    %115 = vector.broadcast %95 : vector<1x32xf32> to vector<48x32xf32>
    %116 = arith.mulf %114, %115 : vector<48x32xf32>
    %117 = vector.broadcast %96 : vector<1x32xf32> to vector<48x32xf32>
    %118 = arith.addf %116, %117 : vector<48x32xf32>
    %c656 = arith.constant 656 : index
    %c0_45 = arith.constant 0 : index
    %119 = vector.load %arg1[%c656, %c0_45] : memref<1952x128xf32, #tpu.memory_space<vmem>>, vector<192x48xf32>
    %cst_46 = arith.constant dense<0.000000e+00> : vector<192x32xf32>
    %120 = tpu.matmul %119, %118, %cst_46 {dimension_numbers = #tpu.dot_dimension_numbers<[1], [0], [0], [1], [0, 0, 1, 1], [], []>} : vector<192x48xf32>, vector<48x32xf32>, vector<192x32xf32> -> vector<192x32xf32>
    %c848 = arith.constant 848 : index
    %c0_47 = arith.constant 0 : index
    %121 = vector.load %arg1[%c848, %c0_47] : memref<1952x128xf32, #tpu.memory_space<vmem>>, vector<192x32xf32>
    %122 = arith.addf %120, %121 : vector<192x32xf32>
    %cst_48 = arith.constant 5.000000e-01 : f32
    %123 = vector.broadcast %cst_48 : f32 to vector<192x32xf32>
    %124 = arith.mulf %123, %122 : vector<192x32xf32>
    %cst_49 = arith.constant 0.707106769 : f32
    %125 = vector.broadcast %cst_49 : f32 to vector<192x32xf32>
    %126 = arith.mulf %122, %125 : vector<192x32xf32>
    %127 = math.erf %126 : vector<192x32xf32>
    %cst_50 = arith.constant 1.000000e+00 : f32
    %128 = vector.broadcast %cst_50 : f32 to vector<192x32xf32>
    %129 = arith.addf %128, %127 : vector<192x32xf32>
    %130 = arith.mulf %124, %129 : vector<192x32xf32>
    %c1040 = arith.constant 1040 : index
    %c0_51 = arith.constant 0 : index
    %131 = vector.load %arg1[%c1040, %c0_51] : memref<1952x128xf32, #tpu.memory_space<vmem>>, vector<48x128xf32>
    %132 = vector.extract_strided_slice %130 {offsets = [0, 0], sizes = [128, 32], strides = [1, 1]} : vector<192x32xf32> to vector<128x32xf32>
    %cst_52 = arith.constant dense<0.000000e+00> : vector<48x32xf32>
    %133 = tpu.matmul %131, %132, %cst_52 {dimension_numbers = #tpu.dot_dimension_numbers<[1], [0], [0], [1], [0, 0, 1, 1], [], []>} : vector<48x128xf32>, vector<128x32xf32>, vector<48x32xf32> -> vector<48x32xf32>
    %c1088 = arith.constant 1088 : index
    %c0_53 = arith.constant 0 : index
    %134 = vector.load %arg1[%c1088, %c0_53] : memref<1952x128xf32, #tpu.memory_space<vmem>>, vector<48x64xf32>
    %135 = vector.extract_strided_slice %130 {offsets = [128, 0], sizes = [64, 32], strides = [1, 1]} : vector<192x32xf32> to vector<64x32xf32>
    %cst_54 = arith.constant dense<0.000000e+00> : vector<48x32xf32>
    %136 = tpu.matmul %134, %135, %cst_54 {dimension_numbers = #tpu.dot_dimension_numbers<[1], [0], [0], [1], [0, 0, 1, 1], [], []>} : vector<48x64xf32>, vector<64x32xf32>, vector<48x32xf32> -> vector<48x32xf32>
    %137 = arith.addf %133, %136 : vector<48x32xf32>
    %c1136 = arith.constant 1136 : index
    %c0_55 = arith.constant 0 : index
    %138 = vector.load %arg1[%c1136, %c0_55] : memref<1952x128xf32, #tpu.memory_space<vmem>>, vector<48x32xf32>
    %139 = arith.addf %137, %138 : vector<48x32xf32>
    %140 = arith.addf %94, %139 : vector<48x32xf32>
    %c1184 = arith.constant 1184 : index
    %c0_56 = arith.constant 0 : index
    %141 = vector.load %arg1[%c1184, %c0_56] : memref<1952x128xf32, #tpu.memory_space<vmem>>, vector<1x32xf32>
    %c1192 = arith.constant 1192 : index
    %c0_57 = arith.constant 0 : index
    %142 = vector.load %arg1[%c1192, %c0_57] : memref<1952x128xf32, #tpu.memory_space<vmem>>, vector<1x32xf32>
    %cst_58 = arith.constant dense<0.000000e+00> : vector<48xf32>
    %143 = vector.multi_reduction <add>, %140, %cst_58 [1] : vector<48x32xf32> to vector<48xf32>
    %144 = vector.shape_cast %143 : vector<48xf32> to vector<48x1xf32>
    %cst_59 = arith.constant 3.200000e+01 : f32
    %145 = vector.broadcast %cst_59 : f32 to vector<48x1xf32>
    %146 = arith.divf %144, %145 : vector<48x1xf32>
    %147 = arith.mulf %140, %140 : vector<48x32xf32>
    %cst_60 = arith.constant dense<0.000000e+00> : vector<48xf32>
    %148 = vector.multi_reduction <add>, %147, %cst_60 [1] : vector<48x32xf32> to vector<48xf32>
    %149 = vector.shape_cast %148 : vector<48xf32> to vector<48x1xf32>
    %cst_61 = arith.constant 3.200000e+01 : f32
    %150 = vector.broadcast %cst_61 : f32 to vector<48x1xf32>
    %151 = arith.divf %149, %150 : vector<48x1xf32>
    %152 = arith.mulf %146, %146 : vector<48x1xf32>
    %153 = arith.subf %151, %152 : vector<48x1xf32>
    %154 = vector.broadcast %146 : vector<48x1xf32> to vector<48x32xf32>
    %155 = arith.subf %140, %154 : vector<48x32xf32>
    %cst_62 = arith.constant 9.99999974E-6 : f32
    %156 = vector.broadcast %cst_62 : f32 to vector<48x1xf32>
    %157 = arith.addf %153, %156 : vector<48x1xf32>
    %158 = math.rsqrt %157 : vector<48x1xf32>
    %159 = vector.broadcast %158 : vector<48x1xf32> to vector<48x32xf32>
    %160 = arith.mulf %155, %159 : vector<48x32xf32>
    %161 = vector.broadcast %141 : vector<1x32xf32> to vector<48x32xf32>
    %162 = arith.mulf %160, %161 : vector<48x32xf32>
    %163 = vector.broadcast %142 : vector<1x32xf32> to vector<48x32xf32>
    %164 = arith.addf %162, %163 : vector<48x32xf32>
    %c1200 = arith.constant 1200 : index
    %c0_63 = arith.constant 0 : index
    %165 = vector.load %arg1[%c1200, %c0_63] : memref<1952x128xf32, #tpu.memory_space<vmem>>, vector<32x16xf32>
    %cst_64 = arith.constant dense<0.000000e+00> : vector<48x16xf32>
    %166 = tpu.matmul %164, %165, %cst_64 {dimension_numbers = #tpu.dot_dimension_numbers<[1], [0], [0], [1], [0, 0, 1, 1], [], []>} : vector<48x32xf32>, vector<32x16xf32>, vector<48x16xf32> -> vector<48x16xf32>
    %c1232 = arith.constant 1232 : index
    %c0_65 = arith.constant 0 : index
    %167 = vector.load %arg1[%c1232, %c0_65] : memref<1952x128xf32, #tpu.memory_space<vmem>>, vector<1x16xf32>
    %168 = vector.broadcast %167 : vector<1x16xf32> to vector<48x16xf32>
    %169 = arith.addf %166, %168 : vector<48x16xf32>
    %cst_66 = arith.constant 5.000000e-01 : f32
    %170 = vector.broadcast %cst_66 : f32 to vector<48x16xf32>
    %171 = arith.mulf %170, %169 : vector<48x16xf32>
    %cst_67 = arith.constant 0.707106769 : f32
    %172 = vector.broadcast %cst_67 : f32 to vector<48x16xf32>
    %173 = arith.mulf %169, %172 : vector<48x16xf32>
    %174 = math.erf %173 : vector<48x16xf32>
    %cst_68 = arith.constant 1.000000e+00 : f32
    %175 = vector.broadcast %cst_68 : f32 to vector<48x16xf32>
    %176 = arith.addf %175, %174 : vector<48x16xf32>
    %177 = arith.mulf %171, %176 : vector<48x16xf32>
    %c1240 = arith.constant 1240 : index
    %c0_69 = arith.constant 0 : index
    %178 = vector.load %arg1[%c1240, %c0_69] : memref<1952x128xf32, #tpu.memory_space<vmem>>, vector<16x32xf32>
    %cst_70 = arith.constant dense<0.000000e+00> : vector<48x32xf32>
    %179 = tpu.matmul %177, %178, %cst_70 {dimension_numbers = #tpu.dot_dimension_numbers<[1], [0], [0], [1], [0, 0, 1, 1], [], []>} : vector<48x16xf32>, vector<16x32xf32>, vector<48x32xf32> -> vector<48x32xf32>
    %c1256 = arith.constant 1256 : index
    %c0_71 = arith.constant 0 : index
    %180 = vector.load %arg1[%c1256, %c0_71] : memref<1952x128xf32, #tpu.memory_space<vmem>>, vector<1x32xf32>
    %181 = vector.broadcast %180 : vector<1x32xf32> to vector<48x32xf32>
    %182 = arith.addf %179, %181 : vector<48x32xf32>
    %183 = arith.addf %140, %182 : vector<48x32xf32>
    %c1264 = arith.constant 1264 : index
    %c0_72 = arith.constant 0 : index
    %184 = vector.load %arg1[%c1264, %c0_72] : memref<1952x128xf32, #tpu.memory_space<vmem>>, vector<1x32xf32>
    %c1272 = arith.constant 1272 : index
    %c0_73 = arith.constant 0 : index
    %185 = vector.load %arg1[%c1272, %c0_73] : memref<1952x128xf32, #tpu.memory_space<vmem>>, vector<1x32xf32>
    %cst_74 = arith.constant dense<0.000000e+00> : vector<48xf32>
    %186 = vector.multi_reduction <add>, %183, %cst_74 [1] : vector<48x32xf32> to vector<48xf32>
    %187 = vector.shape_cast %186 : vector<48xf32> to vector<48x1xf32>
    %cst_75 = arith.constant 3.200000e+01 : f32
    %188 = vector.broadcast %cst_75 : f32 to vector<48x1xf32>
    %189 = arith.divf %187, %188 : vector<48x1xf32>
    %190 = arith.mulf %183, %183 : vector<48x32xf32>
    %cst_76 = arith.constant dense<0.000000e+00> : vector<48xf32>
    %191 = vector.multi_reduction <add>, %190, %cst_76 [1] : vector<48x32xf32> to vector<48xf32>
    %192 = vector.shape_cast %191 : vector<48xf32> to vector<48x1xf32>
    %cst_77 = arith.constant 3.200000e+01 : f32
    %193 = vector.broadcast %cst_77 : f32 to vector<48x1xf32>
    %194 = arith.divf %192, %193 : vector<48x1xf32>
    %195 = arith.mulf %189, %189 : vector<48x1xf32>
    %196 = arith.subf %194, %195 : vector<48x1xf32>
    %197 = vector.broadcast %189 : vector<48x1xf32> to vector<48x32xf32>
    %198 = arith.subf %183, %197 : vector<48x32xf32>
    %cst_78 = arith.constant 9.99999974E-6 : f32
    %199 = vector.broadcast %cst_78 : f32 to vector<48x1xf32>
    %200 = arith.addf %196, %199 : vector<48x1xf32>
    %201 = math.rsqrt %200 : vector<48x1xf32>
    %202 = vector.broadcast %201 : vector<48x1xf32> to vector<48x32xf32>
    %203 = arith.mulf %198, %202 : vector<48x32xf32>
    %204 = vector.broadcast %184 : vector<1x32xf32> to vector<48x32xf32>
    %205 = arith.mulf %203, %204 : vector<48x32xf32>
    %206 = vector.broadcast %185 : vector<1x32xf32> to vector<48x32xf32>
    %207 = arith.addf %205, %206 : vector<48x32xf32>
    %c0_79 = arith.constant 0 : index
    %c0_80 = arith.constant 0 : index
    %208 = vector.load %arg3[%c0_79, %c0_80] : memref<48x32xf32, #tpu.memory_space<vmem>>, vector<48x32xf32>
    tpu.vector_store %arg3[%c0_79, %c0_80], %207 {strides = array<i32>} : memref<48x32xf32, #tpu.memory_space<vmem>>, vector<48x32xf32>,
    %c0_81 = arith.constant 0 : index
    %c0_82 = arith.constant 0 : index
    %209 = vector.load %arg3[%c0_81, %c0_82] : memref<48x32xf32, #tpu.memory_space<vmem>>, vector<16x32xf32>
    %c1280 = arith.constant 1280 : index
    %c0_83 = arith.constant 0 : index
    %210 = vector.load %arg1[%c1280, %c0_83] : memref<1952x128xf32, #tpu.memory_space<vmem>>, vector<32x32xf32>
    %cst_84 = arith.constant dense<0.000000e+00> : vector<16x32xf32>
    %211 = tpu.matmul %209, %210, %cst_84 {dimension_numbers = #tpu.dot_dimension_numbers<[1], [0], [0], [1], [0, 0, 1, 1], [], []>} : vector<16x32xf32>, vector<32x32xf32>, vector<16x32xf32> -> vector<16x32xf32>
    %c16_85 = arith.constant 16 : index
    %c0_86 = arith.constant 0 : index
    %212 = vector.load %arg3[%c16_85, %c0_86] : memref<48x32xf32, #tpu.memory_space<vmem>>, vector<16x32xf32>
    %c1312 = arith.constant 1312 : index
    %c0_87 = arith.constant 0 : index
    %213 = vector.load %arg1[%c1312, %c0_87] : memref<1952x128xf32, #tpu.memory_space<vmem>>, vector<32x32xf32>
    %cst_88 = arith.constant dense<0.000000e+00> : vector<16x32xf32>
    %214 = tpu.matmul %212, %213, %cst_88 {dimension_numbers = #tpu.dot_dimension_numbers<[1], [0], [0], [1], [0, 0, 1, 1], [], []>} : vector<16x32xf32>, vector<32x32xf32>, vector<16x32xf32> -> vector<16x32xf32>
    %215 = arith.addf %211, %214 : vector<16x32xf32>
    %c32_89 = arith.constant 32 : index
    %c0_90 = arith.constant 0 : index
    %216 = vector.load %arg3[%c32_89, %c0_90] : memref<48x32xf32, #tpu.memory_space<vmem>>, vector<16x32xf32>
    %c1344 = arith.constant 1344 : index
    %c0_91 = arith.constant 0 : index
    %217 = vector.load %arg1[%c1344, %c0_91] : memref<1952x128xf32, #tpu.memory_space<vmem>>, vector<32x32xf32>
    %cst_92 = arith.constant dense<0.000000e+00> : vector<16x32xf32>
    %218 = tpu.matmul %216, %217, %cst_92 {dimension_numbers = #tpu.dot_dimension_numbers<[1], [0], [0], [1], [0, 0, 1, 1], [], []>} : vector<16x32xf32>, vector<32x32xf32>, vector<16x32xf32> -> vector<16x32xf32>
    %219 = arith.addf %215, %218 : vector<16x32xf32>
    %c1376 = arith.constant 1376 : index
    %c0_93 = arith.constant 0 : index
    %220 = vector.load %arg1[%c1376, %c0_93] : memref<1952x128xf32, #tpu.memory_space<vmem>>, vector<1x32xf32>
    %221 = vector.broadcast %220 : vector<1x32xf32> to vector<16x32xf32>
    %222 = arith.addf %219, %221 : vector<16x32xf32>
    %c1384 = arith.constant 1384 : index
    %c0_94 = arith.constant 0 : index
    %223 = vector.load %arg1[%c1384, %c0_94] : memref<1952x128xf32, #tpu.memory_space<vmem>>, vector<1x32xf32>
    %c1392 = arith.constant 1392 : index
    %c0_95 = arith.constant 0 : index
    %224 = vector.load %arg1[%c1392, %c0_95] : memref<1952x128xf32, #tpu.memory_space<vmem>>, vector<1x32xf32>
    %cst_96 = arith.constant dense<0.000000e+00> : vector<16xf32>
    %225 = vector.multi_reduction <add>, %222, %cst_96 [1] : vector<16x32xf32> to vector<16xf32>
    %226 = vector.shape_cast %225 : vector<16xf32> to vector<16x1xf32>
    %cst_97 = arith.constant 3.200000e+01 : f32
    %227 = vector.broadcast %cst_97 : f32 to vector<16x1xf32>
    %228 = arith.divf %226, %227 : vector<16x1xf32>
    %229 = arith.mulf %222, %222 : vector<16x32xf32>
    %cst_98 = arith.constant dense<0.000000e+00> : vector<16xf32>
    %230 = vector.multi_reduction <add>, %229, %cst_98 [1] : vector<16x32xf32> to vector<16xf32>
    %231 = vector.shape_cast %230 : vector<16xf32> to vector<16x1xf32>
    %cst_99 = arith.constant 3.200000e+01 : f32
    %232 = vector.broadcast %cst_99 : f32 to vector<16x1xf32>
    %233 = arith.divf %231, %232 : vector<16x1xf32>
    %234 = arith.mulf %228, %228 : vector<16x1xf32>
    %235 = arith.subf %233, %234 : vector<16x1xf32>
    %236 = vector.broadcast %228 : vector<16x1xf32> to vector<16x32xf32>
    %237 = arith.subf %222, %236 : vector<16x32xf32>
    %cst_100 = arith.constant 9.99999974E-6 : f32
    %238 = vector.broadcast %cst_100 : f32 to vector<16x1xf32>
    %239 = arith.addf %235, %238 : vector<16x1xf32>
    %240 = math.rsqrt %239 : vector<16x1xf32>
    %241 = vector.broadcast %240 : vector<16x1xf32> to vector<16x32xf32>
    %242 = arith.mulf %237, %241 : vector<16x32xf32>
    %243 = vector.broadcast %223 : vector<1x32xf32> to vector<16x32xf32>
    %244 = arith.mulf %242, %243 : vector<16x32xf32>
    %245 = vector.broadcast %224 : vector<1x32xf32> to vector<16x32xf32>
    %246 = arith.addf %244, %245 : vector<16x32xf32>
    %c1400 = arith.constant 1400 : index
    %c0_101 = arith.constant 0 : index
    %247 = vector.load %arg1[%c1400, %c0_101] : memref<1952x128xf32, #tpu.memory_space<vmem>>, vector<64x16xf32>
    %cst_102 = arith.constant dense<0.000000e+00> : vector<64x32xf32>
    %248 = tpu.matmul %247, %246, %cst_102 {dimension_numbers = #tpu.dot_dimension_numbers<[1], [0], [0], [1], [0, 0, 1, 1], [], []>} : vector<64x16xf32>, vector<16x32xf32>, vector<64x32xf32> -> vector<64x32xf32>
    %c1464 = arith.constant 1464 : index
    %c0_103 = arith.constant 0 : index
    %249 = vector.load %arg1[%c1464, %c0_103] : memref<1952x128xf32, #tpu.memory_space<vmem>>, vector<64x32xf32>
    %250 = arith.addf %248, %249 : vector<64x32xf32>
    %cst_104 = arith.constant 5.000000e-01 : f32
    %251 = vector.broadcast %cst_104 : f32 to vector<64x32xf32>
    %252 = arith.mulf %251, %250 : vector<64x32xf32>
    %cst_105 = arith.constant 0.707106769 : f32
    %253 = vector.broadcast %cst_105 : f32 to vector<64x32xf32>
    %254 = arith.mulf %250, %253 : vector<64x32xf32>
    %255 = math.erf %254 : vector<64x32xf32>
    %cst_106 = arith.constant 1.000000e+00 : f32
    %256 = vector.broadcast %cst_106 : f32 to vector<64x32xf32>
    %257 = arith.addf %256, %255 : vector<64x32xf32>
    %258 = arith.mulf %252, %257 : vector<64x32xf32>
    %c1528 = arith.constant 1528 : index
    %c0_107 = arith.constant 0 : index
    %259 = vector.load %arg1[%c1528, %c0_107] : memref<1952x128xf32, #tpu.memory_space<vmem>>, vector<16x64xf32>
    %cst_108 = arith.constant dense<0.000000e+00> : vector<16x32xf32>
    %260 = tpu.matmul %259, %258, %cst_108 {dimension_numbers = #tpu.dot_dimension_numbers<[1], [0], [0], [1], [0, 0, 1, 1], [], []>} : vector<16x64xf32>, vector<64x32xf32>, vector<16x32xf32> -> vector<16x32xf32>
    %c1544 = arith.constant 1544 : index
    %c0_109 = arith.constant 0 : index
    %261 = vector.load %arg1[%c1544, %c0_109] : memref<1952x128xf32, #tpu.memory_space<vmem>>, vector<16x32xf32>
    %262 = arith.addf %260, %261 : vector<16x32xf32>
    %263 = arith.addf %222, %262 : vector<16x32xf32>
    %c1560 = arith.constant 1560 : index
    %c0_110 = arith.constant 0 : index
    %264 = vector.load %arg1[%c1560, %c0_110] : memref<1952x128xf32, #tpu.memory_space<vmem>>, vector<1x32xf32>
    %c1568 = arith.constant 1568 : index
    %c0_111 = arith.constant 0 : index
    %265 = vector.load %arg1[%c1568, %c0_111] : memref<1952x128xf32, #tpu.memory_space<vmem>>, vector<1x32xf32>
    %cst_112 = arith.constant dense<0.000000e+00> : vector<16xf32>
    %266 = vector.multi_reduction <add>, %263, %cst_112 [1] : vector<16x32xf32> to vector<16xf32>
    %267 = vector.shape_cast %266 : vector<16xf32> to vector<16x1xf32>
    %cst_113 = arith.constant 3.200000e+01 : f32
    %268 = vector.broadcast %cst_113 : f32 to vector<16x1xf32>
    %269 = arith.divf %267, %268 : vector<16x1xf32>
    %270 = arith.mulf %263, %263 : vector<16x32xf32>
    %cst_114 = arith.constant dense<0.000000e+00> : vector<16xf32>
    %271 = vector.multi_reduction <add>, %270, %cst_114 [1] : vector<16x32xf32> to vector<16xf32>
    %272 = vector.shape_cast %271 : vector<16xf32> to vector<16x1xf32>
    %cst_115 = arith.constant 3.200000e+01 : f32
    %273 = vector.broadcast %cst_115 : f32 to vector<16x1xf32>
    %274 = arith.divf %272, %273 : vector<16x1xf32>
    %275 = arith.mulf %269, %269 : vector<16x1xf32>
    %276 = arith.subf %274, %275 : vector<16x1xf32>
    %277 = vector.broadcast %269 : vector<16x1xf32> to vector<16x32xf32>
    %278 = arith.subf %263, %277 : vector<16x32xf32>
    %cst_116 = arith.constant 9.99999974E-6 : f32
    %279 = vector.broadcast %cst_116 : f32 to vector<16x1xf32>
    %280 = arith.addf %276, %279 : vector<16x1xf32>
    %281 = math.rsqrt %280 : vector<16x1xf32>
    %282 = vector.broadcast %281 : vector<16x1xf32> to vector<16x32xf32>
    %283 = arith.mulf %278, %282 : vector<16x32xf32>
    %284 = vector.broadcast %264 : vector<1x32xf32> to vector<16x32xf32>
    %285 = arith.mulf %283, %284 : vector<16x32xf32>
    %286 = vector.broadcast %265 : vector<1x32xf32> to vector<16x32xf32>
    %287 = arith.addf %285, %286 : vector<16x32xf32>
    %c1576 = arith.constant 1576 : index
    %c0_117 = arith.constant 0 : index
    %288 = vector.load %arg1[%c1576, %c0_117] : memref<1952x128xf32, #tpu.memory_space<vmem>>, vector<32x16xf32>
    %cst_118 = arith.constant dense<0.000000e+00> : vector<16x16xf32>
    %289 = tpu.matmul %287, %288, %cst_118 {dimension_numbers = #tpu.dot_dimension_numbers<[1], [0], [0], [1], [0, 0, 1, 1], [], []>} : vector<16x32xf32>, vector<32x16xf32>, vector<16x16xf32> -> vector<16x16xf32>
    %c1608 = arith.constant 1608 : index
    %c0_119 = arith.constant 0 : index
    %290 = vector.load %arg1[%c1608, %c0_119] : memref<1952x128xf32, #tpu.memory_space<vmem>>, vector<1x16xf32>
    %291 = vector.broadcast %290 : vector<1x16xf32> to vector<16x16xf32>
    %292 = arith.addf %289, %291 : vector<16x16xf32>
    %cst_120 = arith.constant 5.000000e-01 : f32
    %293 = vector.broadcast %cst_120 : f32 to vector<16x16xf32>
    %294 = arith.mulf %293, %292 : vector<16x16xf32>
    %cst_121 = arith.constant 0.707106769 : f32
    %295 = vector.broadcast %cst_121 : f32 to vector<16x16xf32>
    %296 = arith.mulf %292, %295 : vector<16x16xf32>
    %297 = math.erf %296 : vector<16x16xf32>
    %cst_122 = arith.constant 1.000000e+00 : f32
    %298 = vector.broadcast %cst_122 : f32 to vector<16x16xf32>
    %299 = arith.addf %298, %297 : vector<16x16xf32>
    %300 = arith.mulf %294, %299 : vector<16x16xf32>
    %c1616 = arith.constant 1616 : index
    %c0_123 = arith.constant 0 : index
    %301 = vector.load %arg1[%c1616, %c0_123] : memref<1952x128xf32, #tpu.memory_space<vmem>>, vector<16x32xf32>
    %cst_124 = arith.constant dense<0.000000e+00> : vector<16x32xf32>
    %302 = tpu.matmul %300, %301, %cst_124 {dimension_numbers = #tpu.dot_dimension_numbers<[1], [0], [0], [1], [0, 0, 1, 1], [], []>} : vector<16x16xf32>, vector<16x32xf32>, vector<16x32xf32> -> vector<16x32xf32>
    %c1632 = arith.constant 1632 : index
    %c0_125 = arith.constant 0 : index
    %303 = vector.load %arg1[%c1632, %c0_125] : memref<1952x128xf32, #tpu.memory_space<vmem>>, vector<1x32xf32>
    %304 = vector.broadcast %303 : vector<1x32xf32> to vector<16x32xf32>
    %305 = arith.addf %302, %304 : vector<16x32xf32>
    %306 = arith.addf %263, %305 : vector<16x32xf32>
    %c1640 = arith.constant 1640 : index
    %c0_126 = arith.constant 0 : index
    %307 = vector.load %arg1[%c1640, %c0_126] : memref<1952x128xf32, #tpu.memory_space<vmem>>, vector<1x32xf32>
    %c1648 = arith.constant 1648 : index
    %c0_127 = arith.constant 0 : index
    %308 = vector.load %arg1[%c1648, %c0_127] : memref<1952x128xf32, #tpu.memory_space<vmem>>, vector<1x32xf32>
    %cst_128 = arith.constant dense<0.000000e+00> : vector<16xf32>
    %309 = vector.multi_reduction <add>, %306, %cst_128 [1] : vector<16x32xf32> to vector<16xf32>
    %310 = vector.shape_cast %309 : vector<16xf32> to vector<16x1xf32>
    %cst_129 = arith.constant 3.200000e+01 : f32
    %311 = vector.broadcast %cst_129 : f32 to vector<16x1xf32>
    %312 = arith.divf %310, %311 : vector<16x1xf32>
    %313 = arith.mulf %306, %306 : vector<16x32xf32>
    %cst_130 = arith.constant dense<0.000000e+00> : vector<16xf32>
    %314 = vector.multi_reduction <add>, %313, %cst_130 [1] : vector<16x32xf32> to vector<16xf32>
    %315 = vector.shape_cast %314 : vector<16xf32> to vector<16x1xf32>
    %cst_131 = arith.constant 3.200000e+01 : f32
    %316 = vector.broadcast %cst_131 : f32 to vector<16x1xf32>
    %317 = arith.divf %315, %316 : vector<16x1xf32>
    %318 = arith.mulf %312, %312 : vector<16x1xf32>
    %319 = arith.subf %317, %318 : vector<16x1xf32>
    %320 = vector.broadcast %312 : vector<16x1xf32> to vector<16x32xf32>
    %321 = arith.subf %306, %320 : vector<16x32xf32>
    %cst_132 = arith.constant 9.99999974E-6 : f32
    %322 = vector.broadcast %cst_132 : f32 to vector<16x1xf32>
    %323 = arith.addf %319, %322 : vector<16x1xf32>
    %324 = math.rsqrt %323 : vector<16x1xf32>
    %325 = vector.broadcast %324 : vector<16x1xf32> to vector<16x32xf32>
    %326 = arith.mulf %321, %325 : vector<16x32xf32>
    %327 = vector.broadcast %307 : vector<1x32xf32> to vector<16x32xf32>
    %328 = arith.mulf %326, %327 : vector<16x32xf32>
    %329 = vector.broadcast %308 : vector<1x32xf32> to vector<16x32xf32>
    %330 = arith.addf %328, %329 : vector<16x32xf32>
    %c1656 = arith.constant 1656 : index
    %c0_133 = arith.constant 0 : index
    %331 = vector.load %arg1[%c1656, %c0_133] : memref<1952x128xf32, #tpu.memory_space<vmem>>, vector<64x16xf32>
    %cst_134 = arith.constant dense<0.000000e+00> : vector<64x32xf32>
    %332 = tpu.matmul %331, %330, %cst_134 {dimension_numbers = #tpu.dot_dimension_numbers<[1], [0], [0], [1], [0, 0, 1, 1], [], []>} : vector<64x16xf32>, vector<16x32xf32>, vector<64x32xf32> -> vector<64x32xf32>
    %c1720 = arith.constant 1720 : index
    %c0_135 = arith.constant 0 : index
    %333 = vector.load %arg1[%c1720, %c0_135] : memref<1952x128xf32, #tpu.memory_space<vmem>>, vector<64x32xf32>
    %334 = arith.addf %332, %333 : vector<64x32xf32>
    %cst_136 = arith.constant 5.000000e-01 : f32
    %335 = vector.broadcast %cst_136 : f32 to vector<64x32xf32>
    %336 = arith.mulf %335, %334 : vector<64x32xf32>
    %cst_137 = arith.constant 0.707106769 : f32
    %337 = vector.broadcast %cst_137 : f32 to vector<64x32xf32>
    %338 = arith.mulf %334, %337 : vector<64x32xf32>
    %339 = math.erf %338 : vector<64x32xf32>
    %cst_138 = arith.constant 1.000000e+00 : f32
    %340 = vector.broadcast %cst_138 : f32 to vector<64x32xf32>
    %341 = arith.addf %340, %339 : vector<64x32xf32>
    %342 = arith.mulf %336, %341 : vector<64x32xf32>
    %c1784 = arith.constant 1784 : index
    %c0_139 = arith.constant 0 : index
    %343 = vector.load %arg1[%c1784, %c0_139] : memref<1952x128xf32, #tpu.memory_space<vmem>>, vector<16x64xf32>
    %cst_140 = arith.constant dense<0.000000e+00> : vector<16x32xf32>
    %344 = tpu.matmul %343, %342, %cst_140 {dimension_numbers = #tpu.dot_dimension_numbers<[1], [0], [0], [1], [0, 0, 1, 1], [], []>} : vector<16x64xf32>, vector<64x32xf32>, vector<16x32xf32> -> vector<16x32xf32>
    %c1800 = arith.constant 1800 : index
    %c0_141 = arith.constant 0 : index
    %345 = vector.load %arg1[%c1800, %c0_141] : memref<1952x128xf32, #tpu.memory_space<vmem>>, vector<16x32xf32>
    %346 = arith.addf %344, %345 : vector<16x32xf32>
    %347 = arith.addf %306, %346 : vector<16x32xf32>
    %c1816 = arith.constant 1816 : index
    %c0_142 = arith.constant 0 : index
    %348 = vector.load %arg1[%c1816, %c0_142] : memref<1952x128xf32, #tpu.memory_space<vmem>>, vector<1x32xf32>
    %c1824 = arith.constant 1824 : index
    %c0_143 = arith.constant 0 : index
    %349 = vector.load %arg1[%c1824, %c0_143] : memref<1952x128xf32, #tpu.memory_space<vmem>>, vector<1x32xf32>
    %cst_144 = arith.constant dense<0.000000e+00> : vector<16xf32>
    %350 = vector.multi_reduction <add>, %347, %cst_144 [1] : vector<16x32xf32> to vector<16xf32>
    %351 = vector.shape_cast %350 : vector<16xf32> to vector<16x1xf32>
    %cst_145 = arith.constant 3.200000e+01 : f32
    %352 = vector.broadcast %cst_145 : f32 to vector<16x1xf32>
    %353 = arith.divf %351, %352 : vector<16x1xf32>
    %354 = arith.mulf %347, %347 : vector<16x32xf32>
    %cst_146 = arith.constant dense<0.000000e+00> : vector<16xf32>
    %355 = vector.multi_reduction <add>, %354, %cst_146 [1] : vector<16x32xf32> to vector<16xf32>
    %356 = vector.shape_cast %355 : vector<16xf32> to vector<16x1xf32>
    %cst_147 = arith.constant 3.200000e+01 : f32
    %357 = vector.broadcast %cst_147 : f32 to vector<16x1xf32>
    %358 = arith.divf %356, %357 : vector<16x1xf32>
    %359 = arith.mulf %353, %353 : vector<16x1xf32>
    %360 = arith.subf %358, %359 : vector<16x1xf32>
    %361 = vector.broadcast %353 : vector<16x1xf32> to vector<16x32xf32>
    %362 = arith.subf %347, %361 : vector<16x32xf32>
    %cst_148 = arith.constant 9.99999974E-6 : f32
    %363 = vector.broadcast %cst_148 : f32 to vector<16x1xf32>
    %364 = arith.addf %360, %363 : vector<16x1xf32>
    %365 = math.rsqrt %364 : vector<16x1xf32>
    %366 = vector.broadcast %365 : vector<16x1xf32> to vector<16x32xf32>
    %367 = arith.mulf %362, %366 : vector<16x32xf32>
    %368 = vector.broadcast %348 : vector<1x32xf32> to vector<16x32xf32>
    %369 = arith.mulf %367, %368 : vector<16x32xf32>
    %370 = vector.broadcast %349 : vector<1x32xf32> to vector<16x32xf32>
    %371 = arith.addf %369, %370 : vector<16x32xf32>
    %c1832 = arith.constant 1832 : index
    %c0_149 = arith.constant 0 : index
    %372 = vector.load %arg1[%c1832, %c0_149] : memref<1952x128xf32, #tpu.memory_space<vmem>>, vector<32x16xf32>
    %cst_150 = arith.constant dense<0.000000e+00> : vector<16x16xf32>
    %373 = tpu.matmul %371, %372, %cst_150 {dimension_numbers = #tpu.dot_dimension_numbers<[1], [0], [0], [1], [0, 0, 1, 1], [], []>} : vector<16x32xf32>, vector<32x16xf32>, vector<16x16xf32> -> vector<16x16xf32>
    %c1864 = arith.constant 1864 : index
    %c0_151 = arith.constant 0 : index
    %374 = vector.load %arg1[%c1864, %c0_151] : memref<1952x128xf32, #tpu.memory_space<vmem>>, vector<1x16xf32>
    %375 = vector.broadcast %374 : vector<1x16xf32> to vector<16x16xf32>
    %376 = arith.addf %373, %375 : vector<16x16xf32>
    %cst_152 = arith.constant 5.000000e-01 : f32
    %377 = vector.broadcast %cst_152 : f32 to vector<16x16xf32>
    %378 = arith.mulf %377, %376 : vector<16x16xf32>
    %cst_153 = arith.constant 0.707106769 : f32
    %379 = vector.broadcast %cst_153 : f32 to vector<16x16xf32>
    %380 = arith.mulf %376, %379 : vector<16x16xf32>
    %381 = math.erf %380 : vector<16x16xf32>
    %cst_154 = arith.constant 1.000000e+00 : f32
    %382 = vector.broadcast %cst_154 : f32 to vector<16x16xf32>
    %383 = arith.addf %382, %381 : vector<16x16xf32>
    %384 = arith.mulf %378, %383 : vector<16x16xf32>
    %c1872 = arith.constant 1872 : index
    %c0_155 = arith.constant 0 : index
    %385 = vector.load %arg1[%c1872, %c0_155] : memref<1952x128xf32, #tpu.memory_space<vmem>>, vector<16x32xf32>
    %cst_156 = arith.constant dense<0.000000e+00> : vector<16x32xf32>
    %386 = tpu.matmul %384, %385, %cst_156 {dimension_numbers = #tpu.dot_dimension_numbers<[1], [0], [0], [1], [0, 0, 1, 1], [], []>} : vector<16x16xf32>, vector<16x32xf32>, vector<16x32xf32> -> vector<16x32xf32>
    %c1888 = arith.constant 1888 : index
    %c0_157 = arith.constant 0 : index
    %387 = vector.load %arg1[%c1888, %c0_157] : memref<1952x128xf32, #tpu.memory_space<vmem>>, vector<1x32xf32>
    %388 = vector.broadcast %387 : vector<1x32xf32> to vector<16x32xf32>
    %389 = arith.addf %386, %388 : vector<16x32xf32>
    %390 = arith.addf %347, %389 : vector<16x32xf32>
    %c1896 = arith.constant 1896 : index
    %c0_158 = arith.constant 0 : index
    %391 = vector.load %arg1[%c1896, %c0_158] : memref<1952x128xf32, #tpu.memory_space<vmem>>, vector<1x32xf32>
    %c1904 = arith.constant 1904 : index
    %c0_159 = arith.constant 0 : index
    %392 = vector.load %arg1[%c1904, %c0_159] : memref<1952x128xf32, #tpu.memory_space<vmem>>, vector<1x32xf32>
    %cst_160 = arith.constant dense<0.000000e+00> : vector<16xf32>
    %393 = vector.multi_reduction <add>, %390, %cst_160 [1] : vector<16x32xf32> to vector<16xf32>
    %394 = vector.shape_cast %393 : vector<16xf32> to vector<16x1xf32>
    %cst_161 = arith.constant 3.200000e+01 : f32
    %395 = vector.broadcast %cst_161 : f32 to vector<16x1xf32>
    %396 = arith.divf %394, %395 : vector<16x1xf32>
    %397 = arith.mulf %390, %390 : vector<16x32xf32>
    %cst_162 = arith.constant dense<0.000000e+00> : vector<16xf32>
    %398 = vector.multi_reduction <add>, %397, %cst_162 [1] : vector<16x32xf32> to vector<16xf32>
    %399 = vector.shape_cast %398 : vector<16xf32> to vector<16x1xf32>
    %cst_163 = arith.constant 3.200000e+01 : f32
    %400 = vector.broadcast %cst_163 : f32 to vector<16x1xf32>
    %401 = arith.divf %399, %400 : vector<16x1xf32>
    %402 = arith.mulf %396, %396 : vector<16x1xf32>
    %403 = arith.subf %401, %402 : vector<16x1xf32>
    %404 = vector.broadcast %396 : vector<16x1xf32> to vector<16x32xf32>
    %405 = arith.subf %390, %404 : vector<16x32xf32>
    %cst_164 = arith.constant 9.99999974E-6 : f32
    %406 = vector.broadcast %cst_164 : f32 to vector<16x1xf32>
    %407 = arith.addf %403, %406 : vector<16x1xf32>
    %408 = math.rsqrt %407 : vector<16x1xf32>
    %409 = vector.broadcast %408 : vector<16x1xf32> to vector<16x32xf32>
    %410 = arith.mulf %405, %409 : vector<16x32xf32>
    %411 = vector.broadcast %391 : vector<1x32xf32> to vector<16x32xf32>
    %412 = arith.mulf %410, %411 : vector<16x32xf32>
    %413 = vector.broadcast %392 : vector<1x32xf32> to vector<16x32xf32>
    %414 = arith.addf %412, %413 : vector<16x32xf32>
    %c1912 = arith.constant 1912 : index
    %c0_165 = arith.constant 0 : index
    %415 = vector.load %arg1[%c1912, %c0_165] : memref<1952x128xf32, #tpu.memory_space<vmem>>, vector<32x128xf32>
    %cst_166 = arith.constant dense<0.000000e+00> : vector<16x128xf32>
    %416 = tpu.matmul %414, %415, %cst_166 {dimension_numbers = #tpu.dot_dimension_numbers<[1], [0], [0], [1], [0, 0, 1, 1], [], []>} : vector<16x32xf32>, vector<32x128xf32>, vector<16x128xf32> -> vector<16x128xf32>
    %c1944 = arith.constant 1944 : index
    %c0_167 = arith.constant 0 : index
    %417 = vector.load %arg1[%c1944, %c0_167] : memref<1952x128xf32, #tpu.memory_space<vmem>>, vector<1x128xf32>
    %418 = vector.broadcast %417 : vector<1x128xf32> to vector<16x128xf32>
    %419 = arith.addf %416, %418 : vector<16x128xf32>
    %cst_168 = arith.constant 0.000000e+00 : f32
    %420 = vector.broadcast %cst_168 : f32 to vector<16x128xf32>
    %421 = arith.maximumf %419, %420 : vector<16x128xf32>
    %422 = math.absf %419 : vector<16x128xf32>
    %cst_169 = arith.constant 0.000000e+00 : f32
    %423 = vector.broadcast %cst_169 : f32 to vector<16x128xf32>
    %424 = arith.subf %423, %422 : vector<16x128xf32>
    %425 = math.exp %424 : vector<16x128xf32>
    %426 = math.log1p %425 : vector<16x128xf32>
    %427 = arith.addf %421, %426 : vector<16x128xf32>
    %cst_170 = arith.constant 2.000000e+01 : f32
    %428 = vector.broadcast %cst_170 : f32 to vector<16x128xf32>
    %429 = arith.cmpf ogt, %419, %428 : vector<16x128xf32>
    %430 = arith.select %429, %419, %427 : vector<16x128xi1>, vector<16x128xf32>
    %c0_171 = arith.constant 0 : index
    %c0_172 = arith.constant 0 : index
    %431 = vector.load %arg2[%c0_171, %c0_172] : memref<16x128xf32, #tpu.memory_space<vmem>>, vector<16x128xf32>
    tpu.vector_store %arg2[%c0_171, %c0_172], %430 {strides = array<i32>} : memref<16x128xf32, #tpu.memory_space<vmem>>, vector<16x128xf32>,
    return
  }
}

module attributes {stable_mosaic.version = 11 : i64} {
  func.func @policy_kernel(%arg0: memref<48x4xf32, #tpu.memory_space<vmem>>, %arg1: memref<1952x128xf32, #tpu.memory_space<vmem>>, %arg2: memref<16x128xf32, #tpu.memory_space<vmem>>, %arg3: memref<48x32xf32, #tpu.memory_space<vmem>>) attributes {dimension_semantics = [], scalar_prefetch = 0 : i64, scratch_operands = 1 : i64, tpu.core_type = #tpu.core_type<tc>} {
    %c0 = arith.constant 0 : index
    %c0_0 = arith.constant 0 : index
    %0 = vector.load %arg0[%c0, %c0_0] : memref<48x4xf32, #tpu.memory_space<vmem>>, vector<48x4xf32>
    %c0_1 = arith.constant 0 : index
    %c0_2 = arith.constant 0 : index
    %1 = vector.load %arg1[%c0_1, %c0_2] : memref<1952x128xf32, #tpu.memory_space<vmem>>, vector<4x32xf32>
    %cst = arith.constant dense<0.000000e+00> : vector<48x32xf32>
    %2 = tpu.matmul %0, %1, %cst {dimension_numbers = #tpu.dot_dimension_numbers<[1], [0], [0], [1], [0, 0, 1, 1], [], []>} : vector<48x4xf32>, vector<4x32xf32>, vector<48x32xf32> -> vector<48x32xf32>
    %c8 = arith.constant 8 : index
    %c0_3 = arith.constant 0 : index
    %3 = vector.load %arg1[%c8, %c0_3] : memref<1952x128xf32, #tpu.memory_space<vmem>>, vector<1x32xf32>
    %4 = vector.broadcast %3 : vector<1x32xf32> to vector<48x32xf32>
    %5 = arith.addf %2, %4 : vector<48x32xf32>
    %c16 = arith.constant 16 : index
    %c0_4 = arith.constant 0 : index
    %6 = vector.load %arg1[%c16, %c0_4] : memref<1952x128xf32, #tpu.memory_space<vmem>>, vector<1x32xf32>
    %c24 = arith.constant 24 : index
    %c0_5 = arith.constant 0 : index
    %7 = vector.load %arg1[%c24, %c0_5] : memref<1952x128xf32, #tpu.memory_space<vmem>>, vector<1x32xf32>
    %cst_6 = arith.constant dense<0.000000e+00> : vector<48xf32>
    %8 = vector.multi_reduction <add>, %5, %cst_6 [1] : vector<48x32xf32> to vector<48xf32>
    %9 = vector.shape_cast %8 : vector<48xf32> to vector<48x1xf32>
    %cst_7 = arith.constant 3.200000e+01 : f32
    %10 = vector.broadcast %cst_7 : f32 to vector<48x1xf32>
    %11 = arith.divf %9, %10 : vector<48x1xf32>
    %12 = arith.mulf %5, %5 : vector<48x32xf32>
    %cst_8 = arith.constant dense<0.000000e+00> : vector<48xf32>
    %13 = vector.multi_reduction <add>, %12, %cst_8 [1] : vector<48x32xf32> to vector<48xf32>
    %14 = vector.shape_cast %13 : vector<48xf32> to vector<48x1xf32>
    %cst_9 = arith.constant 3.200000e+01 : f32
    %15 = vector.broadcast %cst_9 : f32 to vector<48x1xf32>
    %16 = arith.divf %14, %15 : vector<48x1xf32>
    %17 = arith.mulf %11, %11 : vector<48x1xf32>
    %18 = arith.subf %16, %17 : vector<48x1xf32>
    %19 = vector.broadcast %11 : vector<48x1xf32> to vector<48x32xf32>
    %20 = arith.subf %5, %19 : vector<48x32xf32>
    %cst_10 = arith.constant 9.99999974E-6 : f32
    %21 = vector.broadcast %cst_10 : f32 to vector<48x1xf32>
    %22 = arith.addf %18, %21 : vector<48x1xf32>
    %23 = math.rsqrt %22 : vector<48x1xf32>
    %24 = vector.broadcast %23 : vector<48x1xf32> to vector<48x32xf32>
    %25 = arith.mulf %20, %24 : vector<48x32xf32>
    %26 = vector.broadcast %6 : vector<1x32xf32> to vector<48x32xf32>
    %27 = arith.mulf %25, %26 : vector<48x32xf32>
    %28 = vector.broadcast %7 : vector<1x32xf32> to vector<48x32xf32>
    %29 = arith.addf %27, %28 : vector<48x32xf32>
    %c32 = arith.constant 32 : index
    %c0_11 = arith.constant 0 : index
    %30 = vector.load %arg1[%c32, %c0_11] : memref<1952x128xf32, #tpu.memory_space<vmem>>, vector<192x48xf32>
    %cst_12 = arith.constant dense<0.000000e+00> : vector<192x32xf32>
    %31 = tpu.matmul %30, %29, %cst_12 {dimension_numbers = #tpu.dot_dimension_numbers<[1], [0], [0], [1], [0, 0, 1, 1], [], []>} : vector<192x48xf32>, vector<48x32xf32>, vector<192x32xf32> -> vector<192x32xf32>
    %c224 = arith.constant 224 : index
    %c0_13 = arith.constant 0 : index
    %32 = vector.load %arg1[%c224, %c0_13] : memref<1952x128xf32, #tpu.memory_space<vmem>>, vector<192x32xf32>
    %33 = arith.addf %31, %32 : vector<192x32xf32>
    %cst_14 = arith.constant 5.000000e-01 : f32
    %34 = vector.broadcast %cst_14 : f32 to vector<192x32xf32>
    %35 = arith.mulf %34, %33 : vector<192x32xf32>
    %cst_15 = arith.constant 4.471500e-02 : f32
    %36 = vector.broadcast %cst_15 : f32 to vector<192x32xf32>
    %37 = arith.mulf %36, %33 : vector<192x32xf32>
    %38 = arith.mulf %37, %33 : vector<192x32xf32>
    %39 = arith.mulf %38, %33 : vector<192x32xf32>
    %40 = arith.addf %33, %39 : vector<192x32xf32>
    %cst_16 = arith.constant 0.797884583 : f32
    %41 = vector.broadcast %cst_16 : f32 to vector<192x32xf32>
    %42 = arith.mulf %41, %40 : vector<192x32xf32>
    %43 = math.tanh %42 : vector<192x32xf32>
    %cst_17 = arith.constant 1.000000e+00 : f32
    %44 = vector.broadcast %cst_17 : f32 to vector<192x32xf32>
    %45 = arith.addf %44, %43 : vector<192x32xf32>
    %46 = arith.mulf %35, %45 : vector<192x32xf32>
    %c416 = arith.constant 416 : index
    %c0_18 = arith.constant 0 : index
    %47 = vector.load %arg1[%c416, %c0_18] : memref<1952x128xf32, #tpu.memory_space<vmem>>, vector<48x128xf32>
    %48 = vector.extract_strided_slice %46 {offsets = [0, 0], sizes = [128, 32], strides = [1, 1]} : vector<192x32xf32> to vector<128x32xf32>
    %cst_19 = arith.constant dense<0.000000e+00> : vector<48x32xf32>
    %49 = tpu.matmul %47, %48, %cst_19 {dimension_numbers = #tpu.dot_dimension_numbers<[1], [0], [0], [1], [0, 0, 1, 1], [], []>} : vector<48x128xf32>, vector<128x32xf32>, vector<48x32xf32> -> vector<48x32xf32>
    %c464 = arith.constant 464 : index
    %c0_20 = arith.constant 0 : index
    %50 = vector.load %arg1[%c464, %c0_20] : memref<1952x128xf32, #tpu.memory_space<vmem>>, vector<48x64xf32>
    %51 = vector.extract_strided_slice %46 {offsets = [128, 0], sizes = [64, 32], strides = [1, 1]} : vector<192x32xf32> to vector<64x32xf32>
    %cst_21 = arith.constant dense<0.000000e+00> : vector<48x32xf32>
    %52 = tpu.matmul %50, %51, %cst_21 {dimension_numbers = #tpu.dot_dimension_numbers<[1], [0], [0], [1], [0, 0, 1, 1], [], []>} : vector<48x64xf32>, vector<64x32xf32>, vector<48x32xf32> -> vector<48x32xf32>
    %53 = arith.addf %49, %52 : vector<48x32xf32>
    %c512 = arith.constant 512 : index
    %c0_22 = arith.constant 0 : index
    %54 = vector.load %arg1[%c512, %c0_22] : memref<1952x128xf32, #tpu.memory_space<vmem>>, vector<48x32xf32>
    %55 = arith.addf %53, %54 : vector<48x32xf32>
    %56 = arith.addf %5, %55 : vector<48x32xf32>
    %c560 = arith.constant 560 : index
    %c0_23 = arith.constant 0 : index
    %57 = vector.load %arg1[%c560, %c0_23] : memref<1952x128xf32, #tpu.memory_space<vmem>>, vector<1x32xf32>
    %c568 = arith.constant 568 : index
    %c0_24 = arith.constant 0 : index
    %58 = vector.load %arg1[%c568, %c0_24] : memref<1952x128xf32, #tpu.memory_space<vmem>>, vector<1x32xf32>
    %cst_25 = arith.constant dense<0.000000e+00> : vector<48xf32>
    %59 = vector.multi_reduction <add>, %56, %cst_25 [1] : vector<48x32xf32> to vector<48xf32>
    %60 = vector.shape_cast %59 : vector<48xf32> to vector<48x1xf32>
    %cst_26 = arith.constant 3.200000e+01 : f32
    %61 = vector.broadcast %cst_26 : f32 to vector<48x1xf32>
    %62 = arith.divf %60, %61 : vector<48x1xf32>
    %63 = arith.mulf %56, %56 : vector<48x32xf32>
    %cst_27 = arith.constant dense<0.000000e+00> : vector<48xf32>
    %64 = vector.multi_reduction <add>, %63, %cst_27 [1] : vector<48x32xf32> to vector<48xf32>
    %65 = vector.shape_cast %64 : vector<48xf32> to vector<48x1xf32>
    %cst_28 = arith.constant 3.200000e+01 : f32
    %66 = vector.broadcast %cst_28 : f32 to vector<48x1xf32>
    %67 = arith.divf %65, %66 : vector<48x1xf32>
    %68 = arith.mulf %62, %62 : vector<48x1xf32>
    %69 = arith.subf %67, %68 : vector<48x1xf32>
    %70 = vector.broadcast %62 : vector<48x1xf32> to vector<48x32xf32>
    %71 = arith.subf %56, %70 : vector<48x32xf32>
    %cst_29 = arith.constant 9.99999974E-6 : f32
    %72 = vector.broadcast %cst_29 : f32 to vector<48x1xf32>
    %73 = arith.addf %69, %72 : vector<48x1xf32>
    %74 = math.rsqrt %73 : vector<48x1xf32>
    %75 = vector.broadcast %74 : vector<48x1xf32> to vector<48x32xf32>
    %76 = arith.mulf %71, %75 : vector<48x32xf32>
    %77 = vector.broadcast %57 : vector<1x32xf32> to vector<48x32xf32>
    %78 = arith.mulf %76, %77 : vector<48x32xf32>
    %79 = vector.broadcast %58 : vector<1x32xf32> to vector<48x32xf32>
    %80 = arith.addf %78, %79 : vector<48x32xf32>
    %c576 = arith.constant 576 : index
    %c0_30 = arith.constant 0 : index
    %81 = vector.load %arg1[%c576, %c0_30] : memref<1952x128xf32, #tpu.memory_space<vmem>>, vector<32x16xf32>
    %cst_31 = arith.constant dense<0.000000e+00> : vector<48x16xf32>
    %82 = tpu.matmul %80, %81, %cst_31 {dimension_numbers = #tpu.dot_dimension_numbers<[1], [0], [0], [1], [0, 0, 1, 1], [], []>} : vector<48x32xf32>, vector<32x16xf32>, vector<48x16xf32> -> vector<48x16xf32>
    %c608 = arith.constant 608 : index
    %c0_32 = arith.constant 0 : index
    %83 = vector.load %arg1[%c608, %c0_32] : memref<1952x128xf32, #tpu.memory_space<vmem>>, vector<1x16xf32>
    %84 = vector.broadcast %83 : vector<1x16xf32> to vector<48x16xf32>
    %85 = arith.addf %82, %84 : vector<48x16xf32>
    %cst_33 = arith.constant 5.000000e-01 : f32
    %86 = vector.broadcast %cst_33 : f32 to vector<48x16xf32>
    %87 = arith.mulf %86, %85 : vector<48x16xf32>
    %cst_34 = arith.constant 4.471500e-02 : f32
    %88 = vector.broadcast %cst_34 : f32 to vector<48x16xf32>
    %89 = arith.mulf %88, %85 : vector<48x16xf32>
    %90 = arith.mulf %89, %85 : vector<48x16xf32>
    %91 = arith.mulf %90, %85 : vector<48x16xf32>
    %92 = arith.addf %85, %91 : vector<48x16xf32>
    %cst_35 = arith.constant 0.797884583 : f32
    %93 = vector.broadcast %cst_35 : f32 to vector<48x16xf32>
    %94 = arith.mulf %93, %92 : vector<48x16xf32>
    %95 = math.tanh %94 : vector<48x16xf32>
    %cst_36 = arith.constant 1.000000e+00 : f32
    %96 = vector.broadcast %cst_36 : f32 to vector<48x16xf32>
    %97 = arith.addf %96, %95 : vector<48x16xf32>
    %98 = arith.mulf %87, %97 : vector<48x16xf32>
    %c616 = arith.constant 616 : index
    %c0_37 = arith.constant 0 : index
    %99 = vector.load %arg1[%c616, %c0_37] : memref<1952x128xf32, #tpu.memory_space<vmem>>, vector<16x32xf32>
    %cst_38 = arith.constant dense<0.000000e+00> : vector<48x32xf32>
    %100 = tpu.matmul %98, %99, %cst_38 {dimension_numbers = #tpu.dot_dimension_numbers<[1], [0], [0], [1], [0, 0, 1, 1], [], []>} : vector<48x16xf32>, vector<16x32xf32>, vector<48x32xf32> -> vector<48x32xf32>
    %c632 = arith.constant 632 : index
    %c0_39 = arith.constant 0 : index
    %101 = vector.load %arg1[%c632, %c0_39] : memref<1952x128xf32, #tpu.memory_space<vmem>>, vector<1x32xf32>
    %102 = vector.broadcast %101 : vector<1x32xf32> to vector<48x32xf32>
    %103 = arith.addf %100, %102 : vector<48x32xf32>
    %104 = arith.addf %56, %103 : vector<48x32xf32>
    %c640 = arith.constant 640 : index
    %c0_40 = arith.constant 0 : index
    %105 = vector.load %arg1[%c640, %c0_40] : memref<1952x128xf32, #tpu.memory_space<vmem>>, vector<1x32xf32>
    %c648 = arith.constant 648 : index
    %c0_41 = arith.constant 0 : index
    %106 = vector.load %arg1[%c648, %c0_41] : memref<1952x128xf32, #tpu.memory_space<vmem>>, vector<1x32xf32>
    %cst_42 = arith.constant dense<0.000000e+00> : vector<48xf32>
    %107 = vector.multi_reduction <add>, %104, %cst_42 [1] : vector<48x32xf32> to vector<48xf32>
    %108 = vector.shape_cast %107 : vector<48xf32> to vector<48x1xf32>
    %cst_43 = arith.constant 3.200000e+01 : f32
    %109 = vector.broadcast %cst_43 : f32 to vector<48x1xf32>
    %110 = arith.divf %108, %109 : vector<48x1xf32>
    %111 = arith.mulf %104, %104 : vector<48x32xf32>
    %cst_44 = arith.constant dense<0.000000e+00> : vector<48xf32>
    %112 = vector.multi_reduction <add>, %111, %cst_44 [1] : vector<48x32xf32> to vector<48xf32>
    %113 = vector.shape_cast %112 : vector<48xf32> to vector<48x1xf32>
    %cst_45 = arith.constant 3.200000e+01 : f32
    %114 = vector.broadcast %cst_45 : f32 to vector<48x1xf32>
    %115 = arith.divf %113, %114 : vector<48x1xf32>
    %116 = arith.mulf %110, %110 : vector<48x1xf32>
    %117 = arith.subf %115, %116 : vector<48x1xf32>
    %118 = vector.broadcast %110 : vector<48x1xf32> to vector<48x32xf32>
    %119 = arith.subf %104, %118 : vector<48x32xf32>
    %cst_46 = arith.constant 9.99999974E-6 : f32
    %120 = vector.broadcast %cst_46 : f32 to vector<48x1xf32>
    %121 = arith.addf %117, %120 : vector<48x1xf32>
    %122 = math.rsqrt %121 : vector<48x1xf32>
    %123 = vector.broadcast %122 : vector<48x1xf32> to vector<48x32xf32>
    %124 = arith.mulf %119, %123 : vector<48x32xf32>
    %125 = vector.broadcast %105 : vector<1x32xf32> to vector<48x32xf32>
    %126 = arith.mulf %124, %125 : vector<48x32xf32>
    %127 = vector.broadcast %106 : vector<1x32xf32> to vector<48x32xf32>
    %128 = arith.addf %126, %127 : vector<48x32xf32>
    %c656 = arith.constant 656 : index
    %c0_47 = arith.constant 0 : index
    %129 = vector.load %arg1[%c656, %c0_47] : memref<1952x128xf32, #tpu.memory_space<vmem>>, vector<192x48xf32>
    %cst_48 = arith.constant dense<0.000000e+00> : vector<192x32xf32>
    %130 = tpu.matmul %129, %128, %cst_48 {dimension_numbers = #tpu.dot_dimension_numbers<[1], [0], [0], [1], [0, 0, 1, 1], [], []>} : vector<192x48xf32>, vector<48x32xf32>, vector<192x32xf32> -> vector<192x32xf32>
    %c848 = arith.constant 848 : index
    %c0_49 = arith.constant 0 : index
    %131 = vector.load %arg1[%c848, %c0_49] : memref<1952x128xf32, #tpu.memory_space<vmem>>, vector<192x32xf32>
    %132 = arith.addf %130, %131 : vector<192x32xf32>
    %cst_50 = arith.constant 5.000000e-01 : f32
    %133 = vector.broadcast %cst_50 : f32 to vector<192x32xf32>
    %134 = arith.mulf %133, %132 : vector<192x32xf32>
    %cst_51 = arith.constant 4.471500e-02 : f32
    %135 = vector.broadcast %cst_51 : f32 to vector<192x32xf32>
    %136 = arith.mulf %135, %132 : vector<192x32xf32>
    %137 = arith.mulf %136, %132 : vector<192x32xf32>
    %138 = arith.mulf %137, %132 : vector<192x32xf32>
    %139 = arith.addf %132, %138 : vector<192x32xf32>
    %cst_52 = arith.constant 0.797884583 : f32
    %140 = vector.broadcast %cst_52 : f32 to vector<192x32xf32>
    %141 = arith.mulf %140, %139 : vector<192x32xf32>
    %142 = math.tanh %141 : vector<192x32xf32>
    %cst_53 = arith.constant 1.000000e+00 : f32
    %143 = vector.broadcast %cst_53 : f32 to vector<192x32xf32>
    %144 = arith.addf %143, %142 : vector<192x32xf32>
    %145 = arith.mulf %134, %144 : vector<192x32xf32>
    %c1040 = arith.constant 1040 : index
    %c0_54 = arith.constant 0 : index
    %146 = vector.load %arg1[%c1040, %c0_54] : memref<1952x128xf32, #tpu.memory_space<vmem>>, vector<48x128xf32>
    %147 = vector.extract_strided_slice %145 {offsets = [0, 0], sizes = [128, 32], strides = [1, 1]} : vector<192x32xf32> to vector<128x32xf32>
    %cst_55 = arith.constant dense<0.000000e+00> : vector<48x32xf32>
    %148 = tpu.matmul %146, %147, %cst_55 {dimension_numbers = #tpu.dot_dimension_numbers<[1], [0], [0], [1], [0, 0, 1, 1], [], []>} : vector<48x128xf32>, vector<128x32xf32>, vector<48x32xf32> -> vector<48x32xf32>
    %c1088 = arith.constant 1088 : index
    %c0_56 = arith.constant 0 : index
    %149 = vector.load %arg1[%c1088, %c0_56] : memref<1952x128xf32, #tpu.memory_space<vmem>>, vector<48x64xf32>
    %150 = vector.extract_strided_slice %145 {offsets = [128, 0], sizes = [64, 32], strides = [1, 1]} : vector<192x32xf32> to vector<64x32xf32>
    %cst_57 = arith.constant dense<0.000000e+00> : vector<48x32xf32>
    %151 = tpu.matmul %149, %150, %cst_57 {dimension_numbers = #tpu.dot_dimension_numbers<[1], [0], [0], [1], [0, 0, 1, 1], [], []>} : vector<48x64xf32>, vector<64x32xf32>, vector<48x32xf32> -> vector<48x32xf32>
    %152 = arith.addf %148, %151 : vector<48x32xf32>
    %c1136 = arith.constant 1136 : index
    %c0_58 = arith.constant 0 : index
    %153 = vector.load %arg1[%c1136, %c0_58] : memref<1952x128xf32, #tpu.memory_space<vmem>>, vector<48x32xf32>
    %154 = arith.addf %152, %153 : vector<48x32xf32>
    %155 = arith.addf %104, %154 : vector<48x32xf32>
    %c1184 = arith.constant 1184 : index
    %c0_59 = arith.constant 0 : index
    %156 = vector.load %arg1[%c1184, %c0_59] : memref<1952x128xf32, #tpu.memory_space<vmem>>, vector<1x32xf32>
    %c1192 = arith.constant 1192 : index
    %c0_60 = arith.constant 0 : index
    %157 = vector.load %arg1[%c1192, %c0_60] : memref<1952x128xf32, #tpu.memory_space<vmem>>, vector<1x32xf32>
    %cst_61 = arith.constant dense<0.000000e+00> : vector<48xf32>
    %158 = vector.multi_reduction <add>, %155, %cst_61 [1] : vector<48x32xf32> to vector<48xf32>
    %159 = vector.shape_cast %158 : vector<48xf32> to vector<48x1xf32>
    %cst_62 = arith.constant 3.200000e+01 : f32
    %160 = vector.broadcast %cst_62 : f32 to vector<48x1xf32>
    %161 = arith.divf %159, %160 : vector<48x1xf32>
    %162 = arith.mulf %155, %155 : vector<48x32xf32>
    %cst_63 = arith.constant dense<0.000000e+00> : vector<48xf32>
    %163 = vector.multi_reduction <add>, %162, %cst_63 [1] : vector<48x32xf32> to vector<48xf32>
    %164 = vector.shape_cast %163 : vector<48xf32> to vector<48x1xf32>
    %cst_64 = arith.constant 3.200000e+01 : f32
    %165 = vector.broadcast %cst_64 : f32 to vector<48x1xf32>
    %166 = arith.divf %164, %165 : vector<48x1xf32>
    %167 = arith.mulf %161, %161 : vector<48x1xf32>
    %168 = arith.subf %166, %167 : vector<48x1xf32>
    %169 = vector.broadcast %161 : vector<48x1xf32> to vector<48x32xf32>
    %170 = arith.subf %155, %169 : vector<48x32xf32>
    %cst_65 = arith.constant 9.99999974E-6 : f32
    %171 = vector.broadcast %cst_65 : f32 to vector<48x1xf32>
    %172 = arith.addf %168, %171 : vector<48x1xf32>
    %173 = math.rsqrt %172 : vector<48x1xf32>
    %174 = vector.broadcast %173 : vector<48x1xf32> to vector<48x32xf32>
    %175 = arith.mulf %170, %174 : vector<48x32xf32>
    %176 = vector.broadcast %156 : vector<1x32xf32> to vector<48x32xf32>
    %177 = arith.mulf %175, %176 : vector<48x32xf32>
    %178 = vector.broadcast %157 : vector<1x32xf32> to vector<48x32xf32>
    %179 = arith.addf %177, %178 : vector<48x32xf32>
    %c1200 = arith.constant 1200 : index
    %c0_66 = arith.constant 0 : index
    %180 = vector.load %arg1[%c1200, %c0_66] : memref<1952x128xf32, #tpu.memory_space<vmem>>, vector<32x16xf32>
    %cst_67 = arith.constant dense<0.000000e+00> : vector<48x16xf32>
    %181 = tpu.matmul %179, %180, %cst_67 {dimension_numbers = #tpu.dot_dimension_numbers<[1], [0], [0], [1], [0, 0, 1, 1], [], []>} : vector<48x32xf32>, vector<32x16xf32>, vector<48x16xf32> -> vector<48x16xf32>
    %c1232 = arith.constant 1232 : index
    %c0_68 = arith.constant 0 : index
    %182 = vector.load %arg1[%c1232, %c0_68] : memref<1952x128xf32, #tpu.memory_space<vmem>>, vector<1x16xf32>
    %183 = vector.broadcast %182 : vector<1x16xf32> to vector<48x16xf32>
    %184 = arith.addf %181, %183 : vector<48x16xf32>
    %cst_69 = arith.constant 5.000000e-01 : f32
    %185 = vector.broadcast %cst_69 : f32 to vector<48x16xf32>
    %186 = arith.mulf %185, %184 : vector<48x16xf32>
    %cst_70 = arith.constant 4.471500e-02 : f32
    %187 = vector.broadcast %cst_70 : f32 to vector<48x16xf32>
    %188 = arith.mulf %187, %184 : vector<48x16xf32>
    %189 = arith.mulf %188, %184 : vector<48x16xf32>
    %190 = arith.mulf %189, %184 : vector<48x16xf32>
    %191 = arith.addf %184, %190 : vector<48x16xf32>
    %cst_71 = arith.constant 0.797884583 : f32
    %192 = vector.broadcast %cst_71 : f32 to vector<48x16xf32>
    %193 = arith.mulf %192, %191 : vector<48x16xf32>
    %194 = math.tanh %193 : vector<48x16xf32>
    %cst_72 = arith.constant 1.000000e+00 : f32
    %195 = vector.broadcast %cst_72 : f32 to vector<48x16xf32>
    %196 = arith.addf %195, %194 : vector<48x16xf32>
    %197 = arith.mulf %186, %196 : vector<48x16xf32>
    %c1240 = arith.constant 1240 : index
    %c0_73 = arith.constant 0 : index
    %198 = vector.load %arg1[%c1240, %c0_73] : memref<1952x128xf32, #tpu.memory_space<vmem>>, vector<16x32xf32>
    %cst_74 = arith.constant dense<0.000000e+00> : vector<48x32xf32>
    %199 = tpu.matmul %197, %198, %cst_74 {dimension_numbers = #tpu.dot_dimension_numbers<[1], [0], [0], [1], [0, 0, 1, 1], [], []>} : vector<48x16xf32>, vector<16x32xf32>, vector<48x32xf32> -> vector<48x32xf32>
    %c1256 = arith.constant 1256 : index
    %c0_75 = arith.constant 0 : index
    %200 = vector.load %arg1[%c1256, %c0_75] : memref<1952x128xf32, #tpu.memory_space<vmem>>, vector<1x32xf32>
    %201 = vector.broadcast %200 : vector<1x32xf32> to vector<48x32xf32>
    %202 = arith.addf %199, %201 : vector<48x32xf32>
    %203 = arith.addf %155, %202 : vector<48x32xf32>
    %c1264 = arith.constant 1264 : index
    %c0_76 = arith.constant 0 : index
    %204 = vector.load %arg1[%c1264, %c0_76] : memref<1952x128xf32, #tpu.memory_space<vmem>>, vector<1x32xf32>
    %c1272 = arith.constant 1272 : index
    %c0_77 = arith.constant 0 : index
    %205 = vector.load %arg1[%c1272, %c0_77] : memref<1952x128xf32, #tpu.memory_space<vmem>>, vector<1x32xf32>
    %cst_78 = arith.constant dense<0.000000e+00> : vector<48xf32>
    %206 = vector.multi_reduction <add>, %203, %cst_78 [1] : vector<48x32xf32> to vector<48xf32>
    %207 = vector.shape_cast %206 : vector<48xf32> to vector<48x1xf32>
    %cst_79 = arith.constant 3.200000e+01 : f32
    %208 = vector.broadcast %cst_79 : f32 to vector<48x1xf32>
    %209 = arith.divf %207, %208 : vector<48x1xf32>
    %210 = arith.mulf %203, %203 : vector<48x32xf32>
    %cst_80 = arith.constant dense<0.000000e+00> : vector<48xf32>
    %211 = vector.multi_reduction <add>, %210, %cst_80 [1] : vector<48x32xf32> to vector<48xf32>
    %212 = vector.shape_cast %211 : vector<48xf32> to vector<48x1xf32>
    %cst_81 = arith.constant 3.200000e+01 : f32
    %213 = vector.broadcast %cst_81 : f32 to vector<48x1xf32>
    %214 = arith.divf %212, %213 : vector<48x1xf32>
    %215 = arith.mulf %209, %209 : vector<48x1xf32>
    %216 = arith.subf %214, %215 : vector<48x1xf32>
    %217 = vector.broadcast %209 : vector<48x1xf32> to vector<48x32xf32>
    %218 = arith.subf %203, %217 : vector<48x32xf32>
    %cst_82 = arith.constant 9.99999974E-6 : f32
    %219 = vector.broadcast %cst_82 : f32 to vector<48x1xf32>
    %220 = arith.addf %216, %219 : vector<48x1xf32>
    %221 = math.rsqrt %220 : vector<48x1xf32>
    %222 = vector.broadcast %221 : vector<48x1xf32> to vector<48x32xf32>
    %223 = arith.mulf %218, %222 : vector<48x32xf32>
    %224 = vector.broadcast %204 : vector<1x32xf32> to vector<48x32xf32>
    %225 = arith.mulf %223, %224 : vector<48x32xf32>
    %226 = vector.broadcast %205 : vector<1x32xf32> to vector<48x32xf32>
    %227 = arith.addf %225, %226 : vector<48x32xf32>
    %c0_83 = arith.constant 0 : index
    %c0_84 = arith.constant 0 : index
    %228 = vector.load %arg3[%c0_83, %c0_84] : memref<48x32xf32, #tpu.memory_space<vmem>>, vector<48x32xf32>
    tpu.vector_store %arg3[%c0_83, %c0_84], %227 {strides = array<i32>} : memref<48x32xf32, #tpu.memory_space<vmem>>, vector<48x32xf32>,
    %c0_85 = arith.constant 0 : index
    %c0_86 = arith.constant 0 : index
    %229 = vector.load %arg3[%c0_85, %c0_86] : memref<48x32xf32, #tpu.memory_space<vmem>>, vector<16x32xf32>
    %c1280 = arith.constant 1280 : index
    %c0_87 = arith.constant 0 : index
    %230 = vector.load %arg1[%c1280, %c0_87] : memref<1952x128xf32, #tpu.memory_space<vmem>>, vector<32x32xf32>
    %cst_88 = arith.constant dense<0.000000e+00> : vector<16x32xf32>
    %231 = tpu.matmul %229, %230, %cst_88 {dimension_numbers = #tpu.dot_dimension_numbers<[1], [0], [0], [1], [0, 0, 1, 1], [], []>} : vector<16x32xf32>, vector<32x32xf32>, vector<16x32xf32> -> vector<16x32xf32>
    %c16_89 = arith.constant 16 : index
    %c0_90 = arith.constant 0 : index
    %232 = vector.load %arg3[%c16_89, %c0_90] : memref<48x32xf32, #tpu.memory_space<vmem>>, vector<16x32xf32>
    %c1312 = arith.constant 1312 : index
    %c0_91 = arith.constant 0 : index
    %233 = vector.load %arg1[%c1312, %c0_91] : memref<1952x128xf32, #tpu.memory_space<vmem>>, vector<32x32xf32>
    %cst_92 = arith.constant dense<0.000000e+00> : vector<16x32xf32>
    %234 = tpu.matmul %232, %233, %cst_92 {dimension_numbers = #tpu.dot_dimension_numbers<[1], [0], [0], [1], [0, 0, 1, 1], [], []>} : vector<16x32xf32>, vector<32x32xf32>, vector<16x32xf32> -> vector<16x32xf32>
    %235 = arith.addf %231, %234 : vector<16x32xf32>
    %c32_93 = arith.constant 32 : index
    %c0_94 = arith.constant 0 : index
    %236 = vector.load %arg3[%c32_93, %c0_94] : memref<48x32xf32, #tpu.memory_space<vmem>>, vector<16x32xf32>
    %c1344 = arith.constant 1344 : index
    %c0_95 = arith.constant 0 : index
    %237 = vector.load %arg1[%c1344, %c0_95] : memref<1952x128xf32, #tpu.memory_space<vmem>>, vector<32x32xf32>
    %cst_96 = arith.constant dense<0.000000e+00> : vector<16x32xf32>
    %238 = tpu.matmul %236, %237, %cst_96 {dimension_numbers = #tpu.dot_dimension_numbers<[1], [0], [0], [1], [0, 0, 1, 1], [], []>} : vector<16x32xf32>, vector<32x32xf32>, vector<16x32xf32> -> vector<16x32xf32>
    %239 = arith.addf %235, %238 : vector<16x32xf32>
    %c1376 = arith.constant 1376 : index
    %c0_97 = arith.constant 0 : index
    %240 = vector.load %arg1[%c1376, %c0_97] : memref<1952x128xf32, #tpu.memory_space<vmem>>, vector<1x32xf32>
    %241 = vector.broadcast %240 : vector<1x32xf32> to vector<16x32xf32>
    %242 = arith.addf %239, %241 : vector<16x32xf32>
    %c1384 = arith.constant 1384 : index
    %c0_98 = arith.constant 0 : index
    %243 = vector.load %arg1[%c1384, %c0_98] : memref<1952x128xf32, #tpu.memory_space<vmem>>, vector<1x32xf32>
    %c1392 = arith.constant 1392 : index
    %c0_99 = arith.constant 0 : index
    %244 = vector.load %arg1[%c1392, %c0_99] : memref<1952x128xf32, #tpu.memory_space<vmem>>, vector<1x32xf32>
    %cst_100 = arith.constant dense<0.000000e+00> : vector<16xf32>
    %245 = vector.multi_reduction <add>, %242, %cst_100 [1] : vector<16x32xf32> to vector<16xf32>
    %246 = vector.shape_cast %245 : vector<16xf32> to vector<16x1xf32>
    %cst_101 = arith.constant 3.200000e+01 : f32
    %247 = vector.broadcast %cst_101 : f32 to vector<16x1xf32>
    %248 = arith.divf %246, %247 : vector<16x1xf32>
    %249 = arith.mulf %242, %242 : vector<16x32xf32>
    %cst_102 = arith.constant dense<0.000000e+00> : vector<16xf32>
    %250 = vector.multi_reduction <add>, %249, %cst_102 [1] : vector<16x32xf32> to vector<16xf32>
    %251 = vector.shape_cast %250 : vector<16xf32> to vector<16x1xf32>
    %cst_103 = arith.constant 3.200000e+01 : f32
    %252 = vector.broadcast %cst_103 : f32 to vector<16x1xf32>
    %253 = arith.divf %251, %252 : vector<16x1xf32>
    %254 = arith.mulf %248, %248 : vector<16x1xf32>
    %255 = arith.subf %253, %254 : vector<16x1xf32>
    %256 = vector.broadcast %248 : vector<16x1xf32> to vector<16x32xf32>
    %257 = arith.subf %242, %256 : vector<16x32xf32>
    %cst_104 = arith.constant 9.99999974E-6 : f32
    %258 = vector.broadcast %cst_104 : f32 to vector<16x1xf32>
    %259 = arith.addf %255, %258 : vector<16x1xf32>
    %260 = math.rsqrt %259 : vector<16x1xf32>
    %261 = vector.broadcast %260 : vector<16x1xf32> to vector<16x32xf32>
    %262 = arith.mulf %257, %261 : vector<16x32xf32>
    %263 = vector.broadcast %243 : vector<1x32xf32> to vector<16x32xf32>
    %264 = arith.mulf %262, %263 : vector<16x32xf32>
    %265 = vector.broadcast %244 : vector<1x32xf32> to vector<16x32xf32>
    %266 = arith.addf %264, %265 : vector<16x32xf32>
    %c1400 = arith.constant 1400 : index
    %c0_105 = arith.constant 0 : index
    %267 = vector.load %arg1[%c1400, %c0_105] : memref<1952x128xf32, #tpu.memory_space<vmem>>, vector<64x16xf32>
    %cst_106 = arith.constant dense<0.000000e+00> : vector<64x32xf32>
    %268 = tpu.matmul %267, %266, %cst_106 {dimension_numbers = #tpu.dot_dimension_numbers<[1], [0], [0], [1], [0, 0, 1, 1], [], []>} : vector<64x16xf32>, vector<16x32xf32>, vector<64x32xf32> -> vector<64x32xf32>
    %c1464 = arith.constant 1464 : index
    %c0_107 = arith.constant 0 : index
    %269 = vector.load %arg1[%c1464, %c0_107] : memref<1952x128xf32, #tpu.memory_space<vmem>>, vector<64x32xf32>
    %270 = arith.addf %268, %269 : vector<64x32xf32>
    %cst_108 = arith.constant 5.000000e-01 : f32
    %271 = vector.broadcast %cst_108 : f32 to vector<64x32xf32>
    %272 = arith.mulf %271, %270 : vector<64x32xf32>
    %cst_109 = arith.constant 4.471500e-02 : f32
    %273 = vector.broadcast %cst_109 : f32 to vector<64x32xf32>
    %274 = arith.mulf %273, %270 : vector<64x32xf32>
    %275 = arith.mulf %274, %270 : vector<64x32xf32>
    %276 = arith.mulf %275, %270 : vector<64x32xf32>
    %277 = arith.addf %270, %276 : vector<64x32xf32>
    %cst_110 = arith.constant 0.797884583 : f32
    %278 = vector.broadcast %cst_110 : f32 to vector<64x32xf32>
    %279 = arith.mulf %278, %277 : vector<64x32xf32>
    %280 = math.tanh %279 : vector<64x32xf32>
    %cst_111 = arith.constant 1.000000e+00 : f32
    %281 = vector.broadcast %cst_111 : f32 to vector<64x32xf32>
    %282 = arith.addf %281, %280 : vector<64x32xf32>
    %283 = arith.mulf %272, %282 : vector<64x32xf32>
    %c1528 = arith.constant 1528 : index
    %c0_112 = arith.constant 0 : index
    %284 = vector.load %arg1[%c1528, %c0_112] : memref<1952x128xf32, #tpu.memory_space<vmem>>, vector<16x64xf32>
    %cst_113 = arith.constant dense<0.000000e+00> : vector<16x32xf32>
    %285 = tpu.matmul %284, %283, %cst_113 {dimension_numbers = #tpu.dot_dimension_numbers<[1], [0], [0], [1], [0, 0, 1, 1], [], []>} : vector<16x64xf32>, vector<64x32xf32>, vector<16x32xf32> -> vector<16x32xf32>
    %c1544 = arith.constant 1544 : index
    %c0_114 = arith.constant 0 : index
    %286 = vector.load %arg1[%c1544, %c0_114] : memref<1952x128xf32, #tpu.memory_space<vmem>>, vector<16x32xf32>
    %287 = arith.addf %285, %286 : vector<16x32xf32>
    %288 = arith.addf %242, %287 : vector<16x32xf32>
    %c1560 = arith.constant 1560 : index
    %c0_115 = arith.constant 0 : index
    %289 = vector.load %arg1[%c1560, %c0_115] : memref<1952x128xf32, #tpu.memory_space<vmem>>, vector<1x32xf32>
    %c1568 = arith.constant 1568 : index
    %c0_116 = arith.constant 0 : index
    %290 = vector.load %arg1[%c1568, %c0_116] : memref<1952x128xf32, #tpu.memory_space<vmem>>, vector<1x32xf32>
    %cst_117 = arith.constant dense<0.000000e+00> : vector<16xf32>
    %291 = vector.multi_reduction <add>, %288, %cst_117 [1] : vector<16x32xf32> to vector<16xf32>
    %292 = vector.shape_cast %291 : vector<16xf32> to vector<16x1xf32>
    %cst_118 = arith.constant 3.200000e+01 : f32
    %293 = vector.broadcast %cst_118 : f32 to vector<16x1xf32>
    %294 = arith.divf %292, %293 : vector<16x1xf32>
    %295 = arith.mulf %288, %288 : vector<16x32xf32>
    %cst_119 = arith.constant dense<0.000000e+00> : vector<16xf32>
    %296 = vector.multi_reduction <add>, %295, %cst_119 [1] : vector<16x32xf32> to vector<16xf32>
    %297 = vector.shape_cast %296 : vector<16xf32> to vector<16x1xf32>
    %cst_120 = arith.constant 3.200000e+01 : f32
    %298 = vector.broadcast %cst_120 : f32 to vector<16x1xf32>
    %299 = arith.divf %297, %298 : vector<16x1xf32>
    %300 = arith.mulf %294, %294 : vector<16x1xf32>
    %301 = arith.subf %299, %300 : vector<16x1xf32>
    %302 = vector.broadcast %294 : vector<16x1xf32> to vector<16x32xf32>
    %303 = arith.subf %288, %302 : vector<16x32xf32>
    %cst_121 = arith.constant 9.99999974E-6 : f32
    %304 = vector.broadcast %cst_121 : f32 to vector<16x1xf32>
    %305 = arith.addf %301, %304 : vector<16x1xf32>
    %306 = math.rsqrt %305 : vector<16x1xf32>
    %307 = vector.broadcast %306 : vector<16x1xf32> to vector<16x32xf32>
    %308 = arith.mulf %303, %307 : vector<16x32xf32>
    %309 = vector.broadcast %289 : vector<1x32xf32> to vector<16x32xf32>
    %310 = arith.mulf %308, %309 : vector<16x32xf32>
    %311 = vector.broadcast %290 : vector<1x32xf32> to vector<16x32xf32>
    %312 = arith.addf %310, %311 : vector<16x32xf32>
    %c1576 = arith.constant 1576 : index
    %c0_122 = arith.constant 0 : index
    %313 = vector.load %arg1[%c1576, %c0_122] : memref<1952x128xf32, #tpu.memory_space<vmem>>, vector<32x16xf32>
    %cst_123 = arith.constant dense<0.000000e+00> : vector<16x16xf32>
    %314 = tpu.matmul %312, %313, %cst_123 {dimension_numbers = #tpu.dot_dimension_numbers<[1], [0], [0], [1], [0, 0, 1, 1], [], []>} : vector<16x32xf32>, vector<32x16xf32>, vector<16x16xf32> -> vector<16x16xf32>
    %c1608 = arith.constant 1608 : index
    %c0_124 = arith.constant 0 : index
    %315 = vector.load %arg1[%c1608, %c0_124] : memref<1952x128xf32, #tpu.memory_space<vmem>>, vector<1x16xf32>
    %316 = vector.broadcast %315 : vector<1x16xf32> to vector<16x16xf32>
    %317 = arith.addf %314, %316 : vector<16x16xf32>
    %cst_125 = arith.constant 5.000000e-01 : f32
    %318 = vector.broadcast %cst_125 : f32 to vector<16x16xf32>
    %319 = arith.mulf %318, %317 : vector<16x16xf32>
    %cst_126 = arith.constant 4.471500e-02 : f32
    %320 = vector.broadcast %cst_126 : f32 to vector<16x16xf32>
    %321 = arith.mulf %320, %317 : vector<16x16xf32>
    %322 = arith.mulf %321, %317 : vector<16x16xf32>
    %323 = arith.mulf %322, %317 : vector<16x16xf32>
    %324 = arith.addf %317, %323 : vector<16x16xf32>
    %cst_127 = arith.constant 0.797884583 : f32
    %325 = vector.broadcast %cst_127 : f32 to vector<16x16xf32>
    %326 = arith.mulf %325, %324 : vector<16x16xf32>
    %327 = math.tanh %326 : vector<16x16xf32>
    %cst_128 = arith.constant 1.000000e+00 : f32
    %328 = vector.broadcast %cst_128 : f32 to vector<16x16xf32>
    %329 = arith.addf %328, %327 : vector<16x16xf32>
    %330 = arith.mulf %319, %329 : vector<16x16xf32>
    %c1616 = arith.constant 1616 : index
    %c0_129 = arith.constant 0 : index
    %331 = vector.load %arg1[%c1616, %c0_129] : memref<1952x128xf32, #tpu.memory_space<vmem>>, vector<16x32xf32>
    %cst_130 = arith.constant dense<0.000000e+00> : vector<16x32xf32>
    %332 = tpu.matmul %330, %331, %cst_130 {dimension_numbers = #tpu.dot_dimension_numbers<[1], [0], [0], [1], [0, 0, 1, 1], [], []>} : vector<16x16xf32>, vector<16x32xf32>, vector<16x32xf32> -> vector<16x32xf32>
    %c1632 = arith.constant 1632 : index
    %c0_131 = arith.constant 0 : index
    %333 = vector.load %arg1[%c1632, %c0_131] : memref<1952x128xf32, #tpu.memory_space<vmem>>, vector<1x32xf32>
    %334 = vector.broadcast %333 : vector<1x32xf32> to vector<16x32xf32>
    %335 = arith.addf %332, %334 : vector<16x32xf32>
    %336 = arith.addf %288, %335 : vector<16x32xf32>
    %c1640 = arith.constant 1640 : index
    %c0_132 = arith.constant 0 : index
    %337 = vector.load %arg1[%c1640, %c0_132] : memref<1952x128xf32, #tpu.memory_space<vmem>>, vector<1x32xf32>
    %c1648 = arith.constant 1648 : index
    %c0_133 = arith.constant 0 : index
    %338 = vector.load %arg1[%c1648, %c0_133] : memref<1952x128xf32, #tpu.memory_space<vmem>>, vector<1x32xf32>
    %cst_134 = arith.constant dense<0.000000e+00> : vector<16xf32>
    %339 = vector.multi_reduction <add>, %336, %cst_134 [1] : vector<16x32xf32> to vector<16xf32>
    %340 = vector.shape_cast %339 : vector<16xf32> to vector<16x1xf32>
    %cst_135 = arith.constant 3.200000e+01 : f32
    %341 = vector.broadcast %cst_135 : f32 to vector<16x1xf32>
    %342 = arith.divf %340, %341 : vector<16x1xf32>
    %343 = arith.mulf %336, %336 : vector<16x32xf32>
    %cst_136 = arith.constant dense<0.000000e+00> : vector<16xf32>
    %344 = vector.multi_reduction <add>, %343, %cst_136 [1] : vector<16x32xf32> to vector<16xf32>
    %345 = vector.shape_cast %344 : vector<16xf32> to vector<16x1xf32>
    %cst_137 = arith.constant 3.200000e+01 : f32
    %346 = vector.broadcast %cst_137 : f32 to vector<16x1xf32>
    %347 = arith.divf %345, %346 : vector<16x1xf32>
    %348 = arith.mulf %342, %342 : vector<16x1xf32>
    %349 = arith.subf %347, %348 : vector<16x1xf32>
    %350 = vector.broadcast %342 : vector<16x1xf32> to vector<16x32xf32>
    %351 = arith.subf %336, %350 : vector<16x32xf32>
    %cst_138 = arith.constant 9.99999974E-6 : f32
    %352 = vector.broadcast %cst_138 : f32 to vector<16x1xf32>
    %353 = arith.addf %349, %352 : vector<16x1xf32>
    %354 = math.rsqrt %353 : vector<16x1xf32>
    %355 = vector.broadcast %354 : vector<16x1xf32> to vector<16x32xf32>
    %356 = arith.mulf %351, %355 : vector<16x32xf32>
    %357 = vector.broadcast %337 : vector<1x32xf32> to vector<16x32xf32>
    %358 = arith.mulf %356, %357 : vector<16x32xf32>
    %359 = vector.broadcast %338 : vector<1x32xf32> to vector<16x32xf32>
    %360 = arith.addf %358, %359 : vector<16x32xf32>
    %c1656 = arith.constant 1656 : index
    %c0_139 = arith.constant 0 : index
    %361 = vector.load %arg1[%c1656, %c0_139] : memref<1952x128xf32, #tpu.memory_space<vmem>>, vector<64x16xf32>
    %cst_140 = arith.constant dense<0.000000e+00> : vector<64x32xf32>
    %362 = tpu.matmul %361, %360, %cst_140 {dimension_numbers = #tpu.dot_dimension_numbers<[1], [0], [0], [1], [0, 0, 1, 1], [], []>} : vector<64x16xf32>, vector<16x32xf32>, vector<64x32xf32> -> vector<64x32xf32>
    %c1720 = arith.constant 1720 : index
    %c0_141 = arith.constant 0 : index
    %363 = vector.load %arg1[%c1720, %c0_141] : memref<1952x128xf32, #tpu.memory_space<vmem>>, vector<64x32xf32>
    %364 = arith.addf %362, %363 : vector<64x32xf32>
    %cst_142 = arith.constant 5.000000e-01 : f32
    %365 = vector.broadcast %cst_142 : f32 to vector<64x32xf32>
    %366 = arith.mulf %365, %364 : vector<64x32xf32>
    %cst_143 = arith.constant 4.471500e-02 : f32
    %367 = vector.broadcast %cst_143 : f32 to vector<64x32xf32>
    %368 = arith.mulf %367, %364 : vector<64x32xf32>
    %369 = arith.mulf %368, %364 : vector<64x32xf32>
    %370 = arith.mulf %369, %364 : vector<64x32xf32>
    %371 = arith.addf %364, %370 : vector<64x32xf32>
    %cst_144 = arith.constant 0.797884583 : f32
    %372 = vector.broadcast %cst_144 : f32 to vector<64x32xf32>
    %373 = arith.mulf %372, %371 : vector<64x32xf32>
    %374 = math.tanh %373 : vector<64x32xf32>
    %cst_145 = arith.constant 1.000000e+00 : f32
    %375 = vector.broadcast %cst_145 : f32 to vector<64x32xf32>
    %376 = arith.addf %375, %374 : vector<64x32xf32>
    %377 = arith.mulf %366, %376 : vector<64x32xf32>
    %c1784 = arith.constant 1784 : index
    %c0_146 = arith.constant 0 : index
    %378 = vector.load %arg1[%c1784, %c0_146] : memref<1952x128xf32, #tpu.memory_space<vmem>>, vector<16x64xf32>
    %cst_147 = arith.constant dense<0.000000e+00> : vector<16x32xf32>
    %379 = tpu.matmul %378, %377, %cst_147 {dimension_numbers = #tpu.dot_dimension_numbers<[1], [0], [0], [1], [0, 0, 1, 1], [], []>} : vector<16x64xf32>, vector<64x32xf32>, vector<16x32xf32> -> vector<16x32xf32>
    %c1800 = arith.constant 1800 : index
    %c0_148 = arith.constant 0 : index
    %380 = vector.load %arg1[%c1800, %c0_148] : memref<1952x128xf32, #tpu.memory_space<vmem>>, vector<16x32xf32>
    %381 = arith.addf %379, %380 : vector<16x32xf32>
    %382 = arith.addf %336, %381 : vector<16x32xf32>
    %c1816 = arith.constant 1816 : index
    %c0_149 = arith.constant 0 : index
    %383 = vector.load %arg1[%c1816, %c0_149] : memref<1952x128xf32, #tpu.memory_space<vmem>>, vector<1x32xf32>
    %c1824 = arith.constant 1824 : index
    %c0_150 = arith.constant 0 : index
    %384 = vector.load %arg1[%c1824, %c0_150] : memref<1952x128xf32, #tpu.memory_space<vmem>>, vector<1x32xf32>
    %cst_151 = arith.constant dense<0.000000e+00> : vector<16xf32>
    %385 = vector.multi_reduction <add>, %382, %cst_151 [1] : vector<16x32xf32> to vector<16xf32>
    %386 = vector.shape_cast %385 : vector<16xf32> to vector<16x1xf32>
    %cst_152 = arith.constant 3.200000e+01 : f32
    %387 = vector.broadcast %cst_152 : f32 to vector<16x1xf32>
    %388 = arith.divf %386, %387 : vector<16x1xf32>
    %389 = arith.mulf %382, %382 : vector<16x32xf32>
    %cst_153 = arith.constant dense<0.000000e+00> : vector<16xf32>
    %390 = vector.multi_reduction <add>, %389, %cst_153 [1] : vector<16x32xf32> to vector<16xf32>
    %391 = vector.shape_cast %390 : vector<16xf32> to vector<16x1xf32>
    %cst_154 = arith.constant 3.200000e+01 : f32
    %392 = vector.broadcast %cst_154 : f32 to vector<16x1xf32>
    %393 = arith.divf %391, %392 : vector<16x1xf32>
    %394 = arith.mulf %388, %388 : vector<16x1xf32>
    %395 = arith.subf %393, %394 : vector<16x1xf32>
    %396 = vector.broadcast %388 : vector<16x1xf32> to vector<16x32xf32>
    %397 = arith.subf %382, %396 : vector<16x32xf32>
    %cst_155 = arith.constant 9.99999974E-6 : f32
    %398 = vector.broadcast %cst_155 : f32 to vector<16x1xf32>
    %399 = arith.addf %395, %398 : vector<16x1xf32>
    %400 = math.rsqrt %399 : vector<16x1xf32>
    %401 = vector.broadcast %400 : vector<16x1xf32> to vector<16x32xf32>
    %402 = arith.mulf %397, %401 : vector<16x32xf32>
    %403 = vector.broadcast %383 : vector<1x32xf32> to vector<16x32xf32>
    %404 = arith.mulf %402, %403 : vector<16x32xf32>
    %405 = vector.broadcast %384 : vector<1x32xf32> to vector<16x32xf32>
    %406 = arith.addf %404, %405 : vector<16x32xf32>
    %c1832 = arith.constant 1832 : index
    %c0_156 = arith.constant 0 : index
    %407 = vector.load %arg1[%c1832, %c0_156] : memref<1952x128xf32, #tpu.memory_space<vmem>>, vector<32x16xf32>
    %cst_157 = arith.constant dense<0.000000e+00> : vector<16x16xf32>
    %408 = tpu.matmul %406, %407, %cst_157 {dimension_numbers = #tpu.dot_dimension_numbers<[1], [0], [0], [1], [0, 0, 1, 1], [], []>} : vector<16x32xf32>, vector<32x16xf32>, vector<16x16xf32> -> vector<16x16xf32>
    %c1864 = arith.constant 1864 : index
    %c0_158 = arith.constant 0 : index
    %409 = vector.load %arg1[%c1864, %c0_158] : memref<1952x128xf32, #tpu.memory_space<vmem>>, vector<1x16xf32>
    %410 = vector.broadcast %409 : vector<1x16xf32> to vector<16x16xf32>
    %411 = arith.addf %408, %410 : vector<16x16xf32>
    %cst_159 = arith.constant 5.000000e-01 : f32
    %412 = vector.broadcast %cst_159 : f32 to vector<16x16xf32>
    %413 = arith.mulf %412, %411 : vector<16x16xf32>
    %cst_160 = arith.constant 4.471500e-02 : f32
    %414 = vector.broadcast %cst_160 : f32 to vector<16x16xf32>
    %415 = arith.mulf %414, %411 : vector<16x16xf32>
    %416 = arith.mulf %415, %411 : vector<16x16xf32>
    %417 = arith.mulf %416, %411 : vector<16x16xf32>
    %418 = arith.addf %411, %417 : vector<16x16xf32>
    %cst_161 = arith.constant 0.797884583 : f32
    %419 = vector.broadcast %cst_161 : f32 to vector<16x16xf32>
    %420 = arith.mulf %419, %418 : vector<16x16xf32>
    %421 = math.tanh %420 : vector<16x16xf32>
    %cst_162 = arith.constant 1.000000e+00 : f32
    %422 = vector.broadcast %cst_162 : f32 to vector<16x16xf32>
    %423 = arith.addf %422, %421 : vector<16x16xf32>
    %424 = arith.mulf %413, %423 : vector<16x16xf32>
    %c1872 = arith.constant 1872 : index
    %c0_163 = arith.constant 0 : index
    %425 = vector.load %arg1[%c1872, %c0_163] : memref<1952x128xf32, #tpu.memory_space<vmem>>, vector<16x32xf32>
    %cst_164 = arith.constant dense<0.000000e+00> : vector<16x32xf32>
    %426 = tpu.matmul %424, %425, %cst_164 {dimension_numbers = #tpu.dot_dimension_numbers<[1], [0], [0], [1], [0, 0, 1, 1], [], []>} : vector<16x16xf32>, vector<16x32xf32>, vector<16x32xf32> -> vector<16x32xf32>
    %c1888 = arith.constant 1888 : index
    %c0_165 = arith.constant 0 : index
    %427 = vector.load %arg1[%c1888, %c0_165] : memref<1952x128xf32, #tpu.memory_space<vmem>>, vector<1x32xf32>
    %428 = vector.broadcast %427 : vector<1x32xf32> to vector<16x32xf32>
    %429 = arith.addf %426, %428 : vector<16x32xf32>
    %430 = arith.addf %382, %429 : vector<16x32xf32>
    %c1896 = arith.constant 1896 : index
    %c0_166 = arith.constant 0 : index
    %431 = vector.load %arg1[%c1896, %c0_166] : memref<1952x128xf32, #tpu.memory_space<vmem>>, vector<1x32xf32>
    %c1904 = arith.constant 1904 : index
    %c0_167 = arith.constant 0 : index
    %432 = vector.load %arg1[%c1904, %c0_167] : memref<1952x128xf32, #tpu.memory_space<vmem>>, vector<1x32xf32>
    %cst_168 = arith.constant dense<0.000000e+00> : vector<16xf32>
    %433 = vector.multi_reduction <add>, %430, %cst_168 [1] : vector<16x32xf32> to vector<16xf32>
    %434 = vector.shape_cast %433 : vector<16xf32> to vector<16x1xf32>
    %cst_169 = arith.constant 3.200000e+01 : f32
    %435 = vector.broadcast %cst_169 : f32 to vector<16x1xf32>
    %436 = arith.divf %434, %435 : vector<16x1xf32>
    %437 = arith.mulf %430, %430 : vector<16x32xf32>
    %cst_170 = arith.constant dense<0.000000e+00> : vector<16xf32>
    %438 = vector.multi_reduction <add>, %437, %cst_170 [1] : vector<16x32xf32> to vector<16xf32>
    %439 = vector.shape_cast %438 : vector<16xf32> to vector<16x1xf32>
    %cst_171 = arith.constant 3.200000e+01 : f32
    %440 = vector.broadcast %cst_171 : f32 to vector<16x1xf32>
    %441 = arith.divf %439, %440 : vector<16x1xf32>
    %442 = arith.mulf %436, %436 : vector<16x1xf32>
    %443 = arith.subf %441, %442 : vector<16x1xf32>
    %444 = vector.broadcast %436 : vector<16x1xf32> to vector<16x32xf32>
    %445 = arith.subf %430, %444 : vector<16x32xf32>
    %cst_172 = arith.constant 9.99999974E-6 : f32
    %446 = vector.broadcast %cst_172 : f32 to vector<16x1xf32>
    %447 = arith.addf %443, %446 : vector<16x1xf32>
    %448 = math.rsqrt %447 : vector<16x1xf32>
    %449 = vector.broadcast %448 : vector<16x1xf32> to vector<16x32xf32>
    %450 = arith.mulf %445, %449 : vector<16x32xf32>
    %451 = vector.broadcast %431 : vector<1x32xf32> to vector<16x32xf32>
    %452 = arith.mulf %450, %451 : vector<16x32xf32>
    %453 = vector.broadcast %432 : vector<1x32xf32> to vector<16x32xf32>
    %454 = arith.addf %452, %453 : vector<16x32xf32>
    %c1912 = arith.constant 1912 : index
    %c0_173 = arith.constant 0 : index
    %455 = vector.load %arg1[%c1912, %c0_173] : memref<1952x128xf32, #tpu.memory_space<vmem>>, vector<32x128xf32>
    %cst_174 = arith.constant dense<0.000000e+00> : vector<16x128xf32>
    %456 = tpu.matmul %454, %455, %cst_174 {dimension_numbers = #tpu.dot_dimension_numbers<[1], [0], [0], [1], [0, 0, 1, 1], [], []>} : vector<16x32xf32>, vector<32x128xf32>, vector<16x128xf32> -> vector<16x128xf32>
    %c1944 = arith.constant 1944 : index
    %c0_175 = arith.constant 0 : index
    %457 = vector.load %arg1[%c1944, %c0_175] : memref<1952x128xf32, #tpu.memory_space<vmem>>, vector<1x128xf32>
    %458 = vector.broadcast %457 : vector<1x128xf32> to vector<16x128xf32>
    %459 = arith.addf %456, %458 : vector<16x128xf32>
    %cst_176 = arith.constant 0.000000e+00 : f32
    %460 = vector.broadcast %cst_176 : f32 to vector<16x128xf32>
    %461 = arith.maximumf %459, %460 : vector<16x128xf32>
    %462 = math.absf %459 : vector<16x128xf32>
    %cst_177 = arith.constant 0.000000e+00 : f32
    %463 = vector.broadcast %cst_177 : f32 to vector<16x128xf32>
    %464 = arith.subf %463, %462 : vector<16x128xf32>
    %465 = math.exp %464 : vector<16x128xf32>
    %466 = math.log1p %465 : vector<16x128xf32>
    %467 = arith.addf %461, %466 : vector<16x128xf32>
    %cst_178 = arith.constant 2.000000e+01 : f32
    %468 = vector.broadcast %cst_178 : f32 to vector<16x128xf32>
    %469 = arith.cmpf ogt, %459, %468 : vector<16x128xf32>
    %470 = arith.select %469, %459, %467 : vector<16x128xi1>, vector<16x128xf32>
    %c0_179 = arith.constant 0 : index
    %c0_180 = arith.constant 0 : index
    %471 = vector.load %arg2[%c0_179, %c0_180] : memref<16x128xf32, #tpu.memory_space<vmem>>, vector<16x128xf32>
    tpu.vector_store %arg2[%c0_179, %c0_180], %470 {strides = array<i32>} : memref<16x128xf32, #tpu.memory_space<vmem>>, vector<16x128xf32>,
    return
  }
}

</mosaic_0001>

<llo_original>
// kernel: tpu_custom_call.1
$region0: #{tpu_custom_call.1}
  #allocation0 [shape = 'u32[]', space=smem, size = 0x4, offset = 0x4, fixed_abs, tag = 'smem constant byte address 0x4 - core index']
  #allocation1 [shape = 'u32[72,128]{1,0:T(1,128)}', space=vmem, size = 0x9000, scoped, tag = 'internal scratch']
  #allocation2 [shape = 'f32[48,32]{1,0:T(8,128)}', space=vmem, size = 0x6000, scoped, tag = 'scratch operand']
  %s0 = inlined_call_operand.vmem [shape: f32[48,4], index: 0, kind: input, shape index: {}]
  %s1 = inlined_call_operand.hbm [shape: f32[1952,128], index: 1, kind: input, shape index: {}]
  %s2 = inlined_call_operand.hbm [shape: f32[16,128], index: 2, kind: output, shape index: {}]
  %s3 = sld [smem:[#allocation0]]
  $region22: #{tpu_custom_call.1} parent=0
    _
  %s5 = ssub.s32 1, %s3
  %s6 = scalar_select 0, %s5, %s3
  $region1: #{tpu_custom_call.1} parent=0
    #allocation3 [shape = 'u8[999424]{0}', space=vmem, size = 0xf4000, scoped, tag = 'input window, operand 1, single buffered']
    #allocation4 [shape = 's32[1]{0}', space=sflag, size = 0x4, scoped, tag = 'scoped memory for tpu_custom_call.1']
    #allocation5 [shape = 's32[1]{0}', space=sflag, size = 0x4, scoped, tag = 'scoped memory for tpu_custom_call.1']
    #allocation6 [shape = 'u8[8192]{0}', space=vmem, size = 0x2000, scoped, tag = 'output window, operand 0, single buffered']
    %7 = vsyncpa [#allocation4], 0
    %8 = vsyncpa [#allocation5], 0
    // Predicated region
    $region2: #{tpu_custom_call.1} parent=1 // pred_check
      _
    $region3: #{tpu_custom_call.1} parent=1 // pred_check_branch
      %10 = sbr.rel (0) target = $region5
    $region4: #{tpu_custom_call.1} parent=1 // pred_region
      _
    $region5: #{tpu_custom_call.1} parent=1 // pred_fallthru
      _
    // Predicated region
    $region6: #{tpu_custom_call.1} parent=1 // pred_check
      _
    $region7: #{tpu_custom_call.1} parent=1 // pred_check_branch
      %12 = sbr.rel (0) target = $region9
    $region8: #{tpu_custom_call.1} parent=1 // pred_region
      %14 = vsyncadd [#allocation4], 0
      %s15 = sshll.u32 %s1, 4
      %s16 = int_to_ptr.hbm [resolvable:$true] %s15
      %s17 = sshll.u32 [#allocation3], 4
      %s18 = int_to_ptr.vmem [resolvable:$true] %s17
      %23 = dma.hbm_to_vmem [thread:$0]  %s16, 31232, %s18, [#allocation4], 128, 128, 8
    $region9: #{tpu_custom_call.1} parent=1 // pred_fallthru
      _
    // Predicated region
    $region10: #{tpu_custom_call.1} parent=1 // pred_check
      _
    $region11: #{tpu_custom_call.1} parent=1 // pred_check_branch
      %25 = sbr.rel (0) target = $region13
    $region12: #{tpu_custom_call.1} parent=1 // pred_region
      %27 = dma.done [#allocation4], 31232
    $region13: #{tpu_custom_call.1} parent=1 // pred_fallthru
      _
    %v28 = vld [vmem:[%s0] sm:$0xff]
    %v29 = vld [vmem:[%s0 + $0x8] sm:$0xff]
    %v30 = vld [vmem:[%s0 + $0x10] sm:$0xff]
    %v31 = vld [vmem:[%s0 + $0x18] sm:$0xff]
    %v32 = vld [vmem:[%s0 + $0x20] sm:$0xff]
    %v33 = vld [vmem:[%s0 + $0x28] sm:$0xff]
    %v34 = vld [vmem:[#allocation3] sm:$0xf]
    %v35 = vld [vmem:[#allocation3 + $0x8] sm:$0x1]
    %v36 = vperm.slane %v35, 0
    %vm37 = vcmask 31744
    %v39 = vsel %vm37, %v28, 0
    %v42 = vsel %vm37, %v29, 0
    %v45 = vsel %vm37, %v30, 0
    %v48 = vsel %vm37, %v31, 0
    %v51 = vsel %vm37, %v32, 0
    %v54 = vsel %vm37, %v33, 0
    %vm56 = vcmask 1043456
    %v58 = vsel %vm56, %v34, 0
    %60 = vmatpush.msra.mxu0 0.0
    %61 = vmatpush.msra.mxu0 0.0
    %62 = vmatpush.msra.mxu0 0.0
    %63 = vmatpush.msra.mxu0 0.0
    %64 = vmatpush.msra.mxu0 0.0
    %65 = vmatpush.msra.mxu0 0.0
    %66 = vmatpush.msra.mxu0 0.0
    %67 = vmatpush.msra.mxu0 0.0
    %68 = vmatpush.msra.mxu0 0.0
    %69 = vmatpush.msra.mxu0 0.0
    %70 = vmatpush.msra.mxu0 0.0
    %71 = vmatpush.msra.mxu0 0.0
    %72 = vmatpush.msra.mxu0 0.0
    %73 = vmatpush.msra.mxu0 0.0
    %74 = vmatpush.msra.mxu0 0.0
    %75 = vmatpush.msra.mxu0 %v58
    %76 = vmatmul.f32.gmra.mxu0 %v39
    %v77 = vpop.f32.mrf.mxu0
    %v78 = vadd.f32 %v36, %v77
    %79 = vmatmul.f32.gmra.mxu0 %v42
    %v80 = vpop.f32.mrf.mxu0
    %v81 = vadd.f32 %v36, %v80
    %82 = vmatmul.f32.gmra.mxu0 %v45
    %v83 = vpop.f32.mrf.mxu0
    %v84 = vadd.f32 %v36, %v83
    %85 = vmatmul.f32.gmra.mxu0 %v48
    %v86 = vpop.f32.mrf.mxu0
    %v87 = vadd.f32 %v36, %v86
    %88 = vmatmul.f32.gmra.mxu0 %v51
    %v89 = vpop.f32.mrf.mxu0
    %v90 = vadd.f32 %v36, %v89
    %91 = vmatmul.f32.gmra.mxu0 %v54
    %v92 = vpop.f32.mrf.mxu0
    %v93 = vadd.f32 %v36, %v92
    %94 = vdwg.mxu0
    %v95 = vld [vmem:[#allocation3 + $0x10] sm:$0x1]
    %v96 = vld [vmem:[#allocation3 + $0x18] sm:$0x1]
    %vm97 = vcmask 261120
    %v98 = vsel %vm97, %v78, 0.0
    %99 = vadd.xlane.f32.xlu0 %v98
    %v100 = vpop.xlane.xlu0 %99
    %v101 = vsel %vm97, %v81, 0.0
    %102 = vadd.xlane.f32.xlu0 %v101
    %v103 = vpop.xlane.xlu0 %102
    %v104 = vsel %vm97, %v84, 0.0
    %105 = vadd.xlane.f32.xlu0 %v104
    %v106 = vpop.xlane.xlu0 %105
    %v107 = vsel %vm97, %v87, 0.0
    %108 = vadd.xlane.f32.xlu0 %v107
    %v109 = vpop.xlane.xlu0 %108
    %v110 = vsel %vm97, %v90, 0.0
    %111 = vadd.xlane.f32.xlu0 %v110
    %v112 = vpop.xlane.xlu0 %111
    %v113 = vsel %vm97, %v93, 0.0
    %114 = vadd.xlane.f32.xlu0 %v113
    %v115 = vpop.xlane.xlu0 %114
    %v116 = vrcp.pop 32.0
    %v117 = vmul.f32 32.0, %v116
    %v118 = vsub.f32 1.0, %v117
    %v119 = vmul.f32 %v116, %v118
    %v120 = vadd.f32 %v116, %v119
    %vm121 = vweird.f32 %v116
    %v122 = vsel %vm121, %v116, %v120
    %v123 = vmul.f32 %v100, %v122
    %v124 = vmul.f32 %v103, %v122
    %v125 = vmul.f32 %v106, %v122
    %v126 = vmul.f32 %v109, %v122
    %v127 = vmul.f32 %v112, %v122
    %v128 = vmul.f32 %v115, %v122
    %v129 = vmul.f32 %v78, %v78
    %v130 = vmul.f32 %v81, %v81
    %v131 = vmul.f32 %v84, %v84
    %v132 = vmul.f32 %v87, %v87
    %v133 = vmul.f32 %v90, %v90
    %v134 = vmul.f32 %v93, %v93
    %v135 = vsel %vm97, %v129, 0.0
    %136 = vadd.xlane.f32.xlu0 %v135
    %v137 = vpop.xlane.xlu0 %136
    %v138 = vsel %vm97, %v130, 0.0
    %139 = vadd.xlane.f32.xlu0 %v138
    %v140 = vpop.xlane.xlu0 %139
    %v141 = vsel %vm97, %v131, 0.0
    %142 = vadd.xlane.f32.xlu0 %v141
    %v143 = vpop.xlane.xlu0 %142
    %v144 = vsel %vm97, %v132, 0.0
    %145 = vadd.xlane.f32.xlu0 %v144
    %v146 = vpop.xlane.xlu0 %145
    %v147 = vsel %vm97, %v133, 0.0
    %148 = vadd.xlane.f32.xlu0 %v147
    %v149 = vpop.xlane.xlu0 %148
    %v150 = vsel %vm97, %v134, 0.0
    %151 = vadd.xlane.f32.xlu0 %v150
    %v152 = vpop.xlane.xlu0 %151
    %v153 = vmul.f32 %v137, %v122
    %v154 = vmul.f32 %v140, %v122
    %v155 = vmul.f32 %v143, %v122
    %v156 = vmul.f32 %v146, %v122
    %v157 = vmul.f32 %v149, %v122
    %v158 = vmul.f32 %v152, %v122
    %v159 = vmul.f32 %v123, %v123
    %v160 = vmul.f32 %v124, %v124
    %v161 = vmul.f32 %v125, %v125
    %v162 = vmul.f32 %v126, %v126
    %v163 = vmul.f32 %v127, %v127
    %v164 = vmul.f32 %v128, %v128
    %v165 = vsub.f32 %v153, %v159
    %v166 = vsub.f32 %v154, %v160
    %v167 = vsub.f32 %v155, %v161
    %v168 = vsub.f32 %v156, %v162
    %v169 = vsub.f32 %v157, %v163
    %v170 = vsub.f32 %v158, %v164
    %v171 = vsub.f32 %v78, %v123
    %v172 = vsub.f32 %v81, %v124
    %v173 = vsub.f32 %v84, %v125
    %v174 = vsub.f32 %v87, %v126
    %v175 = vsub.f32 %v90, %v127
    %v176 = vsub.f32 %v93, %v128
    %v177 = vadd.f32 %v165, 1e-05
    %v178 = vadd.f32 %v166, 1e-05
    %v179 = vadd.f32 %v167, 1e-05
    %v180 = vadd.f32 %v168, 1e-05
    %v181 = vadd.f32 %v169, 1e-05
    %v182 = vadd.f32 %v170, 1e-05
    %v183 = vrsqrt.pop %v177
    %v184 = vmul.f32 %v183, %v177
    %v185 = vmul.f32 %v184, %v183
    %v186 = vmul.f32 0.5, %v185
    %v187 = vsub.f32 1.5, %v186
    %v188 = vmul.f32 %v183, %v187
    %vm189 = vweird.f32 %v177
    %vm190 = vweird.f32 %v183
    %vm191 = vmor %vm189, %vm190
    %v192 = vsel %vm191, %v183, %v188
    %v193 = vrsqrt.pop %v178
    %v194 = vmul.f32 %v193, %v178
    %v195 = vmul.f32 %v194, %v193
    %v196 = vmul.f32 0.5, %v195
    %v197 = vsub.f32 1.5, %v196
    %v198 = vmul.f32 %v193, %v197
    %vm199 = vweird.f32 %v178
    %vm200 = vweird.f32 %v193
    %vm201 = vmor %vm199, %vm200
    %v202 = vsel %vm201, %v193, %v198
    %v203 = vrsqrt.pop %v179
    %v204 = vmul.f32 %v203, %v179
    %v205 = vmul.f32 %v204, %v203
    %v206 = vmul.f32 0.5, %v205
    %v207 = vsub.f32 1.5, %v206
    %v208 = vmul.f32 %v203, %v207
    %vm209 = vweird.f32 %v179
    %vm210 = vweird.f32 %v203
    %vm211 = vmor %vm209, %vm210
    %v212 = vsel %vm211, %v203, %v208
    %v213 = vrsqrt.pop %v180
    %v214 = vmul.f32 %v213, %v180
    %v215 = vmul.f32 %v214, %v213
    %v216 = vmul.f32 0.5, %v215
    %v217 = vsub.f32 1.5, %v216
    %v218 = vmul.f32 %v213, %v217
    %vm219 = vweird.f32 %v180
    %vm220 = vweird.f32 %v213
    %vm221 = vmor %vm219, %vm220
    %v222 = vsel %vm221, %v213, %v218
    %v223 = vrsqrt.pop %v181
    %v224 = vmul.f32 %v223, %v181
    %v225 = vmul.f32 %v224, %v223
    %v226 = vmul.f32 0.5, %v225
    %v227 = vsub.f32 1.5, %v226
    %v228 = vmul.f32 %v223, %v227
    %vm229 = vweird.f32 %v181
    %vm230 = vweird.f32 %v223
    %vm231 = vmor %vm229, %vm230
    %v232 = vsel %vm231, %v223, %v228
    %v233 = vrsqrt.pop %v182
    %v234 = vmul.f32 %v233, %v182
    %v235 = vmul.f32 %v234, %v233
    %v236 = vmul.f32 0.5, %v235
    %v237 = vsub.f32 1.5, %v236
    %v238 = vmul.f32 %v233, %v237
    %vm239 = vweird.f32 %v182
    %vm240 = vweird.f32 %v233
    %vm241 = vmor %vm239, %vm240
    %v242 = vsel %vm241, %v233, %v238
    %v243 = vmul.f32 %v171, %v192
    %v244 = vmul.f32 %v172, %v202
    %v245 = vmul.f32 %v173, %v212
    %v246 = vmul.f32 %v174, %v222
    %v247 = vmul.f32 %v175, %v232
    %v248 = vmul.f32 %v176, %v242
    %v249 = vperm.slane %v95, 0
    %v250 = vmul.f32 %v243, %v249
    %v251 = vmul.f32 %v244, %v249
    %v252 = vmul.f32 %v245, %v249
    %v253 = vmul.f32 %v246, %v249
    %v254 = vmul.f32 %v247, %v249
    %v255 = vmul.f32 %v248, %v249
    %v256 = vperm.slane %v96, 0
    %v257 = vadd.f32 %v250, %v256
    %v258 = vadd.f32 %v251, %v256
    %v259 = vadd.f32 %v252, %v256
    %v260 = vadd.f32 %v253, %v256
    %v261 = vadd.f32 %v254, %v256
    %v262 = vadd.f32 %v255, %v256
    %v263 = vld [vmem:[#allocation3 + $0x20] sm:$0xff]
    %v264 = vld [vmem:[#allocation3 + $0x28] sm:$0xff]
    %v265 = vld [vmem:[#allocation3 + $0x30] sm:$0xff]
    %v266 = vld [vmem:[#allocation3 + $0x38] sm:$0xff]
    %v267 = vld [vmem:[#allocation3 + $0x40] sm:$0xff]
    %v268 = vld [vmem:[#allocation3 + $0x48] sm:$0xff]
    %v269 = vld [vmem:[#allocation3 + $0x50] sm:$0xff]
    %v270 = vld [vmem:[#allocation3 + $0x58] sm:$0xff]
    %v271 = vld [vmem:[#allocation3 + $0x60] sm:$0xff]
    %v272 = vld [vmem:[#allocation3 + $0x68] sm:$0xff]
    %v273 = vld [vmem:[#allocation3 + $0x70] sm:$0xff]
    %v274 = vld [vmem:[#allocation3 + $0x78] sm:$0xff]
    %v275 = vld [vmem:[#allocation3 + $0x80] sm:$0xff]
    %v276 = vld [vmem:[#allocation3 + $0x88] sm:$0xff]
    %v277 = vld [vmem:[#allocation3 + $0x90] sm:$0xff]
    %v278 = vld [vmem:[#allocation3 + $0x98] sm:$0xff]
    %v279 = vld [vmem:[#allocation3 + $0xa0] sm:$0xff]
    %v280 = vld [vmem:[#allocation3 + $0xa8] sm:$0xff]
    %v281 = vld [vmem:[#allocation3 + $0xb0] sm:$0xff]
    %v282 = vld [vmem:[#allocation3 + $0xb8] sm:$0xff]
    %v283 = vld [vmem:[#allocation3 + $0xc0] sm:$0xff]
    %v284 = vld [vmem:[#allocation3 + $0xc8] sm:$0xff]
    %v285 = vld [vmem:[#allocation3 + $0xd0] sm:$0xff]
    %v286 = vld [vmem:[#allocation3 + $0xd8] sm:$0xff]
    %v287 = vld [vmem:[#allocation3 + $0xe0] sm:$0xff]
    %v288 = vld [vmem:[#allocation3 + $0xe8] sm:$0xff]
    %v289 = vld [vmem:[#allocation3 + $0xf0] sm:$0xff]
    %v290 = vld [vmem:[#allocation3 + $0xf8] sm:$0xff]
    %v291 = vld [vmem:[#allocation3 + $0x100] sm:$0xff]
    %v292 = vld [vmem:[#allocation3 + $0x108] sm:$0xff]
    %v293 = vld [vmem:[#allocation3 + $0x110] sm:$0xff]
    %v294 = vld [vmem:[#allocation3 + $0x118] sm:$0xff]
    %v295 = vld [vmem:[#allocation3 + $0x120] sm:$0xff]
    %v296 = vld [vmem:[#allocation3 + $0x128] sm:$0xff]
    %v297 = vld [vmem:[#allocation3 + $0x130] sm:$0xff]
    %v298 = vld [vmem:[#allocation3 + $0x138] sm:$0xff]
    %v299 = vld [vmem:[#allocation3 + $0x140] sm:$0xff]
    %v300 = vld [vmem:[#allocation3 + $0x148] sm:$0xff]
    %v301 = vld [vmem:[#allocation3 + $0x150] sm:$0xff]
    %v302 = vld [vmem:[#allocation3 + $0x158] sm:$0xff]
    %v303 = vld [vmem:[#allocation3 + $0x160] sm:$0xff]
    %v304 = vld [vmem:[#allocation3 + $0x168] sm:$0xff]
    %v305 = vld [vmem:[#allocation3 + $0x170] sm:$0xff]
    %v306 = vld [vmem:[#allocation3 + $0x178] sm:$0xff]
    %v307 = vld [vmem:[#allocation3 + $0x180] sm:$0xff]
    %v308 = vld [vmem:[#allocation3 + $0x188] sm:$0xff]
    %v309 = vld [vmem:[#allocation3 + $0x190] sm:$0xff]
    %v310 = vld [vmem:[#allocation3 + $0x198] sm:$0xff]
    %vm311 = vcmask 392192
    %v313 = vsel %vm311, %v263, 0
    %v316 = vsel %vm311, %v264, 0
    %v319 = vsel %vm311, %v265, 0
    %v322 = vsel %vm311, %v266, 0
    %v325 = vsel %vm311, %v267, 0
    %v328 = vsel %vm311, %v268, 0
    %v331 = vsel %vm311, %v269, 0
    %v334 = vsel %vm311, %v270, 0
    %v337 = vsel %vm311, %v271, 0
    %v340 = vsel %vm311, %v272, 0
    %v343 = vsel %vm311, %v273, 0
    %v346 = vsel %vm311, %v274, 0
    %v349 = vsel %vm311, %v275, 0
    %v352 = vsel %vm311, %v276, 0
    %v355 = vsel %vm311, %v277, 0
    %v358 = vsel %vm311, %v278, 0
    %v361 = vsel %vm311, %v279, 0
    %v364 = vsel %vm311, %v280, 0
    %v367 = vsel %vm311, %v281, 0
    %v370 = vsel %vm311, %v282, 0
    %v373 = vsel %vm311, %v283, 0
    %v376 = vsel %vm311, %v284, 0
    %v379 = vsel %vm311, %v285, 0
    %v382 = vsel %vm311, %v286, 0
    %384 = vmatpush.msra.mxu0 0.0
    %385 = vmatpush.msra.mxu0 0.0
    %386 = vmatpush.msra.mxu0 0.0
    %387 = vmatpush.msra.mxu0 0.0
    %388 = vmatpush.msra.mxu0 0.0
    %389 = vmatpush.msra.mxu0 0.0
    %390 = vmatpush.msra.mxu0 0.0
    %391 = vmatpush.msra.mxu0 0.0
    %392 = vmatpush.msra.mxu0 0.0
    %393 = vmatpush.msra.mxu0 0.0
    %394 = vmatpush.msra.mxu0 %v262
    %395 = vmatpush.msra.mxu0 %v261
    %396 = vmatpush.msra.mxu0 %v260
    %397 = vmatpush.msra.mxu0 %v259
    %398 = vmatpush.msra.mxu0 %v258
    %399 = vmatpush.msra.mxu0 %v257
    %400 = vmatmul.f32.gmra.mxu0 %v313
    %v401 = vpop.f32.mrf.mxu0
    %v402 = vadd.f32 %v287, %v401
    %403 = vmatmul.f32.gmra.mxu0 %v316
    %v404 = vpop.f32.mrf.mxu0
    %v405 = vadd.f32 %v288, %v404
    %406 = vmatmul.f32.gmra.mxu0 %v319
    %v407 = vpop.f32.mrf.mxu0
    %v408 = vadd.f32 %v289, %v407
    %409 = vmatmul.f32.gmra.mxu0 %v322
    %v410 = vpop.f32.mrf.mxu0
    %v411 = vadd.f32 %v290, %v410
    %412 = vmatmul.f32.gmra.mxu0 %v325
    %v413 = vpop.f32.mrf.mxu0
    %v414 = vadd.f32 %v291, %v413
    %415 = vmatmul.f32.gmra.mxu0 %v328
    %v416 = vpop.f32.mrf.mxu0
    %v417 = vadd.f32 %v292, %v416
    %418 = vmatmul.f32.gmra.mxu0 %v331
    %v419 = vpop.f32.mrf.mxu0
    %v420 = vadd.f32 %v293, %v419
    %421 = vmatmul.f32.gmra.mxu0 %v334
    %v422 = vpop.f32.mrf.mxu0
    %v423 = vadd.f32 %v294, %v422
    %424 = vmatmul.f32.gmra.mxu0 %v337
    %v425 = vpop.f32.mrf.mxu0
    %v426 = vadd.f32 %v295, %v425
    %427 = vmatmul.f32.gmra.mxu0 %v340
    %v428 = vpop.f32.mrf.mxu0
    %v429 = vadd.f32 %v296, %v428
    %430 = vmatmul.f32.gmra.mxu0 %v343
    %v431 = vpop.f32.mrf.mxu0
    %v432 = vadd.f32 %v297, %v431
    %433 = vmatmul.f32.gmra.mxu0 %v346
    %v434 = vpop.f32.mrf.mxu0
    %v435 = vadd.f32 %v298, %v434
    %436 = vmatmul.f32.gmra.mxu0 %v349
    %v437 = vpop.f32.mrf.mxu0
    %v438 = vadd.f32 %v299, %v437
    %439 = vmatmul.f32.gmra.mxu0 %v352
    %v440 = vpop.f32.mrf.mxu0
    %v441 = vadd.f32 %v300, %v440
    %442 = vmatmul.f32.gmra.mxu0 %v355
    %v443 = vpop.f32.mrf.mxu0
    %v444 = vadd.f32 %v301, %v443
    %445 = vmatmul.f32.gmra.mxu0 %v358
    %v446 = vpop.f32.mrf.mxu0
    %v447 = vadd.f32 %v302, %v446
    %448 = vmatmul.f32.gmra.mxu0 %v361
    %v449 = vpop.f32.mrf.mxu0
    %v450 = vadd.f32 %v303, %v449
    %451 = vmatmul.f32.gmra.mxu0 %v364
    %v452 = vpop.f32.mrf.mxu0
    %v453 = vadd.f32 %v304, %v452
    %454 = vmatmul.f32.gmra.mxu0 %v367
    %v455 = vpop.f32.mrf.mxu0
    %v456 = vadd.f32 %v305, %v455
    %457 = vmatmul.f32.gmra.mxu0 %v370
    %v458 = vpop.f32.mrf.mxu0
    %v459 = vadd.f32 %v306, %v458
    %460 = vmatmul.f32.gmra.mxu0 %v373
    %v461 = vpop.f32.mrf.mxu0
    %v462 = vadd.f32 %v307, %v461
    %463 = vmatmul.f32.gmra.mxu0 %v376
    %v464 = vpop.f32.mrf.mxu0
    %v465 = vadd.f32 %v308, %v464
    %466 = vmatmul.f32.gmra.mxu0 %v379
    %v467 = vpop.f32.mrf.mxu0
    %v468 = vadd.f32 %v309, %v467
    %469 = vmatmul.f32.gmra.mxu0 %v382
    %v470 = vpop.f32.mrf.mxu0
    %v471 = vadd.f32 %v310, %v470
    %472 = vdwg.mxu0
    %v473 = vmul.f32 %v402, 0.5
    %v474 = vmul.f32 %v405, 0.5
    %v475 = vmul.f32 %v408, 0.5
    %v476 = vmul.f32 %v411, 0.5
    %v477 = vmul.f32 %v414, 0.5
    %v478 = vmul.f32 %v417, 0.5
    %v479 = vmul.f32 %v420, 0.5
    %v480 = vmul.f32 %v423, 0.5
    %v481 = vmul.f32 %v426, 0.5
    %v482 = vmul.f32 %v429, 0.5
    %v483 = vmul.f32 %v432, 0.5
    %v484 = vmul.f32 %v435, 0.5
    %v485 = vmul.f32 %v438, 0.5
    %v486 = vmul.f32 %v441, 0.5
    %v487 = vmul.f32 %v444, 0.5
    %v488 = vmul.f32 %v447, 0.5
    %v489 = vmul.f32 %v450, 0.5
    %v490 = vmul.f32 %v453, 0.5
    %v491 = vmul.f32 %v456, 0.5
    %v492 = vmul.f32 %v459, 0.5
    %v493 = vmul.f32 %v462, 0.5
    %v494 = vmul.f32 %v465, 0.5
    %v495 = vmul.f32 %v468, 0.5
    %v496 = vmul.f32 %v471, 0.5
    %v497 = vmul.f32 %v402, 0.70710677
    %v498 = vmul.f32 %v405, 0.70710677
    %v499 = vmul.f32 %v408, 0.70710677
    %v500 = vmul.f32 %v411, 0.70710677
    %v501 = vmul.f32 %v414, 0.70710677
    %v502 = vmul.f32 %v417, 0.70710677
    %v503 = vmul.f32 %v420, 0.70710677
    %v504 = vmul.f32 %v423, 0.70710677
    %v505 = vmul.f32 %v426, 0.70710677
    %v506 = vmul.f32 %v429, 0.70710677
    %v507 = vmul.f32 %v432, 0.70710677
    %v508 = vmul.f32 %v435, 0.70710677
    %v509 = vmul.f32 %v438, 0.70710677
    %v510 = vmul.f32 %v441, 0.70710677
    %v511 = vmul.f32 %v444, 0.70710677
    %v512 = vmul.f32 %v447, 0.70710677
    %v513 = vmul.f32 %v450, 0.70710677
    %v514 = vmul.f32 %v453, 0.70710677
    %v515 = vmul.f32 %v456, 0.70710677
    %v516 = vmul.f32 %v459, 0.70710677
    %v517 = vmul.f32 %v462, 0.70710677
    %v518 = vmul.f32 %v465, 0.70710677
    %v519 = vmul.f32 %v468, 0.70710677
    %v520 = vmul.f32 %v471, 0.70710677
    %v521 = vmul.f32 %v497, %v497
    %v522 = vmin.f32 16.0, %v521
    %v523 = vmul.f32 %v522, 2.1237322e-06
    %v524 = vadd.f32 %v523, 0.00028619796
    %v525 = vmul.f32 %v522, %v524
    %v526 = vadd.f32 %v525, 0.0036580483
    %v527 = vmul.f32 %v522, %v526
    %v528 = vadd.f32 %v527, 0.05243302
    %v529 = vmul.f32 %v522, %v528
    %v530 = vadd.f32 %v529, 0.18741608
    %v531 = vmul.f32 %v522, %v530
    %v532 = vadd.f32 %v531, 1.1283791
    %v533 = vmul.f32 %v497, %v532
    %v534 = vmul.f32 %v522, 3.8918573e-05
    %v535 = vadd.f32 %v534, 0.001143296
    %v536 = vmul.f32 %v522, %v535
    %v537 = vadd.f32 %v536, 0.014752088
    %v538 = vmul.f32 %v522, %v537
    %v539 = vadd.f32 %v538, 0.112945676
    %v540 = vmul.f32 %v522, %v539
    %v541 = vadd.f32 %v540, 0.4994258
    %v542 = vmul.f32 %v522, %v541
    %v543 = vadd.f32 %v542, 1.0
    %v544 = vrcp.pop %v543
    %v545 = vmul.f32 %v543, %v544
    %v546 = vsub.f32 1.0, %v545
    %v547 = vmul.f32 %v544, %v546
    %v548 = vadd.f32 %v544, %v547
    %vm549 = vweird.f32 %v543
    %vm550 = vweird.f32 %v544
    %vm551 = vmor %vm549, %vm550
    %v552 = vsel %vm551, %v544, %v548
    %v553 = vand.u32 2147483647, %v543
    %vm554 = vcmp.eq.f32.partialorder %v553, 8.507059e+37
    %v555 = vand.u32 %v543, 2147483648
    %v556 = vor.u32 1.1754944e-38, %v555
    %v557 = vsel %vm554, %v556, %v552
    %v558 = vmul.f32 %v533, %v557
    %v559 = vmin.f32 %v558, 1.0
    %v560 = vmax.f32 %v559, -1.0
    %v561 = vmul.f32 %v498, %v498
    %v562 = vmin.f32 16.0, %v561
    %v563 = vmul.f32 %v562, 2.1237322e-06
    %v564 = vadd.f32 %v563, 0.00028619796
    %v565 = vmul.f32 %v562, %v564
    %v566 = vadd.f32 %v565, 0.0036580483
    %v567 = vmul.f32 %v562, %v566
    %v568 = vadd.f32 %v567, 0.05243302
    %v569 = vmul.f32 %v562, %v568
    %v570 = vadd.f32 %v569, 0.18741608
    %v571 = vmul.f32 %v562, %v570
    %v572 = vadd.f32 %v571, 1.1283791
    %v573 = vmul.f32 %v498, %v572
    %v574 = vmul.f32 %v562, 3.8918573e-05
    %v575 = vadd.f32 %v574, 0.001143296
    %v576 = vmul.f32 %v562, %v575
    %v577 = vadd.f32 %v576, 0.014752088
    %v578 = vmul.f32 %v562, %v577
    %v579 = vadd.f32 %v578, 0.112945676
    %v580 = vmul.f32 %v562, %v579
    %v581 = vadd.f32 %v580, 0.4994258
    %v582 = vmul.f32 %v562, %v581
    %v583 = vadd.f32 %v582, 1.0
    %v584 = vrcp.pop %v583
    %v585 = vmul.f32 %v583, %v584
    %v586 = vsub.f32 1.0, %v585
    %v587 = vmul.f32 %v584, %v586
    %v588 = vadd.f32 %v584, %v587
    %vm589 = vweird.f32 %v583
    %vm590 = vweird.f32 %v584
    %vm591 = vmor %vm589, %vm590
    %v592 = vsel %vm591, %v584, %v588
    %v593 = vand.u32 2147483647, %v583
    %vm594 = vcmp.eq.f32.partialorder %v593, 8.507059e+37
    %v595 = vand.u32 %v583, 2147483648
    %v596 = vor.u32 1.1754944e-38, %v595
    %v597 = vsel %vm594, %v596, %v592
    %v598 = vmul.f32 %v573, %v597
    %v599 = vmin.f32 %v598, 1.0
    %v600 = vmax.f32 %v599, -1.0
    %v601 = vmul.f32 %v499, %v499
    %v602 = vmin.f32 16.0, %v601
    %v603 = vmul.f32 %v602, 2.1237322e-06
    %v604 = vadd.f32 %v603, 0.00028619796
    %v605 = vmul.f32 %v602, %v604
    %v606 = vadd.f32 %v605, 0.0036580483
    %v607 = vmul.f32 %v602, %v606
    %v608 = vadd.f32 %v607, 0.05243302
    %v609 = vmul.f32 %v602, %v608
    %v610 = vadd.f32 %v609, 0.18741608
    %v611 = vmul.f32 %v602, %v610
    %v612 = vadd.f32 %v611, 1.1283791
    %v613 = vmul.f32 %v499, %v612
    %v614 = vmul.f32 %v602, 3.8918573e-05
    %v615 = vadd.f32 %v614, 0.001143296
    %v616 = vmul.f32 %v602, %v615
    %v617 = vadd.f32 %v616, 0.014752088
    %v618 = vmul.f32 %v602, %v617
    %v619 = vadd.f32 %v618, 0.112945676
    %v620 = vmul.f32 %v602, %v619
    %v621 = vadd.f32 %v620, 0.4994258
    %v622 = vmul.f32 %v602, %v621
    %v623 = vadd.f32 %v622, 1.0
    %v624 = vrcp.pop %v623
    %v625 = vmul.f32 %v623, %v624
    %v626 = vsub.f32 1.0, %v625
    %v627 = vmul.f32 %v624, %v626
    %v628 = vadd.f32 %v624, %v627
    %vm629 = vweird.f32 %v623
    %vm630 = vweird.f32 %v624
    %vm631 = vmor %vm629, %vm630
    %v632 = vsel %vm631, %v624, %v628
    %v633 = vand.u32 2147483647, %v623
    %vm634 = vcmp.eq.f32.partialorder %v633, 8.507059e+37
    %v635 = vand.u32 %v623, 2147483648
    %v636 = vor.u32 1.1754944e-38, %v635
    %v637 = vsel %vm634, %v636, %v632
    %v638 = vmul.f32 %v613, %v637
    %v639 = vmin.f32 %v638, 1.0
    %v640 = vmax.f32 %v639, -1.0
    %v641 = vmul.f32 %v500, %v500
    %v642 = vmin.f32 16.0, %v641
    %v643 = vmul.f32 %v642, 2.1237322e-06
    %v644 = vadd.f32 %v643, 0.00028619796
    %v645 = vmul.f32 %v642, %v644
    %v646 = vadd.f32 %v645, 0.0036580483
    %v647 = vmul.f32 %v642, %v646
    %v648 = vadd.f32 %v647, 0.05243302
    %v649 = vmul.f32 %v642, %v648
    %v650 = vadd.f32 %v649, 0.18741608
    %v651 = vmul.f32 %v642, %v650
    %v652 = vadd.f32 %v651, 1.1283791
    %v653 = vmul.f32 %v500, %v652
    %v654 = vmul.f32 %v642, 3.8918573e-05
    %v655 = vadd.f32 %v654, 0.001143296
    %v656 = vmul.f32 %v642, %v655
    %v657 = vadd.f32 %v656, 0.014752088
    %v658 = vmul.f32 %v642, %v657
    %v659 = vadd.f32 %v658, 0.112945676
    %v660 = vmul.f32 %v642, %v659
    %v661 = vadd.f32 %v660, 0.4994258
    %v662 = vmul.f32 %v642, %v661
    %v663 = vadd.f32 %v662, 1.0
    %v664 = vrcp.pop %v663
    %v665 = vmul.f32 %v663, %v664
    %v666 = vsub.f32 1.0, %v665
    %v667 = vmul.f32 %v664, %v666
    %v668 = vadd.f32 %v664, %v667
    %vm669 = vweird.f32 %v663
    %vm670 = vweird.f32 %v664
    %vm671 = vmor %vm669, %vm670
    %v672 = vsel %vm671, %v664, %v668
    %v673 = vand.u32 2147483647, %v663
    %vm674 = vcmp.eq.f32.partialorder %v673, 8.507059e+37
    %v675 = vand.u32 %v663, 2147483648
    %v676 = vor.u32 1.1754944e-38, %v675
    %v677 = vsel %vm674, %v676, %v672
    %v678 = vmul.f32 %v653, %v677
    %v679 = vmin.f32 %v678, 1.0
    %v680 = vmax.f32 %v679, -1.0
    %v681 = vmul.f32 %v501, %v501
    %v682 = vmin.f32 16.0, %v681
    %v683 = vmul.f32 %v682, 2.1237322e-06
    %v684 = vadd.f32 %v683, 0.00028619796
    %v685 = vmul.f32 %v682, %v684
    %v686 = vadd.f32 %v685, 0.0036580483
    %v687 = vmul.f32 %v682, %v686
    %v688 = vadd.f32 %v687, 0.05243302
    %v689 = vmul.f32 %v682, %v688
    %v690 = vadd.f32 %v689, 0.18741608
    %v691 = vmul.f32 %v682, %v690
    %v692 = vadd.f32 %v691, 1.1283791
    %v693 = vmul.f32 %v501, %v692
    %v694 = vmul.f32 %v682, 3.8918573e-05
    %v695 = vadd.f32 %v694, 0.001143296
    %v696 = vmul.f32 %v682, %v695
    %v697 = vadd.f32 %v696, 0.014752088
    %v698 = vmul.f32 %v682, %v697
    %v699 = vadd.f32 %v698, 0.112945676
    %v700 = vmul.f32 %v682, %v699
    %v701 = vadd.f32 %v700, 0.4994258
    %v702 = vmul.f32 %v682, %v701
    %v703 = vadd.f32 %v702, 1.0
    %v704 = vrcp.pop %v703
    %v705 = vmul.f32 %v703, %v704
    %v706 = vsub.f32 1.0, %v705
    %v707 = vmul.f32 %v704, %v706
    %v708 = vadd.f32 %v704, %v707
    %vm709 = vweird.f32 %v703
    %vm710 = vweird.f32 %v704
    %vm711 = vmor %vm709, %vm710
    %v712 = vsel %vm711, %v704, %v708
    %v713 = vand.u32 2147483647, %v703
    %vm714 = vcmp.eq.f32.partialorder %v713, 8.507059e+37
    %v715 = vand.u32 %v703, 2147483648
    %v716 = vor.u32 1.1754944e-38, %v715
    %v717 = vsel %vm714, %v716, %v712
    %v718 = vmul.f32 %v693, %v717
    %v719 = vmin.f32 %v718, 1.0
    %v720 = vmax.f32 %v719, -1.0
    %v721 = vmul.f32 %v502, %v502
    %v722 = vmin.f32 16.0, %v721
    %v723 = vmul.f32 %v722, 2.1237322e-06
    %v724 = vadd.f32 %v723, 0.00028619796
    %v725 = vmul.f32 %v722, %v724
    %v726 = vadd.f32 %v725, 0.0036580483
    %v727 = vmul.f32 %v722, %v726
    %v728 = vadd.f32 %v727, 0.05243302
    %v729 = vmul.f32 %v722, %v728
    %v730 = vadd.f32 %v729, 0.18741608
    %v731 = vmul.f32 %v722, %v730
    %v732 = vadd.f32 %v731, 1.1283791
    %v733 = vmul.f32 %v502, %v732
    %v734 = vmul.f32 %v722, 3.8918573e-05
    %v735 = vadd.f32 %v734, 0.001143296
    %v736 = vmul.f32 %v722, %v735
    %v737 = vadd.f32 %v736, 0.014752088
    %v738 = vmul.f32 %v722, %v737
    %v739 = vadd.f32 %v738, 0.112945676
    %v740 = vmul.f32 %v722, %v739
    %v741 = vadd.f32 %v740, 0.4994258
    %v742 = vmul.f32 %v722, %v741
    %v743 = vadd.f32 %v742, 1.0
    %v744 = vrcp.pop %v743
    %v745 = vmul.f32 %v743, %v744
    %v746 = vsub.f32 1.0, %v745
    %v747 = vmul.f32 %v744, %v746
    %v748 = vadd.f32 %v744, %v747
    %vm749 = vweird.f32 %v743
    %vm750 = vweird.f32 %v744
    %vm751 = vmor %vm749, %vm750
    %v752 = vsel %vm751, %v744, %v748
    %v753 = vand.u32 2147483647, %v743
    %vm754 = vcmp.eq.f32.partialorder %v753, 8.507059e+37
    %v755 = vand.u32 %v743, 2147483648
    %v756 = vor.u32 1.1754944e-38, %v755
    %v757 = vsel %vm754, %v756, %v752
    %v758 = vmul.f32 %v733, %v757
    %v759 = vmin.f32 %v758, 1.0
    %v760 = vmax.f32 %v759, -1.0
    %v761 = vmul.f32 %v503, %v503
    %v762 = vmin.f32 16.0, %v761
    %v763 = vmul.f32 %v762, 2.1237322e-06
    %v764 = vadd.f32 %v763, 0.00028619796
    %v765 = vmul.f32 %v762, %v764
    %v766 = vadd.f32 %v765, 0.0036580483
    %v767 = vmul.f32 %v762, %v766
    %v768 = vadd.f32 %v767, 0.05243302
    %v769 = vmul.f32 %v762, %v768
    %v770 = vadd.f32 %v769, 0.18741608
    %v771 = vmul.f32 %v762, %v770
    %v772 = vadd.f32 %v771, 1.1283791
    %v773 = vmul.f32 %v503, %v772
    %v774 = vmul.f32 %v762, 3.8918573e-05
    %v775 = vadd.f32 %v774, 0.001143296
    %v776 = vmul.f32 %v762, %v775
    %v777 = vadd.f32 %v776, 0.014752088
    %v778 = vmul.f32 %v762, %v777
    %v779 = vadd.f32 %v778, 0.112945676
    %v780 = vmul.f32 %v762, %v779
    %v781 = vadd.f32 %v780, 0.4994258
    %v782 = vmul.f32 %v762, %v781
    %v783 = vadd.f32 %v782, 1.0
    %v784 = vrcp.pop %v783
    %v785 = vmul.f32 %v783, %v784
    %v786 = vsub.f32 1.0, %v785
    %v787 = vmul.f32 %v784, %v786
    %v788 = vadd.f32 %v784, %v787
    %vm789 = vweird.f32 %v783
    %vm790 = vweird.f32 %v784
    %vm791 = vmor %vm789, %vm790
    %v792 = vsel %vm791, %v784, %v788
    %v793 = vand.u32 2147483647, %v783
    %vm794 = vcmp.eq.f32.partialorder %v793, 8.507059e+37
    %v795 = vand.u32 %v783, 2147483648
    %v796 = vor.u32 1.1754944e-38, %v795
    %v797 = vsel %vm794, %v796, %v792
    %v798 = vmul.f32 %v773, %v797
    %v799 = vmin.f32 %v798, 1.0
    %v800 = vmax.f32 %v799, -1.0
    %v801 = vmul.f32 %v504, %v504
    %v802 = vmin.f32 16.0, %v801
    %v803 = vmul.f32 %v802, 2.1237322e-06
    %v804 = vadd.f32 %v803, 0.00028619796
    %v805 = vmul.f32 %v802, %v804
    %v806 = vadd.f32 %v805, 0.0036580483
    %v807 = vmul.f32 %v802, %v806
    %v808 = vadd.f32 %v807, 0.05243302
    %v809 = vmul.f32 %v802, %v808
    %v810 = vadd.f32 %v809, 0.18741608
    %v811 = vmul.f32 %v802, %v810
    %v812 = vadd.f32 %v811, 1.1283791
    %v813 = vmul.f32 %v504, %v812
    %v814 = vmul.f32 %v802, 3.8918573e-05
    %v815 = vadd.f32 %v814, 0.001143296
    %v816 = vmul.f32 %v802, %v815
    %v817 = vadd.f32 %v816, 0.014752088
    %v818 = vmul.f32 %v802, %v817
    %v819 = vadd.f32 %v818, 0.112945676
    %v820 = vmul.f32 %v802, %v819
    %v821 = vadd.f32 %v820, 0.4994258
    %v822 = vmul.f32 %v802, %v821
    %v823 = vadd.f32 %v822, 1.0
    %v824 = vrcp.pop %v823
    %v825 = vmul.f32 %v823, %v824
    %v826 = vsub.f32 1.0, %v825
    %v827 = vmul.f32 %v824, %v826
    %v828 = vadd.f32 %v824, %v827
    %vm829 = vweird.f32 %v823
    %vm830 = vweird.f32 %v824
    %vm831 = vmor %vm829, %vm830
    %v832 = vsel %vm831, %v824, %v828
    %v833 = vand.u32 2147483647, %v823
    %vm834 = vcmp.eq.f32.partialorder %v833, 8.507059e+37
    %v835 = vand.u32 %v823, 2147483648
    %v836 = vor.u32 1.1754944e-38, %v835
    %v837 = vsel %vm834, %v836, %v832
    %v838 = vmul.f32 %v813, %v837
    %v839 = vmin.f32 %v838, 1.0
    %v840 = vmax.f32 %v839, -1.0
    %v841 = vmul.f32 %v505, %v505
    %v842 = vmin.f32 16.0, %v841
    %v843 = vmul.f32 %v842, 2.1237322e-06
    %v844 = vadd.f32 %v843, 0.00028619796
    %v845 = vmul.f32 %v842, %v844
    %v846 = vadd.f32 %v845, 0.0036580483
    %v847 = vmul.f32 %v842, %v846
    %v848 = vadd.f32 %v847, 0.05243302
    %v849 = vmul.f32 %v842, %v848
    %v850 = vadd.f32 %v849, 0.18741608
    %v851 = vmul.f32 %v842, %v850
    %v852 = vadd.f32 %v851, 1.1283791
    %v853 = vmul.f32 %v505, %v852
    %v854 = vmul.f32 %v842, 3.8918573e-05
    %v855 = vadd.f32 %v854, 0.001143296
    %v856 = vmul.f32 %v842, %v855
    %v857 = vadd.f32 %v856, 0.014752088
    %v858 = vmul.f32 %v842, %v857
    %v859 = vadd.f32 %v858, 0.112945676
    %v860 = vmul.f32 %v842, %v859
    %v861 = vadd.f32 %v860, 0.4994258
    %v862 = vmul.f32 %v842, %v861
    %v863 = vadd.f32 %v862, 1.0
    %v864 = vrcp.pop %v863
    %v865 = vmul.f32 %v863, %v864
    %v866 = vsub.f32 1.0, %v865
    %v867 = vmul.f32 %v864, %v866
    %v868 = vadd.f32 %v864, %v867
    %vm869 = vweird.f32 %v863
    %vm870 = vweird.f32 %v864
    %vm871 = vmor %vm869, %vm870
    %v872 = vsel %vm871, %v864, %v868
    %v873 = vand.u32 2147483647, %v863
    %vm874 = vcmp.eq.f32.partialorder %v873, 8.507059e+37
    %v875 = vand.u32 %v863, 2147483648
    %v876 = vor.u32 1.1754944e-38, %v875
    %v877 = vsel %vm874, %v876, %v872
    %v878 = vmul.f32 %v853, %v877
    %v879 = vmin.f32 %v878, 1.0
    %v880 = vmax.f32 %v879, -1.0
    %v881 = vmul.f32 %v506, %v506
    %v882 = vmin.f32 16.0, %v881
    %v883 = vmul.f32 %v882, 2.1237322e-06
    %v884 = vadd.f32 %v883, 0.00028619796
    %v885 = vmul.f32 %v882, %v884
    %v886 = vadd.f32 %v885, 0.0036580483
    %v887 = vmul.f32 %v882, %v886
    %v888 = vadd.f32 %v887, 0.05243302
    %v889 = vmul.f32 %v882, %v888
    %v890 = vadd.f32 %v889, 0.18741608
    %v891 = vmul.f32 %v882, %v890
    %v892 = vadd.f32 %v891, 1.1283791
    %v893 = vmul.f32 %v506, %v892
    %v894 = vmul.f32 %v882, 3.8918573e-05
    %v895 = vadd.f32 %v894, 0.001143296
    %v896 = vmul.f32 %v882, %v895
    %v897 = vadd.f32 %v896, 0.014752088
    %v898 = vmul.f32 %v882, %v897
    %v899 = vadd.f32 %v898, 0.112945676
    %v900 = vmul.f32 %v882, %v899
    %v901 = vadd.f32 %v900, 0.4994258
    %v902 = vmul.f32 %v882, %v901
    %v903 = vadd.f32 %v902, 1.0
    %v904 = vrcp.pop %v903
    %v905 = vmul.f32 %v903, %v904
    %v906 = vsub.f32 1.0, %v905
    %v907 = vmul.f32 %v904, %v906
    %v908 = vadd.f32 %v904, %v907
    %vm909 = vweird.f32 %v903
    %vm910 = vweird.f32 %v904
    %vm911 = vmor %vm909, %vm910
    %v912 = vsel %vm911, %v904, %v908
    %v913 = vand.u32 2147483647, %v903
    %vm914 = vcmp.eq.f32.partialorder %v913, 8.507059e+37
    %v915 = vand.u32 %v903, 2147483648
    %v916 = vor.u32 1.1754944e-38, %v915
    %v917 = vsel %vm914, %v916, %v912
    %v918 = vmul.f32 %v893, %v917
    %v919 = vmin.f32 %v918, 1.0
    %v920 = vmax.f32 %v919, -1.0
    %v921 = vmul.f32 %v507, %v507
    %v922 = vmin.f32 16.0, %v921
    %v923 = vmul.f32 %v922, 2.1237322e-06
    %v924 = vadd.f32 %v923, 0.00028619796
    %v925 = vmul.f32 %v922, %v924
    %v926 = vadd.f32 %v925, 0.0036580483
    %v927 = vmul.f32 %v922, %v926
    %v928 = vadd.f32 %v927, 0.05243302
    %v929 = vmul.f32 %v922, %v928
    %v930 = vadd.f32 %v929, 0.18741608
    %v931 = vmul.f32 %v922, %v930
    %v932 = vadd.f32 %v931, 1.1283791
    %v933 = vmul.f32 %v507, %v932
    %v934 = vmul.f32 %v922, 3.8918573e-05
    %v935 = vadd.f32 %v934, 0.001143296
    %v936 = vmul.f32 %v922, %v935
    %v937 = vadd.f32 %v936, 0.014752088
    %v938 = vmul.f32 %v922, %v937
    %v939 = vadd.f32 %v938, 0.112945676
    %v940 = vmul.f32 %v922, %v939
    %v941 = vadd.f32 %v940, 0.4994258
    %v942 = vmul.f32 %v922, %v941
    %v943 = vadd.f32 %v942, 1.0
    %v944 = vrcp.pop %v943
    %v945 = vmul.f32 %v943, %v944
    %v946 = vsub.f32 1.0, %v945
    %v947 = vmul.f32 %v944, %v946
    %v948 = vadd.f32 %v944, %v947
    %vm949 = vweird.f32 %v943
    %vm950 = vweird.f32 %v944
    %vm951 = vmor %vm949, %vm950
    %v952 = vsel %vm951, %v944, %v948
    %v953 = vand.u32 2147483647, %v943
    %vm954 = vcmp.eq.f32.partialorder %v953, 8.507059e+37
    %v955 = vand.u32 %v943, 2147483648
    %v956 = vor.u32 1.1754944e-38, %v955
    %v957 = vsel %vm954, %v956, %v952
    %v958 = vmul.f32 %v933, %v957
    %v959 = vmin.f32 %v958, 1.0
    %v960 = vmax.f32 %v959, -1.0
    %v961 = vmul.f32 %v508, %v508
    %v962 = vmin.f32 16.0, %v961
    %v963 = vmul.f32 %v962, 2.1237322e-06
    %v964 = vadd.f32 %v963, 0.00028619796
    %v965 = vmul.f32 %v962, %v964
    %v966 = vadd.f32 %v965, 0.0036580483
    %v967 = vmul.f32 %v962, %v966
    %v968 = vadd.f32 %v967, 0.05243302
    %v969 = vmul.f32 %v962, %v968
    %v970 = vadd.f32 %v969, 0.18741608
    %v971 = vmul.f32 %v962, %v970
    %v972 = vadd.f32 %v971, 1.1283791
    %v973 = vmul.f32 %v508, %v972
    %v974 = vmul.f32 %v962, 3.8918573e-05
    %v975 = vadd.f32 %v974, 0.001143296
    %v976 = vmul.f32 %v962, %v975
    %v977 = vadd.f32 %v976, 0.014752088
    %v978 = vmul.f32 %v962, %v977
    %v979 = vadd.f32 %v978, 0.112945676
    %v980 = vmul.f32 %v962, %v979
    %v981 = vadd.f32 %v980, 0.4994258
    %v982 = vmul.f32 %v962, %v981
    %v983 = vadd.f32 %v982, 1.0
    %v984 = vrcp.pop %v983
    %v985 = vmul.f32 %v983, %v984
    %v986 = vsub.f32 1.0, %v985
    %v987 = vmul.f32 %v984, %v986
    %v988 = vadd.f32 %v984, %v987
    %vm989 = vweird.f32 %v983
    %vm990 = vweird.f32 %v984
    %vm991 = vmor %vm989, %vm990
    %v992 = vsel %vm991, %v984, %v988
    %v993 = vand.u32 2147483647, %v983
    %vm994 = vcmp.eq.f32.partialorder %v993, 8.507059e+37
    %v995 = vand.u32 %v983, 2147483648
    %v996 = vor.u32 1.1754944e-38, %v995
    %v997 = vsel %vm994, %v996, %v992
    %v998 = vmul.f32 %v973, %v997
    %v999 = vmin.f32 %v998, 1.0
    %v1000 = vmax.f32 %v999, -1.0
    %v1001 = vmul.f32 %v509, %v509
    %v1002 = vmin.f32 16.0, %v1001
    %v1003 = vmul.f32 %v1002, 2.1237322e-06
    %v1004 = vadd.f32 %v1003, 0.00028619796
    %v1005 = vmul.f32 %v1002, %v1004
    %v1006 = vadd.f32 %v1005, 0.0036580483
    %v1007 = vmul.f32 %v1002, %v1006
    %v1008 = vadd.f32 %v1007, 0.05243302
    %v1009 = vmul.f32 %v1002, %v1008
    %v1010 = vadd.f32 %v1009, 0.18741608
    %v1011 = vmul.f32 %v1002, %v1010
    %v1012 = vadd.f32 %v1011, 1.1283791
    %v1013 = vmul.f32 %v509, %v1012
    %v1014 = vmul.f32 %v1002, 3.8918573e-05
    %v1015 = vadd.f32 %v1014, 0.001143296
    %v1016 = vmul.f32 %v1002, %v1015
    %v1017 = vadd.f32 %v1016, 0.014752088
    %v1018 = vmul.f32 %v1002, %v1017
    %v1019 = vadd.f32 %v1018, 0.112945676
    %v1020 = vmul.f32 %v1002, %v1019
    %v1021 = vadd.f32 %v1020, 0.4994258
    %v1022 = vmul.f32 %v1002, %v1021
    %v1023 = vadd.f32 %v1022, 1.0
    %v1024 = vrcp.pop %v1023
    %v1025 = vmul.f32 %v1023, %v1024
    %v1026 = vsub.f32 1.0, %v1025
    %v1027 = vmul.f32 %v1024, %v1026
    %v1028 = vadd.f32 %v1024, %v1027
    %vm1029 = vweird.f32 %v1023
    %vm1030 = vweird.f32 %v1024
    %vm1031 = vmor %vm1029, %vm1030
    %v1032 = vsel %vm1031, %v1024, %v1028
    %v1033 = vand.u32 2147483647, %v1023
    %vm1034 = vcmp.eq.f32.partialorder %v1033, 8.507059e+37
    %v1035 = vand.u32 %v1023, 2147483648
    %v1036 = vor.u32 1.1754944e-38, %v1035
    %v1037 = vsel %vm1034, %v1036, %v1032
    %v1038 = vmul.f32 %v1013, %v1037
    %v1039 = vmin.f32 %v1038, 1.0
    %v1040 = vmax.f32 %v1039, -1.0
    %v1041 = vmul.f32 %v510, %v510
    %v1042 = vmin.f32 16.0, %v1041
    %v1043 = vmul.f32 %v1042, 2.1237322e-06
    %v1044 = vadd.f32 %v1043, 0.00028619796
    %v1045 = vmul.f32 %v1042, %v1044
    %v1046 = vadd.f32 %v1045, 0.0036580483
    %v1047 = vmul.f32 %v1042, %v1046
    %v1048 = vadd.f32 %v1047, 0.05243302
    %v1049 = vmul.f32 %v1042, %v1048
    %v1050 = vadd.f32 %v1049, 0.18741608
    %v1051 = vmul.f32 %v1042, %v1050
    %v1052 = vadd.f32 %v1051, 1.1283791
    %v1053 = vmul.f32 %v510, %v1052
    %v1054 = vmul.f32 %v1042, 3.8918573e-05
    %v1055 = vadd.f32 %v1054, 0.001143296
    %v1056 = vmul.f32 %v1042, %v1055
    %v1057 = vadd.f32 %v1056, 0.014752088
    %v1058 = vmul.f32 %v1042, %v1057
    %v1059 = vadd.f32 %v1058, 0.112945676
    %v1060 = vmul.f32 %v1042, %v1059
    %v1061 = vadd.f32 %v1060, 0.4994258
    %v1062 = vmul.f32 %v1042, %v1061
    %v1063 = vadd.f32 %v1062, 1.0
    %v1064 = vrcp.pop %v1063
    %v1065 = vmul.f32 %v1063, %v1064
    %v1066 = vsub.f32 1.0, %v1065
    %v1067 = vmul.f32 %v1064, %v1066
    %v1068 = vadd.f32 %v1064, %v1067
    %vm1069 = vweird.f32 %v1063
    %vm1070 = vweird.f32 %v1064
    %vm1071 = vmor %vm1069, %vm1070
    %v1072 = vsel %vm1071, %v1064, %v1068
    %v1073 = vand.u32 2147483647, %v1063
    %vm1074 = vcmp.eq.f32.partialorder %v1073, 8.507059e+37
    %v1075 = vand.u32 %v1063, 2147483648
    %v1076 = vor.u32 1.1754944e-38, %v1075
    %v1077 = vsel %vm1074, %v1076, %v1072
    %v1078 = vmul.f32 %v1053, %v1077
    %v1079 = vmin.f32 %v1078, 1.0
    %v1080 = vmax.f32 %v1079, -1.0
    %v1081 = vmul.f32 %v511, %v511
    %v1082 = vmin.f32 16.0, %v1081
    %v1083 = vmul.f32 %v1082, 2.1237322e-06
    %v1084 = vadd.f32 %v1083, 0.00028619796
    %v1085 = vmul.f32 %v1082, %v1084
    %v1086 = vadd.f32 %v1085, 0.0036580483
    %v1087 = vmul.f32 %v1082, %v1086
    %v1088 = vadd.f32 %v1087, 0.05243302
    %v1089 = vmul.f32 %v1082, %v1088
    %v1090 = vadd.f32 %v1089, 0.18741608
    %v1091 = vmul.f32 %v1082, %v1090
    %v1092 = vadd.f32 %v1091, 1.1283791
    %v1093 = vmul.f32 %v511, %v1092
    %v1094 = vmul.f32 %v1082, 3.8918573e-05
    %v1095 = vadd.f32 %v1094, 0.001143296
    %v1096 = vmul.f32 %v1082, %v1095
    %v1097 = vadd.f32 %v1096, 0.014752088
    %v1098 = vmul.f32 %v1082, %v1097
    %v1099 = vadd.f32 %v1098, 0.112945676
    %v1100 = vmul.f32 %v1082, %v1099
    %v1101 = vadd.f32 %v1100, 0.4994258
    %v1102 = vmul.f32 %v1082, %v1101
    %v1103 = vadd.f32 %v1102, 1.0
    %v1104 = vrcp.pop %v1103
    %v1105 = vmul.f32 %v1103, %v1104
    %v1106 = vsub.f32 1.0, %v1105
    %v1107 = vmul.f32 %v1104, %v1106
    %v1108 = vadd.f32 %v1104, %v1107
    %vm1109 = vweird.f32 %v1103
    %vm1110 = vweird.f32 %v1104
    %vm1111 = vmor %vm1109, %vm1110
    %v1112 = vsel %vm1111, %v1104, %v1108
    %v1113 = vand.u32 2147483647, %v1103
    %vm1114 = vcmp.eq.f32.partialorder %v1113, 8.507059e+37
    %v1115 = vand.u32 %v1103, 2147483648
    %v1116 = vor.u32 1.1754944e-38, %v1115
    %v1117 = vsel %vm1114, %v1116, %v1112
    %v1118 = vmul.f32 %v1093, %v1117
    %v1119 = vmin.f32 %v1118, 1.0
    %v1120 = vmax.f32 %v1119, -1.0
    %v1121 = vmul.f32 %v512, %v512
    %v1122 = vmin.f32 16.0, %v1121
    %v1123 = vmul.f32 %v1122, 2.1237322e-06
    %v1124 = vadd.f32 %v1123, 0.00028619796
    %v1125 = vmul.f32 %v1122, %v1124
    %v1126 = vadd.f32 %v1125, 0.0036580483
    %v1127 = vmul.f32 %v1122, %v1126
    %v1128 = vadd.f32 %v1127, 0.05243302
    %v1129 = vmul.f32 %v1122, %v1128
    %v1130 = vadd.f32 %v1129, 0.18741608
    %v1131 = vmul.f32 %v1122, %v1130
    %v1132 = vadd.f32 %v1131, 1.1283791
    %v1133 = vmul.f32 %v512, %v1132
    %v1134 = vmul.f32 %v1122, 3.8918573e-05
    %v1135 = vadd.f32 %v1134, 0.001143296
    %v1136 = vmul.f32 %v1122, %v1135
    %v1137 = vadd.f32 %v1136, 0.014752088
    %v1138 = vmul.f32 %v1122, %v1137
    %v1139 = vadd.f32 %v1138, 0.112945676
    %v1140 = vmul.f32 %v1122, %v1139
    %v1141 = vadd.f32 %v1140, 0.4994258
    %v1142 = vmul.f32 %v1122, %v1141
    %v1143 = vadd.f32 %v1142, 1.0
    %v1144 = vrcp.pop %v1143
    %v1145 = vmul.f32 %v1143, %v1144
    %v1146 = vsub.f32 1.0, %v1145
    %v1147 = vmul.f32 %v1144, %v1146
    %v1148 = vadd.f32 %v1144, %v1147
    %vm1149 = vweird.f32 %v1143
    %vm1150 = vweird.f32 %v1144
    %vm1151 = vmor %vm1149, %vm1150
    %v1152 = vsel %vm1151, %v1144, %v1148
    %v1153 = vand.u32 2147483647, %v1143
    %vm1154 = vcmp.eq.f32.partialorder %v1153, 8.507059e+37
    %v1155 = vand.u32 %v1143, 2147483648
    %v1156 = vor.u32 1.1754944e-38, %v1155
    %v1157 = vsel %vm1154, %v1156, %v1152
    %v1158 = vmul.f32 %v1133, %v1157
    %v1159 = vmin.f32 %v1158, 1.0
    %v1160 = vmax.f32 %v1159, -1.0
    %v1161 = vmul.f32 %v513, %v513
    %v1162 = vmin.f32 16.0, %v1161
    %v1163 = vmul.f32 %v1162, 2.1237322e-06
    %v1164 = vadd.f32 %v1163, 0.00028619796
    %v1165 = vmul.f32 %v1162, %v1164
    %v1166 = vadd.f32 %v1165, 0.0036580483
    %v1167 = vmul.f32 %v1162, %v1166
    %v1168 = vadd.f32 %v1167, 0.05243302
    %v1169 = vmul.f32 %v1162, %v1168
    %v1170 = vadd.f32 %v1169, 0.18741608
    %v1171 = vmul.f32 %v1162, %v1170
    %v1172 = vadd.f32 %v1171, 1.1283791
    %v1173 = vmul.f32 %v513, %v1172
    %v1174 = vmul.f32 %v1162, 3.8918573e-05
    %v1175 = vadd.f32 %v1174, 0.001143296
    %v1176 = vmul.f32 %v1162, %v1175
    %v1177 = vadd.f32 %v1176, 0.014752088
    %v1178 = vmul.f32 %v1162, %v1177
    %v1179 = vadd.f32 %v1178, 0.112945676
    %v1180 = vmul.f32 %v1162, %v1179
    %v1181 = vadd.f32 %v1180, 0.4994258
    %v1182 = vmul.f32 %v1162, %v1181
    %v1183 = vadd.f32 %v1182, 1.0
    %v1184 = vrcp.pop %v1183
    %v1185 = vmul.f32 %v1183, %v1184
    %v1186 = vsub.f32 1.0, %v1185
    %v1187 = vmul.f32 %v1184, %v1186
    %v1188 = vadd.f32 %v1184, %v1187
    %vm1189 = vweird.f32 %v1183
    %vm1190 = vweird.f32 %v1184
    %vm1191 = vmor %vm1189, %vm1190
    %v1192 = vsel %vm1191, %v1184, %v1188
    %v1193 = vand.u32 2147483647, %v1183
    %vm1194 = vcmp.eq.f32.partialorder %v1193, 8.507059e+37
    %v1195 = vand.u32 %v1183, 2147483648
    %v1196 = vor.u32 1.1754944e-38, %v1195
    %v1197 = vsel %vm1194, %v1196, %v1192
    %v1198 = vmul.f32 %v1173, %v1197
    %v1199 = vmin.f32 %v1198, 1.0
    %v1200 = vmax.f32 %v1199, -1.0
    %v1201 = vmul.f32 %v514, %v514
    %v1202 = vmin.f32 16.0, %v1201
    %v1203 = vmul.f32 %v1202, 2.1237322e-06
    %v1204 = vadd.f32 %v1203, 0.00028619796
    %v1205 = vmul.f32 %v1202, %v1204
    %v1206 = vadd.f32 %v1205, 0.0036580483
    %v1207 = vmul.f32 %v1202, %v1206
    %v1208 = vadd.f32 %v1207, 0.05243302
    %v1209 = vmul.f32 %v1202, %v1208
    %v1210 = vadd.f32 %v1209, 0.18741608
    %v1211 = vmul.f32 %v1202, %v1210
    %v1212 = vadd.f32 %v1211, 1.1283791
    %v1213 = vmul.f32 %v514, %v1212
    %v1214 = vmul.f32 %v1202, 3.8918573e-05
    %v1215 = vadd.f32 %v1214, 0.001143296
    %v1216 = vmul.f32 %v1202, %v1215
    %v1217 = vadd.f32 %v1216, 0.014752088
    %v1218 = vmul.f32 %v1202, %v1217
    %v1219 = vadd.f32 %v1218, 0.112945676
    %v1220 = vmul.f32 %v1202, %v1219
    %v1221 = vadd.f32 %v1220, 0.4994258
    %v1222 = vmul.f32 %v1202, %v1221
    %v1223 = vadd.f32 %v1222, 1.0
    %v1224 = vrcp.pop %v1223
    %v1225 = vmul.f32 %v1223, %v1224
    %v1226 = vsub.f32 1.0, %v1225
    %v1227 = vmul.f32 %v1224, %v1226
    %v1228 = vadd.f32 %v1224, %v1227
    %vm1229 = vweird.f32 %v1223
    %vm1230 = vweird.f32 %v1224
    %vm1231 = vmor %vm1229, %vm1230
    %v1232 = vsel %vm1231, %v1224, %v1228
    %v1233 = vand.u32 2147483647, %v1223
    %vm1234 = vcmp.eq.f32.partialorder %v1233, 8.507059e+37
    %v1235 = vand.u32 %v1223, 2147483648
    %v1236 = vor.u32 1.1754944e-38, %v1235
    %v1237 = vsel %vm1234, %v1236, %v1232
    %v1238 = vmul.f32 %v1213, %v1237
    %v1239 = vmin.f32 %v1238, 1.0
    %v1240 = vmax.f32 %v1239, -1.0
    %v1241 = vmul.f32 %v515, %v515
    %v1242 = vmin.f32 16.0, %v1241
    %v1243 = vmul.f32 %v1242, 2.1237322e-06
    %v1244 = vadd.f32 %v1243, 0.00028619796
    %v1245 = vmul.f32 %v1242, %v1244
    %v1246 = vadd.f32 %v1245, 0.0036580483
    %v1247 = vmul.f32 %v1242, %v1246
    %v1248 = vadd.f32 %v1247, 0.05243302
    %v1249 = vmul.f32 %v1242, %v1248
    %v1250 = vadd.f32 %v1249, 0.18741608
    %v1251 = vmul.f32 %v1242, %v1250
    %v1252 = vadd.f32 %v1251, 1.1283791
    %v1253 = vmul.f32 %v515, %v1252
    %v1254 = vmul.f32 %v1242, 3.8918573e-05
    %v1255 = vadd.f32 %v1254, 0.001143296
    %v1256 = vmul.f32 %v1242, %v1255
    %v1257 = vadd.f32 %v1256, 0.014752088
    %v1258 = vmul.f32 %v1242, %v1257
    %v1259 = vadd.f32 %v1258, 0.112945676
    %v1260 = vmul.f32 %v1242, %v1259
    %v1261 = vadd.f32 %v1260, 0.4994258
    %v1262 = vmul.f32 %v1242, %v1261
    %v1263 = vadd.f32 %v1262, 1.0
    %v1264 = vrcp.pop %v1263
    %v1265 = vmul.f32 %v1263, %v1264
    %v1266 = vsub.f32 1.0, %v1265
    %v1267 = vmul.f32 %v1264, %v1266
    %v1268 = vadd.f32 %v1264, %v1267
    %vm1269 = vweird.f32 %v1263
    %vm1270 = vweird.f32 %v1264
    %vm1271 = vmor %vm1269, %vm1270
    %v1272 = vsel %vm1271, %v1264, %v1268
    %v1273 = vand.u32 2147483647, %v1263
    %vm1274 = vcmp.eq.f32.partialorder %v1273, 8.507059e+37
    %v1275 = vand.u32 %v1263, 2147483648
    %v1276 = vor.u32 1.1754944e-38, %v1275
    %v1277 = vsel %vm1274, %v1276, %v1272
    %v1278 = vmul.f32 %v1253, %v1277
    %v1279 = vmin.f32 %v1278, 1.0
    %v1280 = vmax.f32 %v1279, -1.0
    %v1281 = vmul.f32 %v516, %v516
    %v1282 = vmin.f32 16.0, %v1281
    %v1283 = vmul.f32 %v1282, 2.1237322e-06
    %v1284 = vadd.f32 %v1283, 0.00028619796
    %v1285 = vmul.f32 %v1282, %v1284
    %v1286 = vadd.f32 %v1285, 0.0036580483
    %v1287 = vmul.f32 %v1282, %v1286
    %v1288 = vadd.f32 %v1287, 0.05243302
    %v1289 = vmul.f32 %v1282, %v1288
    %v1290 = vadd.f32 %v1289, 0.18741608
    %v1291 = vmul.f32 %v1282, %v1290
    %v1292 = vadd.f32 %v1291, 1.1283791
    %v1293 = vmul.f32 %v516, %v1292
    %v1294 = vmul.f32 %v1282, 3.8918573e-05
    %v1295 = vadd.f32 %v1294, 0.001143296
    %v1296 = vmul.f32 %v1282, %v1295
    %v1297 = vadd.f32 %v1296, 0.014752088
    %v1298 = vmul.f32 %v1282, %v1297
    %v1299 = vadd.f32 %v1298, 0.112945676
    %v1300 = vmul.f32 %v1282, %v1299
    %v1301 = vadd.f32 %v1300, 0.4994258
    %v1302 = vmul.f32 %v1282, %v1301
    %v1303 = vadd.f32 %v1302, 1.0
    %v1304 = vrcp.pop %v1303
    %v1305 = vmul.f32 %v1303, %v1304
    %v1306 = vsub.f32 1.0, %v1305
    %v1307 = vmul.f32 %v1304, %v1306
    %v1308 = vadd.f32 %v1304, %v1307
    %vm1309 = vweird.f32 %v1303
    %vm1310 = vweird.f32 %v1304
    %vm1311 = vmor %vm1309, %vm1310
    %v1312 = vsel %vm1311, %v1304, %v1308
    %v1313 = vand.u32 2147483647, %v1303
    %vm1314 = vcmp.eq.f32.partialorder %v1313, 8.507059e+37
    %v1315 = vand.u32 %v1303, 2147483648
    %v1316 = vor.u32 1.1754944e-38, %v1315
    %v1317 = vsel %vm1314, %v1316, %v1312
    %v1318 = vmul.f32 %v1293, %v1317
    %v1319 = vmin.f32 %v1318, 1.0
    %v1320 = vmax.f32 %v1319, -1.0
    %v1321 = vmul.f32 %v517, %v517
    %v1322 = vmin.f32 16.0, %v1321
    %v1323 = vmul.f32 %v1322, 2.1237322e-06
    %v1324 = vadd.f32 %v1323, 0.00028619796
    %v1325 = vmul.f32 %v1322, %v1324
    %v1326 = vadd.f32 %v1325, 0.0036580483
    %v1327 = vmul.f32 %v1322, %v1326
    %v1328 = vadd.f32 %v1327, 0.05243302
    %v1329 = vmul.f32 %v1322, %v1328
    %v1330 = vadd.f32 %v1329, 0.18741608
    %v1331 = vmul.f32 %v1322, %v1330
    %v1332 = vadd.f32 %v1331, 1.1283791
    %v1333 = vmul.f32 %v517, %v1332
    %v1334 = vmul.f32 %v1322, 3.8918573e-05
    %v1335 = vadd.f32 %v1334, 0.001143296
    %v1336 = vmul.f32 %v1322, %v1335
    %v1337 = vadd.f32 %v1336, 0.014752088
    %v1338 = vmul.f32 %v1322, %v1337
    %v1339 = vadd.f32 %v1338, 0.112945676
    %v1340 = vmul.f32 %v1322, %v1339
    %v1341 = vadd.f32 %v1340, 0.4994258
    %v1342 = vmul.f32 %v1322, %v1341
    %v1343 = vadd.f32 %v1342, 1.0
    %v1344 = vrcp.pop %v1343
    %v1345 = vmul.f32 %v1343, %v1344
    %v1346 = vsub.f32 1.0, %v1345
    %v1347 = vmul.f32 %v1344, %v1346
    %v1348 = vadd.f32 %v1344, %v1347
    %vm1349 = vweird.f32 %v1343
    %vm1350 = vweird.f32 %v1344
    %vm1351 = vmor %vm1349, %vm1350
    %v1352 = vsel %vm1351, %v1344, %v1348
    %v1353 = vand.u32 2147483647, %v1343
    %vm1354 = vcmp.eq.f32.partialorder %v1353, 8.507059e+37
    %v1355 = vand.u32 %v1343, 2147483648
    %v1356 = vor.u32 1.1754944e-38, %v1355
    %v1357 = vsel %vm1354, %v1356, %v1352
    %v1358 = vmul.f32 %v1333, %v1357
    %v1359 = vmin.f32 %v1358, 1.0
    %v1360 = vmax.f32 %v1359, -1.0
    %v1361 = vmul.f32 %v518, %v518
    %v1362 = vmin.f32 16.0, %v1361
    %v1363 = vmul.f32 %v1362, 2.1237322e-06
    %v1364 = vadd.f32 %v1363, 0.00028619796
    %v1365 = vmul.f32 %v1362, %v1364
    %v1366 = vadd.f32 %v1365, 0.0036580483
    %v1367 = vmul.f32 %v1362, %v1366
    %v1368 = vadd.f32 %v1367, 0.05243302
    %v1369 = vmul.f32 %v1362, %v1368
    %v1370 = vadd.f32 %v1369, 0.18741608
    %v1371 = vmul.f32 %v1362, %v1370
    %v1372 = vadd.f32 %v1371, 1.1283791
    %v1373 = vmul.f32 %v518, %v1372
    %v1374 = vmul.f32 %v1362, 3.8918573e-05
    %v1375 = vadd.f32 %v1374, 0.001143296
    %v1376 = vmul.f32 %v1362, %v1375
    %v1377 = vadd.f32 %v1376, 0.014752088
    %v1378 = vmul.f32 %v1362, %v1377
    %v1379 = vadd.f32 %v1378, 0.112945676
    %v1380 = vmul.f32 %v1362, %v1379
    %v1381 = vadd.f32 %v1380, 0.4994258
    %v1382 = vmul.f32 %v1362, %v1381
    %v1383 = vadd.f32 %v1382, 1.0
    %v1384 = vrcp.pop %v1383
    %v1385 = vmul.f32 %v1383, %v1384
    %v1386 = vsub.f32 1.0, %v1385
    %v1387 = vmul.f32 %v1384, %v1386
    %v1388 = vadd.f32 %v1384, %v1387
    %vm1389 = vweird.f32 %v1383
    %vm1390 = vweird.f32 %v1384
    %vm1391 = vmor %vm1389, %vm1390
    %v1392 = vsel %vm1391, %v1384, %v1388
    %v1393 = vand.u32 2147483647, %v1383
    %vm1394 = vcmp.eq.f32.partialorder %v1393, 8.507059e+37
    %v1395 = vand.u32 %v1383, 2147483648
    %v1396 = vor.u32 1.1754944e-38, %v1395
    %v1397 = vsel %vm1394, %v1396, %v1392
    %v1398 = vmul.f32 %v1373, %v1397
    %v1399 = vmin.f32 %v1398, 1.0
    %v1400 = vmax.f32 %v1399, -1.0
    %v1401 = vmul.f32 %v519, %v519
    %v1402 = vmin.f32 16.0, %v1401
    %v1403 = vmul.f32 %v1402, 2.1237322e-06
    %v1404 = vadd.f32 %v1403, 0.00028619796
    %v1405 = vmul.f32 %v1402, %v1404
    %v1406 = vadd.f32 %v1405, 0.0036580483
    %v1407 = vmul.f32 %v1402, %v1406
    %v1408 = vadd.f32 %v1407, 0.05243302
    %v1409 = vmul.f32 %v1402, %v1408
    %v1410 = vadd.f32 %v1409, 0.18741608
    %v1411 = vmul.f32 %v1402, %v1410
    %v1412 = vadd.f32 %v1411, 1.1283791
    %v1413 = vmul.f32 %v519, %v1412
    %v1414 = vmul.f32 %v1402, 3.8918573e-05
    %v1415 = vadd.f32 %v1414, 0.001143296
    %v1416 = vmul.f32 %v1402, %v1415
    %v1417 = vadd.f32 %v1416, 0.014752088
    %v1418 = vmul.f32 %v1402, %v1417
    %v1419 = vadd.f32 %v1418, 0.112945676
    %v1420 = vmul.f32 %v1402, %v1419
    %v1421 = vadd.f32 %v1420, 0.4994258
    %v1422 = vmul.f32 %v1402, %v1421
    %v1423 = vadd.f32 %v1422, 1.0
    %v1424 = vrcp.pop %v1423
    %v1425 = vmul.f32 %v1423, %v1424
    %v1426 = vsub.f32 1.0, %v1425
    %v1427 = vmul.f32 %v1424, %v1426
    %v1428 = vadd.f32 %v1424, %v1427
    %vm1429 = vweird.f32 %v1423
    %vm1430 = vweird.f32 %v1424
    %vm1431 = vmor %vm1429, %vm1430
    %v1432 = vsel %vm1431, %v1424, %v1428
    %v1433 = vand.u32 2147483647, %v1423
    %vm1434 = vcmp.eq.f32.partialorder %v1433, 8.507059e+37
    %v1435 = vand.u32 %v1423, 2147483648
    %v1436 = vor.u32 1.1754944e-38, %v1435
    %v1437 = vsel %vm1434, %v1436, %v1432
    %v1438 = vmul.f32 %v1413, %v1437
    %v1439 = vmin.f32 %v1438, 1.0
    %v1440 = vmax.f32 %v1439, -1.0
    %v1441 = vmul.f32 %v520, %v520
    %v1442 = vmin.f32 16.0, %v1441
    %v1443 = vmul.f32 %v1442, 2.1237322e-06
    %v1444 = vadd.f32 %v1443, 0.00028619796
    %v1445 = vmul.f32 %v1442, %v1444
    %v1446 = vadd.f32 %v1445, 0.0036580483
    %v1447 = vmul.f32 %v1442, %v1446
    %v1448 = vadd.f32 %v1447, 0.05243302
    %v1449 = vmul.f32 %v1442, %v1448
    %v1450 = vadd.f32 %v1449, 0.18741608
    %v1451 = vmul.f32 %v1442, %v1450
    %v1452 = vadd.f32 %v1451, 1.1283791
    %v1453 = vmul.f32 %v520, %v1452
    %v1454 = vmul.f32 %v1442, 3.8918573e-05
    %v1455 = vadd.f32 %v1454, 0.001143296
    %v1456 = vmul.f32 %v1442, %v1455
    %v1457 = vadd.f32 %v1456, 0.014752088
    %v1458 = vmul.f32 %v1442, %v1457
    %v1459 = vadd.f32 %v1458, 0.112945676
    %v1460 = vmul.f32 %v1442, %v1459
    %v1461 = vadd.f32 %v1460, 0.4994258
    %v1462 = vmul.f32 %v1442, %v1461
    %v1463 = vadd.f32 %v1462, 1.0
    %v1464 = vrcp.pop %v1463
    %v1465 = vmul.f32 %v1463, %v1464
    %v1466 = vsub.f32 1.0, %v1465
    %v1467 = vmul.f32 %v1464, %v1466
    %v1468 = vadd.f32 %v1464, %v1467
    %vm1469 = vweird.f32 %v1463
    %vm1470 = vweird.f32 %v1464
    %vm1471 = vmor %vm1469, %vm1470
    %v1472 = vsel %vm1471, %v1464, %v1468
    %v1473 = vand.u32 2147483647, %v1463
    %vm1474 = vcmp.eq.f32.partialorder %v1473, 8.507059e+37
    %v1475 = vand.u32 %v1463, 2147483648
    %v1476 = vor.u32 1.1754944e-38, %v1475
    %v1477 = vsel %vm1474, %v1476, %v1472
    %v1478 = vmul.f32 %v1453, %v1477
    %v1479 = vmin.f32 %v1478, 1.0
    %v1480 = vmax.f32 %v1479, -1.0
    %v1481 = vadd.f32 %v560, 1.0
    %v1482 = vadd.f32 %v600, 1.0
    %v1483 = vadd.f32 %v640, 1.0
    %v1484 = vadd.f32 %v680, 1.0
    %v1485 = vadd.f32 %v720, 1.0
    %v1486 = vadd.f32 %v760, 1.0
    %v1487 = vadd.f32 %v800, 1.0
    %v1488 = vadd.f32 %v840, 1.0
    %v1489 = vadd.f32 %v880, 1.0
    %v1490 = vadd.f32 %v920, 1.0
    %v1491 = vadd.f32 %v960, 1.0
    %v1492 = vadd.f32 %v1000, 1.0
    %v1493 = vadd.f32 %v1040, 1.0
    %v1494 = vadd.f32 %v1080, 1.0
    %v1495 = vadd.f32 %v1120, 1.0
    %v1496 = vadd.f32 %v1160, 1.0
    %v1497 = vadd.f32 %v1200, 1.0
    %v1498 = vadd.f32 %v1240, 1.0
    %v1499 = vadd.f32 %v1280, 1.0
    %v1500 = vadd.f32 %v1320, 1.0
    %v1501 = vadd.f32 %v1360, 1.0
    %v1502 = vadd.f32 %v1400, 1.0
    %v1503 = vadd.f32 %v1440, 1.0
    %v1504 = vadd.f32 %v1480, 1.0
    %v1505 = vmul.f32 %v473, %v1481
    %v1506 = vmul.f32 %v474, %v1482
    %v1507 = vmul.f32 %v475, %v1483
    %v1508 = vmul.f32 %v476, %v1484
    %v1509 = vmul.f32 %v477, %v1485
    %v1510 = vmul.f32 %v478, %v1486
    %v1511 = vmul.f32 %v479, %v1487
    %v1512 = vmul.f32 %v480, %v1488
    %v1513 = vmul.f32 %v481, %v1489
    %v1514 = vmul.f32 %v482, %v1490
    %v1515 = vmul.f32 %v483, %v1491
    %v1516 = vmul.f32 %v484, %v1492
    %v1517 = vmul.f32 %v485, %v1493
    %v1518 = vmul.f32 %v486, %v1494
    %v1519 = vmul.f32 %v487, %v1495
    %v1520 = vmul.f32 %v488, %v1496
    %v1521 = vmul.f32 %v489, %v1497
    %v1522 = vmul.f32 %v490, %v1498
    %v1523 = vmul.f32 %v491, %v1499
    %v1524 = vmul.f32 %v492, %v1500
    %v1525 = vmul.f32 %v493, %v1501
    %v1526 = vmul.f32 %v494, %v1502
    %v1527 = vmul.f32 %v495, %v1503
    %v1528 = vmul.f32 %v496, %v1504
    %v1529 = vld [vmem:[#allocation3 + $0x1a0] sm:$0xff]
    %v1530 = vld [vmem:[#allocation3 + $0x1a8] sm:$0xff]
    %v1531 = vld [vmem:[#allocation3 + $0x1b0] sm:$0xff]
    %v1532 = vld [vmem:[#allocation3 + $0x1b8] sm:$0xff]
    %v1533 = vld [vmem:[#allocation3 + $0x1c0] sm:$0xff]
    %v1534 = vld [vmem:[#allocation3 + $0x1c8] sm:$0xff]
    %v1535 = vld [vmem:[#allocation3 + $0x1d0] sm:$0xff]
    %v1536 = vld [vmem:[#allocation3 + $0x1d8] sm:$0xff]
    %v1537 = vld [vmem:[#allocation3 + $0x1e0] sm:$0xff]
    %v1538 = vld [vmem:[#allocation3 + $0x1e8] sm:$0xff]
    %v1539 = vld [vmem:[#allocation3 + $0x1f0] sm:$0xff]
    %v1540 = vld [vmem:[#allocation3 + $0x1f8] sm:$0xff]
    %vm1541 = vcmask 523264
    %v1543 = vsel %vm1541, %v1535, 0
    %v1546 = vsel %vm1541, %v1536, 0
    %v1549 = vsel %vm1541, %v1537, 0
    %v1552 = vsel %vm1541, %v1538, 0
    %v1555 = vsel %vm1541, %v1539, 0
    %v1558 = vsel %vm1541, %v1540, 0
    %1560 = vmatpush.msra.mxu0 0.0
    %1561 = vmatpush.msra.mxu0 0.0
    %1562 = vmatpush.msra.mxu0 0.0
    %1563 = vmatpush.msra.mxu0 0.0
    %1564 = vmatpush.msra.mxu0 0.0
    %1565 = vmatpush.msra.mxu0 0.0
    %1566 = vmatpush.msra.mxu0 0.0
    %1567 = vmatpush.msra.mxu0 0.0
    %1568 = vmatpush.msra.mxu0 %v1528
    %1569 = vmatpush.msra.mxu0 %v1527
    %1570 = vmatpush.msra.mxu0 %v1526
    %1571 = vmatpush.msra.mxu0 %v1525
    %1572 = vmatpush.msra.mxu0 %v1524
    %1573 = vmatpush.msra.mxu0 %v1523
    %1574 = vmatpush.msra.mxu0 %v1522
    %1575 = vmatpush.msra.mxu0 %v1521
    %1576 = vmatmul.f32.gmra.mxu0 %v1543
    %v1577 = vpop.f32.mrf.mxu0
    %v1578 = vadd.f32 0.0, %v1577
    %1579 = vmatmul.f32.gmra.mxu0 %v1546
    %v1580 = vpop.f32.mrf.mxu0
    %v1581 = vadd.f32 0.0, %v1580
    %1582 = vmatmul.f32.gmra.mxu0 %v1549
    %v1583 = vpop.f32.mrf.mxu0
    %v1584 = vadd.f32 0.0, %v1583
    %1585 = vmatmul.f32.gmra.mxu0 %v1552
    %v1586 = vpop.f32.mrf.mxu0
    %v1587 = vadd.f32 0.0, %v1586
    %1588 = vmatmul.f32.gmra.mxu0 %v1555
    %v1589 = vpop.f32.mrf.mxu0
    %v1590 = vadd.f32 0.0, %v1589
    %1591 = vmatmul.f32.gmra.mxu0 %v1558
    %v1592 = vpop.f32.mrf.mxu0
    %v1593 = vadd.f32 0.0, %v1592
    %1594 = vdwg.mxu0
    %1595 = vmatpush.msra.mxu0 %v1520
    %1596 = vmatpush.msra.mxu0 %v1519
    %1597 = vmatpush.msra.mxu0 %v1518
    %1598 = vmatpush.msra.mxu0 %v1517
    %1599 = vmatpush.msra.mxu0 %v1516
    %1600 = vmatpush.msra.mxu0 %v1515
    %1601 = vmatpush.msra.mxu0 %v1514
    %1602 = vmatpush.msra.mxu0 %v1513
    %1603 = vmatpush.msra.mxu0 %v1512
    %1604 = vmatpush.msra.mxu0 %v1511
    %1605 = vmatpush.msra.mxu0 %v1510
    %1606 = vmatpush.msra.mxu0 %v1509
    %1607 = vmatpush.msra.mxu0 %v1508
    %1608 = vmatpush.msra.mxu0 %v1507
    %1609 = vmatpush.msra.mxu0 %v1506
    %1610 = vmatpush.msra.mxu0 %v1505
    %1611 = vmatmul.f32.gmra.mxu0 %v1529
    %v1612 = vpop.f32.mrf.mxu0
    %v1613 = vadd.f32 %v1578, %v1612
    %1614 = vmatmul.f32.gmra.mxu0 %v1530
    %v1615 = vpop.f32.mrf.mxu0
    %v1616 = vadd.f32 %v1581, %v1615
    %1617 = vmatmul.f32.gmra.mxu0 %v1531
    %v1618 = vpop.f32.mrf.mxu0
    %v1619 = vadd.f32 %v1584, %v1618
    %1620 = vmatmul.f32.gmra.mxu0 %v1532
    %v1621 = vpop.f32.mrf.mxu0
    %v1622 = vadd.f32 %v1587, %v1621
    %1623 = vmatmul.f32.gmra.mxu0 %v1533
    %v1624 = vpop.f32.mrf.mxu0
    %v1625 = vadd.f32 %v1590, %v1624
    %1626 = vmatmul.f32.gmra.mxu0 %v1534
    %v1627 = vpop.f32.mrf.mxu0
    %v1628 = vadd.f32 %v1593, %v1627
    %1629 = vdwg.mxu0
    %v1630 = vld [vmem:[#allocation3 + $0x200] sm:$0xff]
    %v1631 = vld [vmem:[#allocation3 + $0x208] sm:$0xff]
    %v1632 = vld [vmem:[#allocation3 + $0x210] sm:$0xff]
    %v1633 = vld [vmem:[#allocation3 + $0x218] sm:$0xff]
    %v1634 = vld [vmem:[#allocation3 + $0x220] sm:$0xff]
    %v1635 = vld [vmem:[#allocation3 + $0x228] sm:$0xff]
    %v1636 = vadd.f32 %v1613, %v1630
    %v1637 = vadd.f32 %v1616, %v1631
    %v1638 = vadd.f32 %v1619, %v1632
    %v1639 = vadd.f32 %v1622, %v1633
    %v1640 = vadd.f32 %v1625, %v1634
    %v1641 = vadd.f32 %v1628, %v1635
    %v1642 = vadd.f32 %v78, %v1636
    %v1643 = vadd.f32 %v81, %v1637
    %v1644 = vadd.f32 %v84, %v1638
    %v1645 = vadd.f32 %v87, %v1639
    %v1646 = vadd.f32 %v90, %v1640
    %v1647 = vadd.f32 %v93, %v1641
    %v1648 = vld [vmem:[#allocation3 + $0x230] sm:$0x1]
    %v1649 = vld [vmem:[#allocation3 + $0x238] sm:$0x1]
    %v1650 = vsel %vm97, %v1642, 0.0
    %1651 = vadd.xlane.f32.xlu0 %v1650
    %v1652 = vpop.xlane.xlu0 %1651
    %v1653 = vsel %vm97, %v1643, 0.0
    %1654 = vadd.xlane.f32.xlu0 %v1653
    %v1655 = vpop.xlane.xlu0 %1654
    %v1656 = vsel %vm97, %v1644, 0.0
    %1657 = vadd.xlane.f32.xlu0 %v1656
    %v1658 = vpop.xlane.xlu0 %1657
    %v1659 = vsel %vm97, %v1645, 0.0
    %1660 = vadd.xlane.f32.xlu0 %v1659
    %v1661 = vpop.xlane.xlu0 %1660
    %v1662 = vsel %vm97, %v1646, 0.0
    %1663 = vadd.xlane.f32.xlu0 %v1662
    %v1664 = vpop.xlane.xlu0 %1663
    %v1665 = vsel %vm97, %v1647, 0.0
    %1666 = vadd.xlane.f32.xlu0 %v1665
    %v1667 = vpop.xlane.xlu0 %1666
    %v1668 = vmul.f32 %v1652, %v122
    %v1669 = vmul.f32 %v1655, %v122
    %v1670 = vmul.f32 %v1658, %v122
    %v1671 = vmul.f32 %v1661, %v122
    %v1672 = vmul.f32 %v1664, %v122
    %v1673 = vmul.f32 %v1667, %v122
    %v1674 = vmul.f32 %v1642, %v1642
    %v1675 = vmul.f32 %v1643, %v1643
    %v1676 = vmul.f32 %v1644, %v1644
    %v1677 = vmul.f32 %v1645, %v1645
    %v1678 = vmul.f32 %v1646, %v1646
    %v1679 = vmul.f32 %v1647, %v1647
    %v1680 = vsel %vm97, %v1674, 0.0
    %1681 = vadd.xlane.f32.xlu0 %v1680
    %v1682 = vpop.xlane.xlu0 %1681
    %v1683 = vsel %vm97, %v1675, 0.0
    %1684 = vadd.xlane.f32.xlu0 %v1683
    %v1685 = vpop.xlane.xlu0 %1684
    %v1686 = vsel %vm97, %v1676, 0.0
    %1687 = vadd.xlane.f32.xlu0 %v1686
    %v1688 = vpop.xlane.xlu0 %1687
    %v1689 = vsel %vm97, %v1677, 0.0
    %1690 = vadd.xlane.f32.xlu0 %v1689
    %v1691 = vpop.xlane.xlu0 %1690
    %v1692 = vsel %vm97, %v1678, 0.0
    %1693 = vadd.xlane.f32.xlu0 %v1692
    %v1694 = vpop.xlane.xlu0 %1693
    %v1695 = vsel %vm97, %v1679, 0.0
    %1696 = vadd.xlane.f32.xlu0 %v1695
    %v1697 = vpop.xlane.xlu0 %1696
    %v1698 = vmul.f32 %v1682, %v122
    %v1699 = vmul.f32 %v1685, %v122
    %v1700 = vmul.f32 %v1688, %v122
    %v1701 = vmul.f32 %v1691, %v122
    %v1702 = vmul.f32 %v1694, %v122
    %v1703 = vmul.f32 %v1697, %v122
    %v1704 = vmul.f32 %v1668, %v1668
    %v1705 = vmul.f32 %v1669, %v1669
    %v1706 = vmul.f32 %v1670, %v1670
    %v1707 = vmul.f32 %v1671, %v1671
    %v1708 = vmul.f32 %v1672, %v1672
    %v1709 = vmul.f32 %v1673, %v1673
    %v1710 = vsub.f32 %v1698, %v1704
    %v1711 = vsub.f32 %v1699, %v1705
    %v1712 = vsub.f32 %v1700, %v1706
    %v1713 = vsub.f32 %v1701, %v1707
    %v1714 = vsub.f32 %v1702, %v1708
    %v1715 = vsub.f32 %v1703, %v1709
    %v1716 = vsub.f32 %v1642, %v1668
    %v1717 = vsub.f32 %v1643, %v1669
    %v1718 = vsub.f32 %v1644, %v1670
    %v1719 = vsub.f32 %v1645, %v1671
    %v1720 = vsub.f32 %v1646, %v1672
    %v1721 = vsub.f32 %v1647, %v1673
    %v1722 = vadd.f32 %v1710, 1e-05
    %v1723 = vadd.f32 %v1711, 1e-05
    %v1724 = vadd.f32 %v1712, 1e-05
    %v1725 = vadd.f32 %v1713, 1e-05
    %v1726 = vadd.f32 %v1714, 1e-05
    %v1727 = vadd.f32 %v1715, 1e-05
    %v1728 = vrsqrt.pop %v1722
    %v1729 = vmul.f32 %v1728, %v1722
    %v1730 = vmul.f32 %v1729, %v1728
    %v1731 = vmul.f32 0.5, %v1730
    %v1732 = vsub.f32 1.5, %v1731
    %v1733 = vmul.f32 %v1728, %v1732
    %vm1734 = vweird.f32 %v1722
    %vm1735 = vweird.f32 %v1728
    %vm1736 = vmor %vm1734, %vm1735
    %v1737 = vsel %vm1736, %v1728, %v1733
    %v1738 = vrsqrt.pop %v1723
    %v1739 = vmul.f32 %v1738, %v1723
    %v1740 = vmul.f32 %v1739, %v1738
    %v1741 = vmul.f32 0.5, %v1740
    %v1742 = vsub.f32 1.5, %v1741
    %v1743 = vmul.f32 %v1738, %v1742
    %vm1744 = vweird.f32 %v1723
    %vm1745 = vweird.f32 %v1738
    %vm1746 = vmor %vm1744, %vm1745
    %v1747 = vsel %vm1746, %v1738, %v1743
    %v1748 = vrsqrt.pop %v1724
    %v1749 = vmul.f32 %v1748, %v1724
    %v1750 = vmul.f32 %v1749, %v1748
    %v1751 = vmul.f32 0.5, %v1750
    %v1752 = vsub.f32 1.5, %v1751
    %v1753 = vmul.f32 %v1748, %v1752
    %vm1754 = vweird.f32 %v1724
    %vm1755 = vweird.f32 %v1748
    %vm1756 = vmor %vm1754, %vm1755
    %v1757 = vsel %vm1756, %v1748, %v1753
    %v1758 = vrsqrt.pop %v1725
    %v1759 = vmul.f32 %v1758, %v1725
    %v1760 = vmul.f32 %v1759, %v1758
    %v1761 = vmul.f32 0.5, %v1760
    %v1762 = vsub.f32 1.5, %v1761
    %v1763 = vmul.f32 %v1758, %v1762
    %vm1764 = vweird.f32 %v1725
    %vm1765 = vweird.f32 %v1758
    %vm1766 = vmor %vm1764, %vm1765
    %v1767 = vsel %vm1766, %v1758, %v1763
    %v1768 = vrsqrt.pop %v1726
    %v1769 = vmul.f32 %v1768, %v1726
    %v1770 = vmul.f32 %v1769, %v1768
    %v1771 = vmul.f32 0.5, %v1770
    %v1772 = vsub.f32 1.5, %v1771
    %v1773 = vmul.f32 %v1768, %v1772
    %vm1774 = vweird.f32 %v1726
    %vm1775 = vweird.f32 %v1768
    %vm1776 = vmor %vm1774, %vm1775
    %v1777 = vsel %vm1776, %v1768, %v1773
    %v1778 = vrsqrt.pop %v1727
    %v1779 = vmul.f32 %v1778, %v1727
    %v1780 = vmul.f32 %v1779, %v1778
    %v1781 = vmul.f32 0.5, %v1780
    %v1782 = vsub.f32 1.5, %v1781
    %v1783 = vmul.f32 %v1778, %v1782
    %vm1784 = vweird.f32 %v1727
    %vm1785 = vweird.f32 %v1778
    %vm1786 = vmor %vm1784, %vm1785
    %v1787 = vsel %vm1786, %v1778, %v1783
    %v1788 = vmul.f32 %v1716, %v1737
    %v1789 = vmul.f32 %v1717, %v1747
    %v1790 = vmul.f32 %v1718, %v1757
    %v1791 = vmul.f32 %v1719, %v1767
    %v1792 = vmul.f32 %v1720, %v1777
    %v1793 = vmul.f32 %v1721, %v1787
    %v1794 = vperm.slane %v1648, 0
    %v1795 = vmul.f32 %v1788, %v1794
    %v1796 = vmul.f32 %v1789, %v1794
    %v1797 = vmul.f32 %v1790, %v1794
    %v1798 = vmul.f32 %v1791, %v1794
    %v1799 = vmul.f32 %v1792, %v1794
    %v1800 = vmul.f32 %v1793, %v1794
    %v1801 = vperm.slane %v1649, 0
    %v1802 = vadd.f32 %v1795, %v1801
    %v1803 = vadd.f32 %v1796, %v1801
    %v1804 = vadd.f32 %v1797, %v1801
    %v1805 = vadd.f32 %v1798, %v1801
    %v1806 = vadd.f32 %v1799, %v1801
    %v1807 = vadd.f32 %v1800, %v1801
    %v1808 = vld [vmem:[#allocation3 + $0x240] sm:$0xff]
    %v1809 = vld [vmem:[#allocation3 + $0x248] sm:$0xff]
    %v1810 = vld [vmem:[#allocation3 + $0x250] sm:$0xff]
    %v1811 = vld [vmem:[#allocation3 + $0x258] sm:$0xff]
    %v1812 = vld [vmem:[#allocation3 + $0x260] sm:$0x1]
    %v1813 = vperm.slane %v1812, 0
    %v1815 = vsel %vm97, %v1802, 0
    %v1818 = vsel %vm97, %v1803, 0
    %v1821 = vsel %vm97, %v1804, 0
    %v1824 = vsel %vm97, %v1805, 0
    %v1827 = vsel %vm97, %v1806, 0
    %v1830 = vsel %vm97, %v1807, 0
    %1832 = vmatpush.msra.mxu0 0.0
    %1833 = vmatpush.msra.mxu0 0.0
    %1834 = vmatpush.msra.mxu0 0.0
    %1835 = vmatpush.msra.mxu0 0.0
    %1836 = vmatpush.msra.mxu0 0.0
    %1837 = vmatpush.msra.mxu0 0.0
    %1838 = vmatpush.msra.mxu0 0.0
    %1839 = vmatpush.msra.mxu0 0.0
    %1840 = vmatpush.msra.mxu0 0.0
    %1841 = vmatpush.msra.mxu0 0.0
    %1842 = vmatpush.msra.mxu0 0.0
    %1843 = vmatpush.msra.mxu0 0.0
    %1844 = vmatpush.msra.mxu0 %v1811
    %1845 = vmatpush.msra.mxu0 %v1810
    %1846 = vmatpush.msra.mxu0 %v1809
    %1847 = vmatpush.msra.mxu0 %v1808
    %1848 = vmatmul.f32.gmra.mxu0 %v1815
    %v1849 = vpop.f32.mrf.mxu0
    %v1850 = vadd.f32 %v1813, %v1849
    %1851 = vmatmul.f32.gmra.mxu0 %v1818
    %v1852 = vpop.f32.mrf.mxu0
    %v1853 = vadd.f32 %v1813, %v1852
    %1854 = vmatmul.f32.gmra.mxu0 %v1821
    %v1855 = vpop.f32.mrf.mxu0
    %v1856 = vadd.f32 %v1813, %v1855
    %1857 = vmatmul.f32.gmra.mxu0 %v1824
    %v1858 = vpop.f32.mrf.mxu0
    %v1859 = vadd.f32 %v1813, %v1858
    %1860 = vmatmul.f32.gmra.mxu0 %v1827
    %v1861 = vpop.f32.mrf.mxu0
    %v1862 = vadd.f32 %v1813, %v1861
    %1863 = vmatmul.f32.gmra.mxu0 %v1830
    %v1864 = vpop.f32.mrf.mxu0
    %v1865 = vadd.f32 %v1813, %v1864
    %1866 = vdwg.mxu0
    %v1867 = vmul.f32 %v1850, 0.5
    %v1868 = vmul.f32 %v1853, 0.5
    %v1869 = vmul.f32 %v1856, 0.5
    %v1870 = vmul.f32 %v1859, 0.5
    %v1871 = vmul.f32 %v1862, 0.5
    %v1872 = vmul.f32 %v1865, 0.5
    %v1873 = vmul.f32 %v1850, 0.70710677
    %v1874 = vmul.f32 %v1853, 0.70710677
    %v1875 = vmul.f32 %v1856, 0.70710677
    %v1876 = vmul.f32 %v1859, 0.70710677
    %v1877 = vmul.f32 %v1862, 0.70710677
    %v1878 = vmul.f32 %v1865, 0.70710677
    %v1879 = vmul.f32 %v1873, %v1873
    %v1880 = vmin.f32 16.0, %v1879
    %v1881 = vmul.f32 %v1880, 2.1237322e-06
    %v1882 = vadd.f32 %v1881, 0.00028619796
    %v1883 = vmul.f32 %v1880, %v1882
    %v1884 = vadd.f32 %v1883, 0.0036580483
    %v1885 = vmul.f32 %v1880, %v1884
    %v1886 = vadd.f32 %v1885, 0.05243302
    %v1887 = vmul.f32 %v1880, %v1886
    %v1888 = vadd.f32 %v1887, 0.18741608
    %v1889 = vmul.f32 %v1880, %v1888
    %v1890 = vadd.f32 %v1889, 1.1283791
    %v1891 = vmul.f32 %v1873, %v1890
    %v1892 = vmul.f32 %v1880, 3.8918573e-05
    %v1893 = vadd.f32 %v1892, 0.001143296
    %v1894 = vmul.f32 %v1880, %v1893
    %v1895 = vadd.f32 %v1894, 0.014752088
    %v1896 = vmul.f32 %v1880, %v1895
    %v1897 = vadd.f32 %v1896, 0.112945676
    %v1898 = vmul.f32 %v1880, %v1897
    %v1899 = vadd.f32 %v1898, 0.4994258
    %v1900 = vmul.f32 %v1880, %v1899
    %v1901 = vadd.f32 %v1900, 1.0
    %v1902 = vrcp.pop %v1901
    %v1903 = vmul.f32 %v1901, %v1902
    %v1904 = vsub.f32 1.0, %v1903
    %v1905 = vmul.f32 %v1902, %v1904
    %v1906 = vadd.f32 %v1902, %v1905
    %vm1907 = vweird.f32 %v1901
    %vm1908 = vweird.f32 %v1902
    %vm1909 = vmor %vm1907, %vm1908
    %v1910 = vsel %vm1909, %v1902, %v1906
    %v1911 = vand.u32 2147483647, %v1901
    %vm1912 = vcmp.eq.f32.partialorder %v1911, 8.507059e+37
    %v1913 = vand.u32 %v1901, 2147483648
    %v1914 = vor.u32 1.1754944e-38, %v1913
    %v1915 = vsel %vm1912, %v1914, %v1910
    %v1916 = vmul.f32 %v1891, %v1915
    %v1917 = vmin.f32 %v1916, 1.0
    %v1918 = vmax.f32 %v1917, -1.0
    %v1919 = vmul.f32 %v1874, %v1874
    %v1920 = vmin.f32 16.0, %v1919
    %v1921 = vmul.f32 %v1920, 2.1237322e-06
    %v1922 = vadd.f32 %v1921, 0.00028619796
    %v1923 = vmul.f32 %v1920, %v1922
    %v1924 = vadd.f32 %v1923, 0.0036580483
    %v1925 = vmul.f32 %v1920, %v1924
    %v1926 = vadd.f32 %v1925, 0.05243302
    %v1927 = vmul.f32 %v1920, %v1926
    %v1928 = vadd.f32 %v1927, 0.18741608
    %v1929 = vmul.f32 %v1920, %v1928
    %v1930 = vadd.f32 %v1929, 1.1283791
    %v1931 = vmul.f32 %v1874, %v1930
    %v1932 = vmul.f32 %v1920, 3.8918573e-05
    %v1933 = vadd.f32 %v1932, 0.001143296
    %v1934 = vmul.f32 %v1920, %v1933
    %v1935 = vadd.f32 %v1934, 0.014752088
    %v1936 = vmul.f32 %v1920, %v1935
    %v1937 = vadd.f32 %v1936, 0.112945676
    %v1938 = vmul.f32 %v1920, %v1937
    %v1939 = vadd.f32 %v1938, 0.4994258
    %v1940 = vmul.f32 %v1920, %v1939
    %v1941 = vadd.f32 %v1940, 1.0
    %v1942 = vrcp.pop %v1941
    %v1943 = vmul.f32 %v1941, %v1942
    %v1944 = vsub.f32 1.0, %v1943
    %v1945 = vmul.f32 %v1942, %v1944
    %v1946 = vadd.f32 %v1942, %v1945
    %vm1947 = vweird.f32 %v1941
    %vm1948 = vweird.f32 %v1942
    %vm1949 = vmor %vm1947, %vm1948
    %v1950 = vsel %vm1949, %v1942, %v1946
    %v1951 = vand.u32 2147483647, %v1941
    %vm1952 = vcmp.eq.f32.partialorder %v1951, 8.507059e+37
    %v1953 = vand.u32 %v1941, 2147483648
    %v1954 = vor.u32 1.1754944e-38, %v1953
    %v1955 = vsel %vm1952, %v1954, %v1950
    %v1956 = vmul.f32 %v1931, %v1955
    %v1957 = vmin.f32 %v1956, 1.0
    %v1958 = vmax.f32 %v1957, -1.0
    %v1959 = vmul.f32 %v1875, %v1875
    %v1960 = vmin.f32 16.0, %v1959
    %v1961 = vmul.f32 %v1960, 2.1237322e-06
    %v1962 = vadd.f32 %v1961, 0.00028619796
    %v1963 = vmul.f32 %v1960, %v1962
    %v1964 = vadd.f32 %v1963, 0.0036580483
    %v1965 = vmul.f32 %v1960, %v1964
    %v1966 = vadd.f32 %v1965, 0.05243302
    %v1967 = vmul.f32 %v1960, %v1966
    %v1968 = vadd.f32 %v1967, 0.18741608
    %v1969 = vmul.f32 %v1960, %v1968
    %v1970 = vadd.f32 %v1969, 1.1283791
    %v1971 = vmul.f32 %v1875, %v1970
    %v1972 = vmul.f32 %v1960, 3.8918573e-05
    %v1973 = vadd.f32 %v1972, 0.001143296
    %v1974 = vmul.f32 %v1960, %v1973
    %v1975 = vadd.f32 %v1974, 0.014752088
    %v1976 = vmul.f32 %v1960, %v1975
    %v1977 = vadd.f32 %v1976, 0.112945676
    %v1978 = vmul.f32 %v1960, %v1977
    %v1979 = vadd.f32 %v1978, 0.4994258
    %v1980 = vmul.f32 %v1960, %v1979
    %v1981 = vadd.f32 %v1980, 1.0
    %v1982 = vrcp.pop %v1981
    %v1983 = vmul.f32 %v1981, %v1982
    %v1984 = vsub.f32 1.0, %v1983
    %v1985 = vmul.f32 %v1982, %v1984
    %v1986 = vadd.f32 %v1982, %v1985
    %vm1987 = vweird.f32 %v1981
    %vm1988 = vweird.f32 %v1982
    %vm1989 = vmor %vm1987, %vm1988
    %v1990 = vsel %vm1989, %v1982, %v1986
    %v1991 = vand.u32 2147483647, %v1981
    %vm1992 = vcmp.eq.f32.partialorder %v1991, 8.507059e+37
    %v1993 = vand.u32 %v1981, 2147483648
    %v1994 = vor.u32 1.1754944e-38, %v1993
    %v1995 = vsel %vm1992, %v1994, %v1990
    %v1996 = vmul.f32 %v1971, %v1995
    %v1997 = vmin.f32 %v1996, 1.0
    %v1998 = vmax.f32 %v1997, -1.0
    %v1999 = vmul.f32 %v1876, %v1876
    %v2000 = vmin.f32 16.0, %v1999
    %v2001 = vmul.f32 %v2000, 2.1237322e-06
    %v2002 = vadd.f32 %v2001, 0.00028619796
    %v2003 = vmul.f32 %v2000, %v2002
    %v2004 = vadd.f32 %v2003, 0.0036580483
    %v2005 = vmul.f32 %v2000, %v2004
    %v2006 = vadd.f32 %v2005, 0.05243302
    %v2007 = vmul.f32 %v2000, %v2006
    %v2008 = vadd.f32 %v2007, 0.18741608
    %v2009 = vmul.f32 %v2000, %v2008
    %v2010 = vadd.f32 %v2009, 1.1283791
    %v2011 = vmul.f32 %v1876, %v2010
    %v2012 = vmul.f32 %v2000, 3.8918573e-05
    %v2013 = vadd.f32 %v2012, 0.001143296
    %v2014 = vmul.f32 %v2000, %v2013
    %v2015 = vadd.f32 %v2014, 0.014752088
    %v2016 = vmul.f32 %v2000, %v2015
    %v2017 = vadd.f32 %v2016, 0.112945676
    %v2018 = vmul.f32 %v2000, %v2017
    %v2019 = vadd.f32 %v2018, 0.4994258
    %v2020 = vmul.f32 %v2000, %v2019
    %v2021 = vadd.f32 %v2020, 1.0
    %v2022 = vrcp.pop %v2021
    %v2023 = vmul.f32 %v2021, %v2022
    %v2024 = vsub.f32 1.0, %v2023
    %v2025 = vmul.f32 %v2022, %v2024
    %v2026 = vadd.f32 %v2022, %v2025
    %vm2027 = vweird.f32 %v2021
    %vm2028 = vweird.f32 %v2022
    %vm2029 = vmor %vm2027, %vm2028
    %v2030 = vsel %vm2029, %v2022, %v2026
    %v2031 = vand.u32 2147483647, %v2021
    %vm2032 = vcmp.eq.f32.partialorder %v2031, 8.507059e+37
    %v2033 = vand.u32 %v2021, 2147483648
    %v2034 = vor.u32 1.1754944e-38, %v2033
    %v2035 = vsel %vm2032, %v2034, %v2030
    %v2036 = vmul.f32 %v2011, %v2035
    %v2037 = vmin.f32 %v2036, 1.0
    %v2038 = vmax.f32 %v2037, -1.0
    %v2039 = vmul.f32 %v1877, %v1877
    %v2040 = vmin.f32 16.0, %v2039
    %v2041 = vmul.f32 %v2040, 2.1237322e-06
    %v2042 = vadd.f32 %v2041, 0.00028619796
    %v2043 = vmul.f32 %v2040, %v2042
    %v2044 = vadd.f32 %v2043, 0.0036580483
    %v2045 = vmul.f32 %v2040, %v2044
    %v2046 = vadd.f32 %v2045, 0.05243302
    %v2047 = vmul.f32 %v2040, %v2046
    %v2048 = vadd.f32 %v2047, 0.18741608
    %v2049 = vmul.f32 %v2040, %v2048
    %v2050 = vadd.f32 %v2049, 1.1283791
    %v2051 = vmul.f32 %v1877, %v2050
    %v2052 = vmul.f32 %v2040, 3.8918573e-05
    %v2053 = vadd.f32 %v2052, 0.001143296
    %v2054 = vmul.f32 %v2040, %v2053
    %v2055 = vadd.f32 %v2054, 0.014752088
    %v2056 = vmul.f32 %v2040, %v2055
    %v2057 = vadd.f32 %v2056, 0.112945676
    %v2058 = vmul.f32 %v2040, %v2057
    %v2059 = vadd.f32 %v2058, 0.4994258
    %v2060 = vmul.f32 %v2040, %v2059
    %v2061 = vadd.f32 %v2060, 1.0
    %v2062 = vrcp.pop %v2061
    %v2063 = vmul.f32 %v2061, %v2062
    %v2064 = vsub.f32 1.0, %v2063
    %v2065 = vmul.f32 %v2062, %v2064
    %v2066 = vadd.f32 %v2062, %v2065
    %vm2067 = vweird.f32 %v2061
    %vm2068 = vweird.f32 %v2062
    %vm2069 = vmor %vm2067, %vm2068
    %v2070 = vsel %vm2069, %v2062, %v2066
    %v2071 = vand.u32 2147483647, %v2061
    %vm2072 = vcmp.eq.f32.partialorder %v2071, 8.507059e+37
    %v2073 = vand.u32 %v2061, 2147483648
    %v2074 = vor.u32 1.1754944e-38, %v2073
    %v2075 = vsel %vm2072, %v2074, %v2070
    %v2076 = vmul.f32 %v2051, %v2075
    %v2077 = vmin.f32 %v2076, 1.0
    %v2078 = vmax.f32 %v2077, -1.0
    %v2079 = vmul.f32 %v1878, %v1878
    %v2080 = vmin.f32 16.0, %v2079
    %v2081 = vmul.f32 %v2080, 2.1237322e-06
    %v2082 = vadd.f32 %v2081, 0.00028619796
    %v2083 = vmul.f32 %v2080, %v2082
    %v2084 = vadd.f32 %v2083, 0.0036580483
    %v2085 = vmul.f32 %v2080, %v2084
    %v2086 = vadd.f32 %v2085, 0.05243302
    %v2087 = vmul.f32 %v2080, %v2086
    %v2088 = vadd.f32 %v2087, 0.18741608
    %v2089 = vmul.f32 %v2080, %v2088
    %v2090 = vadd.f32 %v2089, 1.1283791
    %v2091 = vmul.f32 %v1878, %v2090
    %v2092 = vmul.f32 %v2080, 3.8918573e-05
    %v2093 = vadd.f32 %v2092, 0.001143296
    %v2094 = vmul.f32 %v2080, %v2093
    %v2095 = vadd.f32 %v2094, 0.014752088
    %v2096 = vmul.f32 %v2080, %v2095
    %v2097 = vadd.f32 %v2096, 0.112945676
    %v2098 = vmul.f32 %v2080, %v2097
    %v2099 = vadd.f32 %v2098, 0.4994258
    %v2100 = vmul.f32 %v2080, %v2099
    %v2101 = vadd.f32 %v2100, 1.0
    %v2102 = vrcp.pop %v2101
    %v2103 = vmul.f32 %v2101, %v2102
    %v2104 = vsub.f32 1.0, %v2103
    %v2105 = vmul.f32 %v2102, %v2104
    %v2106 = vadd.f32 %v2102, %v2105
    %vm2107 = vweird.f32 %v2101
    %vm2108 = vweird.f32 %v2102
    %vm2109 = vmor %vm2107, %vm2108
    %v2110 = vsel %vm2109, %v2102, %v2106
    %v2111 = vand.u32 2147483647, %v2101
    %vm2112 = vcmp.eq.f32.partialorder %v2111, 8.507059e+37
    %v2113 = vand.u32 %v2101, 2147483648
    %v2114 = vor.u32 1.1754944e-38, %v2113
    %v2115 = vsel %vm2112, %v2114, %v2110
    %v2116 = vmul.f32 %v2091, %v2115
    %v2117 = vmin.f32 %v2116, 1.0
    %v2118 = vmax.f32 %v2117, -1.0
    %v2119 = vadd.f32 %v1918, 1.0
    %v2120 = vadd.f32 %v1958, 1.0
    %v2121 = vadd.f32 %v1998, 1.0
    %v2122 = vadd.f32 %v2038, 1.0
    %v2123 = vadd.f32 %v2078, 1.0
    %v2124 = vadd.f32 %v2118, 1.0
    %v2125 = vmul.f32 %v1867, %v2119
    %v2126 = vmul.f32 %v1868, %v2120
    %v2127 = vmul.f32 %v1869, %v2121
    %v2128 = vmul.f32 %v1870, %v2122
    %v2129 = vmul.f32 %v1871, %v2123
    %v2130 = vmul.f32 %v1872, %v2124
    %v2131 = vld [vmem:[#allocation3 + $0x268] sm:$0xff]
    %v2132 = vld [vmem:[#allocation3 + $0x270] sm:$0xff]
    %v2133 = vld [vmem:[#allocation3 + $0x278] sm:$0x1]
    %v2134 = vperm.slane %v2133, 0
    %vm2135 = vcmask 130048
    %v2137 = vsel %vm2135, %v2125, 0
    %v2140 = vsel %vm2135, %v2126, 0
    %v2143 = vsel %vm2135, %v2127, 0
    %v2146 = vsel %vm2135, %v2128, 0
    %v2149 = vsel %vm2135, %v2129, 0
    %v2152 = vsel %vm2135, %v2130, 0
    %2154 = vmatpush.msra.mxu0 0.0
    %2155 = vmatpush.msra.mxu0 0.0
    %2156 = vmatpush.msra.mxu0 0.0
    %2157 = vmatpush.msra.mxu0 0.0
    %2158 = vmatpush.msra.mxu0 0.0
    %2159 = vmatpush.msra.mxu0 0.0
    %2160 = vmatpush.msra.mxu0 0.0
    %2161 = vmatpush.msra.mxu0 0.0
    %2162 = vmatpush.msra.mxu0 0.0
    %2163 = vmatpush.msra.mxu0 0.0
    %2164 = vmatpush.msra.mxu0 0.0
    %2165 = vmatpush.msra.mxu0 0.0
    %2166 = vmatpush.msra.mxu0 0.0
    %2167 = vmatpush.msra.mxu0 0.0
    %2168 = vmatpush.msra.mxu0 %v2132
    %2169 = vmatpush.msra.mxu0 %v2131
    %2170 = vmatmul.f32.gmra.mxu0 %v2137
    %v2171 = vpop.f32.mrf.mxu0
    %v2172 = vadd.f32 %v2134, %v2171
    %2173 = vmatmul.f32.gmra.mxu0 %v2140
    %v2174 = vpop.f32.mrf.mxu0
    %v2175 = vadd.f32 %v2134, %v2174
    %2176 = vmatmul.f32.gmra.mxu0 %v2143
    %v2177 = vpop.f32.mrf.mxu0
    %v2178 = vadd.f32 %v2134, %v2177
    %2179 = vmatmul.f32.gmra.mxu0 %v2146
    %v2180 = vpop.f32.mrf.mxu0
    %v2181 = vadd.f32 %v2134, %v2180
    %2182 = vmatmul.f32.gmra.mxu0 %v2149
    %v2183 = vpop.f32.mrf.mxu0
    %v2184 = vadd.f32 %v2134, %v2183
    %2185 = vmatmul.f32.gmra.mxu0 %v2152
    %v2186 = vpop.f32.mrf.mxu0
    %v2187 = vadd.f32 %v2134, %v2186
    %2188 = vdwg.mxu0
    %v2189 = vadd.f32 %v1642, %v2172
    %v2190 = vadd.f32 %v1643, %v2175
    %v2191 = vadd.f32 %v1644, %v2178
    %v2192 = vadd.f32 %v1645, %v2181
    %v2193 = vadd.f32 %v1646, %v2184
    %v2194 = vadd.f32 %v1647, %v2187
    %v2195 = vld [vmem:[#allocation3 + $0x280] sm:$0x1]
    %v2196 = vld [vmem:[#allocation3 + $0x288] sm:$0x1]
    %v2197 = vsel %vm97, %v2189, 0.0
    %2198 = vadd.xlane.f32.xlu0 %v2197
    %v2199 = vpop.xlane.xlu0 %2198
    %v2200 = vsel %vm97, %v2190, 0.0
    %2201 = vadd.xlane.f32.xlu0 %v2200
    %v2202 = vpop.xlane.xlu0 %2201
    %v2203 = vsel %vm97, %v2191, 0.0
    %2204 = vadd.xlane.f32.xlu0 %v2203
    %v2205 = vpop.xlane.xlu0 %2204
    %v2206 = vsel %vm97, %v2192, 0.0
    %2207 = vadd.xlane.f32.xlu0 %v2206
    %v2208 = vpop.xlane.xlu0 %2207
    %v2209 = vsel %vm97, %v2193, 0.0
    %2210 = vadd.xlane.f32.xlu0 %v2209
    %v2211 = vpop.xlane.xlu0 %2210
    %v2212 = vsel %vm97, %v2194, 0.0
    %2213 = vadd.xlane.f32.xlu0 %v2212
    %v2214 = vpop.xlane.xlu0 %2213
    %v2215 = vmul.f32 %v2199, %v122
    %v2216 = vmul.f32 %v2202, %v122
    %v2217 = vmul.f32 %v2205, %v122
    %v2218 = vmul.f32 %v2208, %v122
    %v2219 = vmul.f32 %v2211, %v122
    %v2220 = vmul.f32 %v2214, %v122
    %v2221 = vmul.f32 %v2189, %v2189
    %v2222 = vmul.f32 %v2190, %v2190
    %v2223 = vmul.f32 %v2191, %v2191
    %v2224 = vmul.f32 %v2192, %v2192
    %v2225 = vmul.f32 %v2193, %v2193
    %v2226 = vmul.f32 %v2194, %v2194
    %v2227 = vsel %vm97, %v2221, 0.0
    %2228 = vadd.xlane.f32.xlu0 %v2227
    %v2229 = vpop.xlane.xlu0 %2228
    %v2230 = vsel %vm97, %v2222, 0.0
    %2231 = vadd.xlane.f32.xlu0 %v2230
    %v2232 = vpop.xlane.xlu0 %2231
    %v2233 = vsel %vm97, %v2223, 0.0
    %2234 = vadd.xlane.f32.xlu0 %v2233
    %v2235 = vpop.xlane.xlu0 %2234
    %v2236 = vsel %vm97, %v2224, 0.0
    %2237 = vadd.xlane.f32.xlu0 %v2236
    %v2238 = vpop.xlane.xlu0 %2237
    %v2239 = vsel %vm97, %v2225, 0.0
    %2240 = vadd.xlane.f32.xlu0 %v2239
    %v2241 = vpop.xlane.xlu0 %2240
    %v2242 = vsel %vm97, %v2226, 0.0
    %2243 = vadd.xlane.f32.xlu0 %v2242
    %v2244 = vpop.xlane.xlu0 %2243
    %v2245 = vmul.f32 %v2229, %v122
    %v2246 = vmul.f32 %v2232, %v122
    %v2247 = vmul.f32 %v2235, %v122
    %v2248 = vmul.f32 %v2238, %v122
    %v2249 = vmul.f32 %v2241, %v122
    %v2250 = vmul.f32 %v2244, %v122
    %v2251 = vmul.f32 %v2215, %v2215
    %v2252 = vmul.f32 %v2216, %v2216
    %v2253 = vmul.f32 %v2217, %v2217
    %v2254 = vmul.f32 %v2218, %v2218
    %v2255 = vmul.f32 %v2219, %v2219
    %v2256 = vmul.f32 %v2220, %v2220
    %v2257 = vsub.f32 %v2245, %v2251
    %v2258 = vsub.f32 %v2246, %v2252
    %v2259 = vsub.f32 %v2247, %v2253
    %v2260 = vsub.f32 %v2248, %v2254
    %v2261 = vsub.f32 %v2249, %v2255
    %v2262 = vsub.f32 %v2250, %v2256
    %v2263 = vsub.f32 %v2189, %v2215
    %v2264 = vsub.f32 %v2190, %v2216
    %v2265 = vsub.f32 %v2191, %v2217
    %v2266 = vsub.f32 %v2192, %v2218
    %v2267 = vsub.f32 %v2193, %v2219
    %v2268 = vsub.f32 %v2194, %v2220
    %v2269 = vadd.f32 %v2257, 1e-05
    %v2270 = vadd.f32 %v2258, 1e-05
    %v2271 = vadd.f32 %v2259, 1e-05
    %v2272 = vadd.f32 %v2260, 1e-05
    %v2273 = vadd.f32 %v2261, 1e-05
    %v2274 = vadd.f32 %v2262, 1e-05
    %v2275 = vrsqrt.pop %v2269
    %v2276 = vmul.f32 %v2275, %v2269
    %v2277 = vmul.f32 %v2276, %v2275
    %v2278 = vmul.f32 0.5, %v2277
    %v2279 = vsub.f32 1.5, %v2278
    %v2280 = vmul.f32 %v2275, %v2279
    %vm2281 = vweird.f32 %v2269
    %vm2282 = vweird.f32 %v2275
    %vm2283 = vmor %vm2281, %vm2282
    %v2284 = vsel %vm2283, %v2275, %v2280
    %v2285 = vrsqrt.pop %v2270
    %v2286 = vmul.f32 %v2285, %v2270
    %v2287 = vmul.f32 %v2286, %v2285
    %v2288 = vmul.f32 0.5, %v2287
    %v2289 = vsub.f32 1.5, %v2288
    %v2290 = vmul.f32 %v2285, %v2289
    %vm2291 = vweird.f32 %v2270
    %vm2292 = vweird.f32 %v2285
    %vm2293 = vmor %vm2291, %vm2292
    %v2294 = vsel %vm2293, %v2285, %v2290
    %v2295 = vrsqrt.pop %v2271
    %v2296 = vmul.f32 %v2295, %v2271
    %v2297 = vmul.f32 %v2296, %v2295
    %v2298 = vmul.f32 0.5, %v2297
    %v2299 = vsub.f32 1.5, %v2298
    %v2300 = vmul.f32 %v2295, %v2299
    %vm2301 = vweird.f32 %v2271
    %vm2302 = vweird.f32 %v2295
    %vm2303 = vmor %vm2301, %vm2302
    %v2304 = vsel %vm2303, %v2295, %v2300
    %v2305 = vrsqrt.pop %v2272
    %v2306 = vmul.f32 %v2305, %v2272
    %v2307 = vmul.f32 %v2306, %v2305
    %v2308 = vmul.f32 0.5, %v2307
    %v2309 = vsub.f32 1.5, %v2308
    %v2310 = vmul.f32 %v2305, %v2309
    %vm2311 = vweird.f32 %v2272
    %vm2312 = vweird.f32 %v2305
    %vm2313 = vmor %vm2311, %vm2312
    %v2314 = vsel %vm2313, %v2305, %v2310
    %v2315 = vrsqrt.pop %v2273
    %v2316 = vmul.f32 %v2315, %v2273
    %v2317 = vmul.f32 %v2316, %v2315
    %v2318 = vmul.f32 0.5, %v2317
    %v2319 = vsub.f32 1.5, %v2318
    %v2320 = vmul.f32 %v2315, %v2319
    %vm2321 = vweird.f32 %v2273
    %vm2322 = vweird.f32 %v2315
    %vm2323 = vmor %vm2321, %vm2322
    %v2324 = vsel %vm2323, %v2315, %v2320
    %v2325 = vrsqrt.pop %v2274
    %v2326 = vmul.f32 %v2325, %v2274
    %v2327 = vmul.f32 %v2326, %v2325
    %v2328 = vmul.f32 0.5, %v2327
    %v2329 = vsub.f32 1.5, %v2328
    %v2330 = vmul.f32 %v2325, %v2329
    %vm2331 = vweird.f32 %v2274
    %vm2332 = vweird.f32 %v2325
    %vm2333 = vmor %vm2331, %vm2332
    %v2334 = vsel %vm2333, %v2325, %v2330
    %v2335 = vmul.f32 %v2263, %v2284
    %v2336 = vmul.f32 %v2264, %v2294
    %v2337 = vmul.f32 %v2265, %v2304
    %v2338 = vmul.f32 %v2266, %v2314
    %v2339 = vmul.f32 %v2267, %v2324
    %v2340 = vmul.f32 %v2268, %v2334
    %v2341 = vperm.slane %v2195, 0
    %v2342 = vmul.f32 %v2335, %v2341
    %v2343 = vmul.f32 %v2336, %v2341
    %v2344 = vmul.f32 %v2337, %v2341
    %v2345 = vmul.f32 %v2338, %v2341
    %v2346 = vmul.f32 %v2339, %v2341
    %v2347 = vmul.f32 %v2340, %v2341
    %v2348 = vperm.slane %v2196, 0
    %v2349 = vadd.f32 %v2342, %v2348
    %v2350 = vadd.f32 %v2343, %v2348
    %v2351 = vadd.f32 %v2344, %v2348
    %v2352 = vadd.f32 %v2345, %v2348
    %v2353 = vadd.f32 %v2346, %v2348
    %v2354 = vadd.f32 %v2347, %v2348
    %v2355 = vld [vmem:[#allocation3 + $0x290] sm:$0xff]
    %v2356 = vld [vmem:[#allocation3 + $0x298] sm:$0xff]
    %v2357 = vld [vmem:[#allocation3 + $0x2a0] sm:$0xff]
    %v2358 = vld [vmem:[#allocation3 + $0x2a8] sm:$0xff]
    %v2359 = vld [vmem:[#allocation3 + $0x2b0] sm:$0xff]
    %v2360 = vld [vmem:[#allocation3 + $0x2b8] sm:$0xff]
    %v2361 = vld [vmem:[#allocation3 + $0x2c0] sm:$0xff]
    %v2362 = vld [vmem:[#allocation3 + $0x2c8] sm:$0xff]
    %v2363 = vld [vmem:[#allocation3 + $0x2d0] sm:$0xff]
    %v2364 = vld [vmem:[#allocation3 + $0x2d8] sm:$0xff]
    %v2365 = vld [vmem:[#allocation3 + $0x2e0] sm:$0xff]
    %v2366 = vld [vmem:[#allocation3 + $0x2e8] sm:$0xff]
    %v2367 = vld [vmem:[#allocation3 + $0x2f0] sm:$0xff]
    %v2368 = vld [vmem:[#allocation3 + $0x2f8] sm:$0xff]
    %v2369 = vld [vmem:[#allocation3 + $0x300] sm:$0xff]
    %v2370 = vld [vmem:[#allocation3 + $0x308] sm:$0xff]
    %v2371 = vld [vmem:[#allocation3 + $0x310] sm:$0xff]
    %v2372 = vld [vmem:[#allocation3 + $0x318] sm:$0xff]
    %v2373 = vld [vmem:[#allocation3 + $0x320] sm:$0xff]
    %v2374 = vld [vmem:[#allocation3 + $0x328] sm:$0xff]
    %v2375 = vld [vmem:[#allocation3 + $0x330] sm:$0xff]
    %v2376 = vld [vmem:[#allocation3 + $0x338] sm:$0xff]
    %v2377 = vld [vmem:[#allocation3 + $0x340] sm:$0xff]
    %v2378 = vld [vmem:[#allocation3 + $0x348] sm:$0xff]
    %v2379 = vld [vmem:[#allocation3 + $0x350] sm:$0xff]
    %v2380 = vld [vmem:[#allocation3 + $0x358] sm:$0xff]
    %v2381 = vld [vmem:[#allocation3 + $0x360] sm:$0xff]
    %v2382 = vld [vmem:[#allocation3 + $0x368] sm:$0xff]
    %v2383 = vld [vmem:[#allocation3 + $0x370] sm:$0xff]
    %v2384 = vld [vmem:[#allocation3 + $0x378] sm:$0xff]
    %v2385 = vld [vmem:[#allocation3 + $0x380] sm:$0xff]
    %v2386 = vld [vmem:[#allocation3 + $0x388] sm:$0xff]
    %v2387 = vld [vmem:[#allocation3 + $0x390] sm:$0xff]
    %v2388 = vld [vmem:[#allocation3 + $0x398] sm:$0xff]
    %v2389 = vld [vmem:[#allocation3 + $0x3a0] sm:$0xff]
    %v2390 = vld [vmem:[#allocation3 + $0x3a8] sm:$0xff]
    %v2391 = vld [vmem:[#allocation3 + $0x3b0] sm:$0xff]
    %v2392 = vld [vmem:[#allocation3 + $0x3b8] sm:$0xff]
    %v2393 = vld [vmem:[#allocation3 + $0x3c0] sm:$0xff]
    %v2394 = vld [vmem:[#allocation3 + $0x3c8] sm:$0xff]
    %v2395 = vld [vmem:[#allocation3 + $0x3d0] sm:$0xff]
    %v2396 = vld [vmem:[#allocation3 + $0x3d8] sm:$0xff]
    %v2397 = vld [vmem:[#allocation3 + $0x3e0] sm:$0xff]
    %v2398 = vld [vmem:[#allocation3 + $0x3e8] sm:$0xff]
    %v2399 = vld [vmem:[#allocation3 + $0x3f0] sm:$0xff]
    %v2400 = vld [vmem:[#allocation3 + $0x3f8] sm:$0xff]
    %v2401 = vld [vmem:[#allocation3 + $0x400] sm:$0xff]
    %v2402 = vld [vmem:[#allocation3 + $0x408] sm:$0xff]
    %v2404 = vsel %vm311, %v2355, 0
    %v2407 = vsel %vm311, %v2356, 0
    %v2410 = vsel %vm311, %v2357, 0
    %v2413 = vsel %vm311, %v2358, 0
    %v2416 = vsel %vm311, %v2359, 0
    %v2419 = vsel %vm311, %v2360, 0
    %v2422 = vsel %vm311, %v2361, 0
    %v2425 = vsel %vm311, %v2362, 0
    %v2428 = vsel %vm311, %v2363, 0
    %v2431 = vsel %vm311, %v2364, 0
    %v2434 = vsel %vm311, %v2365, 0
    %v2437 = vsel %vm311, %v2366, 0
    %v2440 = vsel %vm311, %v2367, 0
    %v2443 = vsel %vm311, %v2368, 0
    %v2446 = vsel %vm311, %v2369, 0
    %v2449 = vsel %vm311, %v2370, 0
    %v2452 = vsel %vm311, %v2371, 0
    %v2455 = vsel %vm311, %v2372, 0
    %v2458 = vsel %vm311, %v2373, 0
    %v2461 = vsel %vm311, %v2374, 0
    %v2464 = vsel %vm311, %v2375, 0
    %v2467 = vsel %vm311, %v2376, 0
    %v2470 = vsel %vm311, %v2377, 0
    %v2473 = vsel %vm311, %v2378, 0
    %2475 = vmatpush.msra.mxu0 0.0
    %2476 = vmatpush.msra.mxu0 0.0
    %2477 = vmatpush.msra.mxu0 0.0
    %2478 = vmatpush.msra.mxu0 0.0
    %2479 = vmatpush.msra.mxu0 0.0
    %2480 = vmatpush.msra.mxu0 0.0
    %2481 = vmatpush.msra.mxu0 0.0
    %2482 = vmatpush.msra.mxu0 0.0
    %2483 = vmatpush.msra.mxu0 0.0
    %2484 = vmatpush.msra.mxu0 0.0
    %2485 = vmatpush.msra.mxu0 %v2354
    %2486 = vmatpush.msra.mxu0 %v2353
    %2487 = vmatpush.msra.mxu0 %v2352
    %2488 = vmatpush.msra.mxu0 %v2351
    %2489 = vmatpush.msra.mxu0 %v2350
    %2490 = vmatpush.msra.mxu0 %v2349
    %2491 = vmatmul.f32.gmra.mxu0 %v2404
    %v2492 = vpop.f32.mrf.mxu0
    %v2493 = vadd.f32 %v2379, %v2492
    %2494 = vmatmul.f32.gmra.mxu0 %v2407
    %v2495 = vpop.f32.mrf.mxu0
    %v2496 = vadd.f32 %v2380, %v2495
    %2497 = vmatmul.f32.gmra.mxu0 %v2410
    %v2498 = vpop.f32.mrf.mxu0
    %v2499 = vadd.f32 %v2381, %v2498
    %2500 = vmatmul.f32.gmra.mxu0 %v2413
    %v2501 = vpop.f32.mrf.mxu0
    %v2502 = vadd.f32 %v2382, %v2501
    %2503 = vmatmul.f32.gmra.mxu0 %v2416
    %v2504 = vpop.f32.mrf.mxu0
    %v2505 = vadd.f32 %v2383, %v2504
    %2506 = vmatmul.f32.gmra.mxu0 %v2419
    %v2507 = vpop.f32.mrf.mxu0
    %v2508 = vadd.f32 %v2384, %v2507
    %2509 = vmatmul.f32.gmra.mxu0 %v2422
    %v2510 = vpop.f32.mrf.mxu0
    %v2511 = vadd.f32 %v2385, %v2510
    %2512 = vmatmul.f32.gmra.mxu0 %v2425
    %v2513 = vpop.f32.mrf.mxu0
    %v2514 = vadd.f32 %v2386, %v2513
    %2515 = vmatmul.f32.gmra.mxu0 %v2428
    %v2516 = vpop.f32.mrf.mxu0
    %v2517 = vadd.f32 %v2387, %v2516
    %2518 = vmatmul.f32.gmra.mxu0 %v2431
    %v2519 = vpop.f32.mrf.mxu0
    %v2520 = vadd.f32 %v2388, %v2519
    %2521 = vmatmul.f32.gmra.mxu0 %v2434
    %v2522 = vpop.f32.mrf.mxu0
    %v2523 = vadd.f32 %v2389, %v2522
    %2524 = vmatmul.f32.gmra.mxu0 %v2437
    %v2525 = vpop.f32.mrf.mxu0
    %v2526 = vadd.f32 %v2390, %v2525
    %2527 = vmatmul.f32.gmra.mxu0 %v2440
    %v2528 = vpop.f32.mrf.mxu0
    %v2529 = vadd.f32 %v2391, %v2528
    %2530 = vmatmul.f32.gmra.mxu0 %v2443
    %v2531 = vpop.f32.mrf.mxu0
    %v2532 = vadd.f32 %v2392, %v2531
    %2533 = vmatmul.f32.gmra.mxu0 %v2446
    %v2534 = vpop.f32.mrf.mxu0
    %v2535 = vadd.f32 %v2393, %v2534
    %2536 = vmatmul.f32.gmra.mxu0 %v2449
    %v2537 = vpop.f32.mrf.mxu0
    %v2538 = vadd.f32 %v2394, %v2537
    %2539 = vmatmul.f32.gmra.mxu0 %v2452
    %v2540 = vpop.f32.mrf.mxu0
    %v2541 = vadd.f32 %v2395, %v2540
    %2542 = vmatmul.f32.gmra.mxu0 %v2455
    %v2543 = vpop.f32.mrf.mxu0
    %v2544 = vadd.f32 %v2396, %v2543
    %2545 = vmatmul.f32.gmra.mxu0 %v2458
    %v2546 = vpop.f32.mrf.mxu0
    %v2547 = vadd.f32 %v2397, %v2546
    %2548 = vmatmul.f32.gmra.mxu0 %v2461
    %v2549 = vpop.f32.mrf.mxu0
    %v2550 = vadd.f32 %v2398, %v2549
    %2551 = vmatmul.f32.gmra.mxu0 %v2464
    %v2552 = vpop.f32.mrf.mxu0
    %v2553 = vadd.f32 %v2399, %v2552
    %2554 = vmatmul.f32.gmra.mxu0 %v2467
    %v2555 = vpop.f32.mrf.mxu0
    %v2556 = vadd.f32 %v2400, %v2555
    %2557 = vmatmul.f32.gmra.mxu0 %v2470
    %v2558 = vpop.f32.mrf.mxu0
    %v2559 = vadd.f32 %v2401, %v2558
    %2560 = vmatmul.f32.gmra.mxu0 %v2473
    %v2561 = vpop.f32.mrf.mxu0
    %v2562 = vadd.f32 %v2402, %v2561
    %2563 = vdwg.mxu0
    %v2564 = vmul.f32 %v2493, 0.5
    %v2565 = vmul.f32 %v2496, 0.5
    %v2566 = vmul.f32 %v2499, 0.5
    %v2567 = vmul.f32 %v2502, 0.5
    %v2568 = vmul.f32 %v2505, 0.5
    %v2569 = vmul.f32 %v2508, 0.5
    %v2570 = vmul.f32 %v2511, 0.5
    %v2571 = vmul.f32 %v2514, 0.5
    %v2572 = vmul.f32 %v2517, 0.5
    %v2573 = vmul.f32 %v2520, 0.5
    %v2574 = vmul.f32 %v2523, 0.5
    %v2575 = vmul.f32 %v2526, 0.5
    %v2576 = vmul.f32 %v2529, 0.5
    %v2577 = vmul.f32 %v2532, 0.5
    %v2578 = vmul.f32 %v2535, 0.5
    %v2579 = vmul.f32 %v2538, 0.5
    %v2580 = vmul.f32 %v2541, 0.5
    %v2581 = vmul.f32 %v2544, 0.5
    %v2582 = vmul.f32 %v2547, 0.5
    %v2583 = vmul.f32 %v2550, 0.5
    %v2584 = vmul.f32 %v2553, 0.5
    %v2585 = vmul.f32 %v2556, 0.5
    %v2586 = vmul.f32 %v2559, 0.5
    %v2587 = vmul.f32 %v2562, 0.5
    %v2588 = vmul.f32 %v2493, 0.70710677
    %v2589 = vmul.f32 %v2496, 0.70710677
    %v2590 = vmul.f32 %v2499, 0.70710677
    %v2591 = vmul.f32 %v2502, 0.70710677
    %v2592 = vmul.f32 %v2505, 0.70710677
    %v2593 = vmul.f32 %v2508, 0.70710677
    %v2594 = vmul.f32 %v2511, 0.70710677
    %v2595 = vmul.f32 %v2514, 0.70710677
    %v2596 = vmul.f32 %v2517, 0.70710677
    %v2597 = vmul.f32 %v2520, 0.70710677
    %v2598 = vmul.f32 %v2523, 0.70710677
    %v2599 = vmul.f32 %v2526, 0.70710677
    %v2600 = vmul.f32 %v2529, 0.70710677
    %v2601 = vmul.f32 %v2532, 0.70710677
    %v2602 = vmul.f32 %v2535, 0.70710677
    %v2603 = vmul.f32 %v2538, 0.70710677
    %v2604 = vmul.f32 %v2541, 0.70710677
    %v2605 = vmul.f32 %v2544, 0.70710677
    %v2606 = vmul.f32 %v2547, 0.70710677
    %v2607 = vmul.f32 %v2550, 0.70710677
    %v2608 = vmul.f32 %v2553, 0.70710677
    %v2609 = vmul.f32 %v2556, 0.70710677
    %v2610 = vmul.f32 %v2559, 0.70710677
    %v2611 = vmul.f32 %v2562, 0.70710677
    %v2612 = vmul.f32 %v2588, %v2588
    %v2613 = vmin.f32 16.0, %v2612
    %v2614 = vmul.f32 %v2613, 2.1237322e-06
    %v2615 = vadd.f32 %v2614, 0.00028619796
    %v2616 = vmul.f32 %v2613, %v2615
    %v2617 = vadd.f32 %v2616, 0.0036580483
    %v2618 = vmul.f32 %v2613, %v2617
    %v2619 = vadd.f32 %v2618, 0.05243302
    %v2620 = vmul.f32 %v2613, %v2619
    %v2621 = vadd.f32 %v2620, 0.18741608
    %v2622 = vmul.f32 %v2613, %v2621
    %v2623 = vadd.f32 %v2622, 1.1283791
    %v2624 = vmul.f32 %v2588, %v2623
    %v2625 = vmul.f32 %v2613, 3.8918573e-05
    %v2626 = vadd.f32 %v2625, 0.001143296
    %v2627 = vmul.f32 %v2613, %v2626
    %v2628 = vadd.f32 %v2627, 0.014752088
    %v2629 = vmul.f32 %v2613, %v2628
    %v2630 = vadd.f32 %v2629, 0.112945676
    %v2631 = vmul.f32 %v2613, %v2630
    %v2632 = vadd.f32 %v2631, 0.4994258
    %v2633 = vmul.f32 %v2613, %v2632
    %v2634 = vadd.f32 %v2633, 1.0
    %v2635 = vrcp.pop %v2634
    %v2636 = vmul.f32 %v2634, %v2635
    %v2637 = vsub.f32 1.0, %v2636
    %v2638 = vmul.f32 %v2635, %v2637
    %v2639 = vadd.f32 %v2635, %v2638
    %vm2640 = vweird.f32 %v2634
    %vm2641 = vweird.f32 %v2635
    %vm2642 = vmor %vm2640, %vm2641
    %v2643 = vsel %vm2642, %v2635, %v2639
    %v2644 = vand.u32 2147483647, %v2634
    %vm2645 = vcmp.eq.f32.partialorder %v2644, 8.507059e+37
    %v2646 = vand.u32 %v2634, 2147483648
    %v2647 = vor.u32 1.1754944e-38, %v2646
    %v2648 = vsel %vm2645, %v2647, %v2643
    %v2649 = vmul.f32 %v2624, %v2648
    %v2650 = vmin.f32 %v2649, 1.0
    %v2651 = vmax.f32 %v2650, -1.0
    %v2652 = vmul.f32 %v2589, %v2589
    %v2653 = vmin.f32 16.0, %v2652
    %v2654 = vmul.f32 %v2653, 2.1237322e-06
    %v2655 = vadd.f32 %v2654, 0.00028619796
    %v2656 = vmul.f32 %v2653, %v2655
    %v2657 = vadd.f32 %v2656, 0.0036580483
    %v2658 = vmul.f32 %v2653, %v2657
    %v2659 = vadd.f32 %v2658, 0.05243302
    %v2660 = vmul.f32 %v2653, %v2659
    %v2661 = vadd.f32 %v2660, 0.18741608
    %v2662 = vmul.f32 %v2653, %v2661
    %v2663 = vadd.f32 %v2662, 1.1283791
    %v2664 = vmul.f32 %v2589, %v2663
    %v2665 = vmul.f32 %v2653, 3.8918573e-05
    %v2666 = vadd.f32 %v2665, 0.001143296
    %v2667 = vmul.f32 %v2653, %v2666
    %v2668 = vadd.f32 %v2667, 0.014752088
    %v2669 = vmul.f32 %v2653, %v2668
    %v2670 = vadd.f32 %v2669, 0.112945676
    %v2671 = vmul.f32 %v2653, %v2670
    %v2672 = vadd.f32 %v2671, 0.4994258
    %v2673 = vmul.f32 %v2653, %v2672
    %v2674 = vadd.f32 %v2673, 1.0
    %v2675 = vrcp.pop %v2674
    %v2676 = vmul.f32 %v2674, %v2675
    %v2677 = vsub.f32 1.0, %v2676
    %v2678 = vmul.f32 %v2675, %v2677
    %v2679 = vadd.f32 %v2675, %v2678
    %vm2680 = vweird.f32 %v2674
    %vm2681 = vweird.f32 %v2675
    %vm2682 = vmor %vm2680, %vm2681
    %v2683 = vsel %vm2682, %v2675, %v2679
    %v2684 = vand.u32 2147483647, %v2674
    %vm2685 = vcmp.eq.f32.partialorder %v2684, 8.507059e+37
    %v2686 = vand.u32 %v2674, 2147483648
    %v2687 = vor.u32 1.1754944e-38, %v2686
    %v2688 = vsel %vm2685, %v2687, %v2683
    %v2689 = vmul.f32 %v2664, %v2688
    %v2690 = vmin.f32 %v2689, 1.0
    %v2691 = vmax.f32 %v2690, -1.0
    %v2692 = vmul.f32 %v2590, %v2590
    %v2693 = vmin.f32 16.0, %v2692
    %v2694 = vmul.f32 %v2693, 2.1237322e-06
    %v2695 = vadd.f32 %v2694, 0.00028619796
    %v2696 = vmul.f32 %v2693, %v2695
    %v2697 = vadd.f32 %v2696, 0.0036580483
    %v2698 = vmul.f32 %v2693, %v2697
    %v2699 = vadd.f32 %v2698, 0.05243302
    %v2700 = vmul.f32 %v2693, %v2699
    %v2701 = vadd.f32 %v2700, 0.18741608
    %v2702 = vmul.f32 %v2693, %v2701
    %v2703 = vadd.f32 %v2702, 1.1283791
    %v2704 = vmul.f32 %v2590, %v2703
    %v2705 = vmul.f32 %v2693, 3.8918573e-05
    %v2706 = vadd.f32 %v2705, 0.001143296
    %v2707 = vmul.f32 %v2693, %v2706
    %v2708 = vadd.f32 %v2707, 0.014752088
    %v2709 = vmul.f32 %v2693, %v2708
    %v2710 = vadd.f32 %v2709, 0.112945676
    %v2711 = vmul.f32 %v2693, %v2710
    %v2712 = vadd.f32 %v2711, 0.4994258
    %v2713 = vmul.f32 %v2693, %v2712
    %v2714 = vadd.f32 %v2713, 1.0
    %v2715 = vrcp.pop %v2714
    %v2716 = vmul.f32 %v2714, %v2715
    %v2717 = vsub.f32 1.0, %v2716
    %v2718 = vmul.f32 %v2715, %v2717
    %v2719 = vadd.f32 %v2715, %v2718
    %vm2720 = vweird.f32 %v2714
    %vm2721 = vweird.f32 %v2715
    %vm2722 = vmor %vm2720, %vm2721
    %v2723 = vsel %vm2722, %v2715, %v2719
    %v2724 = vand.u32 2147483647, %v2714
    %vm2725 = vcmp.eq.f32.partialorder %v2724, 8.507059e+37
    %v2726 = vand.u32 %v2714, 2147483648
    %v2727 = vor.u32 1.1754944e-38, %v2726
    %v2728 = vsel %vm2725, %v2727, %v2723
    %v2729 = vmul.f32 %v2704, %v2728
    %v2730 = vmin.f32 %v2729, 1.0
    %v2731 = vmax.f32 %v2730, -1.0
    %v2732 = vmul.f32 %v2591, %v2591
    %v2733 = vmin.f32 16.0, %v2732
    %v2734 = vmul.f32 %v2733, 2.1237322e-06
    %v2735 = vadd.f32 %v2734, 0.00028619796
    %v2736 = vmul.f32 %v2733, %v2735
    %v2737 = vadd.f32 %v2736, 0.0036580483
    %v2738 = vmul.f32 %v2733, %v2737
    %v2739 = vadd.f32 %v2738, 0.05243302
    %v2740 = vmul.f32 %v2733, %v2739
    %v2741 = vadd.f32 %v2740, 0.18741608
    %v2742 = vmul.f32 %v2733, %v2741
    %v2743 = vadd.f32 %v2742, 1.1283791
    %v2744 = vmul.f32 %v2591, %v2743
    %v2745 = vmul.f32 %v2733, 3.8918573e-05
    %v2746 = vadd.f32 %v2745, 0.001143296
    %v2747 = vmul.f32 %v2733, %v2746
    %v2748 = vadd.f32 %v2747, 0.014752088
    %v2749 = vmul.f32 %v2733, %v2748
    %v2750 = vadd.f32 %v2749, 0.112945676
    %v2751 = vmul.f32 %v2733, %v2750
    %v2752 = vadd.f32 %v2751, 0.4994258
    %v2753 = vmul.f32 %v2733, %v2752
    %v2754 = vadd.f32 %v2753, 1.0
    %v2755 = vrcp.pop %v2754
    %v2756 = vmul.f32 %v2754, %v2755
    %v2757 = vsub.f32 1.0, %v2756
    %v2758 = vmul.f32 %v2755, %v2757
    %v2759 = vadd.f32 %v2755, %v2758
    %vm2760 = vweird.f32 %v2754
    %vm2761 = vweird.f32 %v2755
    %vm2762 = vmor %vm2760, %vm2761
    %v2763 = vsel %vm2762, %v2755, %v2759
    %v2764 = vand.u32 2147483647, %v2754
    %vm2765 = vcmp.eq.f32.partialorder %v2764, 8.507059e+37
    %v2766 = vand.u32 %v2754, 2147483648
    %v2767 = vor.u32 1.1754944e-38, %v2766
    %v2768 = vsel %vm2765, %v2767, %v2763
    %v2769 = vmul.f32 %v2744, %v2768
    %v2770 = vmin.f32 %v2769, 1.0
    %v2771 = vmax.f32 %v2770, -1.0
    %v2772 = vmul.f32 %v2592, %v2592
    %v2773 = vmin.f32 16.0, %v2772
    %v2774 = vmul.f32 %v2773, 2.1237322e-06
    %v2775 = vadd.f32 %v2774, 0.00028619796
    %v2776 = vmul.f32 %v2773, %v2775
    %v2777 = vadd.f32 %v2776, 0.0036580483
    %v2778 = vmul.f32 %v2773, %v2777
    %v2779 = vadd.f32 %v2778, 0.05243302
    %v2780 = vmul.f32 %v2773, %v2779
    %v2781 = vadd.f32 %v2780, 0.18741608
    %v2782 = vmul.f32 %v2773, %v2781
    %v2783 = vadd.f32 %v2782, 1.1283791
    %v2784 = vmul.f32 %v2592, %v2783
    %v2785 = vmul.f32 %v2773, 3.8918573e-05
    %v2786 = vadd.f32 %v2785, 0.001143296
    %v2787 = vmul.f32 %v2773, %v2786
    %v2788 = vadd.f32 %v2787, 0.014752088
    %v2789 = vmul.f32 %v2773, %v2788
    %v2790 = vadd.f32 %v2789, 0.112945676
    %v2791 = vmul.f32 %v2773, %v2790
    %v2792 = vadd.f32 %v2791, 0.4994258
    %v2793 = vmul.f32 %v2773, %v2792
    %v2794 = vadd.f32 %v2793, 1.0
    %v2795 = vrcp.pop %v2794
    %v2796 = vmul.f32 %v2794, %v2795
    %v2797 = vsub.f32 1.0, %v2796
    %v2798 = vmul.f32 %v2795, %v2797
    %v2799 = vadd.f32 %v2795, %v2798
    %vm2800 = vweird.f32 %v2794
    %vm2801 = vweird.f32 %v2795
    %vm2802 = vmor %vm2800, %vm2801
    %v2803 = vsel %vm2802, %v2795, %v2799
    %v2804 = vand.u32 2147483647, %v2794
    %vm2805 = vcmp.eq.f32.partialorder %v2804, 8.507059e+37
    %v2806 = vand.u32 %v2794, 2147483648
    %v2807 = vor.u32 1.1754944e-38, %v2806
    %v2808 = vsel %vm2805, %v2807, %v2803
    %v2809 = vmul.f32 %v2784, %v2808
    %v2810 = vmin.f32 %v2809, 1.0
    %v2811 = vmax.f32 %v2810, -1.0
    %v2812 = vmul.f32 %v2593, %v2593
    %v2813 = vmin.f32 16.0, %v2812
    %v2814 = vmul.f32 %v2813, 2.1237322e-06
    %v2815 = vadd.f32 %v2814, 0.00028619796
    %v2816 = vmul.f32 %v2813, %v2815
    %v2817 = vadd.f32 %v2816, 0.0036580483
    %v2818 = vmul.f32 %v2813, %v2817
    %v2819 = vadd.f32 %v2818, 0.05243302
    %v2820 = vmul.f32 %v2813, %v2819
    %v2821 = vadd.f32 %v2820, 0.18741608
    %v2822 = vmul.f32 %v2813, %v2821
    %v2823 = vadd.f32 %v2822, 1.1283791
    %v2824 = vmul.f32 %v2593, %v2823
    %v2825 = vmul.f32 %v2813, 3.8918573e-05
    %v2826 = vadd.f32 %v2825, 0.001143296
    %v2827 = vmul.f32 %v2813, %v2826
    %v2828 = vadd.f32 %v2827, 0.014752088
    %v2829 = vmul.f32 %v2813, %v2828
    %v2830 = vadd.f32 %v2829, 0.112945676
    %v2831 = vmul.f32 %v2813, %v2830
    %v2832 = vadd.f32 %v2831, 0.4994258
    %v2833 = vmul.f32 %v2813, %v2832
    %v2834 = vadd.f32 %v2833, 1.0
    %v2835 = vrcp.pop %v2834
    %v2836 = vmul.f32 %v2834, %v2835
    %v2837 = vsub.f32 1.0, %v2836
    %v2838 = vmul.f32 %v2835, %v2837
    %v2839 = vadd.f32 %v2835, %v2838
    %vm2840 = vweird.f32 %v2834
    %vm2841 = vweird.f32 %v2835
    %vm2842 = vmor %vm2840, %vm2841
    %v2843 = vsel %vm2842, %v2835, %v2839
    %v2844 = vand.u32 2147483647, %v2834
    %vm2845 = vcmp.eq.f32.partialorder %v2844, 8.507059e+37
    %v2846 = vand.u32 %v2834, 2147483648
    %v2847 = vor.u32 1.1754944e-38, %v2846
    %v2848 = vsel %vm2845, %v2847, %v2843
    %v2849 = vmul.f32 %v2824, %v2848
    %v2850 = vmin.f32 %v2849, 1.0
    %v2851 = vmax.f32 %v2850, -1.0
    %v2852 = vmul.f32 %v2594, %v2594
    %v2853 = vmin.f32 16.0, %v2852
    %v2854 = vmul.f32 %v2853, 2.1237322e-06
    %v2855 = vadd.f32 %v2854, 0.00028619796
    %v2856 = vmul.f32 %v2853, %v2855
    %v2857 = vadd.f32 %v2856, 0.0036580483
    %v2858 = vmul.f32 %v2853, %v2857
    %v2859 = vadd.f32 %v2858, 0.05243302
    %v2860 = vmul.f32 %v2853, %v2859
    %v2861 = vadd.f32 %v2860, 0.18741608
    %v2862 = vmul.f32 %v2853, %v2861
    %v2863 = vadd.f32 %v2862, 1.1283791
    %v2864 = vmul.f32 %v2594, %v2863
    %v2865 = vmul.f32 %v2853, 3.8918573e-05
    %v2866 = vadd.f32 %v2865, 0.001143296
    %v2867 = vmul.f32 %v2853, %v2866
    %v2868 = vadd.f32 %v2867, 0.014752088
    %v2869 = vmul.f32 %v2853, %v2868
    %v2870 = vadd.f32 %v2869, 0.112945676
    %v2871 = vmul.f32 %v2853, %v2870
    %v2872 = vadd.f32 %v2871, 0.4994258
    %v2873 = vmul.f32 %v2853, %v2872
    %v2874 = vadd.f32 %v2873, 1.0
    %v2875 = vrcp.pop %v2874
    %v2876 = vmul.f32 %v2874, %v2875
    %v2877 = vsub.f32 1.0, %v2876
    %v2878 = vmul.f32 %v2875, %v2877
    %v2879 = vadd.f32 %v2875, %v2878
    %vm2880 = vweird.f32 %v2874
    %vm2881 = vweird.f32 %v2875
    %vm2882 = vmor %vm2880, %vm2881
    %v2883 = vsel %vm2882, %v2875, %v2879
    %v2884 = vand.u32 2147483647, %v2874
    %vm2885 = vcmp.eq.f32.partialorder %v2884, 8.507059e+37
    %v2886 = vand.u32 %v2874, 2147483648
    %v2887 = vor.u32 1.1754944e-38, %v2886
    %v2888 = vsel %vm2885, %v2887, %v2883
    %v2889 = vmul.f32 %v2864, %v2888
    %v2890 = vmin.f32 %v2889, 1.0
    %v2891 = vmax.f32 %v2890, -1.0
    %v2892 = vmul.f32 %v2595, %v2595
    %v2893 = vmin.f32 16.0, %v2892
    %v2894 = vmul.f32 %v2893, 2.1237322e-06
    %v2895 = vadd.f32 %v2894, 0.00028619796
    %v2896 = vmul.f32 %v2893, %v2895
    %v2897 = vadd.f32 %v2896, 0.0036580483
    %v2898 = vmul.f32 %v2893, %v2897
    %v2899 = vadd.f32 %v2898, 0.05243302
    %v2900 = vmul.f32 %v2893, %v2899
    %v2901 = vadd.f32 %v2900, 0.18741608
    %v2902 = vmul.f32 %v2893, %v2901
    %v2903 = vadd.f32 %v2902, 1.1283791
    %v2904 = vmul.f32 %v2595, %v2903
    %v2905 = vmul.f32 %v2893, 3.8918573e-05
    %v2906 = vadd.f32 %v2905, 0.001143296
    %v2907 = vmul.f32 %v2893, %v2906
    %v2908 = vadd.f32 %v2907, 0.014752088
    %v2909 = vmul.f32 %v2893, %v2908
    %v2910 = vadd.f32 %v2909, 0.112945676
    %v2911 = vmul.f32 %v2893, %v2910
    %v2912 = vadd.f32 %v2911, 0.4994258
    %v2913 = vmul.f32 %v2893, %v2912
    %v2914 = vadd.f32 %v2913, 1.0
    %v2915 = vrcp.pop %v2914
    %v2916 = vmul.f32 %v2914, %v2915
    %v2917 = vsub.f32 1.0, %v2916
    %v2918 = vmul.f32 %v2915, %v2917
    %v2919 = vadd.f32 %v2915, %v2918
    %vm2920 = vweird.f32 %v2914
    %vm2921 = vweird.f32 %v2915
    %vm2922 = vmor %vm2920, %vm2921
    %v2923 = vsel %vm2922, %v2915, %v2919
    %v2924 = vand.u32 2147483647, %v2914
    %vm2925 = vcmp.eq.f32.partialorder %v2924, 8.507059e+37
    %v2926 = vand.u32 %v2914, 2147483648
    %v2927 = vor.u32 1.1754944e-38, %v2926
    %v2928 = vsel %vm2925, %v2927, %v2923
    %v2929 = vmul.f32 %v2904, %v2928
    %v2930 = vmin.f32 %v2929, 1.0
    %v2931 = vmax.f32 %v2930, -1.0
    %v2932 = vmul.f32 %v2596, %v2596
    %v2933 = vmin.f32 16.0, %v2932
    %v2934 = vmul.f32 %v2933, 2.1237322e-06
    %v2935 = vadd.f32 %v2934, 0.00028619796
    %v2936 = vmul.f32 %v2933, %v2935
    %v2937 = vadd.f32 %v2936, 0.0036580483
    %v2938 = vmul.f32 %v2933, %v2937
    %v2939 = vadd.f32 %v2938, 0.05243302
    %v2940 = vmul.f32 %v2933, %v2939
    %v2941 = vadd.f32 %v2940, 0.18741608
    %v2942 = vmul.f32 %v2933, %v2941
    %v2943 = vadd.f32 %v2942, 1.1283791
    %v2944 = vmul.f32 %v2596, %v2943
    %v2945 = vmul.f32 %v2933, 3.8918573e-05
    %v2946 = vadd.f32 %v2945, 0.001143296
    %v2947 = vmul.f32 %v2933, %v2946
    %v2948 = vadd.f32 %v2947, 0.014752088
    %v2949 = vmul.f32 %v2933, %v2948
    %v2950 = vadd.f32 %v2949, 0.112945676
    %v2951 = vmul.f32 %v2933, %v2950
    %v2952 = vadd.f32 %v2951, 0.4994258
    %v2953 = vmul.f32 %v2933, %v2952
    %v2954 = vadd.f32 %v2953, 1.0
    %v2955 = vrcp.pop %v2954
    %v2956 = vmul.f32 %v2954, %v2955
    %v2957 = vsub.f32 1.0, %v2956
    %v2958 = vmul.f32 %v2955, %v2957
    %v2959 = vadd.f32 %v2955, %v2958
    %vm2960 = vweird.f32 %v2954
    %vm2961 = vweird.f32 %v2955
    %vm2962 = vmor %vm2960, %vm2961
    %v2963 = vsel %vm2962, %v2955, %v2959
    %v2964 = vand.u32 2147483647, %v2954
    %vm2965 = vcmp.eq.f32.partialorder %v2964, 8.507059e+37
    %v2966 = vand.u32 %v2954, 2147483648
    %v2967 = vor.u32 1.1754944e-38, %v2966
    %v2968 = vsel %vm2965, %v2967, %v2963
    %v2969 = vmul.f32 %v2944, %v2968
    %v2970 = vmin.f32 %v2969, 1.0
    %v2971 = vmax.f32 %v2970, -1.0
    %v2972 = vmul.f32 %v2597, %v2597
    %v2973 = vmin.f32 16.0, %v2972
    %v2974 = vmul.f32 %v2973, 2.1237322e-06
    %v2975 = vadd.f32 %v2974, 0.00028619796
    %v2976 = vmul.f32 %v2973, %v2975
    %v2977 = vadd.f32 %v2976, 0.0036580483
    %v2978 = vmul.f32 %v2973, %v2977
    %v2979 = vadd.f32 %v2978, 0.05243302
    %v2980 = vmul.f32 %v2973, %v2979
    %v2981 = vadd.f32 %v2980, 0.18741608
    %v2982 = vmul.f32 %v2973, %v2981
    %v2983 = vadd.f32 %v2982, 1.1283791
    %v2984 = vmul.f32 %v2597, %v2983
    %v2985 = vmul.f32 %v2973, 3.8918573e-05
    %v2986 = vadd.f32 %v2985, 0.001143296
    %v2987 = vmul.f32 %v2973, %v2986
    %v2988 = vadd.f32 %v2987, 0.014752088
    %v2989 = vmul.f32 %v2973, %v2988
    %v2990 = vadd.f32 %v2989, 0.112945676
    %v2991 = vmul.f32 %v2973, %v2990
    %v2992 = vadd.f32 %v2991, 0.4994258
    %v2993 = vmul.f32 %v2973, %v2992
    %v2994 = vadd.f32 %v2993, 1.0
    %v2995 = vrcp.pop %v2994
    %v2996 = vmul.f32 %v2994, %v2995
    %v2997 = vsub.f32 1.0, %v2996
    %v2998 = vmul.f32 %v2995, %v2997
    %v2999 = vadd.f32 %v2995, %v2998
    %vm3000 = vweird.f32 %v2994
    %vm3001 = vweird.f32 %v2995
    %vm3002 = vmor %vm3000, %vm3001
    %v3003 = vsel %vm3002, %v2995, %v2999
    %v3004 = vand.u32 2147483647, %v2994
    %vm3005 = vcmp.eq.f32.partialorder %v3004, 8.507059e+37
    %v3006 = vand.u32 %v2994, 2147483648
    %v3007 = vor.u32 1.1754944e-38, %v3006
    %v3008 = vsel %vm3005, %v3007, %v3003
    %v3009 = vmul.f32 %v2984, %v3008
    %v3010 = vmin.f32 %v3009, 1.0
    %v3011 = vmax.f32 %v3010, -1.0
    %v3012 = vmul.f32 %v2598, %v2598
    %v3013 = vmin.f32 16.0, %v3012
    %v3014 = vmul.f32 %v3013, 2.1237322e-06
    %v3015 = vadd.f32 %v3014, 0.00028619796
    %v3016 = vmul.f32 %v3013, %v3015
    %v3017 = vadd.f32 %v3016, 0.0036580483
    %v3018 = vmul.f32 %v3013, %v3017
    %v3019 = vadd.f32 %v3018, 0.05243302
    %v3020 = vmul.f32 %v3013, %v3019
    %v3021 = vadd.f32 %v3020, 0.18741608
    %v3022 = vmul.f32 %v3013, %v3021
    %v3023 = vadd.f32 %v3022, 1.1283791
    %v3024 = vmul.f32 %v2598, %v3023
    %v3025 = vmul.f32 %v3013, 3.8918573e-05
    %v3026 = vadd.f32 %v3025, 0.001143296
    %v3027 = vmul.f32 %v3013, %v3026
    %v3028 = vadd.f32 %v3027, 0.014752088
    %v3029 = vmul.f32 %v3013, %v3028
    %v3030 = vadd.f32 %v3029, 0.112945676
    %v3031 = vmul.f32 %v3013, %v3030
    %v3032 = vadd.f32 %v3031, 0.4994258
    %v3033 = vmul.f32 %v3013, %v3032
    %v3034 = vadd.f32 %v3033, 1.0
    %v3035 = vrcp.pop %v3034
    %v3036 = vmul.f32 %v3034, %v3035
    %v3037 = vsub.f32 1.0, %v3036
    %v3038 = vmul.f32 %v3035, %v3037
    %v3039 = vadd.f32 %v3035, %v3038
    %vm3040 = vweird.f32 %v3034
    %vm3041 = vweird.f32 %v3035
    %vm3042 = vmor %vm3040, %vm3041
    %v3043 = vsel %vm3042, %v3035, %v3039
    %v3044 = vand.u32 2147483647, %v3034
    %vm3045 = vcmp.eq.f32.partialorder %v3044, 8.507059e+37
    %v3046 = vand.u32 %v3034, 2147483648
    %v3047 = vor.u32 1.1754944e-38, %v3046
    %v3048 = vsel %vm3045, %v3047, %v3043
    %v3049 = vmul.f32 %v3024, %v3048
    %v3050 = vmin.f32 %v3049, 1.0
    %v3051 = vmax.f32 %v3050, -1.0
    %v3052 = vmul.f32 %v2599, %v2599
    %v3053 = vmin.f32 16.0, %v3052
    %v3054 = vmul.f32 %v3053, 2.1237322e-06
    %v3055 = vadd.f32 %v3054, 0.00028619796
    %v3056 = vmul.f32 %v3053, %v3055
    %v3057 = vadd.f32 %v3056, 0.0036580483
    %v3058 = vmul.f32 %v3053, %v3057
    %v3059 = vadd.f32 %v3058, 0.05243302
    %v3060 = vmul.f32 %v3053, %v3059
    %v3061 = vadd.f32 %v3060, 0.18741608
    %v3062 = vmul.f32 %v3053, %v3061
    %v3063 = vadd.f32 %v3062, 1.1283791
    %v3064 = vmul.f32 %v2599, %v3063
    %v3065 = vmul.f32 %v3053, 3.8918573e-05
    %v3066 = vadd.f32 %v3065, 0.001143296
    %v3067 = vmul.f32 %v3053, %v3066
    %v3068 = vadd.f32 %v3067, 0.014752088
    %v3069 = vmul.f32 %v3053, %v3068
    %v3070 = vadd.f32 %v3069, 0.112945676
    %v3071 = vmul.f32 %v3053, %v3070
    %v3072 = vadd.f32 %v3071, 0.4994258
    %v3073 = vmul.f32 %v3053, %v3072
    %v3074 = vadd.f32 %v3073, 1.0
    %v3075 = vrcp.pop %v3074
    %v3076 = vmul.f32 %v3074, %v3075
    %v3077 = vsub.f32 1.0, %v3076
    %v3078 = vmul.f32 %v3075, %v3077
    %v3079 = vadd.f32 %v3075, %v3078
    %vm3080 = vweird.f32 %v3074
    %vm3081 = vweird.f32 %v3075
    %vm3082 = vmor %vm3080, %vm3081
    %v3083 = vsel %vm3082, %v3075, %v3079
    %v3084 = vand.u32 2147483647, %v3074
    %vm3085 = vcmp.eq.f32.partialorder %v3084, 8.507059e+37
    %v3086 = vand.u32 %v3074, 2147483648
    %v3087 = vor.u32 1.1754944e-38, %v3086
    %v3088 = vsel %vm3085, %v3087, %v3083
    %v3089 = vmul.f32 %v3064, %v3088
    %v3090 = vmin.f32 %v3089, 1.0
    %v3091 = vmax.f32 %v3090, -1.0
    %v3092 = vmul.f32 %v2600, %v2600
    %v3093 = vmin.f32 16.0, %v3092
    %v3094 = vmul.f32 %v3093, 2.1237322e-06
    %v3095 = vadd.f32 %v3094, 0.00028619796
    %v3096 = vmul.f32 %v3093, %v3095
    %v3097 = vadd.f32 %v3096, 0.0036580483
    %v3098 = vmul.f32 %v3093, %v3097
    %v3099 = vadd.f32 %v3098, 0.05243302
    %v3100 = vmul.f32 %v3093, %v3099
    %v3101 = vadd.f32 %v3100, 0.18741608
    %v3102 = vmul.f32 %v3093, %v3101
    %v3103 = vadd.f32 %v3102, 1.1283791
    %v3104 = vmul.f32 %v2600, %v3103
    %v3105 = vmul.f32 %v3093, 3.8918573e-05
    %v3106 = vadd.f32 %v3105, 0.001143296
    %v3107 = vmul.f32 %v3093, %v3106
    %v3108 = vadd.f32 %v3107, 0.014752088
    %v3109 = vmul.f32 %v3093, %v3108
    %v3110 = vadd.f32 %v3109, 0.112945676
    %v3111 = vmul.f32 %v3093, %v3110
    %v3112 = vadd.f32 %v3111, 0.4994258
    %v3113 = vmul.f32 %v3093, %v3112
    %v3114 = vadd.f32 %v3113, 1.0
    %v3115 = vrcp.pop %v3114
    %v3116 = vmul.f32 %v3114, %v3115
    %v3117 = vsub.f32 1.0, %v3116
    %v3118 = vmul.f32 %v3115, %v3117
    %v3119 = vadd.f32 %v3115, %v3118
    %vm3120 = vweird.f32 %v3114
    %vm3121 = vweird.f32 %v3115
    %vm3122 = vmor %vm3120, %vm3121
    %v3123 = vsel %vm3122, %v3115, %v3119
    %v3124 = vand.u32 2147483647, %v3114
    %vm3125 = vcmp.eq.f32.partialorder %v3124, 8.507059e+37
    %v3126 = vand.u32 %v3114, 2147483648
    %v3127 = vor.u32 1.1754944e-38, %v3126
    %v3128 = vsel %vm3125, %v3127, %v3123
    %v3129 = vmul.f32 %v3104, %v3128
    %v3130 = vmin.f32 %v3129, 1.0
    %v3131 = vmax.f32 %v3130, -1.0
    %v3132 = vmul.f32 %v2601, %v2601
    %v3133 = vmin.f32 16.0, %v3132
    %v3134 = vmul.f32 %v3133, 2.1237322e-06
    %v3135 = vadd.f32 %v3134, 0.00028619796
    %v3136 = vmul.f32 %v3133, %v3135
    %v3137 = vadd.f32 %v3136, 0.0036580483
    %v3138 = vmul.f32 %v3133, %v3137
    %v3139 = vadd.f32 %v3138, 0.05243302
    %v3140 = vmul.f32 %v3133, %v3139
    %v3141 = vadd.f32 %v3140, 0.18741608
    %v3142 = vmul.f32 %v3133, %v3141
    %v3143 = vadd.f32 %v3142, 1.1283791
    %v3144 = vmul.f32 %v2601, %v3143
    %v3145 = vmul.f32 %v3133, 3.8918573e-05
    %v3146 = vadd.f32 %v3145, 0.001143296
    %v3147 = vmul.f32 %v3133, %v3146
    %v3148 = vadd.f32 %v3147, 0.014752088
    %v3149 = vmul.f32 %v3133, %v3148
    %v3150 = vadd.f32 %v3149, 0.112945676
    %v3151 = vmul.f32 %v3133, %v3150
    %v3152 = vadd.f32 %v3151, 0.4994258
    %v3153 = vmul.f32 %v3133, %v3152
    %v3154 = vadd.f32 %v3153, 1.0
    %v3155 = vrcp.pop %v3154
    %v3156 = vmul.f32 %v3154, %v3155
    %v3157 = vsub.f32 1.0, %v3156
    %v3158 = vmul.f32 %v3155, %v3157
    %v3159 = vadd.f32 %v3155, %v3158
    %vm3160 = vweird.f32 %v3154
    %vm3161 = vweird.f32 %v3155
    %vm3162 = vmor %vm3160, %vm3161
    %v3163 = vsel %vm3162, %v3155, %v3159
    %v3164 = vand.u32 2147483647, %v3154
    %vm3165 = vcmp.eq.f32.partialorder %v3164, 8.507059e+37
    %v3166 = vand.u32 %v3154, 2147483648
    %v3167 = vor.u32 1.1754944e-38, %v3166
    %v3168 = vsel %vm3165, %v3167, %v3163
    %v3169 = vmul.f32 %v3144, %v3168
    %v3170 = vmin.f32 %v3169, 1.0
    %v3171 = vmax.f32 %v3170, -1.0
    %v3172 = vmul.f32 %v2602, %v2602
    %v3173 = vmin.f32 16.0, %v3172
    %v3174 = vmul.f32 %v3173, 2.1237322e-06
    %v3175 = vadd.f32 %v3174, 0.00028619796
    %v3176 = vmul.f32 %v3173, %v3175
    %v3177 = vadd.f32 %v3176, 0.0036580483
    %v3178 = vmul.f32 %v3173, %v3177
    %v3179 = vadd.f32 %v3178, 0.05243302
    %v3180 = vmul.f32 %v3173, %v3179
    %v3181 = vadd.f32 %v3180, 0.18741608
    %v3182 = vmul.f32 %v3173, %v3181
    %v3183 = vadd.f32 %v3182, 1.1283791
    %v3184 = vmul.f32 %v2602, %v3183
    %v3185 = vmul.f32 %v3173, 3.8918573e-05
    %v3186 = vadd.f32 %v3185, 0.001143296
    %v3187 = vmul.f32 %v3173, %v3186
    %v3188 = vadd.f32 %v3187, 0.014752088
    %v3189 = vmul.f32 %v3173, %v3188
    %v3190 = vadd.f32 %v3189, 0.112945676
    %v3191 = vmul.f32 %v3173, %v3190
    %v3192 = vadd.f32 %v3191, 0.4994258
    %v3193 = vmul.f32 %v3173, %v3192
    %v3194 = vadd.f32 %v3193, 1.0
    %v3195 = vrcp.pop %v3194
    %v3196 = vmul.f32 %v3194, %v3195
    %v3197 = vsub.f32 1.0, %v3196
    %v3198 = vmul.f32 %v3195, %v3197
    %v3199 = vadd.f32 %v3195, %v3198
    %vm3200 = vweird.f32 %v3194
    %vm3201 = vweird.f32 %v3195
    %vm3202 = vmor %vm3200, %vm3201
    %v3203 = vsel %vm3202, %v3195, %v3199
    %v3204 = vand.u32 2147483647, %v3194
    %vm3205 = vcmp.eq.f32.partialorder %v3204, 8.507059e+37
    %v3206 = vand.u32 %v3194, 2147483648
    %v3207 = vor.u32 1.1754944e-38, %v3206
    %v3208 = vsel %vm3205, %v3207, %v3203
    %v3209 = vmul.f32 %v3184, %v3208
    %v3210 = vmin.f32 %v3209, 1.0
    %v3211 = vmax.f32 %v3210, -1.0
    %v3212 = vmul.f32 %v2603, %v2603
    %v3213 = vmin.f32 16.0, %v3212
    %v3214 = vmul.f32 %v3213, 2.1237322e-06
    %v3215 = vadd.f32 %v3214, 0.00028619796
    %v3216 = vmul.f32 %v3213, %v3215
    %v3217 = vadd.f32 %v3216, 0.0036580483
    %v3218 = vmul.f32 %v3213, %v3217
    %v3219 = vadd.f32 %v3218, 0.05243302
    %v3220 = vmul.f32 %v3213, %v3219
    %v3221 = vadd.f32 %v3220, 0.18741608
    %v3222 = vmul.f32 %v3213, %v3221
    %v3223 = vadd.f32 %v3222, 1.1283791
    %v3224 = vmul.f32 %v2603, %v3223
    %v3225 = vmul.f32 %v3213, 3.8918573e-05
    %v3226 = vadd.f32 %v3225, 0.001143296
    %v3227 = vmul.f32 %v3213, %v3226
    %v3228 = vadd.f32 %v3227, 0.014752088
    %v3229 = vmul.f32 %v3213, %v3228
    %v3230 = vadd.f32 %v3229, 0.112945676
    %v3231 = vmul.f32 %v3213, %v3230
    %v3232 = vadd.f32 %v3231, 0.4994258
    %v3233 = vmul.f32 %v3213, %v3232
    %v3234 = vadd.f32 %v3233, 1.0
    %v3235 = vrcp.pop %v3234
    %v3236 = vmul.f32 %v3234, %v3235
    %v3237 = vsub.f32 1.0, %v3236
    %v3238 = vmul.f32 %v3235, %v3237
    %v3239 = vadd.f32 %v3235, %v3238
    %vm3240 = vweird.f32 %v3234
    %vm3241 = vweird.f32 %v3235
    %vm3242 = vmor %vm3240, %vm3241
    %v3243 = vsel %vm3242, %v3235, %v3239
    %v3244 = vand.u32 2147483647, %v3234
    %vm3245 = vcmp.eq.f32.partialorder %v3244, 8.507059e+37
    %v3246 = vand.u32 %v3234, 2147483648
    %v3247 = vor.u32 1.1754944e-38, %v3246
    %v3248 = vsel %vm3245, %v3247, %v3243
    %v3249 = vmul.f32 %v3224, %v3248
    %v3250 = vmin.f32 %v3249, 1.0
    %v3251 = vmax.f32 %v3250, -1.0
    %v3252 = vmul.f32 %v2604, %v2604
    %v3253 = vmin.f32 16.0, %v3252
    %v3254 = vmul.f32 %v3253, 2.1237322e-06
    %v3255 = vadd.f32 %v3254, 0.00028619796
    %v3256 = vmul.f32 %v3253, %v3255
    %v3257 = vadd.f32 %v3256, 0.0036580483
    %v3258 = vmul.f32 %v3253, %v3257
    %v3259 = vadd.f32 %v3258, 0.05243302
    %v3260 = vmul.f32 %v3253, %v3259
    %v3261 = vadd.f32 %v3260, 0.18741608
    %v3262 = vmul.f32 %v3253, %v3261
    %v3263 = vadd.f32 %v3262, 1.1283791
    %v3264 = vmul.f32 %v2604, %v3263
    %v3265 = vmul.f32 %v3253, 3.8918573e-05
    %v3266 = vadd.f32 %v3265, 0.001143296
    %v3267 = vmul.f32 %v3253, %v3266
    %v3268 = vadd.f32 %v3267, 0.014752088
    %v3269 = vmul.f32 %v3253, %v3268
    %v3270 = vadd.f32 %v3269, 0.112945676
    %v3271 = vmul.f32 %v3253, %v3270
    %v3272 = vadd.f32 %v3271, 0.4994258
    %v3273 = vmul.f32 %v3253, %v3272
    %v3274 = vadd.f32 %v3273, 1.0
    %v3275 = vrcp.pop %v3274
    %v3276 = vmul.f32 %v3274, %v3275
    %v3277 = vsub.f32 1.0, %v3276
    %v3278 = vmul.f32 %v3275, %v3277
    %v3279 = vadd.f32 %v3275, %v3278
    %vm3280 = vweird.f32 %v3274
    %vm3281 = vweird.f32 %v3275
    %vm3282 = vmor %vm3280, %vm3281
    %v3283 = vsel %vm3282, %v3275, %v3279
    %v3284 = vand.u32 2147483647, %v3274
    %vm3285 = vcmp.eq.f32.partialorder %v3284, 8.507059e+37
    %v3286 = vand.u32 %v3274, 2147483648
    %v3287 = vor.u32 1.1754944e-38, %v3286
    %v3288 = vsel %vm3285, %v3287, %v3283
    %v3289 = vmul.f32 %v3264, %v3288
    %v3290 = vmin.f32 %v3289, 1.0
    %v3291 = vmax.f32 %v3290, -1.0
    %v3292 = vmul.f32 %v2605, %v2605
    %v3293 = vmin.f32 16.0, %v3292
    %v3294 = vmul.f32 %v3293, 2.1237322e-06
    %v3295 = vadd.f32 %v3294, 0.00028619796
    %v3296 = vmul.f32 %v3293, %v3295
    %v3297 = vadd.f32 %v3296, 0.0036580483
    %v3298 = vmul.f32 %v3293, %v3297
    %v3299 = vadd.f32 %v3298, 0.05243302
    %v3300 = vmul.f32 %v3293, %v3299
    %v3301 = vadd.f32 %v3300, 0.18741608
    %v3302 = vmul.f32 %v3293, %v3301
    %v3303 = vadd.f32 %v3302, 1.1283791
    %v3304 = vmul.f32 %v2605, %v3303
    %v3305 = vmul.f32 %v3293, 3.8918573e-05
    %v3306 = vadd.f32 %v3305, 0.001143296
    %v3307 = vmul.f32 %v3293, %v3306
    %v3308 = vadd.f32 %v3307, 0.014752088
    %v3309 = vmul.f32 %v3293, %v3308
    %v3310 = vadd.f32 %v3309, 0.112945676
    %v3311 = vmul.f32 %v3293, %v3310
    %v3312 = vadd.f32 %v3311, 0.4994258
    %v3313 = vmul.f32 %v3293, %v3312
    %v3314 = vadd.f32 %v3313, 1.0
    %v3315 = vrcp.pop %v3314
    %v3316 = vmul.f32 %v3314, %v3315
    %v3317 = vsub.f32 1.0, %v3316
    %v3318 = vmul.f32 %v3315, %v3317
    %v3319 = vadd.f32 %v3315, %v3318
    %vm3320 = vweird.f32 %v3314
    %vm3321 = vweird.f32 %v3315
    %vm3322 = vmor %vm3320, %vm3321
    %v3323 = vsel %vm3322, %v3315, %v3319
    %v3324 = vand.u32 2147483647, %v3314
    %vm3325 = vcmp.eq.f32.partialorder %v3324, 8.507059e+37
    %v3326 = vand.u32 %v3314, 2147483648
    %v3327 = vor.u32 1.1754944e-38, %v3326
    %v3328 = vsel %vm3325, %v3327, %v3323
    %v3329 = vmul.f32 %v3304, %v3328
    %v3330 = vmin.f32 %v3329, 1.0
    %v3331 = vmax.f32 %v3330, -1.0
    %v3332 = vmul.f32 %v2606, %v2606
    %v3333 = vmin.f32 16.0, %v3332
    %v3334 = vmul.f32 %v3333, 2.1237322e-06
    %v3335 = vadd.f32 %v3334, 0.00028619796
    %v3336 = vmul.f32 %v3333, %v3335
    %v3337 = vadd.f32 %v3336, 0.0036580483
    %v3338 = vmul.f32 %v3333, %v3337
    %v3339 = vadd.f32 %v3338, 0.05243302
    %v3340 = vmul.f32 %v3333, %v3339
    %v3341 = vadd.f32 %v3340, 0.18741608
    %v3342 = vmul.f32 %v3333, %v3341
    %v3343 = vadd.f32 %v3342, 1.1283791
    %v3344 = vmul.f32 %v2606, %v3343
    %v3345 = vmul.f32 %v3333, 3.8918573e-05
    %v3346 = vadd.f32 %v3345, 0.001143296
    %v3347 = vmul.f32 %v3333, %v3346
    %v3348 = vadd.f32 %v3347, 0.014752088
    %v3349 = vmul.f32 %v3333, %v3348
    %v3350 = vadd.f32 %v3349, 0.112945676
    %v3351 = vmul.f32 %v3333, %v3350
    %v3352 = vadd.f32 %v3351, 0.4994258
    %v3353 = vmul.f32 %v3333, %v3352
    %v3354 = vadd.f32 %v3353, 1.0
    %v3355 = vrcp.pop %v3354
    %v3356 = vmul.f32 %v3354, %v3355
    %v3357 = vsub.f32 1.0, %v3356
    %v3358 = vmul.f32 %v3355, %v3357
    %v3359 = vadd.f32 %v3355, %v3358
    %vm3360 = vweird.f32 %v3354
    %vm3361 = vweird.f32 %v3355
    %vm3362 = vmor %vm3360, %vm3361
    %v3363 = vsel %vm3362, %v3355, %v3359
    %v3364 = vand.u32 2147483647, %v3354
    %vm3365 = vcmp.eq.f32.partialorder %v3364, 8.507059e+37
    %v3366 = vand.u32 %v3354, 2147483648
    %v3367 = vor.u32 1.1754944e-38, %v3366
    %v3368 = vsel %vm3365, %v3367, %v3363
    %v3369 = vmul.f32 %v3344, %v3368
    %v3370 = vmin.f32 %v3369, 1.0
    %v3371 = vmax.f32 %v3370, -1.0
    %v3372 = vmul.f32 %v2607, %v2607
    %v3373 = vmin.f32 16.0, %v3372
    %v3374 = vmul.f32 %v3373, 2.1237322e-06
    %v3375 = vadd.f32 %v3374, 0.00028619796
    %v3376 = vmul.f32 %v3373, %v3375
    %v3377 = vadd.f32 %v3376, 0.0036580483
    %v3378 = vmul.f32 %v3373, %v3377
    %v3379 = vadd.f32 %v3378, 0.05243302
    %v3380 = vmul.f32 %v3373, %v3379
    %v3381 = vadd.f32 %v3380, 0.18741608
    %v3382 = vmul.f32 %v3373, %v3381
    %v3383 = vadd.f32 %v3382, 1.1283791
    %v3384 = vmul.f32 %v2607, %v3383
    %v3385 = vmul.f32 %v3373, 3.8918573e-05
    %v3386 = vadd.f32 %v3385, 0.001143296
    %v3387 = vmul.f32 %v3373, %v3386
    %v3388 = vadd.f32 %v3387, 0.014752088
    %v3389 = vmul.f32 %v3373, %v3388
    %v3390 = vadd.f32 %v3389, 0.112945676
    %v3391 = vmul.f32 %v3373, %v3390
    %v3392 = vadd.f32 %v3391, 0.4994258
    %v3393 = vmul.f32 %v3373, %v3392
    %v3394 = vadd.f32 %v3393, 1.0
    %v3395 = vrcp.pop %v3394
    %v3396 = vmul.f32 %v3394, %v3395
    %v3397 = vsub.f32 1.0, %v3396
    %v3398 = vmul.f32 %v3395, %v3397
    %v3399 = vadd.f32 %v3395, %v3398
    %vm3400 = vweird.f32 %v3394
    %vm3401 = vweird.f32 %v3395
    %vm3402 = vmor %vm3400, %vm3401
    %v3403 = vsel %vm3402, %v3395, %v3399
    %v3404 = vand.u32 2147483647, %v3394
    %vm3405 = vcmp.eq.f32.partialorder %v3404, 8.507059e+37
    %v3406 = vand.u32 %v3394, 2147483648
    %v3407 = vor.u32 1.1754944e-38, %v3406
    %v3408 = vsel %vm3405, %v3407, %v3403
    %v3409 = vmul.f32 %v3384, %v3408
    %v3410 = vmin.f32 %v3409, 1.0
    %v3411 = vmax.f32 %v3410, -1.0
    %v3412 = vmul.f32 %v2608, %v2608
    %v3413 = vmin.f32 16.0, %v3412
    %v3414 = vmul.f32 %v3413, 2.1237322e-06
    %v3415 = vadd.f32 %v3414, 0.00028619796
    %v3416 = vmul.f32 %v3413, %v3415
    %v3417 = vadd.f32 %v3416, 0.0036580483
    %v3418 = vmul.f32 %v3413, %v3417
    %v3419 = vadd.f32 %v3418, 0.05243302
    %v3420 = vmul.f32 %v3413, %v3419
    %v3421 = vadd.f32 %v3420, 0.18741608
    %v3422 = vmul.f32 %v3413, %v3421
    %v3423 = vadd.f32 %v3422, 1.1283791
    %v3424 = vmul.f32 %v2608, %v3423
    %v3425 = vmul.f32 %v3413, 3.8918573e-05
    %v3426 = vadd.f32 %v3425, 0.001143296
    %v3427 = vmul.f32 %v3413, %v3426
    %v3428 = vadd.f32 %v3427, 0.014752088
    %v3429 = vmul.f32 %v3413, %v3428
    %v3430 = vadd.f32 %v3429, 0.112945676
    %v3431 = vmul.f32 %v3413, %v3430
    %v3432 = vadd.f32 %v3431, 0.4994258
    %v3433 = vmul.f32 %v3413, %v3432
    %v3434 = vadd.f32 %v3433, 1.0
    %v3435 = vrcp.pop %v3434
    %v3436 = vmul.f32 %v3434, %v3435
    %v3437 = vsub.f32 1.0, %v3436
    %v3438 = vmul.f32 %v3435, %v3437
    %v3439 = vadd.f32 %v3435, %v3438
    %vm3440 = vweird.f32 %v3434
    %vm3441 = vweird.f32 %v3435
    %vm3442 = vmor %vm3440, %vm3441
    %v3443 = vsel %vm3442, %v3435, %v3439
    %v3444 = vand.u32 2147483647, %v3434
    %vm3445 = vcmp.eq.f32.partialorder %v3444, 8.507059e+37
    %v3446 = vand.u32 %v3434, 2147483648
    %v3447 = vor.u32 1.1754944e-38, %v3446
    %v3448 = vsel %vm3445, %v3447, %v3443
    %v3449 = vmul.f32 %v3424, %v3448
    %v3450 = vmin.f32 %v3449, 1.0
    %v3451 = vmax.f32 %v3450, -1.0
    %v3452 = vmul.f32 %v2609, %v2609
    %v3453 = vmin.f32 16.0, %v3452
    %v3454 = vmul.f32 %v3453, 2.1237322e-06
    %v3455 = vadd.f32 %v3454, 0.00028619796
    %v3456 = vmul.f32 %v3453, %v3455
    %v3457 = vadd.f32 %v3456, 0.0036580483
    %v3458 = vmul.f32 %v3453, %v3457
    %v3459 = vadd.f32 %v3458, 0.05243302
    %v3460 = vmul.f32 %v3453, %v3459
    %v3461 = vadd.f32 %v3460, 0.18741608
    %v3462 = vmul.f32 %v3453, %v3461
    %v3463 = vadd.f32 %v3462, 1.1283791
    %v3464 = vmul.f32 %v2609, %v3463
    %v3465 = vmul.f32 %v3453, 3.8918573e-05
    %v3466 = vadd.f32 %v3465, 0.001143296
    %v3467 = vmul.f32 %v3453, %v3466
    %v3468 = vadd.f32 %v3467, 0.014752088
    %v3469 = vmul.f32 %v3453, %v3468
    %v3470 = vadd.f32 %v3469, 0.112945676
    %v3471 = vmul.f32 %v3453, %v3470
    %v3472 = vadd.f32 %v3471, 0.4994258
    %v3473 = vmul.f32 %v3453, %v3472
    %v3474 = vadd.f32 %v3473, 1.0
    %v3475 = vrcp.pop %v3474
    %v3476 = vmul.f32 %v3474, %v3475
    %v3477 = vsub.f32 1.0, %v3476
    %v3478 = vmul.f32 %v3475, %v3477
    %v3479 = vadd.f32 %v3475, %v3478
    %vm3480 = vweird.f32 %v3474
    %vm3481 = vweird.f32 %v3475
    %vm3482 = vmor %vm3480, %vm3481
    %v3483 = vsel %vm3482, %v3475, %v3479
    %v3484 = vand.u32 2147483647, %v3474
    %vm3485 = vcmp.eq.f32.partialorder %v3484, 8.507059e+37
    %v3486 = vand.u32 %v3474, 2147483648
    %v3487 = vor.u32 1.1754944e-38, %v3486
    %v3488 = vsel %vm3485, %v3487, %v3483
    %v3489 = vmul.f32 %v3464, %v3488
    %v3490 = vmin.f32 %v3489, 1.0
    %v3491 = vmax.f32 %v3490, -1.0
    %v3492 = vmul.f32 %v2610, %v2610
    %v3493 = vmin.f32 16.0, %v3492
    %v3494 = vmul.f32 %v3493, 2.1237322e-06
    %v3495 = vadd.f32 %v3494, 0.00028619796
    %v3496 = vmul.f32 %v3493, %v3495
    %v3497 = vadd.f32 %v3496, 0.0036580483
    %v3498 = vmul.f32 %v3493, %v3497
    %v3499 = vadd.f32 %v3498, 0.05243302
    %v3500 = vmul.f32 %v3493, %v3499
    %v3501 = vadd.f32 %v3500, 0.18741608
    %v3502 = vmul.f32 %v3493, %v3501
    %v3503 = vadd.f32 %v3502, 1.1283791
    %v3504 = vmul.f32 %v2610, %v3503
    %v3505 = vmul.f32 %v3493, 3.8918573e-05
    %v3506 = vadd.f32 %v3505, 0.001143296
    %v3507 = vmul.f32 %v3493, %v3506
    %v3508 = vadd.f32 %v3507, 0.014752088
    %v3509 = vmul.f32 %v3493, %v3508
    %v3510 = vadd.f32 %v3509, 0.112945676
    %v3511 = vmul.f32 %v3493, %v3510
    %v3512 = vadd.f32 %v3511, 0.4994258
    %v3513 = vmul.f32 %v3493, %v3512
    %v3514 = vadd.f32 %v3513, 1.0
    %v3515 = vrcp.pop %v3514
    %v3516 = vmul.f32 %v3514, %v3515
    %v3517 = vsub.f32 1.0, %v3516
    %v3518 = vmul.f32 %v3515, %v3517
    %v3519 = vadd.f32 %v3515, %v3518
    %vm3520 = vweird.f32 %v3514
    %vm3521 = vweird.f32 %v3515
    %vm3522 = vmor %vm3520, %vm3521
    %v3523 = vsel %vm3522, %v3515, %v3519
    %v3524 = vand.u32 2147483647, %v3514
    %vm3525 = vcmp.eq.f32.partialorder %v3524, 8.507059e+37
    %v3526 = vand.u32 %v3514, 2147483648
    %v3527 = vor.u32 1.1754944e-38, %v3526
    %v3528 = vsel %vm3525, %v3527, %v3523
    %v3529 = vmul.f32 %v3504, %v3528
    %v3530 = vmin.f32 %v3529, 1.0
    %v3531 = vmax.f32 %v3530, -1.0
    %v3532 = vmul.f32 %v2611, %v2611
    %v3533 = vmin.f32 16.0, %v3532
    %v3534 = vmul.f32 %v3533, 2.1237322e-06
    %v3535 = vadd.f32 %v3534, 0.00028619796
    %v3536 = vmul.f32 %v3533, %v3535
    %v3537 = vadd.f32 %v3536, 0.0036580483
    %v3538 = vmul.f32 %v3533, %v3537
    %v3539 = vadd.f32 %v3538, 0.05243302
    %v3540 = vmul.f32 %v3533, %v3539
    %v3541 = vadd.f32 %v3540, 0.18741608
    %v3542 = vmul.f32 %v3533, %v3541
    %v3543 = vadd.f32 %v3542, 1.1283791
    %v3544 = vmul.f32 %v2611, %v3543
    %v3545 = vmul.f32 %v3533, 3.8918573e-05
    %v3546 = vadd.f32 %v3545, 0.001143296
    %v3547 = vmul.f32 %v3533, %v3546
    %v3548 = vadd.f32 %v3547, 0.014752088
    %v3549 = vmul.f32 %v3533, %v3548
    %v3550 = vadd.f32 %v3549, 0.112945676
    %v3551 = vmul.f32 %v3533, %v3550
    %v3552 = vadd.f32 %v3551, 0.4994258
    %v3553 = vmul.f32 %v3533, %v3552
    %v3554 = vadd.f32 %v3553, 1.0
    %v3555 = vrcp.pop %v3554
    %v3556 = vmul.f32 %v3554, %v3555
    %v3557 = vsub.f32 1.0, %v3556
    %v3558 = vmul.f32 %v3555, %v3557
    %v3559 = vadd.f32 %v3555, %v3558
    %vm3560 = vweird.f32 %v3554
    %vm3561 = vweird.f32 %v3555
    %vm3562 = vmor %vm3560, %vm3561
    %v3563 = vsel %vm3562, %v3555, %v3559
    %v3564 = vand.u32 2147483647, %v3554
    %vm3565 = vcmp.eq.f32.partialorder %v3564, 8.507059e+37
    %v3566 = vand.u32 %v3554, 2147483648
    %v3567 = vor.u32 1.1754944e-38, %v3566
    %v3568 = vsel %vm3565, %v3567, %v3563
    %v3569 = vmul.f32 %v3544, %v3568
    %v3570 = vmin.f32 %v3569, 1.0
    %v3571 = vmax.f32 %v3570, -1.0
    %v3572 = vadd.f32 %v2651, 1.0
    %v3573 = vadd.f32 %v2691, 1.0
    %v3574 = vadd.f32 %v2731, 1.0
    %v3575 = vadd.f32 %v2771, 1.0
    %v3576 = vadd.f32 %v2811, 1.0
    %v3577 = vadd.f32 %v2851, 1.0
    %v3578 = vadd.f32 %v2891, 1.0
    %v3579 = vadd.f32 %v2931, 1.0
    %v3580 = vadd.f32 %v2971, 1.0
    %v3581 = vadd.f32 %v3011, 1.0
    %v3582 = vadd.f32 %v3051, 1.0
    %v3583 = vadd.f32 %v3091, 1.0
    %v3584 = vadd.f32 %v3131, 1.0
    %v3585 = vadd.f32 %v3171, 1.0
    %v3586 = vadd.f32 %v3211, 1.0
    %v3587 = vadd.f32 %v3251, 1.0
    %v3588 = vadd.f32 %v3291, 1.0
    %v3589 = vadd.f32 %v3331, 1.0
    %v3590 = vadd.f32 %v3371, 1.0
    %v3591 = vadd.f32 %v3411, 1.0
    %v3592 = vadd.f32 %v3451, 1.0
    %v3593 = vadd.f32 %v3491, 1.0
    %v3594 = vadd.f32 %v3531, 1.0
    %v3595 = vadd.f32 %v3571, 1.0
    %v3596 = vmul.f32 %v2564, %v3572
    %v3597 = vmul.f32 %v2565, %v3573
    %v3598 = vmul.f32 %v2566, %v3574
    %v3599 = vmul.f32 %v2567, %v3575
    %v3600 = vmul.f32 %v2568, %v3576
    %v3601 = vmul.f32 %v2569, %v3577
    %v3602 = vmul.f32 %v2570, %v3578
    %v3603 = vmul.f32 %v2571, %v3579
    %v3604 = vmul.f32 %v2572, %v3580
    %v3605 = vmul.f32 %v2573, %v3581
    %v3606 = vmul.f32 %v2574, %v3582
    %v3607 = vmul.f32 %v2575, %v3583
    %v3608 = vmul.f32 %v2576, %v3584
    %v3609 = vmul.f32 %v2577, %v3585
    %v3610 = vmul.f32 %v2578, %v3586
    %v3611 = vmul.f32 %v2579, %v3587
    %v3612 = vmul.f32 %v2580, %v3588
    %v3613 = vmul.f32 %v2581, %v3589
    %v3614 = vmul.f32 %v2582, %v3590
    %v3615 = vmul.f32 %v2583, %v3591
    %v3616 = vmul.f32 %v2584, %v3592
    %v3617 = vmul.f32 %v2585, %v3593
    %v3618 = vmul.f32 %v2586, %v3594
    %v3619 = vmul.f32 %v2587, %v3595
    %v3620 = vld [vmem:[#allocation3 + $0x410] sm:$0xff]
    %v3621 = vld [vmem:[#allocation3 + $0x418] sm:$0xff]
    %v3622 = vld [vmem:[#allocation3 + $0x420] sm:$0xff]
    %v3623 = vld [vmem:[#allocation3 + $0x428] sm:$0xff]
    %v3624 = vld [vmem:[#allocation3 + $0x430] sm:$0xff]
    %v3625 = vld [vmem:[#allocation3 + $0x438] sm:$0xff]
    %v3626 = vld [vmem:[#allocation3 + $0x440] sm:$0xff]
    %v3627 = vld [vmem:[#allocation3 + $0x448] sm:$0xff]
    %v3628 = vld [vmem:[#allocation3 + $0x450] sm:$0xff]
    %v3629 = vld [vmem:[#allocation3 + $0x458] sm:$0xff]
    %v3630 = vld [vmem:[#allocation3 + $0x460] sm:$0xff]
    %v3631 = vld [vmem:[#allocation3 + $0x468] sm:$0xff]
    %v3633 = vsel %vm1541, %v3626, 0
    %v3636 = vsel %vm1541, %v3627, 0
    %v3639 = vsel %vm1541, %v3628, 0
    %v3642 = vsel %vm1541, %v3629, 0
    %v3645 = vsel %vm1541, %v3630, 0
    %v3648 = vsel %vm1541, %v3631, 0
    %3650 = vmatpush.msra.mxu0 0.0
    %3651 = vmatpush.msra.mxu0 0.0
    %3652 = vmatpush.msra.mxu0 0.0
    %3653 = vmatpush.msra.mxu0 0.0
    %3654 = vmatpush.msra.mxu0 0.0
    %3655 = vmatpush.msra.mxu0 0.0
    %3656 = vmatpush.msra.mxu0 0.0
    %3657 = vmatpush.msra.mxu0 0.0
    %3658 = vmatpush.msra.mxu0 %v3619
    %3659 = vmatpush.msra.mxu0 %v3618
    %3660 = vmatpush.msra.mxu0 %v3617
    %3661 = vmatpush.msra.mxu0 %v3616
    %3662 = vmatpush.msra.mxu0 %v3615
    %3663 = vmatpush.msra.mxu0 %v3614
    %3664 = vmatpush.msra.mxu0 %v3613
    %3665 = vmatpush.msra.mxu0 %v3612
    %3666 = vmatmul.f32.gmra.mxu0 %v3633
    %v3667 = vpop.f32.mrf.mxu0
    %v3668 = vadd.f32 0.0, %v3667
    %3669 = vmatmul.f32.gmra.mxu0 %v3636
    %v3670 = vpop.f32.mrf.mxu0
    %v3671 = vadd.f32 0.0, %v3670
    %3672 = vmatmul.f32.gmra.mxu0 %v3639
    %v3673 = vpop.f32.mrf.mxu0
    %v3674 = vadd.f32 0.0, %v3673
    %3675 = vmatmul.f32.gmra.mxu0 %v3642
    %v3676 = vpop.f32.mrf.mxu0
    %v3677 = vadd.f32 0.0, %v3676
    %3678 = vmatmul.f32.gmra.mxu0 %v3645
    %v3679 = vpop.f32.mrf.mxu0
    %v3680 = vadd.f32 0.0, %v3679
    %3681 = vmatmul.f32.gmra.mxu0 %v3648
    %v3682 = vpop.f32.mrf.mxu0
    %v3683 = vadd.f32 0.0, %v3682
    %3684 = vdwg.mxu0
    %3685 = vmatpush.msra.mxu0 %v3611
    %3686 = vmatpush.msra.mxu0 %v3610
    %3687 = vmatpush.msra.mxu0 %v3609
    %3688 = vmatpush.msra.mxu0 %v3608
    %3689 = vmatpush.msra.mxu0 %v3607
    %3690 = vmatpush.msra.mxu0 %v3606
    %3691 = vmatpush.msra.mxu0 %v3605
    %3692 = vmatpush.msra.mxu0 %v3604
    %3693 = vmatpush.msra.mxu0 %v3603
    %3694 = vmatpush.msra.mxu0 %v3602
    %3695 = vmatpush.msra.mxu0 %v3601
    %3696 = vmatpush.msra.mxu0 %v3600
    %3697 = vmatpush.msra.mxu0 %v3599
    %3698 = vmatpush.msra.mxu0 %v3598
    %3699 = vmatpush.msra.mxu0 %v3597
    %3700 = vmatpush.msra.mxu0 %v3596
    %3701 = vmatmul.f32.gmra.mxu0 %v3620
    %v3702 = vpop.f32.mrf.mxu0
    %v3703 = vadd.f32 %v3668, %v3702
    %3704 = vmatmul.f32.gmra.mxu0 %v3621
    %v3705 = vpop.f32.mrf.mxu0
    %v3706 = vadd.f32 %v3671, %v3705
    %3707 = vmatmul.f32.gmra.mxu0 %v3622
    %v3708 = vpop.f32.mrf.mxu0
    %v3709 = vadd.f32 %v3674, %v3708
    %3710 = vmatmul.f32.gmra.mxu0 %v3623
    %v3711 = vpop.f32.mrf.mxu0
    %v3712 = vadd.f32 %v3677, %v3711
    %3713 = vmatmul.f32.gmra.mxu0 %v3624
    %v3714 = vpop.f32.mrf.mxu0
    %v3715 = vadd.f32 %v3680, %v3714
    %3716 = vmatmul.f32.gmra.mxu0 %v3625
    %v3717 = vpop.f32.mrf.mxu0
    %v3718 = vadd.f32 %v3683, %v3717
    %3719 = vdwg.mxu0
    %v3720 = vld [vmem:[#allocation3 + $0x470] sm:$0xff]
    %v3721 = vld [vmem:[#allocation3 + $0x478] sm:$0xff]
    %v3722 = vld [vmem:[#allocation3 + $0x480] sm:$0xff]
    %v3723 = vld [vmem:[#allocation3 + $0x488] sm:$0xff]
    %v3724 = vld [vmem:[#allocation3 + $0x490] sm:$0xff]
    %v3725 = vld [vmem:[#allocation3 + $0x498] sm:$0xff]
    %v3726 = vadd.f32 %v3703, %v3720
    %v3727 = vadd.f32 %v3706, %v3721
    %v3728 = vadd.f32 %v3709, %v3722
    %v3729 = vadd.f32 %v3712, %v3723
    %v3730 = vadd.f32 %v3715, %v3724
    %v3731 = vadd.f32 %v3718, %v3725
    %v3732 = vadd.f32 %v2189, %v3726
    %v3733 = vadd.f32 %v2190, %v3727
    %v3734 = vadd.f32 %v2191, %v3728
    %v3735 = vadd.f32 %v2192, %v3729
    %v3736 = vadd.f32 %v2193, %v3730
    %v3737 = vadd.f32 %v2194, %v3731
    %v3738 = vld [vmem:[#allocation3 + $0x4a0] sm:$0x1]
    %v3739 = vld [vmem:[#allocation3 + $0x4a8] sm:$0x1]
    %v3740 = vsel %vm97, %v3732, 0.0
    %3741 = vadd.xlane.f32.xlu0 %v3740
    %v3742 = vpop.xlane.xlu0 %3741
    %v3743 = vsel %vm97, %v3733, 0.0
    %3744 = vadd.xlane.f32.xlu0 %v3743
    %v3745 = vpop.xlane.xlu0 %3744
    %v3746 = vsel %vm97, %v3734, 0.0
    %3747 = vadd.xlane.f32.xlu0 %v3746
    %v3748 = vpop.xlane.xlu0 %3747
    %v3749 = vsel %vm97, %v3735, 0.0
    %3750 = vadd.xlane.f32.xlu0 %v3749
    %v3751 = vpop.xlane.xlu0 %3750
    %v3752 = vsel %vm97, %v3736, 0.0
    %3753 = vadd.xlane.f32.xlu0 %v3752
    %v3754 = vpop.xlane.xlu0 %3753
    %v3755 = vsel %vm97, %v3737, 0.0
    %3756 = vadd.xlane.f32.xlu0 %v3755
    %v3757 = vpop.xlane.xlu0 %3756
    %v3758 = vmul.f32 %v3742, %v122
    %v3759 = vmul.f32 %v3745, %v122
    %v3760 = vmul.f32 %v3748, %v122
    %v3761 = vmul.f32 %v3751, %v122
    %v3762 = vmul.f32 %v3754, %v122
    %v3763 = vmul.f32 %v3757, %v122
    %v3764 = vmul.f32 %v3732, %v3732
    %v3765 = vmul.f32 %v3733, %v3733
    %v3766 = vmul.f32 %v3734, %v3734
    %v3767 = vmul.f32 %v3735, %v3735
    %v3768 = vmul.f32 %v3736, %v3736
    %v3769 = vmul.f32 %v3737, %v3737
    %v3770 = vsel %vm97, %v3764, 0.0
    %3771 = vadd.xlane.f32.xlu0 %v3770
    %v3772 = vpop.xlane.xlu0 %3771
    %v3773 = vsel %vm97, %v3765, 0.0
    %3774 = vadd.xlane.f32.xlu0 %v3773
    %v3775 = vpop.xlane.xlu0 %3774
    %v3776 = vsel %vm97, %v3766, 0.0
    %3777 = vadd.xlane.f32.xlu0 %v3776
    %v3778 = vpop.xlane.xlu0 %3777
    %v3779 = vsel %vm97, %v3767, 0.0
    %3780 = vadd.xlane.f32.xlu0 %v3779
    %v3781 = vpop.xlane.xlu0 %3780
    %v3782 = vsel %vm97, %v3768, 0.0
    %3783 = vadd.xlane.f32.xlu0 %v3782
    %v3784 = vpop.xlane.xlu0 %3783
    %v3785 = vsel %vm97, %v3769, 0.0
    %3786 = vadd.xlane.f32.xlu0 %v3785
    %v3787 = vpop.xlane.xlu0 %3786
    %v3788 = vmul.f32 %v3772, %v122
    %v3789 = vmul.f32 %v3775, %v122
    %v3790 = vmul.f32 %v3778, %v122
    %v3791 = vmul.f32 %v3781, %v122
    %v3792 = vmul.f32 %v3784, %v122
    %v3793 = vmul.f32 %v3787, %v122
    %v3794 = vmul.f32 %v3758, %v3758
    %v3795 = vmul.f32 %v3759, %v3759
    %v3796 = vmul.f32 %v3760, %v3760
    %v3797 = vmul.f32 %v3761, %v3761
    %v3798 = vmul.f32 %v3762, %v3762
    %v3799 = vmul.f32 %v3763, %v3763
    %v3800 = vsub.f32 %v3788, %v3794
    %v3801 = vsub.f32 %v3789, %v3795
    %v3802 = vsub.f32 %v3790, %v3796
    %v3803 = vsub.f32 %v3791, %v3797
    %v3804 = vsub.f32 %v3792, %v3798
    %v3805 = vsub.f32 %v3793, %v3799
    %v3806 = vsub.f32 %v3732, %v3758
    %v3807 = vsub.f32 %v3733, %v3759
    %v3808 = vsub.f32 %v3734, %v3760
    %v3809 = vsub.f32 %v3735, %v3761
    %v3810 = vsub.f32 %v3736, %v3762
    %v3811 = vsub.f32 %v3737, %v3763
    %v3812 = vadd.f32 %v3800, 1e-05
    %v3813 = vadd.f32 %v3801, 1e-05
    %v3814 = vadd.f32 %v3802, 1e-05
    %v3815 = vadd.f32 %v3803, 1e-05
    %v3816 = vadd.f32 %v3804, 1e-05
    %v3817 = vadd.f32 %v3805, 1e-05
    %v3818 = vrsqrt.pop %v3812
    %v3819 = vmul.f32 %v3818, %v3812
    %v3820 = vmul.f32 %v3819, %v3818
    %v3821 = vmul.f32 0.5, %v3820
    %v3822 = vsub.f32 1.5, %v3821
    %v3823 = vmul.f32 %v3818, %v3822
    %vm3824 = vweird.f32 %v3812
    %vm3825 = vweird.f32 %v3818
    %vm3826 = vmor %vm3824, %vm3825
    %v3827 = vsel %vm3826, %v3818, %v3823
    %v3828 = vrsqrt.pop %v3813
    %v3829 = vmul.f32 %v3828, %v3813
    %v3830 = vmul.f32 %v3829, %v3828
    %v3831 = vmul.f32 0.5, %v3830
    %v3832 = vsub.f32 1.5, %v3831
    %v3833 = vmul.f32 %v3828, %v3832
    %vm3834 = vweird.f32 %v3813
    %vm3835 = vweird.f32 %v3828
    %vm3836 = vmor %vm3834, %vm3835
    %v3837 = vsel %vm3836, %v3828, %v3833
    %v3838 = vrsqrt.pop %v3814
    %v3839 = vmul.f32 %v3838, %v3814
    %v3840 = vmul.f32 %v3839, %v3838
    %v3841 = vmul.f32 0.5, %v3840
    %v3842 = vsub.f32 1.5, %v3841
    %v3843 = vmul.f32 %v3838, %v3842
    %vm3844 = vweird.f32 %v3814
    %vm3845 = vweird.f32 %v3838
    %vm3846 = vmor %vm3844, %vm3845
    %v3847 = vsel %vm3846, %v3838, %v3843
    %v3848 = vrsqrt.pop %v3815
    %v3849 = vmul.f32 %v3848, %v3815
    %v3850 = vmul.f32 %v3849, %v3848
    %v3851 = vmul.f32 0.5, %v3850
    %v3852 = vsub.f32 1.5, %v3851
    %v3853 = vmul.f32 %v3848, %v3852
    %vm3854 = vweird.f32 %v3815
    %vm3855 = vweird.f32 %v3848
    %vm3856 = vmor %vm3854, %vm3855
    %v3857 = vsel %vm3856, %v3848, %v3853
    %v3858 = vrsqrt.pop %v3816
    %v3859 = vmul.f32 %v3858, %v3816
    %v3860 = vmul.f32 %v3859, %v3858
    %v3861 = vmul.f32 0.5, %v3860
    %v3862 = vsub.f32 1.5, %v3861
    %v3863 = vmul.f32 %v3858, %v3862
    %vm3864 = vweird.f32 %v3816
    %vm3865 = vweird.f32 %v3858
    %vm3866 = vmor %vm3864, %vm3865
    %v3867 = vsel %vm3866, %v3858, %v3863
    %v3868 = vrsqrt.pop %v3817
    %v3869 = vmul.f32 %v3868, %v3817
    %v3870 = vmul.f32 %v3869, %v3868
    %v3871 = vmul.f32 0.5, %v3870
    %v3872 = vsub.f32 1.5, %v3871
    %v3873 = vmul.f32 %v3868, %v3872
    %vm3874 = vweird.f32 %v3817
    %vm3875 = vweird.f32 %v3868
    %vm3876 = vmor %vm3874, %vm3875
    %v3877 = vsel %vm3876, %v3868, %v3873
    %v3878 = vmul.f32 %v3806, %v3827
    %v3879 = vmul.f32 %v3807, %v3837
    %v3880 = vmul.f32 %v3808, %v3847
    %v3881 = vmul.f32 %v3809, %v3857
    %v3882 = vmul.f32 %v3810, %v3867
    %v3883 = vmul.f32 %v3811, %v3877
    %v3884 = vperm.slane %v3738, 0
    %v3885 = vmul.f32 %v3878, %v3884
    %v3886 = vmul.f32 %v3879, %v3884
    %v3887 = vmul.f32 %v3880, %v3884
    %v3888 = vmul.f32 %v3881, %v3884
    %v3889 = vmul.f32 %v3882, %v3884
    %v3890 = vmul.f32 %v3883, %v3884
    %v3891 = vperm.slane %v3739, 0
    %v3892 = vadd.f32 %v3885, %v3891
    %v3893 = vadd.f32 %v3886, %v3891
    %v3894 = vadd.f32 %v3887, %v3891
    %v3895 = vadd.f32 %v3888, %v3891
    %v3896 = vadd.f32 %v3889, %v3891
    %v3897 = vadd.f32 %v3890, %v3891
    %v3898 = vld [vmem:[#allocation3 + $0x4b0] sm:$0xff]
    %v3899 = vld [vmem:[#allocation3 + $0x4b8] sm:$0xff]
    %v3900 = vld [vmem:[#allocation3 + $0x4c0] sm:$0xff]
    %v3901 = vld [vmem:[#allocation3 + $0x4c8] sm:$0xff]
    %v3902 = vld [vmem:[#allocation3 + $0x4d0] sm:$0x1]
    %v3903 = vperm.slane %v3902, 0
    %v3905 = vsel %vm97, %v3892, 0
    %v3908 = vsel %vm97, %v3893, 0
    %v3911 = vsel %vm97, %v3894, 0
    %v3914 = vsel %vm97, %v3895, 0
    %v3917 = vsel %vm97, %v3896, 0
    %v3920 = vsel %vm97, %v3897, 0
    %3922 = vmatpush.msra.mxu0 0.0
    %3923 = vmatpush.msra.mxu0 0.0
    %3924 = vmatpush.msra.mxu0 0.0
    %3925 = vmatpush.msra.mxu0 0.0
    %3926 = vmatpush.msra.mxu0 0.0
    %3927 = vmatpush.msra.mxu0 0.0
    %3928 = vmatpush.msra.mxu0 0.0
    %3929 = vmatpush.msra.mxu0 0.0
    %3930 = vmatpush.msra.mxu0 0.0
    %3931 = vmatpush.msra.mxu0 0.0
    %3932 = vmatpush.msra.mxu0 0.0
    %3933 = vmatpush.msra.mxu0 0.0
    %3934 = vmatpush.msra.mxu0 %v3901
    %3935 = vmatpush.msra.mxu0 %v3900
    %3936 = vmatpush.msra.mxu0 %v3899
    %3937 = vmatpush.msra.mxu0 %v3898
    %3938 = vmatmul.f32.gmra.mxu0 %v3905
    %v3939 = vpop.f32.mrf.mxu0
    %v3940 = vadd.f32 %v3903, %v3939
    %3941 = vmatmul.f32.gmra.mxu0 %v3908
    %v3942 = vpop.f32.mrf.mxu0
    %v3943 = vadd.f32 %v3903, %v3942
    %3944 = vmatmul.f32.gmra.mxu0 %v3911
    %v3945 = vpop.f32.mrf.mxu0
    %v3946 = vadd.f32 %v3903, %v3945
    %3947 = vmatmul.f32.gmra.mxu0 %v3914
    %v3948 = vpop.f32.mrf.mxu0
    %v3949 = vadd.f32 %v3903, %v3948
    %3950 = vmatmul.f32.gmra.mxu0 %v3917
    %v3951 = vpop.f32.mrf.mxu0
    %v3952 = vadd.f32 %v3903, %v3951
    %3953 = vmatmul.f32.gmra.mxu0 %v3920
    %v3954 = vpop.f32.mrf.mxu0
    %v3955 = vadd.f32 %v3903, %v3954
    %3956 = vdwg.mxu0
    %v3957 = vmul.f32 %v3940, 0.5
    %v3958 = vmul.f32 %v3943, 0.5
    %v3959 = vmul.f32 %v3946, 0.5
    %v3960 = vmul.f32 %v3949, 0.5
    %v3961 = vmul.f32 %v3952, 0.5
    %v3962 = vmul.f32 %v3955, 0.5
    %v3963 = vmul.f32 %v3940, 0.70710677
    %v3964 = vmul.f32 %v3943, 0.70710677
    %v3965 = vmul.f32 %v3946, 0.70710677
    %v3966 = vmul.f32 %v3949, 0.70710677
    %v3967 = vmul.f32 %v3952, 0.70710677
    %v3968 = vmul.f32 %v3955, 0.70710677
    %v3969 = vmul.f32 %v3963, %v3963
    %v3970 = vmin.f32 16.0, %v3969
    %v3971 = vmul.f32 %v3970, 2.1237322e-06
    %v3972 = vadd.f32 %v3971, 0.00028619796
    %v3973 = vmul.f32 %v3970, %v3972
    %v3974 = vadd.f32 %v3973, 0.0036580483
    %v3975 = vmul.f32 %v3970, %v3974
    %v3976 = vadd.f32 %v3975, 0.05243302
    %v3977 = vmul.f32 %v3970, %v3976
    %v3978 = vadd.f32 %v3977, 0.18741608
    %v3979 = vmul.f32 %v3970, %v3978
    %v3980 = vadd.f32 %v3979, 1.1283791
    %v3981 = vmul.f32 %v3963, %v3980
    %v3982 = vmul.f32 %v3970, 3.8918573e-05
    %v3983 = vadd.f32 %v3982, 0.001143296
    %v3984 = vmul.f32 %v3970, %v3983
    %v3985 = vadd.f32 %v3984, 0.014752088
    %v3986 = vmul.f32 %v3970, %v3985
    %v3987 = vadd.f32 %v3986, 0.112945676
    %v3988 = vmul.f32 %v3970, %v3987
    %v3989 = vadd.f32 %v3988, 0.4994258
    %v3990 = vmul.f32 %v3970, %v3989
    %v3991 = vadd.f32 %v3990, 1.0
    %v3992 = vrcp.pop %v3991
    %v3993 = vmul.f32 %v3991, %v3992
    %v3994 = vsub.f32 1.0, %v3993
    %v3995 = vmul.f32 %v3992, %v3994
    %v3996 = vadd.f32 %v3992, %v3995
    %vm3997 = vweird.f32 %v3991
    %vm3998 = vweird.f32 %v3992
    %vm3999 = vmor %vm3997, %vm3998
    %v4000 = vsel %vm3999, %v3992, %v3996
    %v4001 = vand.u32 2147483647, %v3991
    %vm4002 = vcmp.eq.f32.partialorder %v4001, 8.507059e+37
    %v4003 = vand.u32 %v3991, 2147483648
    %v4004 = vor.u32 1.1754944e-38, %v4003
    %v4005 = vsel %vm4002, %v4004, %v4000
    %v4006 = vmul.f32 %v3981, %v4005
    %v4007 = vmin.f32 %v4006, 1.0
    %v4008 = vmax.f32 %v4007, -1.0
    %v4009 = vmul.f32 %v3964, %v3964
    %v4010 = vmin.f32 16.0, %v4009
    %v4011 = vmul.f32 %v4010, 2.1237322e-06
    %v4012 = vadd.f32 %v4011, 0.00028619796
    %v4013 = vmul.f32 %v4010, %v4012
    %v4014 = vadd.f32 %v4013, 0.0036580483
    %v4015 = vmul.f32 %v4010, %v4014
    %v4016 = vadd.f32 %v4015, 0.05243302
    %v4017 = vmul.f32 %v4010, %v4016
    %v4018 = vadd.f32 %v4017, 0.18741608
    %v4019 = vmul.f32 %v4010, %v4018
    %v4020 = vadd.f32 %v4019, 1.1283791
    %v4021 = vmul.f32 %v3964, %v4020
    %v4022 = vmul.f32 %v4010, 3.8918573e-05
    %v4023 = vadd.f32 %v4022, 0.001143296
    %v4024 = vmul.f32 %v4010, %v4023
    %v4025 = vadd.f32 %v4024, 0.014752088
    %v4026 = vmul.f32 %v4010, %v4025
    %v4027 = vadd.f32 %v4026, 0.112945676
    %v4028 = vmul.f32 %v4010, %v4027
    %v4029 = vadd.f32 %v4028, 0.4994258
    %v4030 = vmul.f32 %v4010, %v4029
    %v4031 = vadd.f32 %v4030, 1.0
    %v4032 = vrcp.pop %v4031
    %v4033 = vmul.f32 %v4031, %v4032
    %v4034 = vsub.f32 1.0, %v4033
    %v4035 = vmul.f32 %v4032, %v4034
    %v4036 = vadd.f32 %v4032, %v4035
    %vm4037 = vweird.f32 %v4031
    %vm4038 = vweird.f32 %v4032
    %vm4039 = vmor %vm4037, %vm4038
    %v4040 = vsel %vm4039, %v4032, %v4036
    %v4041 = vand.u32 2147483647, %v4031
    %vm4042 = vcmp.eq.f32.partialorder %v4041, 8.507059e+37
    %v4043 = vand.u32 %v4031, 2147483648
    %v4044 = vor.u32 1.1754944e-38, %v4043
    %v4045 = vsel %vm4042, %v4044, %v4040
    %v4046 = vmul.f32 %v4021, %v4045
    %v4047 = vmin.f32 %v4046, 1.0
    %v4048 = vmax.f32 %v4047, -1.0
    %v4049 = vmul.f32 %v3965, %v3965
    %v4050 = vmin.f32 16.0, %v4049
    %v4051 = vmul.f32 %v4050, 2.1237322e-06
    %v4052 = vadd.f32 %v4051, 0.00028619796
    %v4053 = vmul.f32 %v4050, %v4052
    %v4054 = vadd.f32 %v4053, 0.0036580483
    %v4055 = vmul.f32 %v4050, %v4054
    %v4056 = vadd.f32 %v4055, 0.05243302
    %v4057 = vmul.f32 %v4050, %v4056
    %v4058 = vadd.f32 %v4057, 0.18741608
    %v4059 = vmul.f32 %v4050, %v4058
    %v4060 = vadd.f32 %v4059, 1.1283791
    %v4061 = vmul.f32 %v3965, %v4060
    %v4062 = vmul.f32 %v4050, 3.8918573e-05
    %v4063 = vadd.f32 %v4062, 0.001143296
    %v4064 = vmul.f32 %v4050, %v4063
    %v4065 = vadd.f32 %v4064, 0.014752088
    %v4066 = vmul.f32 %v4050, %v4065
    %v4067 = vadd.f32 %v4066, 0.112945676
    %v4068 = vmul.f32 %v4050, %v4067
    %v4069 = vadd.f32 %v4068, 0.4994258
    %v4070 = vmul.f32 %v4050, %v4069
    %v4071 = vadd.f32 %v4070, 1.0
    %v4072 = vrcp.pop %v4071
    %v4073 = vmul.f32 %v4071, %v4072
    %v4074 = vsub.f32 1.0, %v4073
    %v4075 = vmul.f32 %v4072, %v4074
    %v4076 = vadd.f32 %v4072, %v4075
    %vm4077 = vweird.f32 %v4071
    %vm4078 = vweird.f32 %v4072
    %vm4079 = vmor %vm4077, %vm4078
    %v4080 = vsel %vm4079, %v4072, %v4076
    %v4081 = vand.u32 2147483647, %v4071
    %vm4082 = vcmp.eq.f32.partialorder %v4081, 8.507059e+37
    %v4083 = vand.u32 %v4071, 2147483648
    %v4084 = vor.u32 1.1754944e-38, %v4083
    %v4085 = vsel %vm4082, %v4084, %v4080
    %v4086 = vmul.f32 %v4061, %v4085
    %v4087 = vmin.f32 %v4086, 1.0
    %v4088 = vmax.f32 %v4087, -1.0
    %v4089 = vmul.f32 %v3966, %v3966
    %v4090 = vmin.f32 16.0, %v4089
    %v4091 = vmul.f32 %v4090, 2.1237322e-06
    %v4092 = vadd.f32 %v4091, 0.00028619796
    %v4093 = vmul.f32 %v4090, %v4092
    %v4094 = vadd.f32 %v4093, 0.0036580483
    %v4095 = vmul.f32 %v4090, %v4094
    %v4096 = vadd.f32 %v4095, 0.05243302
    %v4097 = vmul.f32 %v4090, %v4096
    %v4098 = vadd.f32 %v4097, 0.18741608
    %v4099 = vmul.f32 %v4090, %v4098
    %v4100 = vadd.f32 %v4099, 1.1283791
    %v4101 = vmul.f32 %v3966, %v4100
    %v4102 = vmul.f32 %v4090, 3.8918573e-05
    %v4103 = vadd.f32 %v4102, 0.001143296
    %v4104 = vmul.f32 %v4090, %v4103
    %v4105 = vadd.f32 %v4104, 0.014752088
    %v4106 = vmul.f32 %v4090, %v4105
    %v4107 = vadd.f32 %v4106, 0.112945676
    %v4108 = vmul.f32 %v4090, %v4107
    %v4109 = vadd.f32 %v4108, 0.4994258
    %v4110 = vmul.f32 %v4090, %v4109
    %v4111 = vadd.f32 %v4110, 1.0
    %v4112 = vrcp.pop %v4111
    %v4113 = vmul.f32 %v4111, %v4112
    %v4114 = vsub.f32 1.0, %v4113
    %v4115 = vmul.f32 %v4112, %v4114
    %v4116 = vadd.f32 %v4112, %v4115
    %vm4117 = vweird.f32 %v4111
    %vm4118 = vweird.f32 %v4112
    %vm4119 = vmor %vm4117, %vm4118
    %v4120 = vsel %vm4119, %v4112, %v4116
    %v4121 = vand.u32 2147483647, %v4111
    %vm4122 = vcmp.eq.f32.partialorder %v4121, 8.507059e+37
    %v4123 = vand.u32 %v4111, 2147483648
    %v4124 = vor.u32 1.1754944e-38, %v4123
    %v4125 = vsel %vm4122, %v4124, %v4120
    %v4126 = vmul.f32 %v4101, %v4125
    %v4127 = vmin.f32 %v4126, 1.0
    %v4128 = vmax.f32 %v4127, -1.0
    %v4129 = vmul.f32 %v3967, %v3967
    %v4130 = vmin.f32 16.0, %v4129
    %v4131 = vmul.f32 %v4130, 2.1237322e-06
    %v4132 = vadd.f32 %v4131, 0.00028619796
    %v4133 = vmul.f32 %v4130, %v4132
    %v4134 = vadd.f32 %v4133, 0.0036580483
    %v4135 = vmul.f32 %v4130, %v4134
    %v4136 = vadd.f32 %v4135, 0.05243302
    %v4137 = vmul.f32 %v4130, %v4136
    %v4138 = vadd.f32 %v4137, 0.18741608
    %v4139 = vmul.f32 %v4130, %v4138
    %v4140 = vadd.f32 %v4139, 1.1283791
    %v4141 = vmul.f32 %v3967, %v4140
    %v4142 = vmul.f32 %v4130, 3.8918573e-05
    %v4143 = vadd.f32 %v4142, 0.001143296
    %v4144 = vmul.f32 %v4130, %v4143
    %v4145 = vadd.f32 %v4144, 0.014752088
    %v4146 = vmul.f32 %v4130, %v4145
    %v4147 = vadd.f32 %v4146, 0.112945676
    %v4148 = vmul.f32 %v4130, %v4147
    %v4149 = vadd.f32 %v4148, 0.4994258
    %v4150 = vmul.f32 %v4130, %v4149
    %v4151 = vadd.f32 %v4150, 1.0
    %v4152 = vrcp.pop %v4151
    %v4153 = vmul.f32 %v4151, %v4152
    %v4154 = vsub.f32 1.0, %v4153
    %v4155 = vmul.f32 %v4152, %v4154
    %v4156 = vadd.f32 %v4152, %v4155
    %vm4157 = vweird.f32 %v4151
    %vm4158 = vweird.f32 %v4152
    %vm4159 = vmor %vm4157, %vm4158
    %v4160 = vsel %vm4159, %v4152, %v4156
    %v4161 = vand.u32 2147483647, %v4151
    %vm4162 = vcmp.eq.f32.partialorder %v4161, 8.507059e+37
    %v4163 = vand.u32 %v4151, 2147483648
    %v4164 = vor.u32 1.1754944e-38, %v4163
    %v4165 = vsel %vm4162, %v4164, %v4160
    %v4166 = vmul.f32 %v4141, %v4165
    %v4167 = vmin.f32 %v4166, 1.0
    %v4168 = vmax.f32 %v4167, -1.0
    %v4169 = vmul.f32 %v3968, %v3968
    %v4170 = vmin.f32 16.0, %v4169
    %v4171 = vmul.f32 %v4170, 2.1237322e-06
    %v4172 = vadd.f32 %v4171, 0.00028619796
    %v4173 = vmul.f32 %v4170, %v4172
    %v4174 = vadd.f32 %v4173, 0.0036580483
    %v4175 = vmul.f32 %v4170, %v4174
    %v4176 = vadd.f32 %v4175, 0.05243302
    %v4177 = vmul.f32 %v4170, %v4176
    %v4178 = vadd.f32 %v4177, 0.18741608
    %v4179 = vmul.f32 %v4170, %v4178
    %v4180 = vadd.f32 %v4179, 1.1283791
    %v4181 = vmul.f32 %v3968, %v4180
    %v4182 = vmul.f32 %v4170, 3.8918573e-05
    %v4183 = vadd.f32 %v4182, 0.001143296
    %v4184 = vmul.f32 %v4170, %v4183
    %v4185 = vadd.f32 %v4184, 0.014752088
    %v4186 = vmul.f32 %v4170, %v4185
    %v4187 = vadd.f32 %v4186, 0.112945676
    %v4188 = vmul.f32 %v4170, %v4187
    %v4189 = vadd.f32 %v4188, 0.4994258
    %v4190 = vmul.f32 %v4170, %v4189
    %v4191 = vadd.f32 %v4190, 1.0
    %v4192 = vrcp.pop %v4191
    %v4193 = vmul.f32 %v4191, %v4192
    %v4194 = vsub.f32 1.0, %v4193
    %v4195 = vmul.f32 %v4192, %v4194
    %v4196 = vadd.f32 %v4192, %v4195
    %vm4197 = vweird.f32 %v4191
    %vm4198 = vweird.f32 %v4192
    %vm4199 = vmor %vm4197, %vm4198
    %v4200 = vsel %vm4199, %v4192, %v4196
    %v4201 = vand.u32 2147483647, %v4191
    %vm4202 = vcmp.eq.f32.partialorder %v4201, 8.507059e+37
    %v4203 = vand.u32 %v4191, 2147483648
    %v4204 = vor.u32 1.1754944e-38, %v4203
    %v4205 = vsel %vm4202, %v4204, %v4200
    %v4206 = vmul.f32 %v4181, %v4205
    %v4207 = vmin.f32 %v4206, 1.0
    %v4208 = vmax.f32 %v4207, -1.0
    %v4209 = vadd.f32 %v4008, 1.0
    %v4210 = vadd.f32 %v4048, 1.0
    %v4211 = vadd.f32 %v4088, 1.0
    %v4212 = vadd.f32 %v4128, 1.0
    %v4213 = vadd.f32 %v4168, 1.0
    %v4214 = vadd.f32 %v4208, 1.0
    %v4215 = vmul.f32 %v3957, %v4209
    %v4216 = vmul.f32 %v3958, %v4210
    %v4217 = vmul.f32 %v3959, %v4211
    %v4218 = vmul.f32 %v3960, %v4212
    %v4219 = vmul.f32 %v3961, %v4213
    %v4220 = vmul.f32 %v3962, %v4214
    %v4221 = vld [vmem:[#allocation3 + $0x4d8] sm:$0xff]
    %v4222 = vld [vmem:[#allocation3 + $0x4e0] sm:$0xff]
    %v4223 = vld [vmem:[#allocation3 + $0x4e8] sm:$0x1]
    %v4224 = vperm.slane %v4223, 0
    %v4226 = vsel %vm2135, %v4215, 0
    %v4229 = vsel %vm2135, %v4216, 0
    %v4232 = vsel %vm2135, %v4217, 0
    %v4235 = vsel %vm2135, %v4218, 0
    %v4238 = vsel %vm2135, %v4219, 0
    %v4241 = vsel %vm2135, %v4220, 0
    %4243 = vmatpush.msra.mxu0 0.0
    %4244 = vmatpush.msra.mxu0 0.0
    %4245 = vmatpush.msra.mxu0 0.0
    %4246 = vmatpush.msra.mxu0 0.0
    %4247 = vmatpush.msra.mxu0 0.0
    %4248 = vmatpush.msra.mxu0 0.0
    %4249 = vmatpush.msra.mxu0 0.0
    %4250 = vmatpush.msra.mxu0 0.0
    %4251 = vmatpush.msra.mxu0 0.0
    %4252 = vmatpush.msra.mxu0 0.0
    %4253 = vmatpush.msra.mxu0 0.0
    %4254 = vmatpush.msra.mxu0 0.0
    %4255 = vmatpush.msra.mxu0 0.0
    %4256 = vmatpush.msra.mxu0 0.0
    %4257 = vmatpush.msra.mxu0 %v4222
    %4258 = vmatpush.msra.mxu0 %v4221
    %4259 = vmatmul.f32.gmra.mxu0 %v4226
    %v4260 = vpop.f32.mrf.mxu0
    %v4261 = vadd.f32 %v4224, %v4260
    %4262 = vmatmul.f32.gmra.mxu0 %v4229
    %v4263 = vpop.f32.mrf.mxu0
    %v4264 = vadd.f32 %v4224, %v4263
    %4265 = vmatmul.f32.gmra.mxu0 %v4232
    %v4266 = vpop.f32.mrf.mxu0
    %v4267 = vadd.f32 %v4224, %v4266
    %4268 = vmatmul.f32.gmra.mxu0 %v4235
    %v4269 = vpop.f32.mrf.mxu0
    %v4270 = vadd.f32 %v4224, %v4269
    %4271 = vmatmul.f32.gmra.mxu0 %v4238
    %v4272 = vpop.f32.mrf.mxu0
    %v4273 = vadd.f32 %v4224, %v4272
    %4274 = vmatmul.f32.gmra.mxu0 %v4241
    %v4275 = vpop.f32.mrf.mxu0
    %v4276 = vadd.f32 %v4224, %v4275
    %4277 = vdwg.mxu0
    %v4278 = vadd.f32 %v3732, %v4261
    %v4279 = vadd.f32 %v3733, %v4264
    %v4280 = vadd.f32 %v3734, %v4267
    %v4281 = vadd.f32 %v3735, %v4270
    %v4282 = vadd.f32 %v3736, %v4273
    %v4283 = vadd.f32 %v3737, %v4276
    %v4284 = vld [vmem:[#allocation3 + $0x4f0] sm:$0x1]
    %v4285 = vld [vmem:[#allocation3 + $0x4f8] sm:$0x1]
    %v4286 = vsel %vm97, %v4278, 0.0
    %4287 = vadd.xlane.f32.xlu0 %v4286
    %v4288 = vpop.xlane.xlu0 %4287
    %v4289 = vsel %vm97, %v4279, 0.0
    %4290 = vadd.xlane.f32.xlu0 %v4289
    %v4291 = vpop.xlane.xlu0 %4290
    %v4292 = vsel %vm97, %v4280, 0.0
    %4293 = vadd.xlane.f32.xlu0 %v4292
    %v4294 = vpop.xlane.xlu0 %4293
    %v4295 = vsel %vm97, %v4281, 0.0
    %4296 = vadd.xlane.f32.xlu0 %v4295
    %v4297 = vpop.xlane.xlu0 %4296
    %v4298 = vsel %vm97, %v4282, 0.0
    %4299 = vadd.xlane.f32.xlu0 %v4298
    %v4300 = vpop.xlane.xlu0 %4299
    %v4301 = vsel %vm97, %v4283, 0.0
    %4302 = vadd.xlane.f32.xlu0 %v4301
    %v4303 = vpop.xlane.xlu0 %4302
    %v4304 = vmul.f32 %v4288, %v122
    %v4305 = vmul.f32 %v4291, %v122
    %v4306 = vmul.f32 %v4294, %v122
    %v4307 = vmul.f32 %v4297, %v122
    %v4308 = vmul.f32 %v4300, %v122
    %v4309 = vmul.f32 %v4303, %v122
    %v4310 = vmul.f32 %v4278, %v4278
    %v4311 = vmul.f32 %v4279, %v4279
    %v4312 = vmul.f32 %v4280, %v4280
    %v4313 = vmul.f32 %v4281, %v4281
    %v4314 = vmul.f32 %v4282, %v4282
    %v4315 = vmul.f32 %v4283, %v4283
    %v4316 = vsel %vm97, %v4310, 0.0
    %4317 = vadd.xlane.f32.xlu0 %v4316
    %v4318 = vpop.xlane.xlu0 %4317
    %v4319 = vsel %vm97, %v4311, 0.0
    %4320 = vadd.xlane.f32.xlu0 %v4319
    %v4321 = vpop.xlane.xlu0 %4320
    %v4322 = vsel %vm97, %v4312, 0.0
    %4323 = vadd.xlane.f32.xlu0 %v4322
    %v4324 = vpop.xlane.xlu0 %4323
    %v4325 = vsel %vm97, %v4313, 0.0
    %4326 = vadd.xlane.f32.xlu0 %v4325
    %v4327 = vpop.xlane.xlu0 %4326
    %v4328 = vsel %vm97, %v4314, 0.0
    %4329 = vadd.xlane.f32.xlu0 %v4328
    %v4330 = vpop.xlane.xlu0 %4329
    %v4331 = vsel %vm97, %v4315, 0.0
    %4332 = vadd.xlane.f32.xlu0 %v4331
    %v4333 = vpop.xlane.xlu0 %4332
    %v4334 = vmul.f32 %v4318, %v122
    %v4335 = vmul.f32 %v4321, %v122
    %v4336 = vmul.f32 %v4324, %v122
    %v4337 = vmul.f32 %v4327, %v122
    %v4338 = vmul.f32 %v4330, %v122
    %v4339 = vmul.f32 %v4333, %v122
    %v4340 = vmul.f32 %v4304, %v4304
    %v4341 = vmul.f32 %v4305, %v4305
    %v4342 = vmul.f32 %v4306, %v4306
    %v4343 = vmul.f32 %v4307, %v4307
    %v4344 = vmul.f32 %v4308, %v4308
    %v4345 = vmul.f32 %v4309, %v4309
    %v4346 = vsub.f32 %v4334, %v4340
    %v4347 = vsub.f32 %v4335, %v4341
    %v4348 = vsub.f32 %v4336, %v4342
    %v4349 = vsub.f32 %v4337, %v4343
    %v4350 = vsub.f32 %v4338, %v4344
    %v4351 = vsub.f32 %v4339, %v4345
    %v4352 = vsub.f32 %v4278, %v4304
    %v4353 = vsub.f32 %v4279, %v4305
    %v4354 = vsub.f32 %v4280, %v4306
    %v4355 = vsub.f32 %v4281, %v4307
    %v4356 = vsub.f32 %v4282, %v4308
    %v4357 = vsub.f32 %v4283, %v4309
    %v4358 = vadd.f32 %v4346, 1e-05
    %v4359 = vadd.f32 %v4347, 1e-05
    %v4360 = vadd.f32 %v4348, 1e-05
    %v4361 = vadd.f32 %v4349, 1e-05
    %v4362 = vadd.f32 %v4350, 1e-05
    %v4363 = vadd.f32 %v4351, 1e-05
    %v4364 = vrsqrt.pop %v4358
    %v4365 = vmul.f32 %v4364, %v4358
    %v4366 = vmul.f32 %v4365, %v4364
    %v4367 = vmul.f32 0.5, %v4366
    %v4368 = vsub.f32 1.5, %v4367
    %v4369 = vmul.f32 %v4364, %v4368
    %vm4370 = vweird.f32 %v4358
    %vm4371 = vweird.f32 %v4364
    %vm4372 = vmor %vm4370, %vm4371
    %v4373 = vsel %vm4372, %v4364, %v4369
    %v4374 = vrsqrt.pop %v4359
    %v4375 = vmul.f32 %v4374, %v4359
    %v4376 = vmul.f32 %v4375, %v4374
    %v4377 = vmul.f32 0.5, %v4376
    %v4378 = vsub.f32 1.5, %v4377
    %v4379 = vmul.f32 %v4374, %v4378
    %vm4380 = vweird.f32 %v4359
    %vm4381 = vweird.f32 %v4374
    %vm4382 = vmor %vm4380, %vm4381
    %v4383 = vsel %vm4382, %v4374, %v4379
    %v4384 = vrsqrt.pop %v4360
    %v4385 = vmul.f32 %v4384, %v4360
    %v4386 = vmul.f32 %v4385, %v4384
    %v4387 = vmul.f32 0.5, %v4386
    %v4388 = vsub.f32 1.5, %v4387
    %v4389 = vmul.f32 %v4384, %v4388
    %vm4390 = vweird.f32 %v4360
    %vm4391 = vweird.f32 %v4384
    %vm4392 = vmor %vm4390, %vm4391
    %v4393 = vsel %vm4392, %v4384, %v4389
    %v4394 = vrsqrt.pop %v4361
    %v4395 = vmul.f32 %v4394, %v4361
    %v4396 = vmul.f32 %v4395, %v4394
    %v4397 = vmul.f32 0.5, %v4396
    %v4398 = vsub.f32 1.5, %v4397
    %v4399 = vmul.f32 %v4394, %v4398
    %vm4400 = vweird.f32 %v4361
    %vm4401 = vweird.f32 %v4394
    %vm4402 = vmor %vm4400, %vm4401
    %v4403 = vsel %vm4402, %v4394, %v4399
    %v4404 = vrsqrt.pop %v4362
    %v4405 = vmul.f32 %v4404, %v4362
    %v4406 = vmul.f32 %v4405, %v4404
    %v4407 = vmul.f32 0.5, %v4406
    %v4408 = vsub.f32 1.5, %v4407
    %v4409 = vmul.f32 %v4404, %v4408
    %vm4410 = vweird.f32 %v4362
    %vm4411 = vweird.f32 %v4404
    %vm4412 = vmor %vm4410, %vm4411
    %v4413 = vsel %vm4412, %v4404, %v4409
    %v4414 = vrsqrt.pop %v4363
    %v4415 = vmul.f32 %v4414, %v4363
    %v4416 = vmul.f32 %v4415, %v4414
    %v4417 = vmul.f32 0.5, %v4416
    %v4418 = vsub.f32 1.5, %v4417
    %v4419 = vmul.f32 %v4414, %v4418
    %vm4420 = vweird.f32 %v4363
    %vm4421 = vweird.f32 %v4414
    %vm4422 = vmor %vm4420, %vm4421
    %v4423 = vsel %vm4422, %v4414, %v4419
    %v4424 = vmul.f32 %v4352, %v4373
    %v4425 = vmul.f32 %v4353, %v4383
    %v4426 = vmul.f32 %v4354, %v4393
    %v4427 = vmul.f32 %v4355, %v4403
    %v4428 = vmul.f32 %v4356, %v4413
    %v4429 = vmul.f32 %v4357, %v4423
    %v4430 = vperm.slane %v4284, 0
    %v4431 = vmul.f32 %v4424, %v4430
    %v4432 = vmul.f32 %v4425, %v4430
    %v4433 = vmul.f32 %v4426, %v4430
    %v4434 = vmul.f32 %v4427, %v4430
    %v4435 = vmul.f32 %v4428, %v4430
    %v4436 = vmul.f32 %v4429, %v4430
    %v4437 = vperm.slane %v4285, 0
    %v4438 = vadd.f32 %v4431, %v4437
    %v4439 = vadd.f32 %v4432, %v4437
    %v4440 = vadd.f32 %v4433, %v4437
    %v4441 = vadd.f32 %v4434, %v4437
    %v4442 = vadd.f32 %v4435, %v4437
    %v4443 = vadd.f32 %v4436, %v4437
    %4444 = vst.msk [vmem:[#allocation2] sm:$0xff] %vm97, %v4438
    %4445 = vst.msk [vmem:[#allocation2 + $0x8] sm:$0xff] %vm97, %v4439
    %4446 = vst.msk [vmem:[#allocation2 + $0x10] sm:$0xff] %vm97, %v4440
    %4447 = vst.msk [vmem:[#allocation2 + $0x18] sm:$0xff] %vm97, %v4441
    %4448 = vst.msk [vmem:[#allocation2 + $0x20] sm:$0xff] %vm97, %v4442
    %4449 = vst.msk [vmem:[#allocation2 + $0x28] sm:$0xff] %vm97, %v4443
    %v4450 = vld [vmem:[#allocation2] sm:$0xff]
    %v4451 = vld [vmem:[#allocation2 + $0x8] sm:$0xff]
    %v4452 = vld [vmem:[#allocation3 + $0x500] sm:$0xff]
    %v4453 = vld [vmem:[#allocation3 + $0x508] sm:$0xff]
    %v4454 = vld [vmem:[#allocation3 + $0x510] sm:$0xff]
    %v4455 = vld [vmem:[#allocation3 + $0x518] sm:$0xff]
    %v4456 = vld [vmem:[#allocation2 + $0x10] sm:$0xff]
    %v4457 = vld [vmem:[#allocation2 + $0x18] sm:$0xff]
    %v4458 = vld [vmem:[#allocation3 + $0x520] sm:$0xff]
    %v4459 = vld [vmem:[#allocation3 + $0x528] sm:$0xff]
    %v4460 = vld [vmem:[#allocation3 + $0x530] sm:$0xff]
    %v4461 = vld [vmem:[#allocation3 + $0x538] sm:$0xff]
    %v4463 = vsel %vm97, %v4456, 0
    %v4466 = vsel %vm97, %v4457, 0
    %4468 = vmatpush.msra.mxu0 0.0
    %4469 = vmatpush.msra.mxu0 0.0
    %4470 = vmatpush.msra.mxu0 0.0
    %4471 = vmatpush.msra.mxu0 0.0
    %4472 = vmatpush.msra.mxu0 0.0
    %4473 = vmatpush.msra.mxu0 0.0
    %4474 = vmatpush.msra.mxu0 0.0
    %4475 = vmatpush.msra.mxu0 0.0
    %4476 = vmatpush.msra.mxu0 0.0
    %4477 = vmatpush.msra.mxu0 0.0
    %4478 = vmatpush.msra.mxu0 0.0
    %4479 = vmatpush.msra.mxu0 0.0
    %4480 = vmatpush.msra.mxu0 %v4461
    %4481 = vmatpush.msra.mxu0 %v4460
    %4482 = vmatpush.msra.mxu0 %v4459
    %4483 = vmatpush.msra.mxu0 %v4458
    %4484 = vmatmul.f32.gmra.mxu0 %v4463
    %v4485 = vpop.f32.mrf.mxu0
    %v4486 = vadd.f32 0.0, %v4485
    %4487 = vmatmul.f32.gmra.mxu0 %v4466
    %v4488 = vpop.f32.mrf.mxu0
    %v4489 = vadd.f32 0.0, %v4488
    %4490 = vdwg.mxu0
    %v4492 = vsel %vm97, %v4450, 0
    %v4495 = vsel %vm97, %v4451, 0
    %4497 = vmatpush.msra.mxu0 0.0
    %4498 = vmatpush.msra.mxu0 0.0
    %4499 = vmatpush.msra.mxu0 0.0
    %4500 = vmatpush.msra.mxu0 0.0
    %4501 = vmatpush.msra.mxu0 0.0
    %4502 = vmatpush.msra.mxu0 0.0
    %4503 = vmatpush.msra.mxu0 0.0
    %4504 = vmatpush.msra.mxu0 0.0
    %4505 = vmatpush.msra.mxu0 0.0
    %4506 = vmatpush.msra.mxu0 0.0
    %4507 = vmatpush.msra.mxu0 0.0
    %4508 = vmatpush.msra.mxu0 0.0
    %4509 = vmatpush.msra.mxu0 %v4455
    %4510 = vmatpush.msra.mxu0 %v4454
    %4511 = vmatpush.msra.mxu0 %v4453
    %4512 = vmatpush.msra.mxu0 %v4452
    %4513 = vmatmul.f32.gmra.mxu0 %v4492
    %v4514 = vpop.f32.mrf.mxu0
    %v4515 = vadd.f32 %v4486, %v4514
    %4516 = vmatmul.f32.gmra.mxu0 %v4495
    %v4517 = vpop.f32.mrf.mxu0
    %v4518 = vadd.f32 %v4489, %v4517
    %4519 = vdwg.mxu0
    %v4520 = vld [vmem:[#allocation2 + $0x20] sm:$0xff]
    %v4521 = vld [vmem:[#allocation2 + $0x28] sm:$0xff]
    %v4522 = vld [vmem:[#allocation3 + $0x540] sm:$0xff]
    %v4523 = vld [vmem:[#allocation3 + $0x548] sm:$0xff]
    %v4524 = vld [vmem:[#allocation3 + $0x550] sm:$0xff]
    %v4525 = vld [vmem:[#allocation3 + $0x558] sm:$0xff]
    %v4527 = vsel %vm97, %v4520, 0
    %v4530 = vsel %vm97, %v4521, 0
    %4532 = vmatpush.msra.mxu0 0.0
    %4533 = vmatpush.msra.mxu0 0.0
    %4534 = vmatpush.msra.mxu0 0.0
    %4535 = vmatpush.msra.mxu0 0.0
    %4536 = vmatpush.msra.mxu0 0.0
    %4537 = vmatpush.msra.mxu0 0.0
    %4538 = vmatpush.msra.mxu0 0.0
    %4539 = vmatpush.msra.mxu0 0.0
    %4540 = vmatpush.msra.mxu0 0.0
    %4541 = vmatpush.msra.mxu0 0.0
    %4542 = vmatpush.msra.mxu0 0.0
    %4543 = vmatpush.msra.mxu0 0.0
    %4544 = vmatpush.msra.mxu0 %v4525
    %4545 = vmatpush.msra.mxu0 %v4524
    %4546 = vmatpush.msra.mxu0 %v4523
    %4547 = vmatpush.msra.mxu0 %v4522
    %4548 = vmatmul.f32.gmra.mxu0 %v4527
    %v4549 = vpop.f32.mrf.mxu0
    %v4550 = vadd.f32 0.0, %v4549
    %4551 = vmatmul.f32.gmra.mxu0 %v4530
    %v4552 = vpop.f32.mrf.mxu0
    %v4553 = vadd.f32 0.0, %v4552
    %4554 = vdwg.mxu0
    %v4555 = vadd.f32 %v4515, %v4550
    %v4556 = vadd.f32 %v4518, %v4553
    %v4557 = vld [vmem:[#allocation3 + $0x560] sm:$0x1]
    %v4558 = vperm.slane %v4557, 0
    %v4559 = vadd.f32 %v4555, %v4558
    %v4560 = vadd.f32 %v4556, %v4558
    %v4561 = vld [vmem:[#allocation3 + $0x568] sm:$0x1]
    %v4562 = vld [vmem:[#allocation3 + $0x570] sm:$0x1]
    %v4563 = vsel %vm97, %v4559, 0.0
    %4564 = vadd.xlane.f32.xlu0 %v4563
    %v4565 = vpop.xlane.xlu0 %4564
    %v4566 = vsel %vm97, %v4560, 0.0
    %4567 = vadd.xlane.f32.xlu0 %v4566
    %v4568 = vpop.xlane.xlu0 %4567
    %v4569 = vmul.f32 %v4565, %v122
    %v4570 = vmul.f32 %v4568, %v122
    %v4571 = vmul.f32 %v4559, %v4559
    %v4572 = vmul.f32 %v4560, %v4560
    %v4573 = vsel %vm97, %v4571, 0.0
    %4574 = vadd.xlane.f32.xlu0 %v4573
    %v4575 = vpop.xlane.xlu0 %4574
    %v4576 = vsel %vm97, %v4572, 0.0
    %4577 = vadd.xlane.f32.xlu0 %v4576
    %v4578 = vpop.xlane.xlu0 %4577
    %v4579 = vmul.f32 %v4575, %v122
    %v4580 = vmul.f32 %v4578, %v122
    %v4581 = vmul.f32 %v4569, %v4569
    %v4582 = vmul.f32 %v4570, %v4570
    %v4583 = vsub.f32 %v4579, %v4581
    %v4584 = vsub.f32 %v4580, %v4582
    %v4585 = vsub.f32 %v4559, %v4569
    %v4586 = vsub.f32 %v4560, %v4570
    %v4587 = vadd.f32 %v4583, 1e-05
    %v4588 = vadd.f32 %v4584, 1e-05
    %v4589 = vrsqrt.pop %v4587
    %v4590 = vmul.f32 %v4589, %v4587
    %v4591 = vmul.f32 %v4590, %v4589
    %v4592 = vmul.f32 0.5, %v4591
    %v4593 = vsub.f32 1.5, %v4592
    %v4594 = vmul.f32 %v4589, %v4593
    %vm4595 = vweird.f32 %v4587
    %vm4596 = vweird.f32 %v4589
    %vm4597 = vmor %vm4595, %vm4596
    %v4598 = vsel %vm4597, %v4589, %v4594
    %v4599 = vrsqrt.pop %v4588
    %v4600 = vmul.f32 %v4599, %v4588
    %v4601 = vmul.f32 %v4600, %v4599
    %v4602 = vmul.f32 0.5, %v4601
    %v4603 = vsub.f32 1.5, %v4602
    %v4604 = vmul.f32 %v4599, %v4603
    %vm4605 = vweird.f32 %v4588
    %vm4606 = vweird.f32 %v4599
    %vm4607 = vmor %vm4605, %vm4606
    %v4608 = vsel %vm4607, %v4599, %v4604
    %v4609 = vmul.f32 %v4585, %v4598
    %v4610 = vmul.f32 %v4586, %v4608
    %v4611 = vperm.slane %v4561, 0
    %v4612 = vmul.f32 %v4609, %v4611
    %v4613 = vmul.f32 %v4610, %v4611
    %v4614 = vperm.slane %v4562, 0
    %v4615 = vadd.f32 %v4612, %v4614
    %v4616 = vadd.f32 %v4613, %v4614
    %v4617 = vld [vmem:[#allocation3 + $0x578] sm:$0xff]
    %v4618 = vld [vmem:[#allocation3 + $0x580] sm:$0xff]
    %v4619 = vld [vmem:[#allocation3 + $0x588] sm:$0xff]
    %v4620 = vld [vmem:[#allocation3 + $0x590] sm:$0xff]
    %v4621 = vld [vmem:[#allocation3 + $0x598] sm:$0xff]
    %v4622 = vld [vmem:[#allocation3 + $0x5a0] sm:$0xff]
    %v4623 = vld [vmem:[#allocation3 + $0x5a8] sm:$0xff]
    %v4624 = vld [vmem:[#allocation3 + $0x5b0] sm:$0xff]
    %v4625 = vld [vmem:[#allocation3 + $0x5b8] sm:$0xff]
    %v4626 = vld [vmem:[#allocation3 + $0x5c0] sm:$0xff]
    %v4627 = vld [vmem:[#allocation3 + $0x5c8] sm:$0xff]
    %v4628 = vld [vmem:[#allocation3 + $0x5d0] sm:$0xff]
    %v4629 = vld [vmem:[#allocation3 + $0x5d8] sm:$0xff]
    %v4630 = vld [vmem:[#allocation3 + $0x5e0] sm:$0xff]
    %v4631 = vld [vmem:[#allocation3 + $0x5e8] sm:$0xff]
    %v4632 = vld [vmem:[#allocation3 + $0x5f0] sm:$0xff]
    %v4634 = vsel %vm2135, %v4617, 0
    %v4637 = vsel %vm2135, %v4618, 0
    %v4640 = vsel %vm2135, %v4619, 0
    %v4643 = vsel %vm2135, %v4620, 0
    %v4646 = vsel %vm2135, %v4621, 0
    %v4649 = vsel %vm2135, %v4622, 0
    %v4652 = vsel %vm2135, %v4623, 0
    %v4655 = vsel %vm2135, %v4624, 0
    %4657 = vmatpush.msra.mxu0 0.0
    %4658 = vmatpush.msra.mxu0 0.0
    %4659 = vmatpush.msra.mxu0 0.0
    %4660 = vmatpush.msra.mxu0 0.0
    %4661 = vmatpush.msra.mxu0 0.0
    %4662 = vmatpush.msra.mxu0 0.0
    %4663 = vmatpush.msra.mxu0 0.0
    %4664 = vmatpush.msra.mxu0 0.0
    %4665 = vmatpush.msra.mxu0 0.0
    %4666 = vmatpush.msra.mxu0 0.0
    %4667 = vmatpush.msra.mxu0 0.0
    %4668 = vmatpush.msra.mxu0 0.0
    %4669 = vmatpush.msra.mxu0 0.0
    %4670 = vmatpush.msra.mxu0 0.0
    %4671 = vmatpush.msra.mxu0 %v4616
    %4672 = vmatpush.msra.mxu0 %v4615
    %4673 = vmatmul.f32.gmra.mxu0 %v4634
    %v4674 = vpop.f32.mrf.mxu0
    %v4675 = vadd.f32 %v4625, %v4674
    %4676 = vmatmul.f32.gmra.mxu0 %v4637
    %v4677 = vpop.f32.mrf.mxu0
    %v4678 = vadd.f32 %v4626, %v4677
    %4679 = vmatmul.f32.gmra.mxu0 %v4640
    %v4680 = vpop.f32.mrf.mxu0
    %v4681 = vadd.f32 %v4627, %v4680
    %4682 = vmatmul.f32.gmra.mxu0 %v4643
    %v4683 = vpop.f32.mrf.mxu0
    %v4684 = vadd.f32 %v4628, %v4683
    %4685 = vmatmul.f32.gmra.mxu0 %v4646
    %v4686 = vpop.f32.mrf.mxu0
    %v4687 = vadd.f32 %v4629, %v4686
    %4688 = vmatmul.f32.gmra.mxu0 %v4649
    %v4689 = vpop.f32.mrf.mxu0
    %v4690 = vadd.f32 %v4630, %v4689
    %4691 = vmatmul.f32.gmra.mxu0 %v4652
    %v4692 = vpop.f32.mrf.mxu0
    %v4693 = vadd.f32 %v4631, %v4692
    %4694 = vmatmul.f32.gmra.mxu0 %v4655
    %v4695 = vpop.f32.mrf.mxu0
    %v4696 = vadd.f32 %v4632, %v4695
    %4697 = vdwg.mxu0
    %v4698 = vmul.f32 %v4675, 0.5
    %v4699 = vmul.f32 %v4678, 0.5
    %v4700 = vmul.f32 %v4681, 0.5
    %v4701 = vmul.f32 %v4684, 0.5
    %v4702 = vmul.f32 %v4687, 0.5
    %v4703 = vmul.f32 %v4690, 0.5
    %v4704 = vmul.f32 %v4693, 0.5
    %v4705 = vmul.f32 %v4696, 0.5
    %v4706 = vmul.f32 %v4675, 0.70710677
    %v4707 = vmul.f32 %v4678, 0.70710677
    %v4708 = vmul.f32 %v4681, 0.70710677
    %v4709 = vmul.f32 %v4684, 0.70710677
    %v4710 = vmul.f32 %v4687, 0.70710677
    %v4711 = vmul.f32 %v4690, 0.70710677
    %v4712 = vmul.f32 %v4693, 0.70710677
    %v4713 = vmul.f32 %v4696, 0.70710677
    %v4714 = vmul.f32 %v4706, %v4706
    %v4715 = vmin.f32 16.0, %v4714
    %v4716 = vmul.f32 %v4715, 2.1237322e-06
    %v4717 = vadd.f32 %v4716, 0.00028619796
    %v4718 = vmul.f32 %v4715, %v4717
    %v4719 = vadd.f32 %v4718, 0.0036580483
    %v4720 = vmul.f32 %v4715, %v4719
    %v4721 = vadd.f32 %v4720, 0.05243302
    %v4722 = vmul.f32 %v4715, %v4721
    %v4723 = vadd.f32 %v4722, 0.18741608
    %v4724 = vmul.f32 %v4715, %v4723
    %v4725 = vadd.f32 %v4724, 1.1283791
    %v4726 = vmul.f32 %v4706, %v4725
    %v4727 = vmul.f32 %v4715, 3.8918573e-05
    %v4728 = vadd.f32 %v4727, 0.001143296
    %v4729 = vmul.f32 %v4715, %v4728
    %v4730 = vadd.f32 %v4729, 0.014752088
    %v4731 = vmul.f32 %v4715, %v4730
    %v4732 = vadd.f32 %v4731, 0.112945676
    %v4733 = vmul.f32 %v4715, %v4732
    %v4734 = vadd.f32 %v4733, 0.4994258
    %v4735 = vmul.f32 %v4715, %v4734
    %v4736 = vadd.f32 %v4735, 1.0
    %v4737 = vrcp.pop %v4736
    %v4738 = vmul.f32 %v4736, %v4737
    %v4739 = vsub.f32 1.0, %v4738
    %v4740 = vmul.f32 %v4737, %v4739
    %v4741 = vadd.f32 %v4737, %v4740
    %vm4742 = vweird.f32 %v4736
    %vm4743 = vweird.f32 %v4737
    %vm4744 = vmor %vm4742, %vm4743
    %v4745 = vsel %vm4744, %v4737, %v4741
    %v4746 = vand.u32 2147483647, %v4736
    %vm4747 = vcmp.eq.f32.partialorder %v4746, 8.507059e+37
    %v4748 = vand.u32 %v4736, 2147483648
    %v4749 = vor.u32 1.1754944e-38, %v4748
    %v4750 = vsel %vm4747, %v4749, %v4745
    %v4751 = vmul.f32 %v4726, %v4750
    %v4752 = vmin.f32 %v4751, 1.0
    %v4753 = vmax.f32 %v4752, -1.0
    %v4754 = vmul.f32 %v4707, %v4707
    %v4755 = vmin.f32 16.0, %v4754
    %v4756 = vmul.f32 %v4755, 2.1237322e-06
    %v4757 = vadd.f32 %v4756, 0.00028619796
    %v4758 = vmul.f32 %v4755, %v4757
    %v4759 = vadd.f32 %v4758, 0.0036580483
    %v4760 = vmul.f32 %v4755, %v4759
    %v4761 = vadd.f32 %v4760, 0.05243302
    %v4762 = vmul.f32 %v4755, %v4761
    %v4763 = vadd.f32 %v4762, 0.18741608
    %v4764 = vmul.f32 %v4755, %v4763
    %v4765 = vadd.f32 %v4764, 1.1283791
    %v4766 = vmul.f32 %v4707, %v4765
    %v4767 = vmul.f32 %v4755, 3.8918573e-05
    %v4768 = vadd.f32 %v4767, 0.001143296
    %v4769 = vmul.f32 %v4755, %v4768
    %v4770 = vadd.f32 %v4769, 0.014752088
    %v4771 = vmul.f32 %v4755, %v4770
    %v4772 = vadd.f32 %v4771, 0.112945676
    %v4773 = vmul.f32 %v4755, %v4772
    %v4774 = vadd.f32 %v4773, 0.4994258
    %v4775 = vmul.f32 %v4755, %v4774
    %v4776 = vadd.f32 %v4775, 1.0
    %v4777 = vrcp.pop %v4776
    %v4778 = vmul.f32 %v4776, %v4777
    %v4779 = vsub.f32 1.0, %v4778
    %v4780 = vmul.f32 %v4777, %v4779
    %v4781 = vadd.f32 %v4777, %v4780
    %vm4782 = vweird.f32 %v4776
    %vm4783 = vweird.f32 %v4777
    %vm4784 = vmor %vm4782, %vm4783
    %v4785 = vsel %vm4784, %v4777, %v4781
    %v4786 = vand.u32 2147483647, %v4776
    %vm4787 = vcmp.eq.f32.partialorder %v4786, 8.507059e+37
    %v4788 = vand.u32 %v4776, 2147483648
    %v4789 = vor.u32 1.1754944e-38, %v4788
    %v4790 = vsel %vm4787, %v4789, %v4785
    %v4791 = vmul.f32 %v4766, %v4790
    %v4792 = vmin.f32 %v4791, 1.0
    %v4793 = vmax.f32 %v4792, -1.0
    %v4794 = vmul.f32 %v4708, %v4708
    %v4795 = vmin.f32 16.0, %v4794
    %v4796 = vmul.f32 %v4795, 2.1237322e-06
    %v4797 = vadd.f32 %v4796, 0.00028619796
    %v4798 = vmul.f32 %v4795, %v4797
    %v4799 = vadd.f32 %v4798, 0.0036580483
    %v4800 = vmul.f32 %v4795, %v4799
    %v4801 = vadd.f32 %v4800, 0.05243302
    %v4802 = vmul.f32 %v4795, %v4801
    %v4803 = vadd.f32 %v4802, 0.18741608
    %v4804 = vmul.f32 %v4795, %v4803
    %v4805 = vadd.f32 %v4804, 1.1283791
    %v4806 = vmul.f32 %v4708, %v4805
    %v4807 = vmul.f32 %v4795, 3.8918573e-05
    %v4808 = vadd.f32 %v4807, 0.001143296
    %v4809 = vmul.f32 %v4795, %v4808
    %v4810 = vadd.f32 %v4809, 0.014752088
    %v4811 = vmul.f32 %v4795, %v4810
    %v4812 = vadd.f32 %v4811, 0.112945676
    %v4813 = vmul.f32 %v4795, %v4812
    %v4814 = vadd.f32 %v4813, 0.4994258
    %v4815 = vmul.f32 %v4795, %v4814
    %v4816 = vadd.f32 %v4815, 1.0
    %v4817 = vrcp.pop %v4816
    %v4818 = vmul.f32 %v4816, %v4817
    %v4819 = vsub.f32 1.0, %v4818
    %v4820 = vmul.f32 %v4817, %v4819
    %v4821 = vadd.f32 %v4817, %v4820
    %vm4822 = vweird.f32 %v4816
    %vm4823 = vweird.f32 %v4817
    %vm4824 = vmor %vm4822, %vm4823
    %v4825 = vsel %vm4824, %v4817, %v4821
    %v4826 = vand.u32 2147483647, %v4816
    %vm4827 = vcmp.eq.f32.partialorder %v4826, 8.507059e+37
    %v4828 = vand.u32 %v4816, 2147483648
    %v4829 = vor.u32 1.1754944e-38, %v4828
    %v4830 = vsel %vm4827, %v4829, %v4825
    %v4831 = vmul.f32 %v4806, %v4830
    %v4832 = vmin.f32 %v4831, 1.0
    %v4833 = vmax.f32 %v4832, -1.0
    %v4834 = vmul.f32 %v4709, %v4709
    %v4835 = vmin.f32 16.0, %v4834
    %v4836 = vmul.f32 %v4835, 2.1237322e-06
    %v4837 = vadd.f32 %v4836, 0.00028619796
    %v4838 = vmul.f32 %v4835, %v4837
    %v4839 = vadd.f32 %v4838, 0.0036580483
    %v4840 = vmul.f32 %v4835, %v4839
    %v4841 = vadd.f32 %v4840, 0.05243302
    %v4842 = vmul.f32 %v4835, %v4841
    %v4843 = vadd.f32 %v4842, 0.18741608
    %v4844 = vmul.f32 %v4835, %v4843
    %v4845 = vadd.f32 %v4844, 1.1283791
    %v4846 = vmul.f32 %v4709, %v4845
    %v4847 = vmul.f32 %v4835, 3.8918573e-05
    %v4848 = vadd.f32 %v4847, 0.001143296
    %v4849 = vmul.f32 %v4835, %v4848
    %v4850 = vadd.f32 %v4849, 0.014752088
    %v4851 = vmul.f32 %v4835, %v4850
    %v4852 = vadd.f32 %v4851, 0.112945676
    %v4853 = vmul.f32 %v4835, %v4852
    %v4854 = vadd.f32 %v4853, 0.4994258
    %v4855 = vmul.f32 %v4835, %v4854
    %v4856 = vadd.f32 %v4855, 1.0
    %v4857 = vrcp.pop %v4856
    %v4858 = vmul.f32 %v4856, %v4857
    %v4859 = vsub.f32 1.0, %v4858
    %v4860 = vmul.f32 %v4857, %v4859
    %v4861 = vadd.f32 %v4857, %v4860
    %vm4862 = vweird.f32 %v4856
    %vm4863 = vweird.f32 %v4857
    %vm4864 = vmor %vm4862, %vm4863
    %v4865 = vsel %vm4864, %v4857, %v4861
    %v4866 = vand.u32 2147483647, %v4856
    %vm4867 = vcmp.eq.f32.partialorder %v4866, 8.507059e+37
    %v4868 = vand.u32 %v4856, 2147483648
    %v4869 = vor.u32 1.1754944e-38, %v4868
    %v4870 = vsel %vm4867, %v4869, %v4865
    %v4871 = vmul.f32 %v4846, %v4870
    %v4872 = vmin.f32 %v4871, 1.0
    %v4873 = vmax.f32 %v4872, -1.0
    %v4874 = vmul.f32 %v4710, %v4710
    %v4875 = vmin.f32 16.0, %v4874
    %v4876 = vmul.f32 %v4875, 2.1237322e-06
    %v4877 = vadd.f32 %v4876, 0.00028619796
    %v4878 = vmul.f32 %v4875, %v4877
    %v4879 = vadd.f32 %v4878, 0.0036580483
    %v4880 = vmul.f32 %v4875, %v4879
    %v4881 = vadd.f32 %v4880, 0.05243302
    %v4882 = vmul.f32 %v4875, %v4881
    %v4883 = vadd.f32 %v4882, 0.18741608
    %v4884 = vmul.f32 %v4875, %v4883
    %v4885 = vadd.f32 %v4884, 1.1283791
    %v4886 = vmul.f32 %v4710, %v4885
    %v4887 = vmul.f32 %v4875, 3.8918573e-05
    %v4888 = vadd.f32 %v4887, 0.001143296
    %v4889 = vmul.f32 %v4875, %v4888
    %v4890 = vadd.f32 %v4889, 0.014752088
    %v4891 = vmul.f32 %v4875, %v4890
    %v4892 = vadd.f32 %v4891, 0.112945676
    %v4893 = vmul.f32 %v4875, %v4892
    %v4894 = vadd.f32 %v4893, 0.4994258
    %v4895 = vmul.f32 %v4875, %v4894
    %v4896 = vadd.f32 %v4895, 1.0
    %v4897 = vrcp.pop %v4896
    %v4898 = vmul.f32 %v4896, %v4897
    %v4899 = vsub.f32 1.0, %v4898
    %v4900 = vmul.f32 %v4897, %v4899
    %v4901 = vadd.f32 %v4897, %v4900
    %vm4902 = vweird.f32 %v4896
    %vm4903 = vweird.f32 %v4897
    %vm4904 = vmor %vm4902, %vm4903
    %v4905 = vsel %vm4904, %v4897, %v4901
    %v4906 = vand.u32 2147483647, %v4896
    %vm4907 = vcmp.eq.f32.partialorder %v4906, 8.507059e+37
    %v4908 = vand.u32 %v4896, 2147483648
    %v4909 = vor.u32 1.1754944e-38, %v4908
    %v4910 = vsel %vm4907, %v4909, %v4905
    %v4911 = vmul.f32 %v4886, %v4910
    %v4912 = vmin.f32 %v4911, 1.0
    %v4913 = vmax.f32 %v4912, -1.0
    %v4914 = vmul.f32 %v4711, %v4711
    %v4915 = vmin.f32 16.0, %v4914
    %v4916 = vmul.f32 %v4915, 2.1237322e-06
    %v4917 = vadd.f32 %v4916, 0.00028619796
    %v4918 = vmul.f32 %v4915, %v4917
    %v4919 = vadd.f32 %v4918, 0.0036580483
    %v4920 = vmul.f32 %v4915, %v4919
    %v4921 = vadd.f32 %v4920, 0.05243302
    %v4922 = vmul.f32 %v4915, %v4921
    %v4923 = vadd.f32 %v4922, 0.18741608
    %v4924 = vmul.f32 %v4915, %v4923
    %v4925 = vadd.f32 %v4924, 1.1283791
    %v4926 = vmul.f32 %v4711, %v4925
    %v4927 = vmul.f32 %v4915, 3.8918573e-05
    %v4928 = vadd.f32 %v4927, 0.001143296
    %v4929 = vmul.f32 %v4915, %v4928
    %v4930 = vadd.f32 %v4929, 0.014752088
    %v4931 = vmul.f32 %v4915, %v4930
    %v4932 = vadd.f32 %v4931, 0.112945676
    %v4933 = vmul.f32 %v4915, %v4932
    %v4934 = vadd.f32 %v4933, 0.4994258
    %v4935 = vmul.f32 %v4915, %v4934
    %v4936 = vadd.f32 %v4935, 1.0
    %v4937 = vrcp.pop %v4936
    %v4938 = vmul.f32 %v4936, %v4937
    %v4939 = vsub.f32 1.0, %v4938
    %v4940 = vmul.f32 %v4937, %v4939
    %v4941 = vadd.f32 %v4937, %v4940
    %vm4942 = vweird.f32 %v4936
    %vm4943 = vweird.f32 %v4937
    %vm4944 = vmor %vm4942, %vm4943
    %v4945 = vsel %vm4944, %v4937, %v4941
    %v4946 = vand.u32 2147483647, %v4936
    %vm4947 = vcmp.eq.f32.partialorder %v4946, 8.507059e+37
    %v4948 = vand.u32 %v4936, 2147483648
    %v4949 = vor.u32 1.1754944e-38, %v4948
    %v4950 = vsel %vm4947, %v4949, %v4945
    %v4951 = vmul.f32 %v4926, %v4950
    %v4952 = vmin.f32 %v4951, 1.0
    %v4953 = vmax.f32 %v4952, -1.0
    %v4954 = vmul.f32 %v4712, %v4712
    %v4955 = vmin.f32 16.0, %v4954
    %v4956 = vmul.f32 %v4955, 2.1237322e-06
    %v4957 = vadd.f32 %v4956, 0.00028619796
    %v4958 = vmul.f32 %v4955, %v4957
    %v4959 = vadd.f32 %v4958, 0.0036580483
    %v4960 = vmul.f32 %v4955, %v4959
    %v4961 = vadd.f32 %v4960, 0.05243302
    %v4962 = vmul.f32 %v4955, %v4961
    %v4963 = vadd.f32 %v4962, 0.18741608
    %v4964 = vmul.f32 %v4955, %v4963
    %v4965 = vadd.f32 %v4964, 1.1283791
    %v4966 = vmul.f32 %v4712, %v4965
    %v4967 = vmul.f32 %v4955, 3.8918573e-05
    %v4968 = vadd.f32 %v4967, 0.001143296
    %v4969 = vmul.f32 %v4955, %v4968
    %v4970 = vadd.f32 %v4969, 0.014752088
    %v4971 = vmul.f32 %v4955, %v4970
    %v4972 = vadd.f32 %v4971, 0.112945676
    %v4973 = vmul.f32 %v4955, %v4972
    %v4974 = vadd.f32 %v4973, 0.4994258
    %v4975 = vmul.f32 %v4955, %v4974
    %v4976 = vadd.f32 %v4975, 1.0
    %v4977 = vrcp.pop %v4976
    %v4978 = vmul.f32 %v4976, %v4977
    %v4979 = vsub.f32 1.0, %v4978
    %v4980 = vmul.f32 %v4977, %v4979
    %v4981 = vadd.f32 %v4977, %v4980
    %vm4982 = vweird.f32 %v4976
    %vm4983 = vweird.f32 %v4977
    %vm4984 = vmor %vm4982, %vm4983
    %v4985 = vsel %vm4984, %v4977, %v4981
    %v4986 = vand.u32 2147483647, %v4976
    %vm4987 = vcmp.eq.f32.partialorder %v4986, 8.507059e+37
    %v4988 = vand.u32 %v4976, 2147483648
    %v4989 = vor.u32 1.1754944e-38, %v4988
    %v4990 = vsel %vm4987, %v4989, %v4985
    %v4991 = vmul.f32 %v4966, %v4990
    %v4992 = vmin.f32 %v4991, 1.0
    %v4993 = vmax.f32 %v4992, -1.0
    %v4994 = vmul.f32 %v4713, %v4713
    %v4995 = vmin.f32 16.0, %v4994
    %v4996 = vmul.f32 %v4995, 2.1237322e-06
    %v4997 = vadd.f32 %v4996, 0.00028619796
    %v4998 = vmul.f32 %v4995, %v4997
    %v4999 = vadd.f32 %v4998, 0.0036580483
    %v5000 = vmul.f32 %v4995, %v4999
    %v5001 = vadd.f32 %v5000, 0.05243302
    %v5002 = vmul.f32 %v4995, %v5001
    %v5003 = vadd.f32 %v5002, 0.18741608
    %v5004 = vmul.f32 %v4995, %v5003
    %v5005 = vadd.f32 %v5004, 1.1283791
    %v5006 = vmul.f32 %v4713, %v5005
    %v5007 = vmul.f32 %v4995, 3.8918573e-05
    %v5008 = vadd.f32 %v5007, 0.001143296
    %v5009 = vmul.f32 %v4995, %v5008
    %v5010 = vadd.f32 %v5009, 0.014752088
    %v5011 = vmul.f32 %v4995, %v5010
    %v5012 = vadd.f32 %v5011, 0.112945676
    %v5013 = vmul.f32 %v4995, %v5012
    %v5014 = vadd.f32 %v5013, 0.4994258
    %v5015 = vmul.f32 %v4995, %v5014
    %v5016 = vadd.f32 %v5015, 1.0
    %v5017 = vrcp.pop %v5016
    %v5018 = vmul.f32 %v5016, %v5017
    %v5019 = vsub.f32 1.0, %v5018
    %v5020 = vmul.f32 %v5017, %v5019
    %v5021 = vadd.f32 %v5017, %v5020
    %vm5022 = vweird.f32 %v5016
    %vm5023 = vweird.f32 %v5017
    %vm5024 = vmor %vm5022, %vm5023
    %v5025 = vsel %vm5024, %v5017, %v5021
    %v5026 = vand.u32 2147483647, %v5016
    %vm5027 = vcmp.eq.f32.partialorder %v5026, 8.507059e+37
    %v5028 = vand.u32 %v5016, 2147483648
    %v5029 = vor.u32 1.1754944e-38, %v5028
    %v5030 = vsel %vm5027, %v5029, %v5025
    %v5031 = vmul.f32 %v5006, %v5030
    %v5032 = vmin.f32 %v5031, 1.0
    %v5033 = vmax.f32 %v5032, -1.0
    %v5034 = vadd.f32 %v4753, 1.0
    %v5035 = vadd.f32 %v4793, 1.0
    %v5036 = vadd.f32 %v4833, 1.0
    %v5037 = vadd.f32 %v4873, 1.0
    %v5038 = vadd.f32 %v4913, 1.0
    %v5039 = vadd.f32 %v4953, 1.0
    %v5040 = vadd.f32 %v4993, 1.0
    %v5041 = vadd.f32 %v5033, 1.0
    %v5042 = vmul.f32 %v4698, %v5034
    %v5043 = vmul.f32 %v4699, %v5035
    %v5044 = vmul.f32 %v4700, %v5036
    %v5045 = vmul.f32 %v4701, %v5037
    %v5046 = vmul.f32 %v4702, %v5038
    %v5047 = vmul.f32 %v4703, %v5039
    %v5048 = vmul.f32 %v4704, %v5040
    %v5049 = vmul.f32 %v4705, %v5041
    %v5050 = vld [vmem:[#allocation3 + $0x5f8] sm:$0xff]
    %v5051 = vld [vmem:[#allocation3 + $0x600] sm:$0xff]
    %v5052 = vld [vmem:[#allocation3 + $0x608] sm:$0xff]
    %v5053 = vld [vmem:[#allocation3 + $0x610] sm:$0xff]
    %v5055 = vsel %vm1541, %v5050, 0
    %v5058 = vsel %vm1541, %v5051, 0
    %5060 = vmatpush.msra.mxu0 0.0
    %5061 = vmatpush.msra.mxu0 0.0
    %5062 = vmatpush.msra.mxu0 0.0
    %5063 = vmatpush.msra.mxu0 0.0
    %5064 = vmatpush.msra.mxu0 0.0
    %5065 = vmatpush.msra.mxu0 0.0
    %5066 = vmatpush.msra.mxu0 0.0
    %5067 = vmatpush.msra.mxu0 0.0
    %5068 = vmatpush.msra.mxu0 %v5049
    %5069 = vmatpush.msra.mxu0 %v5048
    %5070 = vmatpush.msra.mxu0 %v5047
    %5071 = vmatpush.msra.mxu0 %v5046
    %5072 = vmatpush.msra.mxu0 %v5045
    %5073 = vmatpush.msra.mxu0 %v5044
    %5074 = vmatpush.msra.mxu0 %v5043
    %5075 = vmatpush.msra.mxu0 %v5042
    %5076 = vmatmul.f32.gmra.mxu0 %v5055
    %v5077 = vpop.f32.mrf.mxu0
    %v5078 = vadd.f32 %v5052, %v5077
    %5079 = vmatmul.f32.gmra.mxu0 %v5058
    %v5080 = vpop.f32.mrf.mxu0
    %v5081 = vadd.f32 %v5053, %v5080
    %5082 = vdwg.mxu0
    %v5083 = vadd.f32 %v4559, %v5078
    %v5084 = vadd.f32 %v4560, %v5081
    %v5085 = vld [vmem:[#allocation3 + $0x618] sm:$0x1]
    %v5086 = vld [vmem:[#allocation3 + $0x620] sm:$0x1]
    %v5087 = vsel %vm97, %v5083, 0.0
    %5088 = vadd.xlane.f32.xlu0 %v5087
    %v5089 = vpop.xlane.xlu0 %5088
    %v5090 = vsel %vm97, %v5084, 0.0
    %5091 = vadd.xlane.f32.xlu0 %v5090
    %v5092 = vpop.xlane.xlu0 %5091
    %v5093 = vmul.f32 %v5089, %v122
    %v5094 = vmul.f32 %v5092, %v122
    %v5095 = vmul.f32 %v5083, %v5083
    %v5096 = vmul.f32 %v5084, %v5084
    %v5097 = vsel %vm97, %v5095, 0.0
    %5098 = vadd.xlane.f32.xlu0 %v5097
    %v5099 = vpop.xlane.xlu0 %5098
    %v5100 = vsel %vm97, %v5096, 0.0
    %5101 = vadd.xlane.f32.xlu0 %v5100
    %v5102 = vpop.xlane.xlu0 %5101
    %v5103 = vmul.f32 %v5099, %v122
    %v5104 = vmul.f32 %v5102, %v122
    %v5105 = vmul.f32 %v5093, %v5093
    %v5106 = vmul.f32 %v5094, %v5094
    %v5107 = vsub.f32 %v5103, %v5105
    %v5108 = vsub.f32 %v5104, %v5106
    %v5109 = vsub.f32 %v5083, %v5093
    %v5110 = vsub.f32 %v5084, %v5094
    %v5111 = vadd.f32 %v5107, 1e-05
    %v5112 = vadd.f32 %v5108, 1e-05
    %v5113 = vrsqrt.pop %v5111
    %v5114 = vmul.f32 %v5113, %v5111
    %v5115 = vmul.f32 %v5114, %v5113
    %v5116 = vmul.f32 0.5, %v5115
    %v5117 = vsub.f32 1.5, %v5116
    %v5118 = vmul.f32 %v5113, %v5117
    %vm5119 = vweird.f32 %v5111
    %vm5120 = vweird.f32 %v5113
    %vm5121 = vmor %vm5119, %vm5120
    %v5122 = vsel %vm5121, %v5113, %v5118
    %v5123 = vrsqrt.pop %v5112
    %v5124 = vmul.f32 %v5123, %v5112
    %v5125 = vmul.f32 %v5124, %v5123
    %v5126 = vmul.f32 0.5, %v5125
    %v5127 = vsub.f32 1.5, %v5126
    %v5128 = vmul.f32 %v5123, %v5127
    %vm5129 = vweird.f32 %v5112
    %vm5130 = vweird.f32 %v5123
    %vm5131 = vmor %vm5129, %vm5130
    %v5132 = vsel %vm5131, %v5123, %v5128
    %v5133 = vmul.f32 %v5109, %v5122
    %v5134 = vmul.f32 %v5110, %v5132
    %v5135 = vperm.slane %v5085, 0
    %v5136 = vmul.f32 %v5133, %v5135
    %v5137 = vmul.f32 %v5134, %v5135
    %v5138 = vperm.slane %v5086, 0
    %v5139 = vadd.f32 %v5136, %v5138
    %v5140 = vadd.f32 %v5137, %v5138
    %v5141 = vld [vmem:[#allocation3 + $0x628] sm:$0xff]
    %v5142 = vld [vmem:[#allocation3 + $0x630] sm:$0xff]
    %v5143 = vld [vmem:[#allocation3 + $0x638] sm:$0xff]
    %v5144 = vld [vmem:[#allocation3 + $0x640] sm:$0xff]
    %v5145 = vld [vmem:[#allocation3 + $0x648] sm:$0x1]
    %v5146 = vperm.slane %v5145, 0
    %v5148 = vsel %vm97, %v5139, 0
    %v5151 = vsel %vm97, %v5140, 0
    %5153 = vmatpush.msra.mxu0 0.0
    %5154 = vmatpush.msra.mxu0 0.0
    %5155 = vmatpush.msra.mxu0 0.0
    %5156 = vmatpush.msra.mxu0 0.0
    %5157 = vmatpush.msra.mxu0 0.0
    %5158 = vmatpush.msra.mxu0 0.0
    %5159 = vmatpush.msra.mxu0 0.0
    %5160 = vmatpush.msra.mxu0 0.0
    %5161 = vmatpush.msra.mxu0 0.0
    %5162 = vmatpush.msra.mxu0 0.0
    %5163 = vmatpush.msra.mxu0 0.0
    %5164 = vmatpush.msra.mxu0 0.0
    %5165 = vmatpush.msra.mxu0 %v5144
    %5166 = vmatpush.msra.mxu0 %v5143
    %5167 = vmatpush.msra.mxu0 %v5142
    %5168 = vmatpush.msra.mxu0 %v5141
    %5169 = vmatmul.f32.gmra.mxu0 %v5148
    %v5170 = vpop.f32.mrf.mxu0
    %v5171 = vadd.f32 %v5146, %v5170
    %5172 = vmatmul.f32.gmra.mxu0 %v5151
    %v5173 = vpop.f32.mrf.mxu0
    %v5174 = vadd.f32 %v5146, %v5173
    %5175 = vdwg.mxu0
    %v5176 = vmul.f32 %v5171, 0.5
    %v5177 = vmul.f32 %v5174, 0.5
    %v5178 = vmul.f32 %v5171, 0.70710677
    %v5179 = vmul.f32 %v5174, 0.70710677
    %v5180 = vmul.f32 %v5178, %v5178
    %v5181 = vmin.f32 16.0, %v5180
    %v5182 = vmul.f32 %v5181, 2.1237322e-06
    %v5183 = vadd.f32 %v5182, 0.00028619796
    %v5184 = vmul.f32 %v5181, %v5183
    %v5185 = vadd.f32 %v5184, 0.0036580483
    %v5186 = vmul.f32 %v5181, %v5185
    %v5187 = vadd.f32 %v5186, 0.05243302
    %v5188 = vmul.f32 %v5181, %v5187
    %v5189 = vadd.f32 %v5188, 0.18741608
    %v5190 = vmul.f32 %v5181, %v5189
    %v5191 = vadd.f32 %v5190, 1.1283791
    %v5192 = vmul.f32 %v5178, %v5191
    %v5193 = vmul.f32 %v5181, 3.8918573e-05
    %v5194 = vadd.f32 %v5193, 0.001143296
    %v5195 = vmul.f32 %v5181, %v5194
    %v5196 = vadd.f32 %v5195, 0.014752088
    %v5197 = vmul.f32 %v5181, %v5196
    %v5198 = vadd.f32 %v5197, 0.112945676
    %v5199 = vmul.f32 %v5181, %v5198
    %v5200 = vadd.f32 %v5199, 0.4994258
    %v5201 = vmul.f32 %v5181, %v5200
    %v5202 = vadd.f32 %v5201, 1.0
    %v5203 = vrcp.pop %v5202
    %v5204 = vmul.f32 %v5202, %v5203
    %v5205 = vsub.f32 1.0, %v5204
    %v5206 = vmul.f32 %v5203, %v5205
    %v5207 = vadd.f32 %v5203, %v5206
    %vm5208 = vweird.f32 %v5202
    %vm5209 = vweird.f32 %v5203
    %vm5210 = vmor %vm5208, %vm5209
    %v5211 = vsel %vm5210, %v5203, %v5207
    %v5212 = vand.u32 2147483647, %v5202
    %vm5213 = vcmp.eq.f32.partialorder %v5212, 8.507059e+37
    %v5214 = vand.u32 %v5202, 2147483648
    %v5215 = vor.u32 1.1754944e-38, %v5214
    %v5216 = vsel %vm5213, %v5215, %v5211
    %v5217 = vmul.f32 %v5192, %v5216
    %v5218 = vmin.f32 %v5217, 1.0
    %v5219 = vmax.f32 %v5218, -1.0
    %v5220 = vmul.f32 %v5179, %v5179
    %v5221 = vmin.f32 16.0, %v5220
    %v5222 = vmul.f32 %v5221, 2.1237322e-06
    %v5223 = vadd.f32 %v5222, 0.00028619796
    %v5224 = vmul.f32 %v5221, %v5223
    %v5225 = vadd.f32 %v5224, 0.0036580483
    %v5226 = vmul.f32 %v5221, %v5225
    %v5227 = vadd.f32 %v5226, 0.05243302
    %v5228 = vmul.f32 %v5221, %v5227
    %v5229 = vadd.f32 %v5228, 0.18741608
    %v5230 = vmul.f32 %v5221, %v5229
    %v5231 = vadd.f32 %v5230, 1.1283791
    %v5232 = vmul.f32 %v5179, %v5231
    %v5233 = vmul.f32 %v5221, 3.8918573e-05
    %v5234 = vadd.f32 %v5233, 0.001143296
    %v5235 = vmul.f32 %v5221, %v5234
    %v5236 = vadd.f32 %v5235, 0.014752088
    %v5237 = vmul.f32 %v5221, %v5236
    %v5238 = vadd.f32 %v5237, 0.112945676
    %v5239 = vmul.f32 %v5221, %v5238
    %v5240 = vadd.f32 %v5239, 0.4994258
    %v5241 = vmul.f32 %v5221, %v5240
    %v5242 = vadd.f32 %v5241, 1.0
    %v5243 = vrcp.pop %v5242
    %v5244 = vmul.f32 %v5242, %v5243
    %v5245 = vsub.f32 1.0, %v5244
    %v5246 = vmul.f32 %v5243, %v5245
    %v5247 = vadd.f32 %v5243, %v5246
    %vm5248 = vweird.f32 %v5242
    %vm5249 = vweird.f32 %v5243
    %vm5250 = vmor %vm5248, %vm5249
    %v5251 = vsel %vm5250, %v5243, %v5247
    %v5252 = vand.u32 2147483647, %v5242
    %vm5253 = vcmp.eq.f32.partialorder %v5252, 8.507059e+37
    %v5254 = vand.u32 %v5242, 2147483648
    %v5255 = vor.u32 1.1754944e-38, %v5254
    %v5256 = vsel %vm5253, %v5255, %v5251
    %v5257 = vmul.f32 %v5232, %v5256
    %v5258 = vmin.f32 %v5257, 1.0
    %v5259 = vmax.f32 %v5258, -1.0
    %v5260 = vadd.f32 %v5219, 1.0
    %v5261 = vadd.f32 %v5259, 1.0
    %v5262 = vmul.f32 %v5176, %v5260
    %v5263 = vmul.f32 %v5177, %v5261
    %v5264 = vld [vmem:[#allocation3 + $0x650] sm:$0xff]
    %v5265 = vld [vmem:[#allocation3 + $0x658] sm:$0xff]
    %v5266 = vld [vmem:[#allocation3 + $0x660] sm:$0x1]
    %v5267 = vperm.slane %v5266, 0
    %v5269 = vsel %vm2135, %v5262, 0
    %v5272 = vsel %vm2135, %v5263, 0
    %5274 = vmatpush.msra.mxu0 0.0
    %5275 = vmatpush.msra.mxu0 0.0
    %5276 = vmatpush.msra.mxu0 0.0
    %5277 = vmatpush.msra.mxu0 0.0
    %5278 = vmatpush.msra.mxu0 0.0
    %5279 = vmatpush.msra.mxu0 0.0
    %5280 = vmatpush.msra.mxu0 0.0
    %5281 = vmatpush.msra.mxu0 0.0
    %5282 = vmatpush.msra.mxu0 0.0
    %5283 = vmatpush.msra.mxu0 0.0
    %5284 = vmatpush.msra.mxu0 0.0
    %5285 = vmatpush.msra.mxu0 0.0
    %5286 = vmatpush.msra.mxu0 0.0
    %5287 = vmatpush.msra.mxu0 0.0
    %5288 = vmatpush.msra.mxu0 %v5265
    %5289 = vmatpush.msra.mxu0 %v5264
    %5290 = vmatmul.f32.gmra.mxu0 %v5269
    %v5291 = vpop.f32.mrf.mxu0
    %v5292 = vadd.f32 %v5267, %v5291
    %5293 = vmatmul.f32.gmra.mxu0 %v5272
    %v5294 = vpop.f32.mrf.mxu0
    %v5295 = vadd.f32 %v5267, %v5294
    %5296 = vdwg.mxu0
    %v5297 = vadd.f32 %v5083, %v5292
    %v5298 = vadd.f32 %v5084, %v5295
    %v5299 = vld [vmem:[#allocation3 + $0x668] sm:$0x1]
    %v5300 = vld [vmem:[#allocation3 + $0x670] sm:$0x1]
    %v5301 = vsel %vm97, %v5297, 0.0
    %5302 = vadd.xlane.f32.xlu0 %v5301
    %v5303 = vpop.xlane.xlu0 %5302
    %v5304 = vsel %vm97, %v5298, 0.0
    %5305 = vadd.xlane.f32.xlu0 %v5304
    %v5306 = vpop.xlane.xlu0 %5305
    %v5307 = vmul.f32 %v5303, %v122
    %v5308 = vmul.f32 %v5306, %v122
    %v5309 = vmul.f32 %v5297, %v5297
    %v5310 = vmul.f32 %v5298, %v5298
    %v5311 = vsel %vm97, %v5309, 0.0
    %5312 = vadd.xlane.f32.xlu0 %v5311
    %v5313 = vpop.xlane.xlu0 %5312
    %v5314 = vsel %vm97, %v5310, 0.0
    %5315 = vadd.xlane.f32.xlu0 %v5314
    %v5316 = vpop.xlane.xlu0 %5315
    %v5317 = vmul.f32 %v5313, %v122
    %v5318 = vmul.f32 %v5316, %v122
    %v5319 = vmul.f32 %v5307, %v5307
    %v5320 = vmul.f32 %v5308, %v5308
    %v5321 = vsub.f32 %v5317, %v5319
    %v5322 = vsub.f32 %v5318, %v5320
    %v5323 = vsub.f32 %v5297, %v5307
    %v5324 = vsub.f32 %v5298, %v5308
    %v5325 = vadd.f32 %v5321, 1e-05
    %v5326 = vadd.f32 %v5322, 1e-05
    %v5327 = vrsqrt.pop %v5325
    %v5328 = vmul.f32 %v5327, %v5325
    %v5329 = vmul.f32 %v5328, %v5327
    %v5330 = vmul.f32 0.5, %v5329
    %v5331 = vsub.f32 1.5, %v5330
    %v5332 = vmul.f32 %v5327, %v5331
    %vm5333 = vweird.f32 %v5325
    %vm5334 = vweird.f32 %v5327
    %vm5335 = vmor %vm5333, %vm5334
    %v5336 = vsel %vm5335, %v5327, %v5332
    %v5337 = vrsqrt.pop %v5326
    %v5338 = vmul.f32 %v5337, %v5326
    %v5339 = vmul.f32 %v5338, %v5337
    %v5340 = vmul.f32 0.5, %v5339
    %v5341 = vsub.f32 1.5, %v5340
    %v5342 = vmul.f32 %v5337, %v5341
    %vm5343 = vweird.f32 %v5326
    %vm5344 = vweird.f32 %v5337
    %vm5345 = vmor %vm5343, %vm5344
    %v5346 = vsel %vm5345, %v5337, %v5342
    %v5347 = vmul.f32 %v5323, %v5336
    %v5348 = vmul.f32 %v5324, %v5346
    %v5349 = vperm.slane %v5299, 0
    %v5350 = vmul.f32 %v5347, %v5349
    %v5351 = vmul.f32 %v5348, %v5349
    %v5352 = vperm.slane %v5300, 0
    %v5353 = vadd.f32 %v5350, %v5352
    %v5354 = vadd.f32 %v5351, %v5352
    %v5355 = vld [vmem:[#allocation3 + $0x678] sm:$0xff]
    %v5356 = vld [vmem:[#allocation3 + $0x680] sm:$0xff]
    %v5357 = vld [vmem:[#allocation3 + $0x688] sm:$0xff]
    %v5358 = vld [vmem:[#allocation3 + $0x690] sm:$0xff]
    %v5359 = vld [vmem:[#allocation3 + $0x698] sm:$0xff]
    %v5360 = vld [vmem:[#allocation3 + $0x6a0] sm:$0xff]
    %v5361 = vld [vmem:[#allocation3 + $0x6a8] sm:$0xff]
    %v5362 = vld [vmem:[#allocation3 + $0x6b0] sm:$0xff]
    %v5363 = vld [vmem:[#allocation3 + $0x6b8] sm:$0xff]
    %v5364 = vld [vmem:[#allocation3 + $0x6c0] sm:$0xff]
    %v5365 = vld [vmem:[#allocation3 + $0x6c8] sm:$0xff]
    %v5366 = vld [vmem:[#allocation3 + $0x6d0] sm:$0xff]
    %v5367 = vld [vmem:[#allocation3 + $0x6d8] sm:$0xff]
    %v5368 = vld [vmem:[#allocation3 + $0x6e0] sm:$0xff]
    %v5369 = vld [vmem:[#allocation3 + $0x6e8] sm:$0xff]
    %v5370 = vld [vmem:[#allocation3 + $0x6f0] sm:$0xff]
    %v5372 = vsel %vm2135, %v5355, 0
    %v5375 = vsel %vm2135, %v5356, 0
    %v5378 = vsel %vm2135, %v5357, 0
    %v5381 = vsel %vm2135, %v5358, 0
    %v5384 = vsel %vm2135, %v5359, 0
    %v5387 = vsel %vm2135, %v5360, 0
    %v5390 = vsel %vm2135, %v5361, 0
    %v5393 = vsel %vm2135, %v5362, 0
    %5395 = vmatpush.msra.mxu0 0.0
    %5396 = vmatpush.msra.mxu0 0.0
    %5397 = vmatpush.msra.mxu0 0.0
    %5398 = vmatpush.msra.mxu0 0.0
    %5399 = vmatpush.msra.mxu0 0.0
    %5400 = vmatpush.msra.mxu0 0.0
    %5401 = vmatpush.msra.mxu0 0.0
    %5402 = vmatpush.msra.mxu0 0.0
    %5403 = vmatpush.msra.mxu0 0.0
    %5404 = vmatpush.msra.mxu0 0.0
    %5405 = vmatpush.msra.mxu0 0.0
    %5406 = vmatpush.msra.mxu0 0.0
    %5407 = vmatpush.msra.mxu0 0.0
    %5408 = vmatpush.msra.mxu0 0.0
    %5409 = vmatpush.msra.mxu0 %v5354
    %5410 = vmatpush.msra.mxu0 %v5353
    %5411 = vmatmul.f32.gmra.mxu0 %v5372
    %v5412 = vpop.f32.mrf.mxu0
    %v5413 = vadd.f32 %v5363, %v5412
    %5414 = vmatmul.f32.gmra.mxu0 %v5375
    %v5415 = vpop.f32.mrf.mxu0
    %v5416 = vadd.f32 %v5364, %v5415
    %5417 = vmatmul.f32.gmra.mxu0 %v5378
    %v5418 = vpop.f32.mrf.mxu0
    %v5419 = vadd.f32 %v5365, %v5418
    %5420 = vmatmul.f32.gmra.mxu0 %v5381
    %v5421 = vpop.f32.mrf.mxu0
    %v5422 = vadd.f32 %v5366, %v5421
    %5423 = vmatmul.f32.gmra.mxu0 %v5384
    %v5424 = vpop.f32.mrf.mxu0
    %v5425 = vadd.f32 %v5367, %v5424
    %5426 = vmatmul.f32.gmra.mxu0 %v5387
    %v5427 = vpop.f32.mrf.mxu0
    %v5428 = vadd.f32 %v5368, %v5427
    %5429 = vmatmul.f32.gmra.mxu0 %v5390
    %v5430 = vpop.f32.mrf.mxu0
    %v5431 = vadd.f32 %v5369, %v5430
    %5432 = vmatmul.f32.gmra.mxu0 %v5393
    %v5433 = vpop.f32.mrf.mxu0
    %v5434 = vadd.f32 %v5370, %v5433
    %5435 = vdwg.mxu0
    %v5436 = vmul.f32 %v5413, 0.5
    %v5437 = vmul.f32 %v5416, 0.5
    %v5438 = vmul.f32 %v5419, 0.5
    %v5439 = vmul.f32 %v5422, 0.5
    %v5440 = vmul.f32 %v5425, 0.5
    %v5441 = vmul.f32 %v5428, 0.5
    %v5442 = vmul.f32 %v5431, 0.5
    %v5443 = vmul.f32 %v5434, 0.5
    %v5444 = vmul.f32 %v5413, 0.70710677
    %v5445 = vmul.f32 %v5416, 0.70710677
    %v5446 = vmul.f32 %v5419, 0.70710677
    %v5447 = vmul.f32 %v5422, 0.70710677
    %v5448 = vmul.f32 %v5425, 0.70710677
    %v5449 = vmul.f32 %v5428, 0.70710677
    %v5450 = vmul.f32 %v5431, 0.70710677
    %v5451 = vmul.f32 %v5434, 0.70710677
    %v5452 = vmul.f32 %v5444, %v5444
    %v5453 = vmin.f32 16.0, %v5452
    %v5454 = vmul.f32 %v5453, 2.1237322e-06
    %v5455 = vadd.f32 %v5454, 0.00028619796
    %v5456 = vmul.f32 %v5453, %v5455
    %v5457 = vadd.f32 %v5456, 0.0036580483
    %v5458 = vmul.f32 %v5453, %v5457
    %v5459 = vadd.f32 %v5458, 0.05243302
    %v5460 = vmul.f32 %v5453, %v5459
    %v5461 = vadd.f32 %v5460, 0.18741608
    %v5462 = vmul.f32 %v5453, %v5461
    %v5463 = vadd.f32 %v5462, 1.1283791
    %v5464 = vmul.f32 %v5444, %v5463
    %v5465 = vmul.f32 %v5453, 3.8918573e-05
    %v5466 = vadd.f32 %v5465, 0.001143296
    %v5467 = vmul.f32 %v5453, %v5466
    %v5468 = vadd.f32 %v5467, 0.014752088
    %v5469 = vmul.f32 %v5453, %v5468
    %v5470 = vadd.f32 %v5469, 0.112945676
    %v5471 = vmul.f32 %v5453, %v5470
    %v5472 = vadd.f32 %v5471, 0.4994258
    %v5473 = vmul.f32 %v5453, %v5472
    %v5474 = vadd.f32 %v5473, 1.0
    %v5475 = vrcp.pop %v5474
    %v5476 = vmul.f32 %v5474, %v5475
    %v5477 = vsub.f32 1.0, %v5476
    %v5478 = vmul.f32 %v5475, %v5477
    %v5479 = vadd.f32 %v5475, %v5478
    %vm5480 = vweird.f32 %v5474
    %vm5481 = vweird.f32 %v5475
    %vm5482 = vmor %vm5480, %vm5481
    %v5483 = vsel %vm5482, %v5475, %v5479
    %v5484 = vand.u32 2147483647, %v5474
    %vm5485 = vcmp.eq.f32.partialorder %v5484, 8.507059e+37
    %v5486 = vand.u32 %v5474, 2147483648
    %v5487 = vor.u32 1.1754944e-38, %v5486
    %v5488 = vsel %vm5485, %v5487, %v5483
    %v5489 = vmul.f32 %v5464, %v5488
    %v5490 = vmin.f32 %v5489, 1.0
    %v5491 = vmax.f32 %v5490, -1.0
    %v5492 = vmul.f32 %v5445, %v5445
    %v5493 = vmin.f32 16.0, %v5492
    %v5494 = vmul.f32 %v5493, 2.1237322e-06
    %v5495 = vadd.f32 %v5494, 0.00028619796
    %v5496 = vmul.f32 %v5493, %v5495
    %v5497 = vadd.f32 %v5496, 0.0036580483
    %v5498 = vmul.f32 %v5493, %v5497
    %v5499 = vadd.f32 %v5498, 0.05243302
    %v5500 = vmul.f32 %v5493, %v5499
    %v5501 = vadd.f32 %v5500, 0.18741608
    %v5502 = vmul.f32 %v5493, %v5501
    %v5503 = vadd.f32 %v5502, 1.1283791
    %v5504 = vmul.f32 %v5445, %v5503
    %v5505 = vmul.f32 %v5493, 3.8918573e-05
    %v5506 = vadd.f32 %v5505, 0.001143296
    %v5507 = vmul.f32 %v5493, %v5506
    %v5508 = vadd.f32 %v5507, 0.014752088
    %v5509 = vmul.f32 %v5493, %v5508
    %v5510 = vadd.f32 %v5509, 0.112945676
    %v5511 = vmul.f32 %v5493, %v5510
    %v5512 = vadd.f32 %v5511, 0.4994258
    %v5513 = vmul.f32 %v5493, %v5512
    %v5514 = vadd.f32 %v5513, 1.0
    %v5515 = vrcp.pop %v5514
    %v5516 = vmul.f32 %v5514, %v5515
    %v5517 = vsub.f32 1.0, %v5516
    %v5518 = vmul.f32 %v5515, %v5517
    %v5519 = vadd.f32 %v5515, %v5518
    %vm5520 = vweird.f32 %v5514
    %vm5521 = vweird.f32 %v5515
    %vm5522 = vmor %vm5520, %vm5521
    %v5523 = vsel %vm5522, %v5515, %v5519
    %v5524 = vand.u32 2147483647, %v5514
    %vm5525 = vcmp.eq.f32.partialorder %v5524, 8.507059e+37
    %v5526 = vand.u32 %v5514, 2147483648
    %v5527 = vor.u32 1.1754944e-38, %v5526
    %v5528 = vsel %vm5525, %v5527, %v5523
    %v5529 = vmul.f32 %v5504, %v5528
    %v5530 = vmin.f32 %v5529, 1.0
    %v5531 = vmax.f32 %v5530, -1.0
    %v5532 = vmul.f32 %v5446, %v5446
    %v5533 = vmin.f32 16.0, %v5532
    %v5534 = vmul.f32 %v5533, 2.1237322e-06
    %v5535 = vadd.f32 %v5534, 0.00028619796
    %v5536 = vmul.f32 %v5533, %v5535
    %v5537 = vadd.f32 %v5536, 0.0036580483
    %v5538 = vmul.f32 %v5533, %v5537
    %v5539 = vadd.f32 %v5538, 0.05243302
    %v5540 = vmul.f32 %v5533, %v5539
    %v5541 = vadd.f32 %v5540, 0.18741608
    %v5542 = vmul.f32 %v5533, %v5541
    %v5543 = vadd.f32 %v5542, 1.1283791
    %v5544 = vmul.f32 %v5446, %v5543
    %v5545 = vmul.f32 %v5533, 3.8918573e-05
    %v5546 = vadd.f32 %v5545, 0.001143296
    %v5547 = vmul.f32 %v5533, %v5546
    %v5548 = vadd.f32 %v5547, 0.014752088
    %v5549 = vmul.f32 %v5533, %v5548
    %v5550 = vadd.f32 %v5549, 0.112945676
    %v5551 = vmul.f32 %v5533, %v5550
    %v5552 = vadd.f32 %v5551, 0.4994258
    %v5553 = vmul.f32 %v5533, %v5552
    %v5554 = vadd.f32 %v5553, 1.0
    %v5555 = vrcp.pop %v5554
    %v5556 = vmul.f32 %v5554, %v5555
    %v5557 = vsub.f32 1.0, %v5556
    %v5558 = vmul.f32 %v5555, %v5557
    %v5559 = vadd.f32 %v5555, %v5558
    %vm5560 = vweird.f32 %v5554
    %vm5561 = vweird.f32 %v5555
    %vm5562 = vmor %vm5560, %vm5561
    %v5563 = vsel %vm5562, %v5555, %v5559
    %v5564 = vand.u32 2147483647, %v5554
    %vm5565 = vcmp.eq.f32.partialorder %v5564, 8.507059e+37
    %v5566 = vand.u32 %v5554, 2147483648
    %v5567 = vor.u32 1.1754944e-38, %v5566
    %v5568 = vsel %vm5565, %v5567, %v5563
    %v5569 = vmul.f32 %v5544, %v5568
    %v5570 = vmin.f32 %v5569, 1.0
    %v5571 = vmax.f32 %v5570, -1.0
    %v5572 = vmul.f32 %v5447, %v5447
    %v5573 = vmin.f32 16.0, %v5572
    %v5574 = vmul.f32 %v5573, 2.1237322e-06
    %v5575 = vadd.f32 %v5574, 0.00028619796
    %v5576 = vmul.f32 %v5573, %v5575
    %v5577 = vadd.f32 %v5576, 0.0036580483
    %v5578 = vmul.f32 %v5573, %v5577
    %v5579 = vadd.f32 %v5578, 0.05243302
    %v5580 = vmul.f32 %v5573, %v5579
    %v5581 = vadd.f32 %v5580, 0.18741608
    %v5582 = vmul.f32 %v5573, %v5581
    %v5583 = vadd.f32 %v5582, 1.1283791
    %v5584 = vmul.f32 %v5447, %v5583
    %v5585 = vmul.f32 %v5573, 3.8918573e-05
    %v5586 = vadd.f32 %v5585, 0.001143296
    %v5587 = vmul.f32 %v5573, %v5586
    %v5588 = vadd.f32 %v5587, 0.014752088
    %v5589 = vmul.f32 %v5573, %v5588
    %v5590 = vadd.f32 %v5589, 0.112945676
    %v5591 = vmul.f32 %v5573, %v5590
    %v5592 = vadd.f32 %v5591, 0.4994258
    %v5593 = vmul.f32 %v5573, %v5592
    %v5594 = vadd.f32 %v5593, 1.0
    %v5595 = vrcp.pop %v5594
    %v5596 = vmul.f32 %v5594, %v5595
    %v5597 = vsub.f32 1.0, %v5596
    %v5598 = vmul.f32 %v5595, %v5597
    %v5599 = vadd.f32 %v5595, %v5598
    %vm5600 = vweird.f32 %v5594
    %vm5601 = vweird.f32 %v5595
    %vm5602 = vmor %vm5600, %vm5601
    %v5603 = vsel %vm5602, %v5595, %v5599
    %v5604 = vand.u32 2147483647, %v5594
    %vm5605 = vcmp.eq.f32.partialorder %v5604, 8.507059e+37
    %v5606 = vand.u32 %v5594, 2147483648
    %v5607 = vor.u32 1.1754944e-38, %v5606
    %v5608 = vsel %vm5605, %v5607, %v5603
    %v5609 = vmul.f32 %v5584, %v5608
    %v5610 = vmin.f32 %v5609, 1.0
    %v5611 = vmax.f32 %v5610, -1.0
    %v5612 = vmul.f32 %v5448, %v5448
    %v5613 = vmin.f32 16.0, %v5612
    %v5614 = vmul.f32 %v5613, 2.1237322e-06
    %v5615 = vadd.f32 %v5614, 0.00028619796
    %v5616 = vmul.f32 %v5613, %v5615
    %v5617 = vadd.f32 %v5616, 0.0036580483
    %v5618 = vmul.f32 %v5613, %v5617
    %v5619 = vadd.f32 %v5618, 0.05243302
    %v5620 = vmul.f32 %v5613, %v5619
    %v5621 = vadd.f32 %v5620, 0.18741608
    %v5622 = vmul.f32 %v5613, %v5621
    %v5623 = vadd.f32 %v5622, 1.1283791
    %v5624 = vmul.f32 %v5448, %v5623
    %v5625 = vmul.f32 %v5613, 3.8918573e-05
    %v5626 = vadd.f32 %v5625, 0.001143296
    %v5627 = vmul.f32 %v5613, %v5626
    %v5628 = vadd.f32 %v5627, 0.014752088
    %v5629 = vmul.f32 %v5613, %v5628
    %v5630 = vadd.f32 %v5629, 0.112945676
    %v5631 = vmul.f32 %v5613, %v5630
    %v5632 = vadd.f32 %v5631, 0.4994258
    %v5633 = vmul.f32 %v5613, %v5632
    %v5634 = vadd.f32 %v5633, 1.0
    %v5635 = vrcp.pop %v5634
    %v5636 = vmul.f32 %v5634, %v5635
    %v5637 = vsub.f32 1.0, %v5636
    %v5638 = vmul.f32 %v5635, %v5637
    %v5639 = vadd.f32 %v5635, %v5638
    %vm5640 = vweird.f32 %v5634
    %vm5641 = vweird.f32 %v5635
    %vm5642 = vmor %vm5640, %vm5641
    %v5643 = vsel %vm5642, %v5635, %v5639
    %v5644 = vand.u32 2147483647, %v5634
    %vm5645 = vcmp.eq.f32.partialorder %v5644, 8.507059e+37
    %v5646 = vand.u32 %v5634, 2147483648
    %v5647 = vor.u32 1.1754944e-38, %v5646
    %v5648 = vsel %vm5645, %v5647, %v5643
    %v5649 = vmul.f32 %v5624, %v5648
    %v5650 = vmin.f32 %v5649, 1.0
    %v5651 = vmax.f32 %v5650, -1.0
    %v5652 = vmul.f32 %v5449, %v5449
    %v5653 = vmin.f32 16.0, %v5652
    %v5654 = vmul.f32 %v5653, 2.1237322e-06
    %v5655 = vadd.f32 %v5654, 0.00028619796
    %v5656 = vmul.f32 %v5653, %v5655
    %v5657 = vadd.f32 %v5656, 0.0036580483
    %v5658 = vmul.f32 %v5653, %v5657
    %v5659 = vadd.f32 %v5658, 0.05243302
    %v5660 = vmul.f32 %v5653, %v5659
    %v5661 = vadd.f32 %v5660, 0.18741608
    %v5662 = vmul.f32 %v5653, %v5661
    %v5663 = vadd.f32 %v5662, 1.1283791
    %v5664 = vmul.f32 %v5449, %v5663
    %v5665 = vmul.f32 %v5653, 3.8918573e-05
    %v5666 = vadd.f32 %v5665, 0.001143296
    %v5667 = vmul.f32 %v5653, %v5666
    %v5668 = vadd.f32 %v5667, 0.014752088
    %v5669 = vmul.f32 %v5653, %v5668
    %v5670 = vadd.f32 %v5669, 0.112945676
    %v5671 = vmul.f32 %v5653, %v5670
    %v5672 = vadd.f32 %v5671, 0.4994258
    %v5673 = vmul.f32 %v5653, %v5672
    %v5674 = vadd.f32 %v5673, 1.0
    %v5675 = vrcp.pop %v5674
    %v5676 = vmul.f32 %v5674, %v5675
    %v5677 = vsub.f32 1.0, %v5676
    %v5678 = vmul.f32 %v5675, %v5677
    %v5679 = vadd.f32 %v5675, %v5678
    %vm5680 = vweird.f32 %v5674
    %vm5681 = vweird.f32 %v5675
    %vm5682 = vmor %vm5680, %vm5681
    %v5683 = vsel %vm5682, %v5675, %v5679
    %v5684 = vand.u32 2147483647, %v5674
    %vm5685 = vcmp.eq.f32.partialorder %v5684, 8.507059e+37
    %v5686 = vand.u32 %v5674, 2147483648
    %v5687 = vor.u32 1.1754944e-38, %v5686
    %v5688 = vsel %vm5685, %v5687, %v5683
    %v5689 = vmul.f32 %v5664, %v5688
    %v5690 = vmin.f32 %v5689, 1.0
    %v5691 = vmax.f32 %v5690, -1.0
    %v5692 = vmul.f32 %v5450, %v5450
    %v5693 = vmin.f32 16.0, %v5692
    %v5694 = vmul.f32 %v5693, 2.1237322e-06
    %v5695 = vadd.f32 %v5694, 0.00028619796
    %v5696 = vmul.f32 %v5693, %v5695
    %v5697 = vadd.f32 %v5696, 0.0036580483
    %v5698 = vmul.f32 %v5693, %v5697
    %v5699 = vadd.f32 %v5698, 0.05243302
    %v5700 = vmul.f32 %v5693, %v5699
    %v5701 = vadd.f32 %v5700, 0.18741608
    %v5702 = vmul.f32 %v5693, %v5701
    %v5703 = vadd.f32 %v5702, 1.1283791
    %v5704 = vmul.f32 %v5450, %v5703
    %v5705 = vmul.f32 %v5693, 3.8918573e-05
    %v5706 = vadd.f32 %v5705, 0.001143296
    %v5707 = vmul.f32 %v5693, %v5706
    %v5708 = vadd.f32 %v5707, 0.014752088
    %v5709 = vmul.f32 %v5693, %v5708
    %v5710 = vadd.f32 %v5709, 0.112945676
    %v5711 = vmul.f32 %v5693, %v5710
    %v5712 = vadd.f32 %v5711, 0.4994258
    %v5713 = vmul.f32 %v5693, %v5712
    %v5714 = vadd.f32 %v5713, 1.0
    %v5715 = vrcp.pop %v5714
    %v5716 = vmul.f32 %v5714, %v5715
    %v5717 = vsub.f32 1.0, %v5716
    %v5718 = vmul.f32 %v5715, %v5717
    %v5719 = vadd.f32 %v5715, %v5718
    %vm5720 = vweird.f32 %v5714
    %vm5721 = vweird.f32 %v5715
    %vm5722 = vmor %vm5720, %vm5721
    %v5723 = vsel %vm5722, %v5715, %v5719
    %v5724 = vand.u32 2147483647, %v5714
    %vm5725 = vcmp.eq.f32.partialorder %v5724, 8.507059e+37
    %v5726 = vand.u32 %v5714, 2147483648
    %v5727 = vor.u32 1.1754944e-38, %v5726
    %v5728 = vsel %vm5725, %v5727, %v5723
    %v5729 = vmul.f32 %v5704, %v5728
    %v5730 = vmin.f32 %v5729, 1.0
    %v5731 = vmax.f32 %v5730, -1.0
    %v5732 = vmul.f32 %v5451, %v5451
    %v5733 = vmin.f32 16.0, %v5732
    %v5734 = vmul.f32 %v5733, 2.1237322e-06
    %v5735 = vadd.f32 %v5734, 0.00028619796
    %v5736 = vmul.f32 %v5733, %v5735
    %v5737 = vadd.f32 %v5736, 0.0036580483
    %v5738 = vmul.f32 %v5733, %v5737
    %v5739 = vadd.f32 %v5738, 0.05243302
    %v5740 = vmul.f32 %v5733, %v5739
    %v5741 = vadd.f32 %v5740, 0.18741608
    %v5742 = vmul.f32 %v5733, %v5741
    %v5743 = vadd.f32 %v5742, 1.1283791
    %v5744 = vmul.f32 %v5451, %v5743
    %v5745 = vmul.f32 %v5733, 3.8918573e-05
    %v5746 = vadd.f32 %v5745, 0.001143296
    %v5747 = vmul.f32 %v5733, %v5746
    %v5748 = vadd.f32 %v5747, 0.014752088
    %v5749 = vmul.f32 %v5733, %v5748
    %v5750 = vadd.f32 %v5749, 0.112945676
    %v5751 = vmul.f32 %v5733, %v5750
    %v5752 = vadd.f32 %v5751, 0.4994258
    %v5753 = vmul.f32 %v5733, %v5752
    %v5754 = vadd.f32 %v5753, 1.0
    %v5755 = vrcp.pop %v5754
    %v5756 = vmul.f32 %v5754, %v5755
    %v5757 = vsub.f32 1.0, %v5756
    %v5758 = vmul.f32 %v5755, %v5757
    %v5759 = vadd.f32 %v5755, %v5758
    %vm5760 = vweird.f32 %v5754
    %vm5761 = vweird.f32 %v5755
    %vm5762 = vmor %vm5760, %vm5761
    %v5763 = vsel %vm5762, %v5755, %v5759
    %v5764 = vand.u32 2147483647, %v5754
    %vm5765 = vcmp.eq.f32.partialorder %v5764, 8.507059e+37
    %v5766 = vand.u32 %v5754, 2147483648
    %v5767 = vor.u32 1.1754944e-38, %v5766
    %v5768 = vsel %vm5765, %v5767, %v5763
    %v5769 = vmul.f32 %v5744, %v5768
    %v5770 = vmin.f32 %v5769, 1.0
    %v5771 = vmax.f32 %v5770, -1.0
    %v5772 = vadd.f32 %v5491, 1.0
    %v5773 = vadd.f32 %v5531, 1.0
    %v5774 = vadd.f32 %v5571, 1.0
    %v5775 = vadd.f32 %v5611, 1.0
    %v5776 = vadd.f32 %v5651, 1.0
    %v5777 = vadd.f32 %v5691, 1.0
    %v5778 = vadd.f32 %v5731, 1.0
    %v5779 = vadd.f32 %v5771, 1.0
    %v5780 = vmul.f32 %v5436, %v5772
    %v5781 = vmul.f32 %v5437, %v5773
    %v5782 = vmul.f32 %v5438, %v5774
    %v5783 = vmul.f32 %v5439, %v5775
    %v5784 = vmul.f32 %v5440, %v5776
    %v5785 = vmul.f32 %v5441, %v5777
    %v5786 = vmul.f32 %v5442, %v5778
    %v5787 = vmul.f32 %v5443, %v5779
    %v5788 = vld [vmem:[#allocation3 + $0x6f8] sm:$0xff]
    %v5789 = vld [vmem:[#allocation3 + $0x700] sm:$0xff]
    %v5790 = vld [vmem:[#allocation3 + $0x708] sm:$0xff]
    %v5791 = vld [vmem:[#allocation3 + $0x710] sm:$0xff]
    %v5793 = vsel %vm1541, %v5788, 0
    %v5796 = vsel %vm1541, %v5789, 0
    %5798 = vmatpush.msra.mxu0 0.0
    %5799 = vmatpush.msra.mxu0 0.0
    %5800 = vmatpush.msra.mxu0 0.0
    %5801 = vmatpush.msra.mxu0 0.0
    %5802 = vmatpush.msra.mxu0 0.0
    %5803 = vmatpush.msra.mxu0 0.0
    %5804 = vmatpush.msra.mxu0 0.0
    %5805 = vmatpush.msra.mxu0 0.0
    %5806 = vmatpush.msra.mxu0 %v5787
    %5807 = vmatpush.msra.mxu0 %v5786
    %5808 = vmatpush.msra.mxu0 %v5785
    %5809 = vmatpush.msra.mxu0 %v5784
    %5810 = vmatpush.msra.mxu0 %v5783
    %5811 = vmatpush.msra.mxu0 %v5782
    %5812 = vmatpush.msra.mxu0 %v5781
    %5813 = vmatpush.msra.mxu0 %v5780
    %5814 = vmatmul.f32.gmra.mxu0 %v5793
    %v5815 = vpop.f32.mrf.mxu0
    %v5816 = vadd.f32 %v5790, %v5815
    %5817 = vmatmul.f32.gmra.mxu0 %v5796
    %v5818 = vpop.f32.mrf.mxu0
    %v5819 = vadd.f32 %v5791, %v5818
    %5820 = vdwg.mxu0
    %v5821 = vadd.f32 %v5297, %v5816
    %v5822 = vadd.f32 %v5298, %v5819
    %v5823 = vld [vmem:[#allocation3 + $0x718] sm:$0x1]
    %v5824 = vld [vmem:[#allocation3 + $0x720] sm:$0x1]
    %v5825 = vsel %vm97, %v5821, 0.0
    %5826 = vadd.xlane.f32.xlu0 %v5825
    %v5827 = vpop.xlane.xlu0 %5826
    %v5828 = vsel %vm97, %v5822, 0.0
    %5829 = vadd.xlane.f32.xlu0 %v5828
    %v5830 = vpop.xlane.xlu0 %5829
    %v5831 = vmul.f32 %v5827, %v122
    %v5832 = vmul.f32 %v5830, %v122
    %v5833 = vmul.f32 %v5821, %v5821
    %v5834 = vmul.f32 %v5822, %v5822
    %v5835 = vsel %vm97, %v5833, 0.0
    %5836 = vadd.xlane.f32.xlu0 %v5835
    %v5837 = vpop.xlane.xlu0 %5836
    %v5838 = vsel %vm97, %v5834, 0.0
    %5839 = vadd.xlane.f32.xlu0 %v5838
    %v5840 = vpop.xlane.xlu0 %5839
    %v5841 = vmul.f32 %v5837, %v122
    %v5842 = vmul.f32 %v5840, %v122
    %v5843 = vmul.f32 %v5831, %v5831
    %v5844 = vmul.f32 %v5832, %v5832
    %v5845 = vsub.f32 %v5841, %v5843
    %v5846 = vsub.f32 %v5842, %v5844
    %v5847 = vsub.f32 %v5821, %v5831
    %v5848 = vsub.f32 %v5822, %v5832
    %v5849 = vadd.f32 %v5845, 1e-05
    %v5850 = vadd.f32 %v5846, 1e-05
    %v5851 = vrsqrt.pop %v5849
    %v5852 = vmul.f32 %v5851, %v5849
    %v5853 = vmul.f32 %v5852, %v5851
    %v5854 = vmul.f32 0.5, %v5853
    %v5855 = vsub.f32 1.5, %v5854
    %v5856 = vmul.f32 %v5851, %v5855
    %vm5857 = vweird.f32 %v5849
    %vm5858 = vweird.f32 %v5851
    %vm5859 = vmor %vm5857, %vm5858
    %v5860 = vsel %vm5859, %v5851, %v5856
    %v5861 = vrsqrt.pop %v5850
    %v5862 = vmul.f32 %v5861, %v5850
    %v5863 = vmul.f32 %v5862, %v5861
    %v5864 = vmul.f32 0.5, %v5863
    %v5865 = vsub.f32 1.5, %v5864
    %v5866 = vmul.f32 %v5861, %v5865
    %vm5867 = vweird.f32 %v5850
    %vm5868 = vweird.f32 %v5861
    %vm5869 = vmor %vm5867, %vm5868
    %v5870 = vsel %vm5869, %v5861, %v5866
    %v5871 = vmul.f32 %v5847, %v5860
    %v5872 = vmul.f32 %v5848, %v5870
    %v5873 = vperm.slane %v5823, 0
    %v5874 = vmul.f32 %v5871, %v5873
    %v5875 = vmul.f32 %v5872, %v5873
    %v5876 = vperm.slane %v5824, 0
    %v5877 = vadd.f32 %v5874, %v5876
    %v5878 = vadd.f32 %v5875, %v5876
    %v5879 = vld [vmem:[#allocation3 + $0x728] sm:$0xff]
    %v5880 = vld [vmem:[#allocation3 + $0x730] sm:$0xff]
    %v5881 = vld [vmem:[#allocation3 + $0x738] sm:$0xff]
    %v5882 = vld [vmem:[#allocation3 + $0x740] sm:$0xff]
    %v5883 = vld [vmem:[#allocation3 + $0x748] sm:$0x1]
    %v5884 = vperm.slane %v5883, 0
    %v5886 = vsel %vm97, %v5877, 0
    %v5889 = vsel %vm97, %v5878, 0
    %5891 = vmatpush.msra.mxu0 0.0
    %5892 = vmatpush.msra.mxu0 0.0
    %5893 = vmatpush.msra.mxu0 0.0
    %5894 = vmatpush.msra.mxu0 0.0
    %5895 = vmatpush.msra.mxu0 0.0
    %5896 = vmatpush.msra.mxu0 0.0
    %5897 = vmatpush.msra.mxu0 0.0
    %5898 = vmatpush.msra.mxu0 0.0
    %5899 = vmatpush.msra.mxu0 0.0
    %5900 = vmatpush.msra.mxu0 0.0
    %5901 = vmatpush.msra.mxu0 0.0
    %5902 = vmatpush.msra.mxu0 0.0
    %5903 = vmatpush.msra.mxu0 %v5882
    %5904 = vmatpush.msra.mxu0 %v5881
    %5905 = vmatpush.msra.mxu0 %v5880
    %5906 = vmatpush.msra.mxu0 %v5879
    %5907 = vmatmul.f32.gmra.mxu0 %v5886
    %v5908 = vpop.f32.mrf.mxu0
    %v5909 = vadd.f32 %v5884, %v5908
    %5910 = vmatmul.f32.gmra.mxu0 %v5889
    %v5911 = vpop.f32.mrf.mxu0
    %v5912 = vadd.f32 %v5884, %v5911
    %5913 = vdwg.mxu0
    %v5914 = vmul.f32 %v5909, 0.5
    %v5915 = vmul.f32 %v5912, 0.5
    %v5916 = vmul.f32 %v5909, 0.70710677
    %v5917 = vmul.f32 %v5912, 0.70710677
    %v5918 = vmul.f32 %v5916, %v5916
    %v5919 = vmin.f32 16.0, %v5918
    %v5920 = vmul.f32 %v5919, 2.1237322e-06
    %v5921 = vadd.f32 %v5920, 0.00028619796
    %v5922 = vmul.f32 %v5919, %v5921
    %v5923 = vadd.f32 %v5922, 0.0036580483
    %v5924 = vmul.f32 %v5919, %v5923
    %v5925 = vadd.f32 %v5924, 0.05243302
    %v5926 = vmul.f32 %v5919, %v5925
    %v5927 = vadd.f32 %v5926, 0.18741608
    %v5928 = vmul.f32 %v5919, %v5927
    %v5929 = vadd.f32 %v5928, 1.1283791
    %v5930 = vmul.f32 %v5916, %v5929
    %v5931 = vmul.f32 %v5919, 3.8918573e-05
    %v5932 = vadd.f32 %v5931, 0.001143296
    %v5933 = vmul.f32 %v5919, %v5932
    %v5934 = vadd.f32 %v5933, 0.014752088
    %v5935 = vmul.f32 %v5919, %v5934
    %v5936 = vadd.f32 %v5935, 0.112945676
    %v5937 = vmul.f32 %v5919, %v5936
    %v5938 = vadd.f32 %v5937, 0.4994258
    %v5939 = vmul.f32 %v5919, %v5938
    %v5940 = vadd.f32 %v5939, 1.0
    %v5941 = vrcp.pop %v5940
    %v5942 = vmul.f32 %v5940, %v5941
    %v5943 = vsub.f32 1.0, %v5942
    %v5944 = vmul.f32 %v5941, %v5943
    %v5945 = vadd.f32 %v5941, %v5944
    %vm5946 = vweird.f32 %v5940
    %vm5947 = vweird.f32 %v5941
    %vm5948 = vmor %vm5946, %vm5947
    %v5949 = vsel %vm5948, %v5941, %v5945
    %v5950 = vand.u32 2147483647, %v5940
    %vm5951 = vcmp.eq.f32.partialorder %v5950, 8.507059e+37
    %v5952 = vand.u32 %v5940, 2147483648
    %v5953 = vor.u32 1.1754944e-38, %v5952
    %v5954 = vsel %vm5951, %v5953, %v5949
    %v5955 = vmul.f32 %v5930, %v5954
    %v5956 = vmin.f32 %v5955, 1.0
    %v5957 = vmax.f32 %v5956, -1.0
    %v5958 = vmul.f32 %v5917, %v5917
    %v5959 = vmin.f32 16.0, %v5958
    %v5960 = vmul.f32 %v5959, 2.1237322e-06
    %v5961 = vadd.f32 %v5960, 0.00028619796
    %v5962 = vmul.f32 %v5959, %v5961
    %v5963 = vadd.f32 %v5962, 0.0036580483
    %v5964 = vmul.f32 %v5959, %v5963
    %v5965 = vadd.f32 %v5964, 0.05243302
    %v5966 = vmul.f32 %v5959, %v5965
    %v5967 = vadd.f32 %v5966, 0.18741608
    %v5968 = vmul.f32 %v5959, %v5967
    %v5969 = vadd.f32 %v5968, 1.1283791
    %v5970 = vmul.f32 %v5917, %v5969
    %v5971 = vmul.f32 %v5959, 3.8918573e-05
    %v5972 = vadd.f32 %v5971, 0.001143296
    %v5973 = vmul.f32 %v5959, %v5972
    %v5974 = vadd.f32 %v5973, 0.014752088
    %v5975 = vmul.f32 %v5959, %v5974
    %v5976 = vadd.f32 %v5975, 0.112945676
    %v5977 = vmul.f32 %v5959, %v5976
    %v5978 = vadd.f32 %v5977, 0.4994258
    %v5979 = vmul.f32 %v5959, %v5978
    %v5980 = vadd.f32 %v5979, 1.0
    %v5981 = vrcp.pop %v5980
    %v5982 = vmul.f32 %v5980, %v5981
    %v5983 = vsub.f32 1.0, %v5982
    %v5984 = vmul.f32 %v5981, %v5983
    %v5985 = vadd.f32 %v5981, %v5984
    %vm5986 = vweird.f32 %v5980
    %vm5987 = vweird.f32 %v5981
    %vm5988 = vmor %vm5986, %vm5987
    %v5989 = vsel %vm5988, %v5981, %v5985
    %v5990 = vand.u32 2147483647, %v5980
    %vm5991 = vcmp.eq.f32.partialorder %v5990, 8.507059e+37
    %v5992 = vand.u32 %v5980, 2147483648
    %v5993 = vor.u32 1.1754944e-38, %v5992
    %v5994 = vsel %vm5991, %v5993, %v5989
    %v5995 = vmul.f32 %v5970, %v5994
    %v5996 = vmin.f32 %v5995, 1.0
    %v5997 = vmax.f32 %v5996, -1.0
    %v5998 = vadd.f32 %v5957, 1.0
    %v5999 = vadd.f32 %v5997, 1.0
    %v6000 = vmul.f32 %v5914, %v5998
    %v6001 = vmul.f32 %v5915, %v5999
    %v6002 = vld [vmem:[#allocation3 + $0x750] sm:$0xff]
    %v6003 = vld [vmem:[#allocation3 + $0x758] sm:$0xff]
    %v6004 = vld [vmem:[#allocation3 + $0x760] sm:$0x1]
    %v6005 = vperm.slane %v6004, 0
    %v6007 = vsel %vm2135, %v6000, 0
    %v6010 = vsel %vm2135, %v6001, 0
    %6012 = vmatpush.msra.mxu0 0.0
    %6013 = vmatpush.msra.mxu0 0.0
    %6014 = vmatpush.msra.mxu0 0.0
    %6015 = vmatpush.msra.mxu0 0.0
    %6016 = vmatpush.msra.mxu0 0.0
    %6017 = vmatpush.msra.mxu0 0.0
    %6018 = vmatpush.msra.mxu0 0.0
    %6019 = vmatpush.msra.mxu0 0.0
    %6020 = vmatpush.msra.mxu0 0.0
    %6021 = vmatpush.msra.mxu0 0.0
    %6022 = vmatpush.msra.mxu0 0.0
    %6023 = vmatpush.msra.mxu0 0.0
    %6024 = vmatpush.msra.mxu0 0.0
    %6025 = vmatpush.msra.mxu0 0.0
    %6026 = vmatpush.msra.mxu0 %v6003
    %6027 = vmatpush.msra.mxu0 %v6002
    %6028 = vmatmul.f32.gmra.mxu0 %v6007
    %v6029 = vpop.f32.mrf.mxu0
    %v6030 = vadd.f32 %v6005, %v6029
    %6031 = vmatmul.f32.gmra.mxu0 %v6010
    %v6032 = vpop.f32.mrf.mxu0
    %v6033 = vadd.f32 %v6005, %v6032
    %6034 = vdwg.mxu0
    %v6035 = vadd.f32 %v5821, %v6030
    %v6036 = vadd.f32 %v5822, %v6033
    %v6037 = vld [vmem:[#allocation3 + $0x768] sm:$0x1]
    %v6038 = vld [vmem:[#allocation3 + $0x770] sm:$0x1]
    %v6039 = vsel %vm97, %v6035, 0.0
    %6040 = vadd.xlane.f32.xlu0 %v6039
    %v6041 = vpop.xlane.xlu0 %6040
    %v6042 = vsel %vm97, %v6036, 0.0
    %6043 = vadd.xlane.f32.xlu0 %v6042
    %v6044 = vpop.xlane.xlu0 %6043
    %v6045 = vmul.f32 %v6041, %v122
    %v6046 = vmul.f32 %v6044, %v122
    %v6047 = vmul.f32 %v6035, %v6035
    %v6048 = vmul.f32 %v6036, %v6036
    %v6049 = vsel %vm97, %v6047, 0.0
    %6050 = vadd.xlane.f32.xlu0 %v6049
    %v6051 = vpop.xlane.xlu0 %6050
    %v6052 = vsel %vm97, %v6048, 0.0
    %6053 = vadd.xlane.f32.xlu0 %v6052
    %v6054 = vpop.xlane.xlu0 %6053
    %v6055 = vmul.f32 %v6051, %v122
    %v6056 = vmul.f32 %v6054, %v122
    %v6057 = vmul.f32 %v6045, %v6045
    %v6058 = vmul.f32 %v6046, %v6046
    %v6059 = vsub.f32 %v6055, %v6057
    %v6060 = vsub.f32 %v6056, %v6058
    %v6061 = vsub.f32 %v6035, %v6045
    %v6062 = vsub.f32 %v6036, %v6046
    %v6063 = vadd.f32 %v6059, 1e-05
    %v6064 = vadd.f32 %v6060, 1e-05
    %v6065 = vrsqrt.pop %v6063
    %v6066 = vmul.f32 %v6065, %v6063
    %v6067 = vmul.f32 %v6066, %v6065
    %v6068 = vmul.f32 0.5, %v6067
    %v6069 = vsub.f32 1.5, %v6068
    %v6070 = vmul.f32 %v6065, %v6069
    %vm6071 = vweird.f32 %v6063
    %vm6072 = vweird.f32 %v6065
    %vm6073 = vmor %vm6071, %vm6072
    %v6074 = vsel %vm6073, %v6065, %v6070
    %v6075 = vrsqrt.pop %v6064
    %v6076 = vmul.f32 %v6075, %v6064
    %v6077 = vmul.f32 %v6076, %v6075
    %v6078 = vmul.f32 0.5, %v6077
    %v6079 = vsub.f32 1.5, %v6078
    %v6080 = vmul.f32 %v6075, %v6079
    %vm6081 = vweird.f32 %v6064
    %vm6082 = vweird.f32 %v6075
    %vm6083 = vmor %vm6081, %vm6082
    %v6084 = vsel %vm6083, %v6075, %v6080
    %v6085 = vmul.f32 %v6061, %v6074
    %v6086 = vmul.f32 %v6062, %v6084
    %v6087 = vperm.slane %v6037, 0
    %v6088 = vmul.f32 %v6085, %v6087
    %v6089 = vmul.f32 %v6086, %v6087
    %v6090 = vperm.slane %v6038, 0
    %v6091 = vadd.f32 %v6088, %v6090
    %v6092 = vadd.f32 %v6089, %v6090
    %v6093 = vld [vmem:[#allocation3 + $0x778] sm:$0xff]
    %v6094 = vld [vmem:[#allocation3 + $0x780] sm:$0xff]
    %v6095 = vld [vmem:[#allocation3 + $0x788] sm:$0xff]
    %v6096 = vld [vmem:[#allocation3 + $0x790] sm:$0xff]
    %v6097 = vld [vmem:[#allocation3 + $0x798] sm:$0x1]
    %v6098 = vperm.slane %v6097, 0
    %v6100 = vsel %vm97, %v6091, 0
    %v6103 = vsel %vm97, %v6092, 0
    %6105 = vmatpush.msra.mxu0 0.0
    %6106 = vmatpush.msra.mxu0 0.0
    %6107 = vmatpush.msra.mxu0 0.0
    %6108 = vmatpush.msra.mxu0 0.0
    %6109 = vmatpush.msra.mxu0 0.0
    %6110 = vmatpush.msra.mxu0 0.0
    %6111 = vmatpush.msra.mxu0 0.0
    %6112 = vmatpush.msra.mxu0 0.0
    %6113 = vmatpush.msra.mxu0 0.0
    %6114 = vmatpush.msra.mxu0 0.0
    %6115 = vmatpush.msra.mxu0 0.0
    %6116 = vmatpush.msra.mxu0 0.0
    %6117 = vmatpush.msra.mxu0 %v6096
    %6118 = vmatpush.msra.mxu0 %v6095
    %6119 = vmatpush.msra.mxu0 %v6094
    %6120 = vmatpush.msra.mxu0 %v6093
    %6121 = vmatmul.f32.gmra.mxu0 %v6100
    %v6122 = vpop.f32.mrf.mxu0
    %v6123 = vadd.f32 %v6098, %v6122
    %6124 = vmatmul.f32.gmra.mxu0 %v6103
    %v6125 = vpop.f32.mrf.mxu0
    %v6126 = vadd.f32 %v6098, %v6125
    %6127 = vdwg.mxu0
    %v6128 = vmax.f32 %v6123, 0.0
    %v6129 = vmax.f32 %v6126, 0.0
    %v6130 = vand.u32 2147483647, %v6123
    %v6131 = vand.u32 2147483647, %v6126
    %v6132 = vsub.f32 0.0, %v6130
    %v6133 = vsub.f32 0.0, %v6131
    %v6134 = vmul.f32 %v6132, 1.442695
    %v6135 = vpow.pop %v6134
    %v6136 = vmul.f32 %v6133, 1.442695
    %v6137 = vpow.pop %v6136
    %v6138 = vadd.f32 %v6135, 1.0
    %v6139 = vlog2.pop %v6138
    %v6140 = vmul.f32 %v6139, 0.6931472
    %v6141 = vmul.f32 -0.5, %v6135
    %v6142 = vadd.f32 %v6141, 1.0
    %v6143 = vmul.f32 %v6142, %v6135
    %v6144 = vand.u32 2147483647, %v6135
    %vm6145 = vcmp.lt.f32.partialorder %v6144, 0.0004427343
    %v6146 = vsel %vm6145, %v6143, %v6140
    %v6147 = vadd.f32 %v6137, 1.0
    %v6148 = vlog2.pop %v6147
    %v6149 = vmul.f32 %v6148, 0.6931472
    %v6150 = vmul.f32 -0.5, %v6137
    %v6151 = vadd.f32 %v6150, 1.0
    %v6152 = vmul.f32 %v6151, %v6137
    %v6153 = vand.u32 2147483647, %v6137
    %vm6154 = vcmp.lt.f32.partialorder %v6153, 0.0004427343
    %v6155 = vsel %vm6154, %v6152, %v6149
    %v6156 = vadd.f32 %v6128, %v6146
    %v6157 = vadd.f32 %v6129, %v6155
    %vm6158 = vcmp.gt.f32.partialorder %v6123, 20.0
    %vm6159 = vcmp.gt.f32.partialorder %v6126, 20.0
    %v6160 = vsel %vm6158, %v6123, %v6156
    %v6161 = vsel %vm6159, %v6126, %v6157
    %6162 = vst [vmem:[#allocation6] sm:$0xff] %v6160
    %6163 = vst [vmem:[#allocation6 + $0x8] sm:$0xff] %v6161
    // Predicated region
    $region14: #{tpu_custom_call.1} parent=1 // pred_check
      _
    $region15: #{tpu_custom_call.1} parent=1 // pred_check_branch
      %6165 = sbr.rel (0) target = $region17
    $region16: #{tpu_custom_call.1} parent=1 // pred_region
      %6167 = vsyncadd [#allocation5], 0
      %s6168 = sshll.u32 [#allocation6], 4
      %s6169 = int_to_ptr.vmem [resolvable:$true] %s6168
      %s6170 = sshll.u32 %s2, 4
      %s6171 = int_to_ptr.hbm [resolvable:$true] %s6170
      %6176 = dma.vmem_to_hbm [thread:$0]  %s6169, 256, %s6171, [#allocation5], 128, 128, 8
    $region17: #{tpu_custom_call.1} parent=1 // pred_fallthru
      _
    // Predicated region
    $region18: #{tpu_custom_call.1} parent=1 // pred_check
      _
    $region19: #{tpu_custom_call.1} parent=1 // pred_check_branch
      %6178 = sbr.rel (0) target = $region21
    $region20: #{tpu_custom_call.1} parent=1 // pred_region
      %6180 = dma.done [#allocation5], 256
    $region21: #{tpu_custom_call.1} parent=1 // pred_fallthru
      _
    %6181 = vsyncpa [#allocation4], 1
    %6182 = vsyncpa [#allocation5], 1

// kernel: tpu_custom_call.1
$region0: #{tpu_custom_call.1}
  #allocation0 [shape = 'u32[]', space=smem, size = 0x4, offset = 0x4, fixed_abs, tag = 'smem constant byte address 0x4 - core index']
  #allocation1 [shape = 'u32[72,128]{1,0:T(1,128)}', space=vmem, size = 0x9000, scoped, tag = 'internal scratch']
  #allocation2 [shape = 'f32[48,32]{1,0:T(8,128)}', space=vmem, size = 0x6000, scoped, tag = 'scratch operand']
  %s0 = inlined_call_operand.vmem [shape: f32[48,4], index: 0, kind: input, shape index: {}]
  %s1 = inlined_call_operand.hbm [shape: f32[1952,128], index: 1, kind: input, shape index: {}]
  %s2 = inlined_call_operand.hbm [shape: f32[16,128], index: 2, kind: output, shape index: {}]
  %s3 = sld [smem:[#allocation0]]
  $region22: #{tpu_custom_call.1} parent=0
    _
  %s5 = ssub.s32 1, %s3
  %s6 = scalar_select 0, %s5, %s3
  $region1: #{tpu_custom_call.1} parent=0
    #allocation3 [shape = 'u8[999424]{0}', space=vmem, size = 0xf4000, scoped, tag = 'input window, operand 1, single buffered']
    #allocation4 [shape = 's32[1]{0}', space=sflag, size = 0x4, scoped, tag = 'scoped memory for tpu_custom_call.1']
    #allocation5 [shape = 's32[1]{0}', space=sflag, size = 0x4, scoped, tag = 'scoped memory for tpu_custom_call.1']
    #allocation6 [shape = 'u8[8192]{0}', space=vmem, size = 0x2000, scoped, tag = 'output window, operand 0, single buffered']
    %7 = vsyncpa [#allocation4], 0
    %8 = vsyncpa [#allocation5], 0
    // Predicated region
    $region2: #{tpu_custom_call.1} parent=1 // pred_check
      _
    $region3: #{tpu_custom_call.1} parent=1 // pred_check_branch
      %10 = sbr.rel (0) target = $region5
    $region4: #{tpu_custom_call.1} parent=1 // pred_region
      _
    $region5: #{tpu_custom_call.1} parent=1 // pred_fallthru
      _
    // Predicated region
    $region6: #{tpu_custom_call.1} parent=1 // pred_check
      _
    $region7: #{tpu_custom_call.1} parent=1 // pred_check_branch
      %12 = sbr.rel (0) target = $region9
    $region8: #{tpu_custom_call.1} parent=1 // pred_region
      %14 = vsyncadd [#allocation4], 0
      %s15 = sshll.u32 %s1, 4
      %s16 = int_to_ptr.hbm [resolvable:$true] %s15
      %s17 = sshll.u32 [#allocation3], 4
      %s18 = int_to_ptr.vmem [resolvable:$true] %s17
      %23 = dma.hbm_to_vmem [thread:$0]  %s16, 31232, %s18, [#allocation4], 128, 128, 8
    $region9: #{tpu_custom_call.1} parent=1 // pred_fallthru
      _
    // Predicated region
    $region10: #{tpu_custom_call.1} parent=1 // pred_check
      _
    $region11: #{tpu_custom_call.1} parent=1 // pred_check_branch
      %25 = sbr.rel (0) target = $region13
    $region12: #{tpu_custom_call.1} parent=1 // pred_region
      %27 = dma.done [#allocation4], 31232
    $region13: #{tpu_custom_call.1} parent=1 // pred_fallthru
      _
    %v28 = vld [vmem:[%s0] sm:$0xff]
    %v29 = vld [vmem:[%s0 + $0x8] sm:$0xff]
    %v30 = vld [vmem:[%s0 + $0x10] sm:$0xff]
    %v31 = vld [vmem:[%s0 + $0x18] sm:$0xff]
    %v32 = vld [vmem:[%s0 + $0x20] sm:$0xff]
    %v33 = vld [vmem:[%s0 + $0x28] sm:$0xff]
    %v34 = vld [vmem:[#allocation3] sm:$0xf]
    %v35 = vld [vmem:[#allocation3 + $0x8] sm:$0x1]
    %v36 = vperm.slane %v35, 0
    %vm37 = vcmask 31744
    %v39 = vsel %vm37, %v28, 0
    %v42 = vsel %vm37, %v29, 0
    %v45 = vsel %vm37, %v30, 0
    %v48 = vsel %vm37, %v31, 0
    %v51 = vsel %vm37, %v32, 0
    %v54 = vsel %vm37, %v33, 0
    %vm56 = vcmask 1043456
    %v58 = vsel %vm56, %v34, 0
    %60 = vmatpush.msra.mxu0 0.0
    %61 = vmatpush.msra.mxu0 0.0
    %62 = vmatpush.msra.mxu0 0.0
    %63 = vmatpush.msra.mxu0 0.0
    %64 = vmatpush.msra.mxu0 0.0
    %65 = vmatpush.msra.mxu0 0.0
    %66 = vmatpush.msra.mxu0 0.0
    %67 = vmatpush.msra.mxu0 0.0
    %68 = vmatpush.msra.mxu0 0.0
    %69 = vmatpush.msra.mxu0 0.0
    %70 = vmatpush.msra.mxu0 0.0
    %71 = vmatpush.msra.mxu0 0.0
    %72 = vmatpush.msra.mxu0 0.0
    %73 = vmatpush.msra.mxu0 0.0
    %74 = vmatpush.msra.mxu0 0.0
    %75 = vmatpush.msra.mxu0 %v58
    %76 = vmatmul.f32.gmra.mxu0 %v39
    %v77 = vpop.f32.mrf.mxu0
    %v78 = vadd.f32 %v36, %v77
    %79 = vmatmul.f32.gmra.mxu0 %v42
    %v80 = vpop.f32.mrf.mxu0
    %v81 = vadd.f32 %v36, %v80
    %82 = vmatmul.f32.gmra.mxu0 %v45
    %v83 = vpop.f32.mrf.mxu0
    %v84 = vadd.f32 %v36, %v83
    %85 = vmatmul.f32.gmra.mxu0 %v48
    %v86 = vpop.f32.mrf.mxu0
    %v87 = vadd.f32 %v36, %v86
    %88 = vmatmul.f32.gmra.mxu0 %v51
    %v89 = vpop.f32.mrf.mxu0
    %v90 = vadd.f32 %v36, %v89
    %91 = vmatmul.f32.gmra.mxu0 %v54
    %v92 = vpop.f32.mrf.mxu0
    %v93 = vadd.f32 %v36, %v92
    %94 = vdwg.mxu0
    %v95 = vld [vmem:[#allocation3 + $0x10] sm:$0x1]
    %v96 = vld [vmem:[#allocation3 + $0x18] sm:$0x1]
    %vm97 = vcmask 261120
    %v98 = vsel %vm97, %v78, 0.0
    %99 = vadd.xlane.f32.xlu0 %v98
    %v100 = vpop.xlane.xlu0 %99
    %v101 = vsel %vm97, %v81, 0.0
    %102 = vadd.xlane.f32.xlu0 %v101
    %v103 = vpop.xlane.xlu0 %102
    %v104 = vsel %vm97, %v84, 0.0
    %105 = vadd.xlane.f32.xlu0 %v104
    %v106 = vpop.xlane.xlu0 %105
    %v107 = vsel %vm97, %v87, 0.0
    %108 = vadd.xlane.f32.xlu0 %v107
    %v109 = vpop.xlane.xlu0 %108
    %v110 = vsel %vm97, %v90, 0.0
    %111 = vadd.xlane.f32.xlu0 %v110
    %v112 = vpop.xlane.xlu0 %111
    %v113 = vsel %vm97, %v93, 0.0
    %114 = vadd.xlane.f32.xlu0 %v113
    %v115 = vpop.xlane.xlu0 %114
    %v116 = vrcp.pop 32.0
    %v117 = vmul.f32 32.0, %v116
    %v118 = vsub.f32 1.0, %v117
    %v119 = vmul.f32 %v116, %v118
    %v120 = vadd.f32 %v116, %v119
    %vm121 = vweird.f32 %v116
    %v122 = vsel %vm121, %v116, %v120
    %v123 = vmul.f32 %v100, %v122
    %v124 = vmul.f32 %v103, %v122
    %v125 = vmul.f32 %v106, %v122
    %v126 = vmul.f32 %v109, %v122
    %v127 = vmul.f32 %v112, %v122
    %v128 = vmul.f32 %v115, %v122
    %v129 = vmul.f32 %v78, %v78
    %v130 = vmul.f32 %v81, %v81
    %v131 = vmul.f32 %v84, %v84
    %v132 = vmul.f32 %v87, %v87
    %v133 = vmul.f32 %v90, %v90
    %v134 = vmul.f32 %v93, %v93
    %v135 = vsel %vm97, %v129, 0.0
    %136 = vadd.xlane.f32.xlu0 %v135
    %v137 = vpop.xlane.xlu0 %136
    %v138 = vsel %vm97, %v130, 0.0
    %139 = vadd.xlane.f32.xlu0 %v138
    %v140 = vpop.xlane.xlu0 %139
    %v141 = vsel %vm97, %v131, 0.0
    %142 = vadd.xlane.f32.xlu0 %v141
    %v143 = vpop.xlane.xlu0 %142
    %v144 = vsel %vm97, %v132, 0.0
    %145 = vadd.xlane.f32.xlu0 %v144
    %v146 = vpop.xlane.xlu0 %145
    %v147 = vsel %vm97, %v133, 0.0
    %148 = vadd.xlane.f32.xlu0 %v147
    %v149 = vpop.xlane.xlu0 %148
    %v150 = vsel %vm97, %v134, 0.0
    %151 = vadd.xlane.f32.xlu0 %v150
    %v152 = vpop.xlane.xlu0 %151
    %v153 = vmul.f32 %v137, %v122
    %v154 = vmul.f32 %v140, %v122
    %v155 = vmul.f32 %v143, %v122
    %v156 = vmul.f32 %v146, %v122
    %v157 = vmul.f32 %v149, %v122
    %v158 = vmul.f32 %v152, %v122
    %v159 = vmul.f32 %v123, %v123
    %v160 = vmul.f32 %v124, %v124
    %v161 = vmul.f32 %v125, %v125
    %v162 = vmul.f32 %v126, %v126
    %v163 = vmul.f32 %v127, %v127
    %v164 = vmul.f32 %v128, %v128
    %v165 = vsub.f32 %v153, %v159
    %v166 = vsub.f32 %v154, %v160
    %v167 = vsub.f32 %v155, %v161
    %v168 = vsub.f32 %v156, %v162
    %v169 = vsub.f32 %v157, %v163
    %v170 = vsub.f32 %v158, %v164
    %v171 = vsub.f32 %v78, %v123
    %v172 = vsub.f32 %v81, %v124
    %v173 = vsub.f32 %v84, %v125
    %v174 = vsub.f32 %v87, %v126
    %v175 = vsub.f32 %v90, %v127
    %v176 = vsub.f32 %v93, %v128
    %v177 = vadd.f32 %v165, 1e-05
    %v178 = vadd.f32 %v166, 1e-05
    %v179 = vadd.f32 %v167, 1e-05
    %v180 = vadd.f32 %v168, 1e-05
    %v181 = vadd.f32 %v169, 1e-05
    %v182 = vadd.f32 %v170, 1e-05
    %v183 = vrsqrt.pop %v177
    %v184 = vmul.f32 %v183, %v177
    %v185 = vmul.f32 %v184, %v183
    %v186 = vmul.f32 0.5, %v185
    %v187 = vsub.f32 1.5, %v186
    %v188 = vmul.f32 %v183, %v187
    %vm189 = vweird.f32 %v177
    %vm190 = vweird.f32 %v183
    %vm191 = vmor %vm189, %vm190
    %v192 = vsel %vm191, %v183, %v188
    %v193 = vrsqrt.pop %v178
    %v194 = vmul.f32 %v193, %v178
    %v195 = vmul.f32 %v194, %v193
    %v196 = vmul.f32 0.5, %v195
    %v197 = vsub.f32 1.5, %v196
    %v198 = vmul.f32 %v193, %v197
    %vm199 = vweird.f32 %v178
    %vm200 = vweird.f32 %v193
    %vm201 = vmor %vm199, %vm200
    %v202 = vsel %vm201, %v193, %v198
    %v203 = vrsqrt.pop %v179
    %v204 = vmul.f32 %v203, %v179
    %v205 = vmul.f32 %v204, %v203
    %v206 = vmul.f32 0.5, %v205
    %v207 = vsub.f32 1.5, %v206
    %v208 = vmul.f32 %v203, %v207
    %vm209 = vweird.f32 %v179
    %vm210 = vweird.f32 %v203
    %vm211 = vmor %vm209, %vm210
    %v212 = vsel %vm211, %v203, %v208
    %v213 = vrsqrt.pop %v180
    %v214 = vmul.f32 %v213, %v180
    %v215 = vmul.f32 %v214, %v213
    %v216 = vmul.f32 0.5, %v215
    %v217 = vsub.f32 1.5, %v216
    %v218 = vmul.f32 %v213, %v217
    %vm219 = vweird.f32 %v180
    %vm220 = vweird.f32 %v213
    %vm221 = vmor %vm219, %vm220
    %v222 = vsel %vm221, %v213, %v218
    %v223 = vrsqrt.pop %v181
    %v224 = vmul.f32 %v223, %v181
    %v225 = vmul.f32 %v224, %v223
    %v226 = vmul.f32 0.5, %v225
    %v227 = vsub.f32 1.5, %v226
    %v228 = vmul.f32 %v223, %v227
    %vm229 = vweird.f32 %v181
    %vm230 = vweird.f32 %v223
    %vm231 = vmor %vm229, %vm230
    %v232 = vsel %vm231, %v223, %v228
    %v233 = vrsqrt.pop %v182
    %v234 = vmul.f32 %v233, %v182
    %v235 = vmul.f32 %v234, %v233
    %v236 = vmul.f32 0.5, %v235
    %v237 = vsub.f32 1.5, %v236
    %v238 = vmul.f32 %v233, %v237
    %vm239 = vweird.f32 %v182
    %vm240 = vweird.f32 %v233
    %vm241 = vmor %vm239, %vm240
    %v242 = vsel %vm241, %v233, %v238
    %v243 = vmul.f32 %v171, %v192
    %v244 = vmul.f32 %v172, %v202
    %v245 = vmul.f32 %v173, %v212
    %v246 = vmul.f32 %v174, %v222
    %v247 = vmul.f32 %v175, %v232
    %v248 = vmul.f32 %v176, %v242
    %v249 = vperm.slane %v95, 0
    %v250 = vmul.f32 %v243, %v249
    %v251 = vmul.f32 %v244, %v249
    %v252 = vmul.f32 %v245, %v249
    %v253 = vmul.f32 %v246, %v249
    %v254 = vmul.f32 %v247, %v249
    %v255 = vmul.f32 %v248, %v249
    %v256 = vperm.slane %v96, 0
    %v257 = vadd.f32 %v250, %v256
    %v258 = vadd.f32 %v251, %v256
    %v259 = vadd.f32 %v252, %v256
    %v260 = vadd.f32 %v253, %v256
    %v261 = vadd.f32 %v254, %v256
    %v262 = vadd.f32 %v255, %v256
    %v263 = vld [vmem:[#allocation3 + $0x20] sm:$0xff]
    %v264 = vld [vmem:[#allocation3 + $0x28] sm:$0xff]
    %v265 = vld [vmem:[#allocation3 + $0x30] sm:$0xff]
    %v266 = vld [vmem:[#allocation3 + $0x38] sm:$0xff]
    %v267 = vld [vmem:[#allocation3 + $0x40] sm:$0xff]
    %v268 = vld [vmem:[#allocation3 + $0x48] sm:$0xff]
    %v269 = vld [vmem:[#allocation3 + $0x50] sm:$0xff]
    %v270 = vld [vmem:[#allocation3 + $0x58] sm:$0xff]
    %v271 = vld [vmem:[#allocation3 + $0x60] sm:$0xff]
    %v272 = vld [vmem:[#allocation3 + $0x68] sm:$0xff]
    %v273 = vld [vmem:[#allocation3 + $0x70] sm:$0xff]
    %v274 = vld [vmem:[#allocation3 + $0x78] sm:$0xff]
    %v275 = vld [vmem:[#allocation3 + $0x80] sm:$0xff]
    %v276 = vld [vmem:[#allocation3 + $0x88] sm:$0xff]
    %v277 = vld [vmem:[#allocation3 + $0x90] sm:$0xff]
    %v278 = vld [vmem:[#allocation3 + $0x98] sm:$0xff]
    %v279 = vld [vmem:[#allocation3 + $0xa0] sm:$0xff]
    %v280 = vld [vmem:[#allocation3 + $0xa8] sm:$0xff]
    %v281 = vld [vmem:[#allocation3 + $0xb0] sm:$0xff]
    %v282 = vld [vmem:[#allocation3 + $0xb8] sm:$0xff]
    %v283 = vld [vmem:[#allocation3 + $0xc0] sm:$0xff]
    %v284 = vld [vmem:[#allocation3 + $0xc8] sm:$0xff]
    %v285 = vld [vmem:[#allocation3 + $0xd0] sm:$0xff]
    %v286 = vld [vmem:[#allocation3 + $0xd8] sm:$0xff]
    %v287 = vld [vmem:[#allocation3 + $0xe0] sm:$0xff]
    %v288 = vld [vmem:[#allocation3 + $0xe8] sm:$0xff]
    %v289 = vld [vmem:[#allocation3 + $0xf0] sm:$0xff]
    %v290 = vld [vmem:[#allocation3 + $0xf8] sm:$0xff]
    %v291 = vld [vmem:[#allocation3 + $0x100] sm:$0xff]
    %v292 = vld [vmem:[#allocation3 + $0x108] sm:$0xff]
    %v293 = vld [vmem:[#allocation3 + $0x110] sm:$0xff]
    %v294 = vld [vmem:[#allocation3 + $0x118] sm:$0xff]
    %v295 = vld [vmem:[#allocation3 + $0x120] sm:$0xff]
    %v296 = vld [vmem:[#allocation3 + $0x128] sm:$0xff]
    %v297 = vld [vmem:[#allocation3 + $0x130] sm:$0xff]
    %v298 = vld [vmem:[#allocation3 + $0x138] sm:$0xff]
    %v299 = vld [vmem:[#allocation3 + $0x140] sm:$0xff]
    %v300 = vld [vmem:[#allocation3 + $0x148] sm:$0xff]
    %v301 = vld [vmem:[#allocation3 + $0x150] sm:$0xff]
    %v302 = vld [vmem:[#allocation3 + $0x158] sm:$0xff]
    %v303 = vld [vmem:[#allocation3 + $0x160] sm:$0xff]
    %v304 = vld [vmem:[#allocation3 + $0x168] sm:$0xff]
    %v305 = vld [vmem:[#allocation3 + $0x170] sm:$0xff]
    %v306 = vld [vmem:[#allocation3 + $0x178] sm:$0xff]
    %v307 = vld [vmem:[#allocation3 + $0x180] sm:$0xff]
    %v308 = vld [vmem:[#allocation3 + $0x188] sm:$0xff]
    %v309 = vld [vmem:[#allocation3 + $0x190] sm:$0xff]
    %v310 = vld [vmem:[#allocation3 + $0x198] sm:$0xff]
    %vm311 = vcmask 392192
    %v313 = vsel %vm311, %v263, 0
    %v316 = vsel %vm311, %v264, 0
    %v319 = vsel %vm311, %v265, 0
    %v322 = vsel %vm311, %v266, 0
    %v325 = vsel %vm311, %v267, 0
    %v328 = vsel %vm311, %v268, 0
    %v331 = vsel %vm311, %v269, 0
    %v334 = vsel %vm311, %v270, 0
    %v337 = vsel %vm311, %v271, 0
    %v340 = vsel %vm311, %v272, 0
    %v343 = vsel %vm311, %v273, 0
    %v346 = vsel %vm311, %v274, 0
    %v349 = vsel %vm311, %v275, 0
    %v352 = vsel %vm311, %v276, 0
    %v355 = vsel %vm311, %v277, 0
    %v358 = vsel %vm311, %v278, 0
    %v361 = vsel %vm311, %v279, 0
    %v364 = vsel %vm311, %v280, 0
    %v367 = vsel %vm311, %v281, 0
    %v370 = vsel %vm311, %v282, 0
    %v373 = vsel %vm311, %v283, 0
    %v376 = vsel %vm311, %v284, 0
    %v379 = vsel %vm311, %v285, 0
    %v382 = vsel %vm311, %v286, 0
    %384 = vmatpush.msra.mxu0 0.0
    %385 = vmatpush.msra.mxu0 0.0
    %386 = vmatpush.msra.mxu0 0.0
    %387 = vmatpush.msra.mxu0 0.0
    %388 = vmatpush.msra.mxu0 0.0
    %389 = vmatpush.msra.mxu0 0.0
    %390 = vmatpush.msra.mxu0 0.0
    %391 = vmatpush.msra.mxu0 0.0
    %392 = vmatpush.msra.mxu0 0.0
    %393 = vmatpush.msra.mxu0 0.0
    %394 = vmatpush.msra.mxu0 %v262
    %395 = vmatpush.msra.mxu0 %v261
    %396 = vmatpush.msra.mxu0 %v260
    %397 = vmatpush.msra.mxu0 %v259
    %398 = vmatpush.msra.mxu0 %v258
    %399 = vmatpush.msra.mxu0 %v257
    %400 = vmatmul.f32.gmra.mxu0 %v313
    %v401 = vpop.f32.mrf.mxu0
    %v402 = vadd.f32 %v287, %v401
    %403 = vmatmul.f32.gmra.mxu0 %v316
    %v404 = vpop.f32.mrf.mxu0
    %v405 = vadd.f32 %v288, %v404
    %406 = vmatmul.f32.gmra.mxu0 %v319
    %v407 = vpop.f32.mrf.mxu0
    %v408 = vadd.f32 %v289, %v407
    %409 = vmatmul.f32.gmra.mxu0 %v322
    %v410 = vpop.f32.mrf.mxu0
    %v411 = vadd.f32 %v290, %v410
    %412 = vmatmul.f32.gmra.mxu0 %v325
    %v413 = vpop.f32.mrf.mxu0
    %v414 = vadd.f32 %v291, %v413
    %415 = vmatmul.f32.gmra.mxu0 %v328
    %v416 = vpop.f32.mrf.mxu0
    %v417 = vadd.f32 %v292, %v416
    %418 = vmatmul.f32.gmra.mxu0 %v331
    %v419 = vpop.f32.mrf.mxu0
    %v420 = vadd.f32 %v293, %v419
    %421 = vmatmul.f32.gmra.mxu0 %v334
    %v422 = vpop.f32.mrf.mxu0
    %v423 = vadd.f32 %v294, %v422
    %424 = vmatmul.f32.gmra.mxu0 %v337
    %v425 = vpop.f32.mrf.mxu0
    %v426 = vadd.f32 %v295, %v425
    %427 = vmatmul.f32.gmra.mxu0 %v340
    %v428 = vpop.f32.mrf.mxu0
    %v429 = vadd.f32 %v296, %v428
    %430 = vmatmul.f32.gmra.mxu0 %v343
    %v431 = vpop.f32.mrf.mxu0
    %v432 = vadd.f32 %v297, %v431
    %433 = vmatmul.f32.gmra.mxu0 %v346
    %v434 = vpop.f32.mrf.mxu0
    %v435 = vadd.f32 %v298, %v434
    %436 = vmatmul.f32.gmra.mxu0 %v349
    %v437 = vpop.f32.mrf.mxu0
    %v438 = vadd.f32 %v299, %v437
    %439 = vmatmul.f32.gmra.mxu0 %v352
    %v440 = vpop.f32.mrf.mxu0
    %v441 = vadd.f32 %v300, %v440
    %442 = vmatmul.f32.gmra.mxu0 %v355
    %v443 = vpop.f32.mrf.mxu0
    %v444 = vadd.f32 %v301, %v443
    %445 = vmatmul.f32.gmra.mxu0 %v358
    %v446 = vpop.f32.mrf.mxu0
    %v447 = vadd.f32 %v302, %v446
    %448 = vmatmul.f32.gmra.mxu0 %v361
    %v449 = vpop.f32.mrf.mxu0
    %v450 = vadd.f32 %v303, %v449
    %451 = vmatmul.f32.gmra.mxu0 %v364
    %v452 = vpop.f32.mrf.mxu0
    %v453 = vadd.f32 %v304, %v452
    %454 = vmatmul.f32.gmra.mxu0 %v367
    %v455 = vpop.f32.mrf.mxu0
    %v456 = vadd.f32 %v305, %v455
    %457 = vmatmul.f32.gmra.mxu0 %v370
    %v458 = vpop.f32.mrf.mxu0
    %v459 = vadd.f32 %v306, %v458
    %460 = vmatmul.f32.gmra.mxu0 %v373
    %v461 = vpop.f32.mrf.mxu0
    %v462 = vadd.f32 %v307, %v461
    %463 = vmatmul.f32.gmra.mxu0 %v376
    %v464 = vpop.f32.mrf.mxu0
    %v465 = vadd.f32 %v308, %v464
    %466 = vmatmul.f32.gmra.mxu0 %v379
    %v467 = vpop.f32.mrf.mxu0
    %v468 = vadd.f32 %v309, %v467
    %469 = vmatmul.f32.gmra.mxu0 %v382
    %v470 = vpop.f32.mrf.mxu0
    %v471 = vadd.f32 %v310, %v470
    %472 = vdwg.mxu0
    %v473 = vmul.f32 %v402, 0.5
    %v474 = vmul.f32 %v405, 0.5
    %v475 = vmul.f32 %v408, 0.5
    %v476 = vmul.f32 %v411, 0.5
    %v477 = vmul.f32 %v414, 0.5
    %v478 = vmul.f32 %v417, 0.5
    %v479 = vmul.f32 %v420, 0.5
    %v480 = vmul.f32 %v423, 0.5
    %v481 = vmul.f32 %v426, 0.5
    %v482 = vmul.f32 %v429, 0.5
    %v483 = vmul.f32 %v432, 0.5
    %v484 = vmul.f32 %v435, 0.5
    %v485 = vmul.f32 %v438, 0.5
    %v486 = vmul.f32 %v441, 0.5
    %v487 = vmul.f32 %v444, 0.5
    %v488 = vmul.f32 %v447, 0.5
    %v489 = vmul.f32 %v450, 0.5
    %v490 = vmul.f32 %v453, 0.5
    %v491 = vmul.f32 %v456, 0.5
    %v492 = vmul.f32 %v459, 0.5
    %v493 = vmul.f32 %v462, 0.5
    %v494 = vmul.f32 %v465, 0.5
    %v495 = vmul.f32 %v468, 0.5
    %v496 = vmul.f32 %v471, 0.5
    %v497 = vmul.f32 %v402, 0.044715
    %v498 = vmul.f32 %v405, 0.044715
    %v499 = vmul.f32 %v408, 0.044715
    %v500 = vmul.f32 %v411, 0.044715
    %v501 = vmul.f32 %v414, 0.044715
    %v502 = vmul.f32 %v417, 0.044715
    %v503 = vmul.f32 %v420, 0.044715
    %v504 = vmul.f32 %v423, 0.044715
    %v505 = vmul.f32 %v426, 0.044715
    %v506 = vmul.f32 %v429, 0.044715
    %v507 = vmul.f32 %v432, 0.044715
    %v508 = vmul.f32 %v435, 0.044715
    %v509 = vmul.f32 %v438, 0.044715
    %v510 = vmul.f32 %v441, 0.044715
    %v511 = vmul.f32 %v444, 0.044715
    %v512 = vmul.f32 %v447, 0.044715
    %v513 = vmul.f32 %v450, 0.044715
    %v514 = vmul.f32 %v453, 0.044715
    %v515 = vmul.f32 %v456, 0.044715
    %v516 = vmul.f32 %v459, 0.044715
    %v517 = vmul.f32 %v462, 0.044715
    %v518 = vmul.f32 %v465, 0.044715
    %v519 = vmul.f32 %v468, 0.044715
    %v520 = vmul.f32 %v471, 0.044715
    %v521 = vmul.f32 %v497, %v402
    %v522 = vmul.f32 %v498, %v405
    %v523 = vmul.f32 %v499, %v408
    %v524 = vmul.f32 %v500, %v411
    %v525 = vmul.f32 %v501, %v414
    %v526 = vmul.f32 %v502, %v417
    %v527 = vmul.f32 %v503, %v420
    %v528 = vmul.f32 %v504, %v423
    %v529 = vmul.f32 %v505, %v426
    %v530 = vmul.f32 %v506, %v429
    %v531 = vmul.f32 %v507, %v432
    %v532 = vmul.f32 %v508, %v435
    %v533 = vmul.f32 %v509, %v438
    %v534 = vmul.f32 %v510, %v441
    %v535 = vmul.f32 %v511, %v444
    %v536 = vmul.f32 %v512, %v447
    %v537 = vmul.f32 %v513, %v450
    %v538 = vmul.f32 %v514, %v453
    %v539 = vmul.f32 %v515, %v456
    %v540 = vmul.f32 %v516, %v459
    %v541 = vmul.f32 %v517, %v462
    %v542 = vmul.f32 %v518, %v465
    %v543 = vmul.f32 %v519, %v468
    %v544 = vmul.f32 %v520, %v471
    %v545 = vmul.f32 %v521, %v402
    %v546 = vmul.f32 %v522, %v405
    %v547 = vmul.f32 %v523, %v408
    %v548 = vmul.f32 %v524, %v411
    %v549 = vmul.f32 %v525, %v414
    %v550 = vmul.f32 %v526, %v417
    %v551 = vmul.f32 %v527, %v420
    %v552 = vmul.f32 %v528, %v423
    %v553 = vmul.f32 %v529, %v426
    %v554 = vmul.f32 %v530, %v429
    %v555 = vmul.f32 %v531, %v432
    %v556 = vmul.f32 %v532, %v435
    %v557 = vmul.f32 %v533, %v438
    %v558 = vmul.f32 %v534, %v441
    %v559 = vmul.f32 %v535, %v444
    %v560 = vmul.f32 %v536, %v447
    %v561 = vmul.f32 %v537, %v450
    %v562 = vmul.f32 %v538, %v453
    %v563 = vmul.f32 %v539, %v456
    %v564 = vmul.f32 %v540, %v459
    %v565 = vmul.f32 %v541, %v462
    %v566 = vmul.f32 %v542, %v465
    %v567 = vmul.f32 %v543, %v468
    %v568 = vmul.f32 %v544, %v471
    %v569 = vadd.f32 %v402, %v545
    %v570 = vadd.f32 %v405, %v546
    %v571 = vadd.f32 %v408, %v547
    %v572 = vadd.f32 %v411, %v548
    %v573 = vadd.f32 %v414, %v549
    %v574 = vadd.f32 %v417, %v550
    %v575 = vadd.f32 %v420, %v551
    %v576 = vadd.f32 %v423, %v552
    %v577 = vadd.f32 %v426, %v553
    %v578 = vadd.f32 %v429, %v554
    %v579 = vadd.f32 %v432, %v555
    %v580 = vadd.f32 %v435, %v556
    %v581 = vadd.f32 %v438, %v557
    %v582 = vadd.f32 %v441, %v558
    %v583 = vadd.f32 %v444, %v559
    %v584 = vadd.f32 %v447, %v560
    %v585 = vadd.f32 %v450, %v561
    %v586 = vadd.f32 %v453, %v562
    %v587 = vadd.f32 %v456, %v563
    %v588 = vadd.f32 %v459, %v564
    %v589 = vadd.f32 %v462, %v565
    %v590 = vadd.f32 %v465, %v566
    %v591 = vadd.f32 %v468, %v567
    %v592 = vadd.f32 %v471, %v568
    %v593 = vmul.f32 %v569, 0.7978846
    %v594 = vmul.f32 %v570, 0.7978846
    %v595 = vmul.f32 %v571, 0.7978846
    %v596 = vmul.f32 %v572, 0.7978846
    %v597 = vmul.f32 %v573, 0.7978846
    %v598 = vmul.f32 %v574, 0.7978846
    %v599 = vmul.f32 %v575, 0.7978846
    %v600 = vmul.f32 %v576, 0.7978846
    %v601 = vmul.f32 %v577, 0.7978846
    %v602 = vmul.f32 %v578, 0.7978846
    %v603 = vmul.f32 %v579, 0.7978846
    %v604 = vmul.f32 %v580, 0.7978846
    %v605 = vmul.f32 %v581, 0.7978846
    %v606 = vmul.f32 %v582, 0.7978846
    %v607 = vmul.f32 %v583, 0.7978846
    %v608 = vmul.f32 %v584, 0.7978846
    %v609 = vmul.f32 %v585, 0.7978846
    %v610 = vmul.f32 %v586, 0.7978846
    %v611 = vmul.f32 %v587, 0.7978846
    %v612 = vmul.f32 %v588, 0.7978846
    %v613 = vmul.f32 %v589, 0.7978846
    %v614 = vmul.f32 %v590, 0.7978846
    %v615 = vmul.f32 %v591, 0.7978846
    %v616 = vmul.f32 %v592, 0.7978846
    %v617 = vtanh.pop %v593
    %v618 = vtanh.pop %v594
    %v619 = vtanh.pop %v595
    %v620 = vtanh.pop %v596
    %v621 = vtanh.pop %v597
    %v622 = vtanh.pop %v598
    %v623 = vtanh.pop %v599
    %v624 = vtanh.pop %v600
    %v625 = vtanh.pop %v601
    %v626 = vtanh.pop %v602
    %v627 = vtanh.pop %v603
    %v628 = vtanh.pop %v604
    %v629 = vtanh.pop %v605
    %v630 = vtanh.pop %v606
    %v631 = vtanh.pop %v607
    %v632 = vtanh.pop %v608
    %v633 = vtanh.pop %v609
    %v634 = vtanh.pop %v610
    %v635 = vtanh.pop %v611
    %v636 = vtanh.pop %v612
    %v637 = vtanh.pop %v613
    %v638 = vtanh.pop %v614
    %v639 = vtanh.pop %v615
    %v640 = vtanh.pop %v616
    %v641 = vadd.f32 %v617, 1.0
    %v642 = vadd.f32 %v618, 1.0
    %v643 = vadd.f32 %v619, 1.0
    %v644 = vadd.f32 %v620, 1.0
    %v645 = vadd.f32 %v621, 1.0
    %v646 = vadd.f32 %v622, 1.0
    %v647 = vadd.f32 %v623, 1.0
    %v648 = vadd.f32 %v624, 1.0
    %v649 = vadd.f32 %v625, 1.0
    %v650 = vadd.f32 %v626, 1.0
    %v651 = vadd.f32 %v627, 1.0
    %v652 = vadd.f32 %v628, 1.0
    %v653 = vadd.f32 %v629, 1.0
    %v654 = vadd.f32 %v630, 1.0
    %v655 = vadd.f32 %v631, 1.0
    %v656 = vadd.f32 %v632, 1.0
    %v657 = vadd.f32 %v633, 1.0
    %v658 = vadd.f32 %v634, 1.0
    %v659 = vadd.f32 %v635, 1.0
    %v660 = vadd.f32 %v636, 1.0
    %v661 = vadd.f32 %v637, 1.0
    %v662 = vadd.f32 %v638, 1.0
    %v663 = vadd.f32 %v639, 1.0
    %v664 = vadd.f32 %v640, 1.0
    %v665 = vmul.f32 %v473, %v641
    %v666 = vmul.f32 %v474, %v642
    %v667 = vmul.f32 %v475, %v643
    %v668 = vmul.f32 %v476, %v644
    %v669 = vmul.f32 %v477, %v645
    %v670 = vmul.f32 %v478, %v646
    %v671 = vmul.f32 %v479, %v647
    %v672 = vmul.f32 %v480, %v648
    %v673 = vmul.f32 %v481, %v649
    %v674 = vmul.f32 %v482, %v650
    %v675 = vmul.f32 %v483, %v651
    %v676 = vmul.f32 %v484, %v652
    %v677 = vmul.f32 %v485, %v653
    %v678 = vmul.f32 %v486, %v654
    %v679 = vmul.f32 %v487, %v655
    %v680 = vmul.f32 %v488, %v656
    %v681 = vmul.f32 %v489, %v657
    %v682 = vmul.f32 %v490, %v658
    %v683 = vmul.f32 %v491, %v659
    %v684 = vmul.f32 %v492, %v660
    %v685 = vmul.f32 %v493, %v661
    %v686 = vmul.f32 %v494, %v662
    %v687 = vmul.f32 %v495, %v663
    %v688 = vmul.f32 %v496, %v664
    %v689 = vld [vmem:[#allocation3 + $0x1a0] sm:$0xff]
    %v690 = vld [vmem:[#allocation3 + $0x1a8] sm:$0xff]
    %v691 = vld [vmem:[#allocation3 + $0x1b0] sm:$0xff]
    %v692 = vld [vmem:[#allocation3 + $0x1b8] sm:$0xff]
    %v693 = vld [vmem:[#allocation3 + $0x1c0] sm:$0xff]
    %v694 = vld [vmem:[#allocation3 + $0x1c8] sm:$0xff]
    %v695 = vld [vmem:[#allocation3 + $0x1d0] sm:$0xff]
    %v696 = vld [vmem:[#allocation3 + $0x1d8] sm:$0xff]
    %v697 = vld [vmem:[#allocation3 + $0x1e0] sm:$0xff]
    %v698 = vld [vmem:[#allocation3 + $0x1e8] sm:$0xff]
    %v699 = vld [vmem:[#allocation3 + $0x1f0] sm:$0xff]
    %v700 = vld [vmem:[#allocation3 + $0x1f8] sm:$0xff]
    %vm701 = vcmask 523264
    %v703 = vsel %vm701, %v695, 0
    %v706 = vsel %vm701, %v696, 0
    %v709 = vsel %vm701, %v697, 0
    %v712 = vsel %vm701, %v698, 0
    %v715 = vsel %vm701, %v699, 0
    %v718 = vsel %vm701, %v700, 0
    %720 = vmatpush.msra.mxu0 0.0
    %721 = vmatpush.msra.mxu0 0.0
    %722 = vmatpush.msra.mxu0 0.0
    %723 = vmatpush.msra.mxu0 0.0
    %724 = vmatpush.msra.mxu0 0.0
    %725 = vmatpush.msra.mxu0 0.0
    %726 = vmatpush.msra.mxu0 0.0
    %727 = vmatpush.msra.mxu0 0.0
    %728 = vmatpush.msra.mxu0 %v688
    %729 = vmatpush.msra.mxu0 %v687
    %730 = vmatpush.msra.mxu0 %v686
    %731 = vmatpush.msra.mxu0 %v685
    %732 = vmatpush.msra.mxu0 %v684
    %733 = vmatpush.msra.mxu0 %v683
    %734 = vmatpush.msra.mxu0 %v682
    %735 = vmatpush.msra.mxu0 %v681
    %736 = vmatmul.f32.gmra.mxu0 %v703
    %v737 = vpop.f32.mrf.mxu0
    %v738 = vadd.f32 0.0, %v737
    %739 = vmatmul.f32.gmra.mxu0 %v706
    %v740 = vpop.f32.mrf.mxu0
    %v741 = vadd.f32 0.0, %v740
    %742 = vmatmul.f32.gmra.mxu0 %v709
    %v743 = vpop.f32.mrf.mxu0
    %v744 = vadd.f32 0.0, %v743
    %745 = vmatmul.f32.gmra.mxu0 %v712
    %v746 = vpop.f32.mrf.mxu0
    %v747 = vadd.f32 0.0, %v746
    %748 = vmatmul.f32.gmra.mxu0 %v715
    %v749 = vpop.f32.mrf.mxu0
    %v750 = vadd.f32 0.0, %v749
    %751 = vmatmul.f32.gmra.mxu0 %v718
    %v752 = vpop.f32.mrf.mxu0
    %v753 = vadd.f32 0.0, %v752
    %754 = vdwg.mxu0
    %755 = vmatpush.msra.mxu0 %v680
    %756 = vmatpush.msra.mxu0 %v679
    %757 = vmatpush.msra.mxu0 %v678
    %758 = vmatpush.msra.mxu0 %v677
    %759 = vmatpush.msra.mxu0 %v676
    %760 = vmatpush.msra.mxu0 %v675
    %761 = vmatpush.msra.mxu0 %v674
    %762 = vmatpush.msra.mxu0 %v673
    %763 = vmatpush.msra.mxu0 %v672
    %764 = vmatpush.msra.mxu0 %v671
    %765 = vmatpush.msra.mxu0 %v670
    %766 = vmatpush.msra.mxu0 %v669
    %767 = vmatpush.msra.mxu0 %v668
    %768 = vmatpush.msra.mxu0 %v667
    %769 = vmatpush.msra.mxu0 %v666
    %770 = vmatpush.msra.mxu0 %v665
    %771 = vmatmul.f32.gmra.mxu0 %v689
    %v772 = vpop.f32.mrf.mxu0
    %v773 = vadd.f32 %v738, %v772
    %774 = vmatmul.f32.gmra.mxu0 %v690
    %v775 = vpop.f32.mrf.mxu0
    %v776 = vadd.f32 %v741, %v775
    %777 = vmatmul.f32.gmra.mxu0 %v691
    %v778 = vpop.f32.mrf.mxu0
    %v779 = vadd.f32 %v744, %v778
    %780 = vmatmul.f32.gmra.mxu0 %v692
    %v781 = vpop.f32.mrf.mxu0
    %v782 = vadd.f32 %v747, %v781
    %783 = vmatmul.f32.gmra.mxu0 %v693
    %v784 = vpop.f32.mrf.mxu0
    %v785 = vadd.f32 %v750, %v784
    %786 = vmatmul.f32.gmra.mxu0 %v694
    %v787 = vpop.f32.mrf.mxu0
    %v788 = vadd.f32 %v753, %v787
    %789 = vdwg.mxu0
    %v790 = vld [vmem:[#allocation3 + $0x200] sm:$0xff]
    %v791 = vld [vmem:[#allocation3 + $0x208] sm:$0xff]
    %v792 = vld [vmem:[#allocation3 + $0x210] sm:$0xff]
    %v793 = vld [vmem:[#allocation3 + $0x218] sm:$0xff]
    %v794 = vld [vmem:[#allocation3 + $0x220] sm:$0xff]
    %v795 = vld [vmem:[#allocation3 + $0x228] sm:$0xff]
    %v796 = vadd.f32 %v773, %v790
    %v797 = vadd.f32 %v776, %v791
    %v798 = vadd.f32 %v779, %v792
    %v799 = vadd.f32 %v782, %v793
    %v800 = vadd.f32 %v785, %v794
    %v801 = vadd.f32 %v788, %v795
    %v802 = vadd.f32 %v78, %v796
    %v803 = vadd.f32 %v81, %v797
    %v804 = vadd.f32 %v84, %v798
    %v805 = vadd.f32 %v87, %v799
    %v806 = vadd.f32 %v90, %v800
    %v807 = vadd.f32 %v93, %v801
    %v808 = vld [vmem:[#allocation3 + $0x230] sm:$0x1]
    %v809 = vld [vmem:[#allocation3 + $0x238] sm:$0x1]
    %v810 = vsel %vm97, %v802, 0.0
    %811 = vadd.xlane.f32.xlu0 %v810
    %v812 = vpop.xlane.xlu0 %811
    %v813 = vsel %vm97, %v803, 0.0
    %814 = vadd.xlane.f32.xlu0 %v813
    %v815 = vpop.xlane.xlu0 %814
    %v816 = vsel %vm97, %v804, 0.0
    %817 = vadd.xlane.f32.xlu0 %v816
    %v818 = vpop.xlane.xlu0 %817
    %v819 = vsel %vm97, %v805, 0.0
    %820 = vadd.xlane.f32.xlu0 %v819
    %v821 = vpop.xlane.xlu0 %820
    %v822 = vsel %vm97, %v806, 0.0
    %823 = vadd.xlane.f32.xlu0 %v822
    %v824 = vpop.xlane.xlu0 %823
    %v825 = vsel %vm97, %v807, 0.0
    %826 = vadd.xlane.f32.xlu0 %v825
    %v827 = vpop.xlane.xlu0 %826
    %v828 = vmul.f32 %v812, %v122
    %v829 = vmul.f32 %v815, %v122
    %v830 = vmul.f32 %v818, %v122
    %v831 = vmul.f32 %v821, %v122
    %v832 = vmul.f32 %v824, %v122
    %v833 = vmul.f32 %v827, %v122
    %v834 = vmul.f32 %v802, %v802
    %v835 = vmul.f32 %v803, %v803
    %v836 = vmul.f32 %v804, %v804
    %v837 = vmul.f32 %v805, %v805
    %v838 = vmul.f32 %v806, %v806
    %v839 = vmul.f32 %v807, %v807
    %v840 = vsel %vm97, %v834, 0.0
    %841 = vadd.xlane.f32.xlu0 %v840
    %v842 = vpop.xlane.xlu0 %841
    %v843 = vsel %vm97, %v835, 0.0
    %844 = vadd.xlane.f32.xlu0 %v843
    %v845 = vpop.xlane.xlu0 %844
    %v846 = vsel %vm97, %v836, 0.0
    %847 = vadd.xlane.f32.xlu0 %v846
    %v848 = vpop.xlane.xlu0 %847
    %v849 = vsel %vm97, %v837, 0.0
    %850 = vadd.xlane.f32.xlu0 %v849
    %v851 = vpop.xlane.xlu0 %850
    %v852 = vsel %vm97, %v838, 0.0
    %853 = vadd.xlane.f32.xlu0 %v852
    %v854 = vpop.xlane.xlu0 %853
    %v855 = vsel %vm97, %v839, 0.0
    %856 = vadd.xlane.f32.xlu0 %v855
    %v857 = vpop.xlane.xlu0 %856
    %v858 = vmul.f32 %v842, %v122
    %v859 = vmul.f32 %v845, %v122
    %v860 = vmul.f32 %v848, %v122
    %v861 = vmul.f32 %v851, %v122
    %v862 = vmul.f32 %v854, %v122
    %v863 = vmul.f32 %v857, %v122
    %v864 = vmul.f32 %v828, %v828
    %v865 = vmul.f32 %v829, %v829
    %v866 = vmul.f32 %v830, %v830
    %v867 = vmul.f32 %v831, %v831
    %v868 = vmul.f32 %v832, %v832
    %v869 = vmul.f32 %v833, %v833
    %v870 = vsub.f32 %v858, %v864
    %v871 = vsub.f32 %v859, %v865
    %v872 = vsub.f32 %v860, %v866
    %v873 = vsub.f32 %v861, %v867
    %v874 = vsub.f32 %v862, %v868
    %v875 = vsub.f32 %v863, %v869
    %v876 = vsub.f32 %v802, %v828
    %v877 = vsub.f32 %v803, %v829
    %v878 = vsub.f32 %v804, %v830
    %v879 = vsub.f32 %v805, %v831
    %v880 = vsub.f32 %v806, %v832
    %v881 = vsub.f32 %v807, %v833
    %v882 = vadd.f32 %v870, 1e-05
    %v883 = vadd.f32 %v871, 1e-05
    %v884 = vadd.f32 %v872, 1e-05
    %v885 = vadd.f32 %v873, 1e-05
    %v886 = vadd.f32 %v874, 1e-05
    %v887 = vadd.f32 %v875, 1e-05
    %v888 = vrsqrt.pop %v882
    %v889 = vmul.f32 %v888, %v882
    %v890 = vmul.f32 %v889, %v888
    %v891 = vmul.f32 0.5, %v890
    %v892 = vsub.f32 1.5, %v891
    %v893 = vmul.f32 %v888, %v892
    %vm894 = vweird.f32 %v882
    %vm895 = vweird.f32 %v888
    %vm896 = vmor %vm894, %vm895
    %v897 = vsel %vm896, %v888, %v893
    %v898 = vrsqrt.pop %v883
    %v899 = vmul.f32 %v898, %v883
    %v900 = vmul.f32 %v899, %v898
    %v901 = vmul.f32 0.5, %v900
    %v902 = vsub.f32 1.5, %v901
    %v903 = vmul.f32 %v898, %v902
    %vm904 = vweird.f32 %v883
    %vm905 = vweird.f32 %v898
    %vm906 = vmor %vm904, %vm905
    %v907 = vsel %vm906, %v898, %v903
    %v908 = vrsqrt.pop %v884
    %v909 = vmul.f32 %v908, %v884
    %v910 = vmul.f32 %v909, %v908
    %v911 = vmul.f32 0.5, %v910
    %v912 = vsub.f32 1.5, %v911
    %v913 = vmul.f32 %v908, %v912
    %vm914 = vweird.f32 %v884
    %vm915 = vweird.f32 %v908
    %vm916 = vmor %vm914, %vm915
    %v917 = vsel %vm916, %v908, %v913
    %v918 = vrsqrt.pop %v885
    %v919 = vmul.f32 %v918, %v885
    %v920 = vmul.f32 %v919, %v918
    %v921 = vmul.f32 0.5, %v920
    %v922 = vsub.f32 1.5, %v921
    %v923 = vmul.f32 %v918, %v922
    %vm924 = vweird.f32 %v885
    %vm925 = vweird.f32 %v918
    %vm926 = vmor %vm924, %vm925
    %v927 = vsel %vm926, %v918, %v923
    %v928 = vrsqrt.pop %v886
    %v929 = vmul.f32 %v928, %v886
    %v930 = vmul.f32 %v929, %v928
    %v931 = vmul.f32 0.5, %v930
    %v932 = vsub.f32 1.5, %v931
    %v933 = vmul.f32 %v928, %v932
    %vm934 = vweird.f32 %v886
    %vm935 = vweird.f32 %v928
    %vm936 = vmor %vm934, %vm935
    %v937 = vsel %vm936, %v928, %v933
    %v938 = vrsqrt.pop %v887
    %v939 = vmul.f32 %v938, %v887
    %v940 = vmul.f32 %v939, %v938
    %v941 = vmul.f32 0.5, %v940
    %v942 = vsub.f32 1.5, %v941
    %v943 = vmul.f32 %v938, %v942
    %vm944 = vweird.f32 %v887
    %vm945 = vweird.f32 %v938
    %vm946 = vmor %vm944, %vm945
    %v947 = vsel %vm946, %v938, %v943
    %v948 = vmul.f32 %v876, %v897
    %v949 = vmul.f32 %v877, %v907
    %v950 = vmul.f32 %v878, %v917
    %v951 = vmul.f32 %v879, %v927
    %v952 = vmul.f32 %v880, %v937
    %v953 = vmul.f32 %v881, %v947
    %v954 = vperm.slane %v808, 0
    %v955 = vmul.f32 %v948, %v954
    %v956 = vmul.f32 %v949, %v954
    %v957 = vmul.f32 %v950, %v954
    %v958 = vmul.f32 %v951, %v954
    %v959 = vmul.f32 %v952, %v954
    %v960 = vmul.f32 %v953, %v954
    %v961 = vperm.slane %v809, 0
    %v962 = vadd.f32 %v955, %v961
    %v963 = vadd.f32 %v956, %v961
    %v964 = vadd.f32 %v957, %v961
    %v965 = vadd.f32 %v958, %v961
    %v966 = vadd.f32 %v959, %v961
    %v967 = vadd.f32 %v960, %v961
    %v968 = vld [vmem:[#allocation3 + $0x240] sm:$0xff]
    %v969 = vld [vmem:[#allocation3 + $0x248] sm:$0xff]
    %v970 = vld [vmem:[#allocation3 + $0x250] sm:$0xff]
    %v971 = vld [vmem:[#allocation3 + $0x258] sm:$0xff]
    %v972 = vld [vmem:[#allocation3 + $0x260] sm:$0x1]
    %v973 = vperm.slane %v972, 0
    %v975 = vsel %vm97, %v962, 0
    %v978 = vsel %vm97, %v963, 0
    %v981 = vsel %vm97, %v964, 0
    %v984 = vsel %vm97, %v965, 0
    %v987 = vsel %vm97, %v966, 0
    %v990 = vsel %vm97, %v967, 0
    %992 = vmatpush.msra.mxu0 0.0
    %993 = vmatpush.msra.mxu0 0.0
    %994 = vmatpush.msra.mxu0 0.0
    %995 = vmatpush.msra.mxu0 0.0
    %996 = vmatpush.msra.mxu0 0.0
    %997 = vmatpush.msra.mxu0 0.0
    %998 = vmatpush.msra.mxu0 0.0
    %999 = vmatpush.msra.mxu0 0.0
    %1000 = vmatpush.msra.mxu0 0.0
    %1001 = vmatpush.msra.mxu0 0.0
    %1002 = vmatpush.msra.mxu0 0.0
    %1003 = vmatpush.msra.mxu0 0.0
    %1004 = vmatpush.msra.mxu0 %v971
    %1005 = vmatpush.msra.mxu0 %v970
    %1006 = vmatpush.msra.mxu0 %v969
    %1007 = vmatpush.msra.mxu0 %v968
    %1008 = vmatmul.f32.gmra.mxu0 %v975
    %v1009 = vpop.f32.mrf.mxu0
    %v1010 = vadd.f32 %v973, %v1009
    %1011 = vmatmul.f32.gmra.mxu0 %v978
    %v1012 = vpop.f32.mrf.mxu0
    %v1013 = vadd.f32 %v973, %v1012
    %1014 = vmatmul.f32.gmra.mxu0 %v981
    %v1015 = vpop.f32.mrf.mxu0
    %v1016 = vadd.f32 %v973, %v1015
    %1017 = vmatmul.f32.gmra.mxu0 %v984
    %v1018 = vpop.f32.mrf.mxu0
    %v1019 = vadd.f32 %v973, %v1018
    %1020 = vmatmul.f32.gmra.mxu0 %v987
    %v1021 = vpop.f32.mrf.mxu0
    %v1022 = vadd.f32 %v973, %v1021
    %1023 = vmatmul.f32.gmra.mxu0 %v990
    %v1024 = vpop.f32.mrf.mxu0
    %v1025 = vadd.f32 %v973, %v1024
    %1026 = vdwg.mxu0
    %v1027 = vmul.f32 %v1010, 0.5
    %v1028 = vmul.f32 %v1013, 0.5
    %v1029 = vmul.f32 %v1016, 0.5
    %v1030 = vmul.f32 %v1019, 0.5
    %v1031 = vmul.f32 %v1022, 0.5
    %v1032 = vmul.f32 %v1025, 0.5
    %v1033 = vmul.f32 %v1010, 0.044715
    %v1034 = vmul.f32 %v1013, 0.044715
    %v1035 = vmul.f32 %v1016, 0.044715
    %v1036 = vmul.f32 %v1019, 0.044715
    %v1037 = vmul.f32 %v1022, 0.044715
    %v1038 = vmul.f32 %v1025, 0.044715
    %v1039 = vmul.f32 %v1033, %v1010
    %v1040 = vmul.f32 %v1034, %v1013
    %v1041 = vmul.f32 %v1035, %v1016
    %v1042 = vmul.f32 %v1036, %v1019
    %v1043 = vmul.f32 %v1037, %v1022
    %v1044 = vmul.f32 %v1038, %v1025
    %v1045 = vmul.f32 %v1039, %v1010
    %v1046 = vmul.f32 %v1040, %v1013
    %v1047 = vmul.f32 %v1041, %v1016
    %v1048 = vmul.f32 %v1042, %v1019
    %v1049 = vmul.f32 %v1043, %v1022
    %v1050 = vmul.f32 %v1044, %v1025
    %v1051 = vadd.f32 %v1010, %v1045
    %v1052 = vadd.f32 %v1013, %v1046
    %v1053 = vadd.f32 %v1016, %v1047
    %v1054 = vadd.f32 %v1019, %v1048
    %v1055 = vadd.f32 %v1022, %v1049
    %v1056 = vadd.f32 %v1025, %v1050
    %v1057 = vmul.f32 %v1051, 0.7978846
    %v1058 = vmul.f32 %v1052, 0.7978846
    %v1059 = vmul.f32 %v1053, 0.7978846
    %v1060 = vmul.f32 %v1054, 0.7978846
    %v1061 = vmul.f32 %v1055, 0.7978846
    %v1062 = vmul.f32 %v1056, 0.7978846
    %v1063 = vtanh.pop %v1057
    %v1064 = vtanh.pop %v1058
    %v1065 = vtanh.pop %v1059
    %v1066 = vtanh.pop %v1060
    %v1067 = vtanh.pop %v1061
    %v1068 = vtanh.pop %v1062
    %v1069 = vadd.f32 %v1063, 1.0
    %v1070 = vadd.f32 %v1064, 1.0
    %v1071 = vadd.f32 %v1065, 1.0
    %v1072 = vadd.f32 %v1066, 1.0
    %v1073 = vadd.f32 %v1067, 1.0
    %v1074 = vadd.f32 %v1068, 1.0
    %v1075 = vmul.f32 %v1027, %v1069
    %v1076 = vmul.f32 %v1028, %v1070
    %v1077 = vmul.f32 %v1029, %v1071
    %v1078 = vmul.f32 %v1030, %v1072
    %v1079 = vmul.f32 %v1031, %v1073
    %v1080 = vmul.f32 %v1032, %v1074
    %v1081 = vld [vmem:[#allocation3 + $0x268] sm:$0xff]
    %v1082 = vld [vmem:[#allocation3 + $0x270] sm:$0xff]
    %v1083 = vld [vmem:[#allocation3 + $0x278] sm:$0x1]
    %v1084 = vperm.slane %v1083, 0
    %vm1085 = vcmask 130048
    %v1087 = vsel %vm1085, %v1075, 0
    %v1090 = vsel %vm1085, %v1076, 0
    %v1093 = vsel %vm1085, %v1077, 0
    %v1096 = vsel %vm1085, %v1078, 0
    %v1099 = vsel %vm1085, %v1079, 0
    %v1102 = vsel %vm1085, %v1080, 0
    %1104 = vmatpush.msra.mxu0 0.0
    %1105 = vmatpush.msra.mxu0 0.0
    %1106 = vmatpush.msra.mxu0 0.0
    %1107 = vmatpush.msra.mxu0 0.0
    %1108 = vmatpush.msra.mxu0 0.0
    %1109 = vmatpush.msra.mxu0 0.0
    %1110 = vmatpush.msra.mxu0 0.0
    %1111 = vmatpush.msra.mxu0 0.0
    %1112 = vmatpush.msra.mxu0 0.0
    %1113 = vmatpush.msra.mxu0 0.0
    %1114 = vmatpush.msra.mxu0 0.0
    %1115 = vmatpush.msra.mxu0 0.0
    %1116 = vmatpush.msra.mxu0 0.0
    %1117 = vmatpush.msra.mxu0 0.0
    %1118 = vmatpush.msra.mxu0 %v1082
    %1119 = vmatpush.msra.mxu0 %v1081
    %1120 = vmatmul.f32.gmra.mxu0 %v1087
    %v1121 = vpop.f32.mrf.mxu0
    %v1122 = vadd.f32 %v1084, %v1121
    %1123 = vmatmul.f32.gmra.mxu0 %v1090
    %v1124 = vpop.f32.mrf.mxu0
    %v1125 = vadd.f32 %v1084, %v1124
    %1126 = vmatmul.f32.gmra.mxu0 %v1093
    %v1127 = vpop.f32.mrf.mxu0
    %v1128 = vadd.f32 %v1084, %v1127
    %1129 = vmatmul.f32.gmra.mxu0 %v1096
    %v1130 = vpop.f32.mrf.mxu0
    %v1131 = vadd.f32 %v1084, %v1130
    %1132 = vmatmul.f32.gmra.mxu0 %v1099
    %v1133 = vpop.f32.mrf.mxu0
    %v1134 = vadd.f32 %v1084, %v1133
    %1135 = vmatmul.f32.gmra.mxu0 %v1102
    %v1136 = vpop.f32.mrf.mxu0
    %v1137 = vadd.f32 %v1084, %v1136
    %1138 = vdwg.mxu0
    %v1139 = vadd.f32 %v802, %v1122
    %v1140 = vadd.f32 %v803, %v1125
    %v1141 = vadd.f32 %v804, %v1128
    %v1142 = vadd.f32 %v805, %v1131
    %v1143 = vadd.f32 %v806, %v1134
    %v1144 = vadd.f32 %v807, %v1137
    %v1145 = vld [vmem:[#allocation3 + $0x280] sm:$0x1]
    %v1146 = vld [vmem:[#allocation3 + $0x288] sm:$0x1]
    %v1147 = vsel %vm97, %v1139, 0.0
    %1148 = vadd.xlane.f32.xlu0 %v1147
    %v1149 = vpop.xlane.xlu0 %1148
    %v1150 = vsel %vm97, %v1140, 0.0
    %1151 = vadd.xlane.f32.xlu0 %v1150
    %v1152 = vpop.xlane.xlu0 %1151
    %v1153 = vsel %vm97, %v1141, 0.0
    %1154 = vadd.xlane.f32.xlu0 %v1153
    %v1155 = vpop.xlane.xlu0 %1154
    %v1156 = vsel %vm97, %v1142, 0.0
    %1157 = vadd.xlane.f32.xlu0 %v1156
    %v1158 = vpop.xlane.xlu0 %1157
    %v1159 = vsel %vm97, %v1143, 0.0
    %1160 = vadd.xlane.f32.xlu0 %v1159
    %v1161 = vpop.xlane.xlu0 %1160
    %v1162 = vsel %vm97, %v1144, 0.0
    %1163 = vadd.xlane.f32.xlu0 %v1162
    %v1164 = vpop.xlane.xlu0 %1163
    %v1165 = vmul.f32 %v1149, %v122
    %v1166 = vmul.f32 %v1152, %v122
    %v1167 = vmul.f32 %v1155, %v122
    %v1168 = vmul.f32 %v1158, %v122
    %v1169 = vmul.f32 %v1161, %v122
    %v1170 = vmul.f32 %v1164, %v122
    %v1171 = vmul.f32 %v1139, %v1139
    %v1172 = vmul.f32 %v1140, %v1140
    %v1173 = vmul.f32 %v1141, %v1141
    %v1174 = vmul.f32 %v1142, %v1142
    %v1175 = vmul.f32 %v1143, %v1143
    %v1176 = vmul.f32 %v1144, %v1144
    %v1177 = vsel %vm97, %v1171, 0.0
    %1178 = vadd.xlane.f32.xlu0 %v1177
    %v1179 = vpop.xlane.xlu0 %1178
    %v1180 = vsel %vm97, %v1172, 0.0
    %1181 = vadd.xlane.f32.xlu0 %v1180
    %v1182 = vpop.xlane.xlu0 %1181
    %v1183 = vsel %vm97, %v1173, 0.0
    %1184 = vadd.xlane.f32.xlu0 %v1183
    %v1185 = vpop.xlane.xlu0 %1184
    %v1186 = vsel %vm97, %v1174, 0.0
    %1187 = vadd.xlane.f32.xlu0 %v1186
    %v1188 = vpop.xlane.xlu0 %1187
    %v1189 = vsel %vm97, %v1175, 0.0
    %1190 = vadd.xlane.f32.xlu0 %v1189
    %v1191 = vpop.xlane.xlu0 %1190
    %v1192 = vsel %vm97, %v1176, 0.0
    %1193 = vadd.xlane.f32.xlu0 %v1192
    %v1194 = vpop.xlane.xlu0 %1193
    %v1195 = vmul.f32 %v1179, %v122
    %v1196 = vmul.f32 %v1182, %v122
    %v1197 = vmul.f32 %v1185, %v122
    %v1198 = vmul.f32 %v1188, %v122
    %v1199 = vmul.f32 %v1191, %v122
    %v1200 = vmul.f32 %v1194, %v122
    %v1201 = vmul.f32 %v1165, %v1165
    %v1202 = vmul.f32 %v1166, %v1166
    %v1203 = vmul.f32 %v1167, %v1167
    %v1204 = vmul.f32 %v1168, %v1168
    %v1205 = vmul.f32 %v1169, %v1169
    %v1206 = vmul.f32 %v1170, %v1170
    %v1207 = vsub.f32 %v1195, %v1201
    %v1208 = vsub.f32 %v1196, %v1202
    %v1209 = vsub.f32 %v1197, %v1203
    %v1210 = vsub.f32 %v1198, %v1204
    %v1211 = vsub.f32 %v1199, %v1205
    %v1212 = vsub.f32 %v1200, %v1206
    %v1213 = vsub.f32 %v1139, %v1165
    %v1214 = vsub.f32 %v1140, %v1166
    %v1215 = vsub.f32 %v1141, %v1167
    %v1216 = vsub.f32 %v1142, %v1168
    %v1217 = vsub.f32 %v1143, %v1169
    %v1218 = vsub.f32 %v1144, %v1170
    %v1219 = vadd.f32 %v1207, 1e-05
    %v1220 = vadd.f32 %v1208, 1e-05
    %v1221 = vadd.f32 %v1209, 1e-05
    %v1222 = vadd.f32 %v1210, 1e-05
    %v1223 = vadd.f32 %v1211, 1e-05
    %v1224 = vadd.f32 %v1212, 1e-05
    %v1225 = vrsqrt.pop %v1219
    %v1226 = vmul.f32 %v1225, %v1219
    %v1227 = vmul.f32 %v1226, %v1225
    %v1228 = vmul.f32 0.5, %v1227
    %v1229 = vsub.f32 1.5, %v1228
    %v1230 = vmul.f32 %v1225, %v1229
    %vm1231 = vweird.f32 %v1219
    %vm1232 = vweird.f32 %v1225
    %vm1233 = vmor %vm1231, %vm1232
    %v1234 = vsel %vm1233, %v1225, %v1230
    %v1235 = vrsqrt.pop %v1220
    %v1236 = vmul.f32 %v1235, %v1220
    %v1237 = vmul.f32 %v1236, %v1235
    %v1238 = vmul.f32 0.5, %v1237
    %v1239 = vsub.f32 1.5, %v1238
    %v1240 = vmul.f32 %v1235, %v1239
    %vm1241 = vweird.f32 %v1220
    %vm1242 = vweird.f32 %v1235
    %vm1243 = vmor %vm1241, %vm1242
    %v1244 = vsel %vm1243, %v1235, %v1240
    %v1245 = vrsqrt.pop %v1221
    %v1246 = vmul.f32 %v1245, %v1221
    %v1247 = vmul.f32 %v1246, %v1245
    %v1248 = vmul.f32 0.5, %v1247
    %v1249 = vsub.f32 1.5, %v1248
    %v1250 = vmul.f32 %v1245, %v1249
    %vm1251 = vweird.f32 %v1221
    %vm1252 = vweird.f32 %v1245
    %vm1253 = vmor %vm1251, %vm1252
    %v1254 = vsel %vm1253, %v1245, %v1250
    %v1255 = vrsqrt.pop %v1222
    %v1256 = vmul.f32 %v1255, %v1222
    %v1257 = vmul.f32 %v1256, %v1255
    %v1258 = vmul.f32 0.5, %v1257
    %v1259 = vsub.f32 1.5, %v1258
    %v1260 = vmul.f32 %v1255, %v1259
    %vm1261 = vweird.f32 %v1222
    %vm1262 = vweird.f32 %v1255
    %vm1263 = vmor %vm1261, %vm1262
    %v1264 = vsel %vm1263, %v1255, %v1260
    %v1265 = vrsqrt.pop %v1223
    %v1266 = vmul.f32 %v1265, %v1223
    %v1267 = vmul.f32 %v1266, %v1265
    %v1268 = vmul.f32 0.5, %v1267
    %v1269 = vsub.f32 1.5, %v1268
    %v1270 = vmul.f32 %v1265, %v1269
    %vm1271 = vweird.f32 %v1223
    %vm1272 = vweird.f32 %v1265
    %vm1273 = vmor %vm1271, %vm1272
    %v1274 = vsel %vm1273, %v1265, %v1270
    %v1275 = vrsqrt.pop %v1224
    %v1276 = vmul.f32 %v1275, %v1224
    %v1277 = vmul.f32 %v1276, %v1275
    %v1278 = vmul.f32 0.5, %v1277
    %v1279 = vsub.f32 1.5, %v1278
    %v1280 = vmul.f32 %v1275, %v1279
    %vm1281 = vweird.f32 %v1224
    %vm1282 = vweird.f32 %v1275
    %vm1283 = vmor %vm1281, %vm1282
    %v1284 = vsel %vm1283, %v1275, %v1280
    %v1285 = vmul.f32 %v1213, %v1234
    %v1286 = vmul.f32 %v1214, %v1244
    %v1287 = vmul.f32 %v1215, %v1254
    %v1288 = vmul.f32 %v1216, %v1264
    %v1289 = vmul.f32 %v1217, %v1274
    %v1290 = vmul.f32 %v1218, %v1284
    %v1291 = vperm.slane %v1145, 0
    %v1292 = vmul.f32 %v1285, %v1291
    %v1293 = vmul.f32 %v1286, %v1291
    %v1294 = vmul.f32 %v1287, %v1291
    %v1295 = vmul.f32 %v1288, %v1291
    %v1296 = vmul.f32 %v1289, %v1291
    %v1297 = vmul.f32 %v1290, %v1291
    %v1298 = vperm.slane %v1146, 0
    %v1299 = vadd.f32 %v1292, %v1298
    %v1300 = vadd.f32 %v1293, %v1298
    %v1301 = vadd.f32 %v1294, %v1298
    %v1302 = vadd.f32 %v1295, %v1298
    %v1303 = vadd.f32 %v1296, %v1298
    %v1304 = vadd.f32 %v1297, %v1298
    %v1305 = vld [vmem:[#allocation3 + $0x290] sm:$0xff]
    %v1306 = vld [vmem:[#allocation3 + $0x298] sm:$0xff]
    %v1307 = vld [vmem:[#allocation3 + $0x2a0] sm:$0xff]
    %v1308 = vld [vmem:[#allocation3 + $0x2a8] sm:$0xff]
    %v1309 = vld [vmem:[#allocation3 + $0x2b0] sm:$0xff]
    %v1310 = vld [vmem:[#allocation3 + $0x2b8] sm:$0xff]
    %v1311 = vld [vmem:[#allocation3 + $0x2c0] sm:$0xff]
    %v1312 = vld [vmem:[#allocation3 + $0x2c8] sm:$0xff]
    %v1313 = vld [vmem:[#allocation3 + $0x2d0] sm:$0xff]
    %v1314 = vld [vmem:[#allocation3 + $0x2d8] sm:$0xff]
    %v1315 = vld [vmem:[#allocation3 + $0x2e0] sm:$0xff]
    %v1316 = vld [vmem:[#allocation3 + $0x2e8] sm:$0xff]
    %v1317 = vld [vmem:[#allocation3 + $0x2f0] sm:$0xff]
    %v1318 = vld [vmem:[#allocation3 + $0x2f8] sm:$0xff]
    %v1319 = vld [vmem:[#allocation3 + $0x300] sm:$0xff]
    %v1320 = vld [vmem:[#allocation3 + $0x308] sm:$0xff]
    %v1321 = vld [vmem:[#allocation3 + $0x310] sm:$0xff]
    %v1322 = vld [vmem:[#allocation3 + $0x318] sm:$0xff]
    %v1323 = vld [vmem:[#allocation3 + $0x320] sm:$0xff]
    %v1324 = vld [vmem:[#allocation3 + $0x328] sm:$0xff]
    %v1325 = vld [vmem:[#allocation3 + $0x330] sm:$0xff]
    %v1326 = vld [vmem:[#allocation3 + $0x338] sm:$0xff]
    %v1327 = vld [vmem:[#allocation3 + $0x340] sm:$0xff]
    %v1328 = vld [vmem:[#allocation3 + $0x348] sm:$0xff]
    %v1329 = vld [vmem:[#allocation3 + $0x350] sm:$0xff]
    %v1330 = vld [vmem:[#allocation3 + $0x358] sm:$0xff]
    %v1331 = vld [vmem:[#allocation3 + $0x360] sm:$0xff]
    %v1332 = vld [vmem:[#allocation3 + $0x368] sm:$0xff]
    %v1333 = vld [vmem:[#allocation3 + $0x370] sm:$0xff]
    %v1334 = vld [vmem:[#allocation3 + $0x378] sm:$0xff]
    %v1335 = vld [vmem:[#allocation3 + $0x380] sm:$0xff]
    %v1336 = vld [vmem:[#allocation3 + $0x388] sm:$0xff]
    %v1337 = vld [vmem:[#allocation3 + $0x390] sm:$0xff]
    %v1338 = vld [vmem:[#allocation3 + $0x398] sm:$0xff]
    %v1339 = vld [vmem:[#allocation3 + $0x3a0] sm:$0xff]
    %v1340 = vld [vmem:[#allocation3 + $0x3a8] sm:$0xff]
    %v1341 = vld [vmem:[#allocation3 + $0x3b0] sm:$0xff]
    %v1342 = vld [vmem:[#allocation3 + $0x3b8] sm:$0xff]
    %v1343 = vld [vmem:[#allocation3 + $0x3c0] sm:$0xff]
    %v1344 = vld [vmem:[#allocation3 + $0x3c8] sm:$0xff]
    %v1345 = vld [vmem:[#allocation3 + $0x3d0] sm:$0xff]
    %v1346 = vld [vmem:[#allocation3 + $0x3d8] sm:$0xff]
    %v1347 = vld [vmem:[#allocation3 + $0x3e0] sm:$0xff]
    %v1348 = vld [vmem:[#allocation3 + $0x3e8] sm:$0xff]
    %v1349 = vld [vmem:[#allocation3 + $0x3f0] sm:$0xff]
    %v1350 = vld [vmem:[#allocation3 + $0x3f8] sm:$0xff]
    %v1351 = vld [vmem:[#allocation3 + $0x400] sm:$0xff]
    %v1352 = vld [vmem:[#allocation3 + $0x408] sm:$0xff]
    %v1354 = vsel %vm311, %v1305, 0
    %v1357 = vsel %vm311, %v1306, 0
    %v1360 = vsel %vm311, %v1307, 0
    %v1363 = vsel %vm311, %v1308, 0
    %v1366 = vsel %vm311, %v1309, 0
    %v1369 = vsel %vm311, %v1310, 0
    %v1372 = vsel %vm311, %v1311, 0
    %v1375 = vsel %vm311, %v1312, 0
    %v1378 = vsel %vm311, %v1313, 0
    %v1381 = vsel %vm311, %v1314, 0
    %v1384 = vsel %vm311, %v1315, 0
    %v1387 = vsel %vm311, %v1316, 0
    %v1390 = vsel %vm311, %v1317, 0
    %v1393 = vsel %vm311, %v1318, 0
    %v1396 = vsel %vm311, %v1319, 0
    %v1399 = vsel %vm311, %v1320, 0
    %v1402 = vsel %vm311, %v1321, 0
    %v1405 = vsel %vm311, %v1322, 0
    %v1408 = vsel %vm311, %v1323, 0
    %v1411 = vsel %vm311, %v1324, 0
    %v1414 = vsel %vm311, %v1325, 0
    %v1417 = vsel %vm311, %v1326, 0
    %v1420 = vsel %vm311, %v1327, 0
    %v1423 = vsel %vm311, %v1328, 0
    %1425 = vmatpush.msra.mxu0 0.0
    %1426 = vmatpush.msra.mxu0 0.0
    %1427 = vmatpush.msra.mxu0 0.0
    %1428 = vmatpush.msra.mxu0 0.0
    %1429 = vmatpush.msra.mxu0 0.0
    %1430 = vmatpush.msra.mxu0 0.0
    %1431 = vmatpush.msra.mxu0 0.0
    %1432 = vmatpush.msra.mxu0 0.0
    %1433 = vmatpush.msra.mxu0 0.0
    %1434 = vmatpush.msra.mxu0 0.0
    %1435 = vmatpush.msra.mxu0 %v1304
    %1436 = vmatpush.msra.mxu0 %v1303
    %1437 = vmatpush.msra.mxu0 %v1302
    %1438 = vmatpush.msra.mxu0 %v1301
    %1439 = vmatpush.msra.mxu0 %v1300
    %1440 = vmatpush.msra.mxu0 %v1299
    %1441 = vmatmul.f32.gmra.mxu0 %v1354
    %v1442 = vpop.f32.mrf.mxu0
    %v1443 = vadd.f32 %v1329, %v1442
    %1444 = vmatmul.f32.gmra.mxu0 %v1357
    %v1445 = vpop.f32.mrf.mxu0
    %v1446 = vadd.f32 %v1330, %v1445
    %1447 = vmatmul.f32.gmra.mxu0 %v1360
    %v1448 = vpop.f32.mrf.mxu0
    %v1449 = vadd.f32 %v1331, %v1448
    %1450 = vmatmul.f32.gmra.mxu0 %v1363
    %v1451 = vpop.f32.mrf.mxu0
    %v1452 = vadd.f32 %v1332, %v1451
    %1453 = vmatmul.f32.gmra.mxu0 %v1366
    %v1454 = vpop.f32.mrf.mxu0
    %v1455 = vadd.f32 %v1333, %v1454
    %1456 = vmatmul.f32.gmra.mxu0 %v1369
    %v1457 = vpop.f32.mrf.mxu0
    %v1458 = vadd.f32 %v1334, %v1457
    %1459 = vmatmul.f32.gmra.mxu0 %v1372
    %v1460 = vpop.f32.mrf.mxu0
    %v1461 = vadd.f32 %v1335, %v1460
    %1462 = vmatmul.f32.gmra.mxu0 %v1375
    %v1463 = vpop.f32.mrf.mxu0
    %v1464 = vadd.f32 %v1336, %v1463
    %1465 = vmatmul.f32.gmra.mxu0 %v1378
    %v1466 = vpop.f32.mrf.mxu0
    %v1467 = vadd.f32 %v1337, %v1466
    %1468 = vmatmul.f32.gmra.mxu0 %v1381
    %v1469 = vpop.f32.mrf.mxu0
    %v1470 = vadd.f32 %v1338, %v1469
    %1471 = vmatmul.f32.gmra.mxu0 %v1384
    %v1472 = vpop.f32.mrf.mxu0
    %v1473 = vadd.f32 %v1339, %v1472
    %1474 = vmatmul.f32.gmra.mxu0 %v1387
    %v1475 = vpop.f32.mrf.mxu0
    %v1476 = vadd.f32 %v1340, %v1475
    %1477 = vmatmul.f32.gmra.mxu0 %v1390
    %v1478 = vpop.f32.mrf.mxu0
    %v1479 = vadd.f32 %v1341, %v1478
    %1480 = vmatmul.f32.gmra.mxu0 %v1393
    %v1481 = vpop.f32.mrf.mxu0
    %v1482 = vadd.f32 %v1342, %v1481
    %1483 = vmatmul.f32.gmra.mxu0 %v1396
    %v1484 = vpop.f32.mrf.mxu0
    %v1485 = vadd.f32 %v1343, %v1484
    %1486 = vmatmul.f32.gmra.mxu0 %v1399
    %v1487 = vpop.f32.mrf.mxu0
    %v1488 = vadd.f32 %v1344, %v1487
    %1489 = vmatmul.f32.gmra.mxu0 %v1402
    %v1490 = vpop.f32.mrf.mxu0
    %v1491 = vadd.f32 %v1345, %v1490
    %1492 = vmatmul.f32.gmra.mxu0 %v1405
    %v1493 = vpop.f32.mrf.mxu0
    %v1494 = vadd.f32 %v1346, %v1493
    %1495 = vmatmul.f32.gmra.mxu0 %v1408
    %v1496 = vpop.f32.mrf.mxu0
    %v1497 = vadd.f32 %v1347, %v1496
    %1498 = vmatmul.f32.gmra.mxu0 %v1411
    %v1499 = vpop.f32.mrf.mxu0
    %v1500 = vadd.f32 %v1348, %v1499
    %1501 = vmatmul.f32.gmra.mxu0 %v1414
    %v1502 = vpop.f32.mrf.mxu0
    %v1503 = vadd.f32 %v1349, %v1502
    %1504 = vmatmul.f32.gmra.mxu0 %v1417
    %v1505 = vpop.f32.mrf.mxu0
    %v1506 = vadd.f32 %v1350, %v1505
    %1507 = vmatmul.f32.gmra.mxu0 %v1420
    %v1508 = vpop.f32.mrf.mxu0
    %v1509 = vadd.f32 %v1351, %v1508
    %1510 = vmatmul.f32.gmra.mxu0 %v1423
    %v1511 = vpop.f32.mrf.mxu0
    %v1512 = vadd.f32 %v1352, %v1511
    %1513 = vdwg.mxu0
    %v1514 = vmul.f32 %v1443, 0.5
    %v1515 = vmul.f32 %v1446, 0.5
    %v1516 = vmul.f32 %v1449, 0.5
    %v1517 = vmul.f32 %v1452, 0.5
    %v1518 = vmul.f32 %v1455, 0.5
    %v1519 = vmul.f32 %v1458, 0.5
    %v1520 = vmul.f32 %v1461, 0.5
    %v1521 = vmul.f32 %v1464, 0.5
    %v1522 = vmul.f32 %v1467, 0.5
    %v1523 = vmul.f32 %v1470, 0.5
    %v1524 = vmul.f32 %v1473, 0.5
    %v1525 = vmul.f32 %v1476, 0.5
    %v1526 = vmul.f32 %v1479, 0.5
    %v1527 = vmul.f32 %v1482, 0.5
    %v1528 = vmul.f32 %v1485, 0.5
    %v1529 = vmul.f32 %v1488, 0.5
    %v1530 = vmul.f32 %v1491, 0.5
    %v1531 = vmul.f32 %v1494, 0.5
    %v1532 = vmul.f32 %v1497, 0.5
    %v1533 = vmul.f32 %v1500, 0.5
    %v1534 = vmul.f32 %v1503, 0.5
    %v1535 = vmul.f32 %v1506, 0.5
    %v1536 = vmul.f32 %v1509, 0.5
    %v1537 = vmul.f32 %v1512, 0.5
    %v1538 = vmul.f32 %v1443, 0.044715
    %v1539 = vmul.f32 %v1446, 0.044715
    %v1540 = vmul.f32 %v1449, 0.044715
    %v1541 = vmul.f32 %v1452, 0.044715
    %v1542 = vmul.f32 %v1455, 0.044715
    %v1543 = vmul.f32 %v1458, 0.044715
    %v1544 = vmul.f32 %v1461, 0.044715
    %v1545 = vmul.f32 %v1464, 0.044715
    %v1546 = vmul.f32 %v1467, 0.044715
    %v1547 = vmul.f32 %v1470, 0.044715
    %v1548 = vmul.f32 %v1473, 0.044715
    %v1549 = vmul.f32 %v1476, 0.044715
    %v1550 = vmul.f32 %v1479, 0.044715
    %v1551 = vmul.f32 %v1482, 0.044715
    %v1552 = vmul.f32 %v1485, 0.044715
    %v1553 = vmul.f32 %v1488, 0.044715
    %v1554 = vmul.f32 %v1491, 0.044715
    %v1555 = vmul.f32 %v1494, 0.044715
    %v1556 = vmul.f32 %v1497, 0.044715
    %v1557 = vmul.f32 %v1500, 0.044715
    %v1558 = vmul.f32 %v1503, 0.044715
    %v1559 = vmul.f32 %v1506, 0.044715
    %v1560 = vmul.f32 %v1509, 0.044715
    %v1561 = vmul.f32 %v1512, 0.044715
    %v1562 = vmul.f32 %v1538, %v1443
    %v1563 = vmul.f32 %v1539, %v1446
    %v1564 = vmul.f32 %v1540, %v1449
    %v1565 = vmul.f32 %v1541, %v1452
    %v1566 = vmul.f32 %v1542, %v1455
    %v1567 = vmul.f32 %v1543, %v1458
    %v1568 = vmul.f32 %v1544, %v1461
    %v1569 = vmul.f32 %v1545, %v1464
    %v1570 = vmul.f32 %v1546, %v1467
    %v1571 = vmul.f32 %v1547, %v1470
    %v1572 = vmul.f32 %v1548, %v1473
    %v1573 = vmul.f32 %v1549, %v1476
    %v1574 = vmul.f32 %v1550, %v1479
    %v1575 = vmul.f32 %v1551, %v1482
    %v1576 = vmul.f32 %v1552, %v1485
    %v1577 = vmul.f32 %v1553, %v1488
    %v1578 = vmul.f32 %v1554, %v1491
    %v1579 = vmul.f32 %v1555, %v1494
    %v1580 = vmul.f32 %v1556, %v1497
    %v1581 = vmul.f32 %v1557, %v1500
    %v1582 = vmul.f32 %v1558, %v1503
    %v1583 = vmul.f32 %v1559, %v1506
    %v1584 = vmul.f32 %v1560, %v1509
    %v1585 = vmul.f32 %v1561, %v1512
    %v1586 = vmul.f32 %v1562, %v1443
    %v1587 = vmul.f32 %v1563, %v1446
    %v1588 = vmul.f32 %v1564, %v1449
    %v1589 = vmul.f32 %v1565, %v1452
    %v1590 = vmul.f32 %v1566, %v1455
    %v1591 = vmul.f32 %v1567, %v1458
    %v1592 = vmul.f32 %v1568, %v1461
    %v1593 = vmul.f32 %v1569, %v1464
    %v1594 = vmul.f32 %v1570, %v1467
    %v1595 = vmul.f32 %v1571, %v1470
    %v1596 = vmul.f32 %v1572, %v1473
    %v1597 = vmul.f32 %v1573, %v1476
    %v1598 = vmul.f32 %v1574, %v1479
    %v1599 = vmul.f32 %v1575, %v1482
    %v1600 = vmul.f32 %v1576, %v1485
    %v1601 = vmul.f32 %v1577, %v1488
    %v1602 = vmul.f32 %v1578, %v1491
    %v1603 = vmul.f32 %v1579, %v1494
    %v1604 = vmul.f32 %v1580, %v1497
    %v1605 = vmul.f32 %v1581, %v1500
    %v1606 = vmul.f32 %v1582, %v1503
    %v1607 = vmul.f32 %v1583, %v1506
    %v1608 = vmul.f32 %v1584, %v1509
    %v1609 = vmul.f32 %v1585, %v1512
    %v1610 = vadd.f32 %v1443, %v1586
    %v1611 = vadd.f32 %v1446, %v1587
    %v1612 = vadd.f32 %v1449, %v1588
    %v1613 = vadd.f32 %v1452, %v1589
    %v1614 = vadd.f32 %v1455, %v1590
    %v1615 = vadd.f32 %v1458, %v1591
    %v1616 = vadd.f32 %v1461, %v1592
    %v1617 = vadd.f32 %v1464, %v1593
    %v1618 = vadd.f32 %v1467, %v1594
    %v1619 = vadd.f32 %v1470, %v1595
    %v1620 = vadd.f32 %v1473, %v1596
    %v1621 = vadd.f32 %v1476, %v1597
    %v1622 = vadd.f32 %v1479, %v1598
    %v1623 = vadd.f32 %v1482, %v1599
    %v1624 = vadd.f32 %v1485, %v1600
    %v1625 = vadd.f32 %v1488, %v1601
    %v1626 = vadd.f32 %v1491, %v1602
    %v1627 = vadd.f32 %v1494, %v1603
    %v1628 = vadd.f32 %v1497, %v1604
    %v1629 = vadd.f32 %v1500, %v1605
    %v1630 = vadd.f32 %v1503, %v1606
    %v1631 = vadd.f32 %v1506, %v1607
    %v1632 = vadd.f32 %v1509, %v1608
    %v1633 = vadd.f32 %v1512, %v1609
    %v1634 = vmul.f32 %v1610, 0.7978846
    %v1635 = vmul.f32 %v1611, 0.7978846
    %v1636 = vmul.f32 %v1612, 0.7978846
    %v1637 = vmul.f32 %v1613, 0.7978846
    %v1638 = vmul.f32 %v1614, 0.7978846
    %v1639 = vmul.f32 %v1615, 0.7978846
    %v1640 = vmul.f32 %v1616, 0.7978846
    %v1641 = vmul.f32 %v1617, 0.7978846
    %v1642 = vmul.f32 %v1618, 0.7978846
    %v1643 = vmul.f32 %v1619, 0.7978846
    %v1644 = vmul.f32 %v1620, 0.7978846
    %v1645 = vmul.f32 %v1621, 0.7978846
    %v1646 = vmul.f32 %v1622, 0.7978846
    %v1647 = vmul.f32 %v1623, 0.7978846
    %v1648 = vmul.f32 %v1624, 0.7978846
    %v1649 = vmul.f32 %v1625, 0.7978846
    %v1650 = vmul.f32 %v1626, 0.7978846
    %v1651 = vmul.f32 %v1627, 0.7978846
    %v1652 = vmul.f32 %v1628, 0.7978846
    %v1653 = vmul.f32 %v1629, 0.7978846
    %v1654 = vmul.f32 %v1630, 0.7978846
    %v1655 = vmul.f32 %v1631, 0.7978846
    %v1656 = vmul.f32 %v1632, 0.7978846
    %v1657 = vmul.f32 %v1633, 0.7978846
    %v1658 = vtanh.pop %v1634
    %v1659 = vtanh.pop %v1635
    %v1660 = vtanh.pop %v1636
    %v1661 = vtanh.pop %v1637
    %v1662 = vtanh.pop %v1638
    %v1663 = vtanh.pop %v1639
    %v1664 = vtanh.pop %v1640
    %v1665 = vtanh.pop %v1641
    %v1666 = vtanh.pop %v1642
    %v1667 = vtanh.pop %v1643
    %v1668 = vtanh.pop %v1644
    %v1669 = vtanh.pop %v1645
    %v1670 = vtanh.pop %v1646
    %v1671 = vtanh.pop %v1647
    %v1672 = vtanh.pop %v1648
    %v1673 = vtanh.pop %v1649
    %v1674 = vtanh.pop %v1650
    %v1675 = vtanh.pop %v1651
    %v1676 = vtanh.pop %v1652
    %v1677 = vtanh.pop %v1653
    %v1678 = vtanh.pop %v1654
    %v1679 = vtanh.pop %v1655
    %v1680 = vtanh.pop %v1656
    %v1681 = vtanh.pop %v1657
    %v1682 = vadd.f32 %v1658, 1.0
    %v1683 = vadd.f32 %v1659, 1.0
    %v1684 = vadd.f32 %v1660, 1.0
    %v1685 = vadd.f32 %v1661, 1.0
    %v1686 = vadd.f32 %v1662, 1.0
    %v1687 = vadd.f32 %v1663, 1.0
    %v1688 = vadd.f32 %v1664, 1.0
    %v1689 = vadd.f32 %v1665, 1.0
    %v1690 = vadd.f32 %v1666, 1.0
    %v1691 = vadd.f32 %v1667, 1.0
    %v1692 = vadd.f32 %v1668, 1.0
    %v1693 = vadd.f32 %v1669, 1.0
    %v1694 = vadd.f32 %v1670, 1.0
    %v1695 = vadd.f32 %v1671, 1.0
    %v1696 = vadd.f32 %v1672, 1.0
    %v1697 = vadd.f32 %v1673, 1.0
    %v1698 = vadd.f32 %v1674, 1.0
    %v1699 = vadd.f32 %v1675, 1.0
    %v1700 = vadd.f32 %v1676, 1.0
    %v1701 = vadd.f32 %v1677, 1.0
    %v1702 = vadd.f32 %v1678, 1.0
    %v1703 = vadd.f32 %v1679, 1.0
    %v1704 = vadd.f32 %v1680, 1.0
    %v1705 = vadd.f32 %v1681, 1.0
    %v1706 = vmul.f32 %v1514, %v1682
    %v1707 = vmul.f32 %v1515, %v1683
    %v1708 = vmul.f32 %v1516, %v1684
    %v1709 = vmul.f32 %v1517, %v1685
    %v1710 = vmul.f32 %v1518, %v1686
    %v1711 = vmul.f32 %v1519, %v1687
    %v1712 = vmul.f32 %v1520, %v1688
    %v1713 = vmul.f32 %v1521, %v1689
    %v1714 = vmul.f32 %v1522, %v1690
    %v1715 = vmul.f32 %v1523, %v1691
    %v1716 = vmul.f32 %v1524, %v1692
    %v1717 = vmul.f32 %v1525, %v1693
    %v1718 = vmul.f32 %v1526, %v1694
    %v1719 = vmul.f32 %v1527, %v1695
    %v1720 = vmul.f32 %v1528, %v1696
    %v1721 = vmul.f32 %v1529, %v1697
    %v1722 = vmul.f32 %v1530, %v1698
    %v1723 = vmul.f32 %v1531, %v1699
    %v1724 = vmul.f32 %v1532, %v1700
    %v1725 = vmul.f32 %v1533, %v1701
    %v1726 = vmul.f32 %v1534, %v1702
    %v1727 = vmul.f32 %v1535, %v1703
    %v1728 = vmul.f32 %v1536, %v1704
    %v1729 = vmul.f32 %v1537, %v1705
    %v1730 = vld [vmem:[#allocation3 + $0x410] sm:$0xff]
    %v1731 = vld [vmem:[#allocation3 + $0x418] sm:$0xff]
    %v1732 = vld [vmem:[#allocation3 + $0x420] sm:$0xff]
    %v1733 = vld [vmem:[#allocation3 + $0x428] sm:$0xff]
    %v1734 = vld [vmem:[#allocation3 + $0x430] sm:$0xff]
    %v1735 = vld [vmem:[#allocation3 + $0x438] sm:$0xff]
    %v1736 = vld [vmem:[#allocation3 + $0x440] sm:$0xff]
    %v1737 = vld [vmem:[#allocation3 + $0x448] sm:$0xff]
    %v1738 = vld [vmem:[#allocation3 + $0x450] sm:$0xff]
    %v1739 = vld [vmem:[#allocation3 + $0x458] sm:$0xff]
    %v1740 = vld [vmem:[#allocation3 + $0x460] sm:$0xff]
    %v1741 = vld [vmem:[#allocation3 + $0x468] sm:$0xff]
    %v1743 = vsel %vm701, %v1736, 0
    %v1746 = vsel %vm701, %v1737, 0
    %v1749 = vsel %vm701, %v1738, 0
    %v1752 = vsel %vm701, %v1739, 0
    %v1755 = vsel %vm701, %v1740, 0
    %v1758 = vsel %vm701, %v1741, 0
    %1760 = vmatpush.msra.mxu0 0.0
    %1761 = vmatpush.msra.mxu0 0.0
    %1762 = vmatpush.msra.mxu0 0.0
    %1763 = vmatpush.msra.mxu0 0.0
    %1764 = vmatpush.msra.mxu0 0.0
    %1765 = vmatpush.msra.mxu0 0.0
    %1766 = vmatpush.msra.mxu0 0.0
    %1767 = vmatpush.msra.mxu0 0.0
    %1768 = vmatpush.msra.mxu0 %v1729
    %1769 = vmatpush.msra.mxu0 %v1728
    %1770 = vmatpush.msra.mxu0 %v1727
    %1771 = vmatpush.msra.mxu0 %v1726
    %1772 = vmatpush.msra.mxu0 %v1725
    %1773 = vmatpush.msra.mxu0 %v1724
    %1774 = vmatpush.msra.mxu0 %v1723
    %1775 = vmatpush.msra.mxu0 %v1722
    %1776 = vmatmul.f32.gmra.mxu0 %v1743
    %v1777 = vpop.f32.mrf.mxu0
    %v1778 = vadd.f32 0.0, %v1777
    %1779 = vmatmul.f32.gmra.mxu0 %v1746
    %v1780 = vpop.f32.mrf.mxu0
    %v1781 = vadd.f32 0.0, %v1780
    %1782 = vmatmul.f32.gmra.mxu0 %v1749
    %v1783 = vpop.f32.mrf.mxu0
    %v1784 = vadd.f32 0.0, %v1783
    %1785 = vmatmul.f32.gmra.mxu0 %v1752
    %v1786 = vpop.f32.mrf.mxu0
    %v1787 = vadd.f32 0.0, %v1786
    %1788 = vmatmul.f32.gmra.mxu0 %v1755
    %v1789 = vpop.f32.mrf.mxu0
    %v1790 = vadd.f32 0.0, %v1789
    %1791 = vmatmul.f32.gmra.mxu0 %v1758
    %v1792 = vpop.f32.mrf.mxu0
    %v1793 = vadd.f32 0.0, %v1792
    %1794 = vdwg.mxu0
    %1795 = vmatpush.msra.mxu0 %v1721
    %1796 = vmatpush.msra.mxu0 %v1720
    %1797 = vmatpush.msra.mxu0 %v1719
    %1798 = vmatpush.msra.mxu0 %v1718
    %1799 = vmatpush.msra.mxu0 %v1717
    %1800 = vmatpush.msra.mxu0 %v1716
    %1801 = vmatpush.msra.mxu0 %v1715
    %1802 = vmatpush.msra.mxu0 %v1714
    %1803 = vmatpush.msra.mxu0 %v1713
    %1804 = vmatpush.msra.mxu0 %v1712
    %1805 = vmatpush.msra.mxu0 %v1711
    %1806 = vmatpush.msra.mxu0 %v1710
    %1807 = vmatpush.msra.mxu0 %v1709
    %1808 = vmatpush.msra.mxu0 %v1708
    %1809 = vmatpush.msra.mxu0 %v1707
    %1810 = vmatpush.msra.mxu0 %v1706
    %1811 = vmatmul.f32.gmra.mxu0 %v1730
    %v1812 = vpop.f32.mrf.mxu0
    %v1813 = vadd.f32 %v1778, %v1812
    %1814 = vmatmul.f32.gmra.mxu0 %v1731
    %v1815 = vpop.f32.mrf.mxu0
    %v1816 = vadd.f32 %v1781, %v1815
    %1817 = vmatmul.f32.gmra.mxu0 %v1732
    %v1818 = vpop.f32.mrf.mxu0
    %v1819 = vadd.f32 %v1784, %v1818
    %1820 = vmatmul.f32.gmra.mxu0 %v1733
    %v1821 = vpop.f32.mrf.mxu0
    %v1822 = vadd.f32 %v1787, %v1821
    %1823 = vmatmul.f32.gmra.mxu0 %v1734
    %v1824 = vpop.f32.mrf.mxu0
    %v1825 = vadd.f32 %v1790, %v1824
    %1826 = vmatmul.f32.gmra.mxu0 %v1735
    %v1827 = vpop.f32.mrf.mxu0
    %v1828 = vadd.f32 %v1793, %v1827
    %1829 = vdwg.mxu0
    %v1830 = vld [vmem:[#allocation3 + $0x470] sm:$0xff]
    %v1831 = vld [vmem:[#allocation3 + $0x478] sm:$0xff]
    %v1832 = vld [vmem:[#allocation3 + $0x480] sm:$0xff]
    %v1833 = vld [vmem:[#allocation3 + $0x488] sm:$0xff]
    %v1834 = vld [vmem:[#allocation3 + $0x490] sm:$0xff]
    %v1835 = vld [vmem:[#allocation3 + $0x498] sm:$0xff]
    %v1836 = vadd.f32 %v1813, %v1830
    %v1837 = vadd.f32 %v1816, %v1831
    %v1838 = vadd.f32 %v1819, %v1832
    %v1839 = vadd.f32 %v1822, %v1833
    %v1840 = vadd.f32 %v1825, %v1834
    %v1841 = vadd.f32 %v1828, %v1835
    %v1842 = vadd.f32 %v1139, %v1836
    %v1843 = vadd.f32 %v1140, %v1837
    %v1844 = vadd.f32 %v1141, %v1838
    %v1845 = vadd.f32 %v1142, %v1839
    %v1846 = vadd.f32 %v1143, %v1840
    %v1847 = vadd.f32 %v1144, %v1841
    %v1848 = vld [vmem:[#allocation3 + $0x4a0] sm:$0x1]
    %v1849 = vld [vmem:[#allocation3 + $0x4a8] sm:$0x1]
    %v1850 = vsel %vm97, %v1842, 0.0
    %1851 = vadd.xlane.f32.xlu0 %v1850
    %v1852 = vpop.xlane.xlu0 %1851
    %v1853 = vsel %vm97, %v1843, 0.0
    %1854 = vadd.xlane.f32.xlu0 %v1853
    %v1855 = vpop.xlane.xlu0 %1854
    %v1856 = vsel %vm97, %v1844, 0.0
    %1857 = vadd.xlane.f32.xlu0 %v1856
    %v1858 = vpop.xlane.xlu0 %1857
    %v1859 = vsel %vm97, %v1845, 0.0
    %1860 = vadd.xlane.f32.xlu0 %v1859
    %v1861 = vpop.xlane.xlu0 %1860
    %v1862 = vsel %vm97, %v1846, 0.0
    %1863 = vadd.xlane.f32.xlu0 %v1862
    %v1864 = vpop.xlane.xlu0 %1863
    %v1865 = vsel %vm97, %v1847, 0.0
    %1866 = vadd.xlane.f32.xlu0 %v1865
    %v1867 = vpop.xlane.xlu0 %1866
    %v1868 = vmul.f32 %v1852, %v122
    %v1869 = vmul.f32 %v1855, %v122
    %v1870 = vmul.f32 %v1858, %v122
    %v1871 = vmul.f32 %v1861, %v122
    %v1872 = vmul.f32 %v1864, %v122
    %v1873 = vmul.f32 %v1867, %v122
    %v1874 = vmul.f32 %v1842, %v1842
    %v1875 = vmul.f32 %v1843, %v1843
    %v1876 = vmul.f32 %v1844, %v1844
    %v1877 = vmul.f32 %v1845, %v1845
    %v1878 = vmul.f32 %v1846, %v1846
    %v1879 = vmul.f32 %v1847, %v1847
    %v1880 = vsel %vm97, %v1874, 0.0
    %1881 = vadd.xlane.f32.xlu0 %v1880
    %v1882 = vpop.xlane.xlu0 %1881
    %v1883 = vsel %vm97, %v1875, 0.0
    %1884 = vadd.xlane.f32.xlu0 %v1883
    %v1885 = vpop.xlane.xlu0 %1884
    %v1886 = vsel %vm97, %v1876, 0.0
    %1887 = vadd.xlane.f32.xlu0 %v1886
    %v1888 = vpop.xlane.xlu0 %1887
    %v1889 = vsel %vm97, %v1877, 0.0
    %1890 = vadd.xlane.f32.xlu0 %v1889
    %v1891 = vpop.xlane.xlu0 %1890
    %v1892 = vsel %vm97, %v1878, 0.0
    %1893 = vadd.xlane.f32.xlu0 %v1892
    %v1894 = vpop.xlane.xlu0 %1893
    %v1895 = vsel %vm97, %v1879, 0.0
    %1896 = vadd.xlane.f32.xlu0 %v1895
    %v1897 = vpop.xlane.xlu0 %1896
    %v1898 = vmul.f32 %v1882, %v122
    %v1899 = vmul.f32 %v1885, %v122
    %v1900 = vmul.f32 %v1888, %v122
    %v1901 = vmul.f32 %v1891, %v122
    %v1902 = vmul.f32 %v1894, %v122
    %v1903 = vmul.f32 %v1897, %v122
    %v1904 = vmul.f32 %v1868, %v1868
    %v1905 = vmul.f32 %v1869, %v1869
    %v1906 = vmul.f32 %v1870, %v1870
    %v1907 = vmul.f32 %v1871, %v1871
    %v1908 = vmul.f32 %v1872, %v1872
    %v1909 = vmul.f32 %v1873, %v1873
    %v1910 = vsub.f32 %v1898, %v1904
    %v1911 = vsub.f32 %v1899, %v1905
    %v1912 = vsub.f32 %v1900, %v1906
    %v1913 = vsub.f32 %v1901, %v1907
    %v1914 = vsub.f32 %v1902, %v1908
    %v1915 = vsub.f32 %v1903, %v1909
    %v1916 = vsub.f32 %v1842, %v1868
    %v1917 = vsub.f32 %v1843, %v1869
    %v1918 = vsub.f32 %v1844, %v1870
    %v1919 = vsub.f32 %v1845, %v1871
    %v1920 = vsub.f32 %v1846, %v1872
    %v1921 = vsub.f32 %v1847, %v1873
    %v1922 = vadd.f32 %v1910, 1e-05
    %v1923 = vadd.f32 %v1911, 1e-05
    %v1924 = vadd.f32 %v1912, 1e-05
    %v1925 = vadd.f32 %v1913, 1e-05
    %v1926 = vadd.f32 %v1914, 1e-05
    %v1927 = vadd.f32 %v1915, 1e-05
    %v1928 = vrsqrt.pop %v1922
    %v1929 = vmul.f32 %v1928, %v1922
    %v1930 = vmul.f32 %v1929, %v1928
    %v1931 = vmul.f32 0.5, %v1930
    %v1932 = vsub.f32 1.5, %v1931
    %v1933 = vmul.f32 %v1928, %v1932
    %vm1934 = vweird.f32 %v1922
    %vm1935 = vweird.f32 %v1928
    %vm1936 = vmor %vm1934, %vm1935
    %v1937 = vsel %vm1936, %v1928, %v1933
    %v1938 = vrsqrt.pop %v1923
    %v1939 = vmul.f32 %v1938, %v1923
    %v1940 = vmul.f32 %v1939, %v1938
    %v1941 = vmul.f32 0.5, %v1940
    %v1942 = vsub.f32 1.5, %v1941
    %v1943 = vmul.f32 %v1938, %v1942
    %vm1944 = vweird.f32 %v1923
    %vm1945 = vweird.f32 %v1938
    %vm1946 = vmor %vm1944, %vm1945
    %v1947 = vsel %vm1946, %v1938, %v1943
    %v1948 = vrsqrt.pop %v1924
    %v1949 = vmul.f32 %v1948, %v1924
    %v1950 = vmul.f32 %v1949, %v1948
    %v1951 = vmul.f32 0.5, %v1950
    %v1952 = vsub.f32 1.5, %v1951
    %v1953 = vmul.f32 %v1948, %v1952
    %vm1954 = vweird.f32 %v1924
    %vm1955 = vweird.f32 %v1948
    %vm1956 = vmor %vm1954, %vm1955
    %v1957 = vsel %vm1956, %v1948, %v1953
    %v1958 = vrsqrt.pop %v1925
    %v1959 = vmul.f32 %v1958, %v1925
    %v1960 = vmul.f32 %v1959, %v1958
    %v1961 = vmul.f32 0.5, %v1960
    %v1962 = vsub.f32 1.5, %v1961
    %v1963 = vmul.f32 %v1958, %v1962
    %vm1964 = vweird.f32 %v1925
    %vm1965 = vweird.f32 %v1958
    %vm1966 = vmor %vm1964, %vm1965
    %v1967 = vsel %vm1966, %v1958, %v1963
    %v1968 = vrsqrt.pop %v1926
    %v1969 = vmul.f32 %v1968, %v1926
    %v1970 = vmul.f32 %v1969, %v1968
    %v1971 = vmul.f32 0.5, %v1970
    %v1972 = vsub.f32 1.5, %v1971
    %v1973 = vmul.f32 %v1968, %v1972
    %vm1974 = vweird.f32 %v1926
    %vm1975 = vweird.f32 %v1968
    %vm1976 = vmor %vm1974, %vm1975
    %v1977 = vsel %vm1976, %v1968, %v1973
    %v1978 = vrsqrt.pop %v1927
    %v1979 = vmul.f32 %v1978, %v1927
    %v1980 = vmul.f32 %v1979, %v1978
    %v1981 = vmul.f32 0.5, %v1980
    %v1982 = vsub.f32 1.5, %v1981
    %v1983 = vmul.f32 %v1978, %v1982
    %vm1984 = vweird.f32 %v1927
    %vm1985 = vweird.f32 %v1978
    %vm1986 = vmor %vm1984, %vm1985
    %v1987 = vsel %vm1986, %v1978, %v1983
    %v1988 = vmul.f32 %v1916, %v1937
    %v1989 = vmul.f32 %v1917, %v1947
    %v1990 = vmul.f32 %v1918, %v1957
    %v1991 = vmul.f32 %v1919, %v1967
    %v1992 = vmul.f32 %v1920, %v1977
    %v1993 = vmul.f32 %v1921, %v1987
    %v1994 = vperm.slane %v1848, 0
    %v1995 = vmul.f32 %v1988, %v1994
    %v1996 = vmul.f32 %v1989, %v1994
    %v1997 = vmul.f32 %v1990, %v1994
    %v1998 = vmul.f32 %v1991, %v1994
    %v1999 = vmul.f32 %v1992, %v1994
    %v2000 = vmul.f32 %v1993, %v1994
    %v2001 = vperm.slane %v1849, 0
    %v2002 = vadd.f32 %v1995, %v2001
    %v2003 = vadd.f32 %v1996, %v2001
    %v2004 = vadd.f32 %v1997, %v2001
    %v2005 = vadd.f32 %v1998, %v2001
    %v2006 = vadd.f32 %v1999, %v2001
    %v2007 = vadd.f32 %v2000, %v2001
    %v2008 = vld [vmem:[#allocation3 + $0x4b0] sm:$0xff]
    %v2009 = vld [vmem:[#allocation3 + $0x4b8] sm:$0xff]
    %v2010 = vld [vmem:[#allocation3 + $0x4c0] sm:$0xff]
    %v2011 = vld [vmem:[#allocation3 + $0x4c8] sm:$0xff]
    %v2012 = vld [vmem:[#allocation3 + $0x4d0] sm:$0x1]
    %v2013 = vperm.slane %v2012, 0
    %v2015 = vsel %vm97, %v2002, 0
    %v2018 = vsel %vm97, %v2003, 0
    %v2021 = vsel %vm97, %v2004, 0
    %v2024 = vsel %vm97, %v2005, 0
    %v2027 = vsel %vm97, %v2006, 0
    %v2030 = vsel %vm97, %v2007, 0
    %2032 = vmatpush.msra.mxu0 0.0
    %2033 = vmatpush.msra.mxu0 0.0
    %2034 = vmatpush.msra.mxu0 0.0
    %2035 = vmatpush.msra.mxu0 0.0
    %2036 = vmatpush.msra.mxu0 0.0
    %2037 = vmatpush.msra.mxu0 0.0
    %2038 = vmatpush.msra.mxu0 0.0
    %2039 = vmatpush.msra.mxu0 0.0
    %2040 = vmatpush.msra.mxu0 0.0
    %2041 = vmatpush.msra.mxu0 0.0
    %2042 = vmatpush.msra.mxu0 0.0
    %2043 = vmatpush.msra.mxu0 0.0
    %2044 = vmatpush.msra.mxu0 %v2011
    %2045 = vmatpush.msra.mxu0 %v2010
    %2046 = vmatpush.msra.mxu0 %v2009
    %2047 = vmatpush.msra.mxu0 %v2008
    %2048 = vmatmul.f32.gmra.mxu0 %v2015
    %v2049 = vpop.f32.mrf.mxu0
    %v2050 = vadd.f32 %v2013, %v2049
    %2051 = vmatmul.f32.gmra.mxu0 %v2018
    %v2052 = vpop.f32.mrf.mxu0
    %v2053 = vadd.f32 %v2013, %v2052
    %2054 = vmatmul.f32.gmra.mxu0 %v2021
    %v2055 = vpop.f32.mrf.mxu0
    %v2056 = vadd.f32 %v2013, %v2055
    %2057 = vmatmul.f32.gmra.mxu0 %v2024
    %v2058 = vpop.f32.mrf.mxu0
    %v2059 = vadd.f32 %v2013, %v2058
    %2060 = vmatmul.f32.gmra.mxu0 %v2027
    %v2061 = vpop.f32.mrf.mxu0
    %v2062 = vadd.f32 %v2013, %v2061
    %2063 = vmatmul.f32.gmra.mxu0 %v2030
    %v2064 = vpop.f32.mrf.mxu0
    %v2065 = vadd.f32 %v2013, %v2064
    %2066 = vdwg.mxu0
    %v2067 = vmul.f32 %v2050, 0.5
    %v2068 = vmul.f32 %v2053, 0.5
    %v2069 = vmul.f32 %v2056, 0.5
    %v2070 = vmul.f32 %v2059, 0.5
    %v2071 = vmul.f32 %v2062, 0.5
    %v2072 = vmul.f32 %v2065, 0.5
    %v2073 = vmul.f32 %v2050, 0.044715
    %v2074 = vmul.f32 %v2053, 0.044715
    %v2075 = vmul.f32 %v2056, 0.044715
    %v2076 = vmul.f32 %v2059, 0.044715
    %v2077 = vmul.f32 %v2062, 0.044715
    %v2078 = vmul.f32 %v2065, 0.044715
    %v2079 = vmul.f32 %v2073, %v2050
    %v2080 = vmul.f32 %v2074, %v2053
    %v2081 = vmul.f32 %v2075, %v2056
    %v2082 = vmul.f32 %v2076, %v2059
    %v2083 = vmul.f32 %v2077, %v2062
    %v2084 = vmul.f32 %v2078, %v2065
    %v2085 = vmul.f32 %v2079, %v2050
    %v2086 = vmul.f32 %v2080, %v2053
    %v2087 = vmul.f32 %v2081, %v2056
    %v2088 = vmul.f32 %v2082, %v2059
    %v2089 = vmul.f32 %v2083, %v2062
    %v2090 = vmul.f32 %v2084, %v2065
    %v2091 = vadd.f32 %v2050, %v2085
    %v2092 = vadd.f32 %v2053, %v2086
    %v2093 = vadd.f32 %v2056, %v2087
    %v2094 = vadd.f32 %v2059, %v2088
    %v2095 = vadd.f32 %v2062, %v2089
    %v2096 = vadd.f32 %v2065, %v2090
    %v2097 = vmul.f32 %v2091, 0.7978846
    %v2098 = vmul.f32 %v2092, 0.7978846
    %v2099 = vmul.f32 %v2093, 0.7978846
    %v2100 = vmul.f32 %v2094, 0.7978846
    %v2101 = vmul.f32 %v2095, 0.7978846
    %v2102 = vmul.f32 %v2096, 0.7978846
    %v2103 = vtanh.pop %v2097
    %v2104 = vtanh.pop %v2098
    %v2105 = vtanh.pop %v2099
    %v2106 = vtanh.pop %v2100
    %v2107 = vtanh.pop %v2101
    %v2108 = vtanh.pop %v2102
    %v2109 = vadd.f32 %v2103, 1.0
    %v2110 = vadd.f32 %v2104, 1.0
    %v2111 = vadd.f32 %v2105, 1.0
    %v2112 = vadd.f32 %v2106, 1.0
    %v2113 = vadd.f32 %v2107, 1.0
    %v2114 = vadd.f32 %v2108, 1.0
    %v2115 = vmul.f32 %v2067, %v2109
    %v2116 = vmul.f32 %v2068, %v2110
    %v2117 = vmul.f32 %v2069, %v2111
    %v2118 = vmul.f32 %v2070, %v2112
    %v2119 = vmul.f32 %v2071, %v2113
    %v2120 = vmul.f32 %v2072, %v2114
    %v2121 = vld [vmem:[#allocation3 + $0x4d8] sm:$0xff]
    %v2122 = vld [vmem:[#allocation3 + $0x4e0] sm:$0xff]
    %v2123 = vld [vmem:[#allocation3 + $0x4e8] sm:$0x1]
    %v2124 = vperm.slane %v2123, 0
    %v2126 = vsel %vm1085, %v2115, 0
    %v2129 = vsel %vm1085, %v2116, 0
    %v2132 = vsel %vm1085, %v2117, 0
    %v2135 = vsel %vm1085, %v2118, 0
    %v2138 = vsel %vm1085, %v2119, 0
    %v2141 = vsel %vm1085, %v2120, 0
    %2143 = vmatpush.msra.mxu0 0.0
    %2144 = vmatpush.msra.mxu0 0.0
    %2145 = vmatpush.msra.mxu0 0.0
    %2146 = vmatpush.msra.mxu0 0.0
    %2147 = vmatpush.msra.mxu0 0.0
    %2148 = vmatpush.msra.mxu0 0.0
    %2149 = vmatpush.msra.mxu0 0.0
    %2150 = vmatpush.msra.mxu0 0.0
    %2151 = vmatpush.msra.mxu0 0.0
    %2152 = vmatpush.msra.mxu0 0.0
    %2153 = vmatpush.msra.mxu0 0.0
    %2154 = vmatpush.msra.mxu0 0.0
    %2155 = vmatpush.msra.mxu0 0.0
    %2156 = vmatpush.msra.mxu0 0.0
    %2157 = vmatpush.msra.mxu0 %v2122
    %2158 = vmatpush.msra.mxu0 %v2121
    %2159 = vmatmul.f32.gmra.mxu0 %v2126
    %v2160 = vpop.f32.mrf.mxu0
    %v2161 = vadd.f32 %v2124, %v2160
    %2162 = vmatmul.f32.gmra.mxu0 %v2129
    %v2163 = vpop.f32.mrf.mxu0
    %v2164 = vadd.f32 %v2124, %v2163
    %2165 = vmatmul.f32.gmra.mxu0 %v2132
    %v2166 = vpop.f32.mrf.mxu0
    %v2167 = vadd.f32 %v2124, %v2166
    %2168 = vmatmul.f32.gmra.mxu0 %v2135
    %v2169 = vpop.f32.mrf.mxu0
    %v2170 = vadd.f32 %v2124, %v2169
    %2171 = vmatmul.f32.gmra.mxu0 %v2138
    %v2172 = vpop.f32.mrf.mxu0
    %v2173 = vadd.f32 %v2124, %v2172
    %2174 = vmatmul.f32.gmra.mxu0 %v2141
    %v2175 = vpop.f32.mrf.mxu0
    %v2176 = vadd.f32 %v2124, %v2175
    %2177 = vdwg.mxu0
    %v2178 = vadd.f32 %v1842, %v2161
    %v2179 = vadd.f32 %v1843, %v2164
    %v2180 = vadd.f32 %v1844, %v2167
    %v2181 = vadd.f32 %v1845, %v2170
    %v2182 = vadd.f32 %v1846, %v2173
    %v2183 = vadd.f32 %v1847, %v2176
    %v2184 = vld [vmem:[#allocation3 + $0x4f0] sm:$0x1]
    %v2185 = vld [vmem:[#allocation3 + $0x4f8] sm:$0x1]
    %v2186 = vsel %vm97, %v2178, 0.0
    %2187 = vadd.xlane.f32.xlu0 %v2186
    %v2188 = vpop.xlane.xlu0 %2187
    %v2189 = vsel %vm97, %v2179, 0.0
    %2190 = vadd.xlane.f32.xlu0 %v2189
    %v2191 = vpop.xlane.xlu0 %2190
    %v2192 = vsel %vm97, %v2180, 0.0
    %2193 = vadd.xlane.f32.xlu0 %v2192
    %v2194 = vpop.xlane.xlu0 %2193
    %v2195 = vsel %vm97, %v2181, 0.0
    %2196 = vadd.xlane.f32.xlu0 %v2195
    %v2197 = vpop.xlane.xlu0 %2196
    %v2198 = vsel %vm97, %v2182, 0.0
    %2199 = vadd.xlane.f32.xlu0 %v2198
    %v2200 = vpop.xlane.xlu0 %2199
    %v2201 = vsel %vm97, %v2183, 0.0
    %2202 = vadd.xlane.f32.xlu0 %v2201
    %v2203 = vpop.xlane.xlu0 %2202
    %v2204 = vmul.f32 %v2188, %v122
    %v2205 = vmul.f32 %v2191, %v122
    %v2206 = vmul.f32 %v2194, %v122
    %v2207 = vmul.f32 %v2197, %v122
    %v2208 = vmul.f32 %v2200, %v122
    %v2209 = vmul.f32 %v2203, %v122
    %v2210 = vmul.f32 %v2178, %v2178
    %v2211 = vmul.f32 %v2179, %v2179
    %v2212 = vmul.f32 %v2180, %v2180
    %v2213 = vmul.f32 %v2181, %v2181
    %v2214 = vmul.f32 %v2182, %v2182
    %v2215 = vmul.f32 %v2183, %v2183
    %v2216 = vsel %vm97, %v2210, 0.0
    %2217 = vadd.xlane.f32.xlu0 %v2216
    %v2218 = vpop.xlane.xlu0 %2217
    %v2219 = vsel %vm97, %v2211, 0.0
    %2220 = vadd.xlane.f32.xlu0 %v2219
    %v2221 = vpop.xlane.xlu0 %2220
    %v2222 = vsel %vm97, %v2212, 0.0
    %2223 = vadd.xlane.f32.xlu0 %v2222
    %v2224 = vpop.xlane.xlu0 %2223
    %v2225 = vsel %vm97, %v2213, 0.0
    %2226 = vadd.xlane.f32.xlu0 %v2225
    %v2227 = vpop.xlane.xlu0 %2226
    %v2228 = vsel %vm97, %v2214, 0.0
    %2229 = vadd.xlane.f32.xlu0 %v2228
    %v2230 = vpop.xlane.xlu0 %2229
    %v2231 = vsel %vm97, %v2215, 0.0
    %2232 = vadd.xlane.f32.xlu0 %v2231
    %v2233 = vpop.xlane.xlu0 %2232
    %v2234 = vmul.f32 %v2218, %v122
    %v2235 = vmul.f32 %v2221, %v122
    %v2236 = vmul.f32 %v2224, %v122
    %v2237 = vmul.f32 %v2227, %v122
    %v2238 = vmul.f32 %v2230, %v122
    %v2239 = vmul.f32 %v2233, %v122
    %v2240 = vmul.f32 %v2204, %v2204
    %v2241 = vmul.f32 %v2205, %v2205
    %v2242 = vmul.f32 %v2206, %v2206
    %v2243 = vmul.f32 %v2207, %v2207
    %v2244 = vmul.f32 %v2208, %v2208
    %v2245 = vmul.f32 %v2209, %v2209
    %v2246 = vsub.f32 %v2234, %v2240
    %v2247 = vsub.f32 %v2235, %v2241
    %v2248 = vsub.f32 %v2236, %v2242
    %v2249 = vsub.f32 %v2237, %v2243
    %v2250 = vsub.f32 %v2238, %v2244
    %v2251 = vsub.f32 %v2239, %v2245
    %v2252 = vsub.f32 %v2178, %v2204
    %v2253 = vsub.f32 %v2179, %v2205
    %v2254 = vsub.f32 %v2180, %v2206
    %v2255 = vsub.f32 %v2181, %v2207
    %v2256 = vsub.f32 %v2182, %v2208
    %v2257 = vsub.f32 %v2183, %v2209
    %v2258 = vadd.f32 %v2246, 1e-05
    %v2259 = vadd.f32 %v2247, 1e-05
    %v2260 = vadd.f32 %v2248, 1e-05
    %v2261 = vadd.f32 %v2249, 1e-05
    %v2262 = vadd.f32 %v2250, 1e-05
    %v2263 = vadd.f32 %v2251, 1e-05
    %v2264 = vrsqrt.pop %v2258
    %v2265 = vmul.f32 %v2264, %v2258
    %v2266 = vmul.f32 %v2265, %v2264
    %v2267 = vmul.f32 0.5, %v2266
    %v2268 = vsub.f32 1.5, %v2267
    %v2269 = vmul.f32 %v2264, %v2268
    %vm2270 = vweird.f32 %v2258
    %vm2271 = vweird.f32 %v2264
    %vm2272 = vmor %vm2270, %vm2271
    %v2273 = vsel %vm2272, %v2264, %v2269
    %v2274 = vrsqrt.pop %v2259
    %v2275 = vmul.f32 %v2274, %v2259
    %v2276 = vmul.f32 %v2275, %v2274
    %v2277 = vmul.f32 0.5, %v2276
    %v2278 = vsub.f32 1.5, %v2277
    %v2279 = vmul.f32 %v2274, %v2278
    %vm2280 = vweird.f32 %v2259
    %vm2281 = vweird.f32 %v2274
    %vm2282 = vmor %vm2280, %vm2281
    %v2283 = vsel %vm2282, %v2274, %v2279
    %v2284 = vrsqrt.pop %v2260
    %v2285 = vmul.f32 %v2284, %v2260
    %v2286 = vmul.f32 %v2285, %v2284
    %v2287 = vmul.f32 0.5, %v2286
    %v2288 = vsub.f32 1.5, %v2287
    %v2289 = vmul.f32 %v2284, %v2288
    %vm2290 = vweird.f32 %v2260
    %vm2291 = vweird.f32 %v2284
    %vm2292 = vmor %vm2290, %vm2291
    %v2293 = vsel %vm2292, %v2284, %v2289
    %v2294 = vrsqrt.pop %v2261
    %v2295 = vmul.f32 %v2294, %v2261
    %v2296 = vmul.f32 %v2295, %v2294
    %v2297 = vmul.f32 0.5, %v2296
    %v2298 = vsub.f32 1.5, %v2297
    %v2299 = vmul.f32 %v2294, %v2298
    %vm2300 = vweird.f32 %v2261
    %vm2301 = vweird.f32 %v2294
    %vm2302 = vmor %vm2300, %vm2301
    %v2303 = vsel %vm2302, %v2294, %v2299
    %v2304 = vrsqrt.pop %v2262
    %v2305 = vmul.f32 %v2304, %v2262
    %v2306 = vmul.f32 %v2305, %v2304
    %v2307 = vmul.f32 0.5, %v2306
    %v2308 = vsub.f32 1.5, %v2307
    %v2309 = vmul.f32 %v2304, %v2308
    %vm2310 = vweird.f32 %v2262
    %vm2311 = vweird.f32 %v2304
    %vm2312 = vmor %vm2310, %vm2311
    %v2313 = vsel %vm2312, %v2304, %v2309
    %v2314 = vrsqrt.pop %v2263
    %v2315 = vmul.f32 %v2314, %v2263
    %v2316 = vmul.f32 %v2315, %v2314
    %v2317 = vmul.f32 0.5, %v2316
    %v2318 = vsub.f32 1.5, %v2317
    %v2319 = vmul.f32 %v2314, %v2318
    %vm2320 = vweird.f32 %v2263
    %vm2321 = vweird.f32 %v2314
    %vm2322 = vmor %vm2320, %vm2321
    %v2323 = vsel %vm2322, %v2314, %v2319
    %v2324 = vmul.f32 %v2252, %v2273
    %v2325 = vmul.f32 %v2253, %v2283
    %v2326 = vmul.f32 %v2254, %v2293
    %v2327 = vmul.f32 %v2255, %v2303
    %v2328 = vmul.f32 %v2256, %v2313
    %v2329 = vmul.f32 %v2257, %v2323
    %v2330 = vperm.slane %v2184, 0
    %v2331 = vmul.f32 %v2324, %v2330
    %v2332 = vmul.f32 %v2325, %v2330
    %v2333 = vmul.f32 %v2326, %v2330
    %v2334 = vmul.f32 %v2327, %v2330
    %v2335 = vmul.f32 %v2328, %v2330
    %v2336 = vmul.f32 %v2329, %v2330
    %v2337 = vperm.slane %v2185, 0
    %v2338 = vadd.f32 %v2331, %v2337
    %v2339 = vadd.f32 %v2332, %v2337
    %v2340 = vadd.f32 %v2333, %v2337
    %v2341 = vadd.f32 %v2334, %v2337
    %v2342 = vadd.f32 %v2335, %v2337
    %v2343 = vadd.f32 %v2336, %v2337
    %2344 = vst.msk [vmem:[#allocation2] sm:$0xff] %vm97, %v2338
    %2345 = vst.msk [vmem:[#allocation2 + $0x8] sm:$0xff] %vm97, %v2339
    %2346 = vst.msk [vmem:[#allocation2 + $0x10] sm:$0xff] %vm97, %v2340
    %2347 = vst.msk [vmem:[#allocation2 + $0x18] sm:$0xff] %vm97, %v2341
    %2348 = vst.msk [vmem:[#allocation2 + $0x20] sm:$0xff] %vm97, %v2342
    %2349 = vst.msk [vmem:[#allocation2 + $0x28] sm:$0xff] %vm97, %v2343
    %v2350 = vld [vmem:[#allocation2] sm:$0xff]
    %v2351 = vld [vmem:[#allocation2 + $0x8] sm:$0xff]
    %v2352 = vld [vmem:[#allocation3 + $0x500] sm:$0xff]
    %v2353 = vld [vmem:[#allocation3 + $0x508] sm:$0xff]
    %v2354 = vld [vmem:[#allocation3 + $0x510] sm:$0xff]
    %v2355 = vld [vmem:[#allocation3 + $0x518] sm:$0xff]
    %v2356 = vld [vmem:[#allocation2 + $0x10] sm:$0xff]
    %v2357 = vld [vmem:[#allocation2 + $0x18] sm:$0xff]
    %v2358 = vld [vmem:[#allocation3 + $0x520] sm:$0xff]
    %v2359 = vld [vmem:[#allocation3 + $0x528] sm:$0xff]
    %v2360 = vld [vmem:[#allocation3 + $0x530] sm:$0xff]
    %v2361 = vld [vmem:[#allocation3 + $0x538] sm:$0xff]
    %v2363 = vsel %vm97, %v2356, 0
    %v2366 = vsel %vm97, %v2357, 0
    %2368 = vmatpush.msra.mxu0 0.0
    %2369 = vmatpush.msra.mxu0 0.0
    %2370 = vmatpush.msra.mxu0 0.0
    %2371 = vmatpush.msra.mxu0 0.0
    %2372 = vmatpush.msra.mxu0 0.0
    %2373 = vmatpush.msra.mxu0 0.0
    %2374 = vmatpush.msra.mxu0 0.0
    %2375 = vmatpush.msra.mxu0 0.0
    %2376 = vmatpush.msra.mxu0 0.0
    %2377 = vmatpush.msra.mxu0 0.0
    %2378 = vmatpush.msra.mxu0 0.0
    %2379 = vmatpush.msra.mxu0 0.0
    %2380 = vmatpush.msra.mxu0 %v2361
    %2381 = vmatpush.msra.mxu0 %v2360
    %2382 = vmatpush.msra.mxu0 %v2359
    %2383 = vmatpush.msra.mxu0 %v2358
    %2384 = vmatmul.f32.gmra.mxu0 %v2363
    %v2385 = vpop.f32.mrf.mxu0
    %v2386 = vadd.f32 0.0, %v2385
    %2387 = vmatmul.f32.gmra.mxu0 %v2366
    %v2388 = vpop.f32.mrf.mxu0
    %v2389 = vadd.f32 0.0, %v2388
    %2390 = vdwg.mxu0
    %v2392 = vsel %vm97, %v2350, 0
    %v2395 = vsel %vm97, %v2351, 0
    %2397 = vmatpush.msra.mxu0 0.0
    %2398 = vmatpush.msra.mxu0 0.0
    %2399 = vmatpush.msra.mxu0 0.0
    %2400 = vmatpush.msra.mxu0 0.0
    %2401 = vmatpush.msra.mxu0 0.0
    %2402 = vmatpush.msra.mxu0 0.0
    %2403 = vmatpush.msra.mxu0 0.0
    %2404 = vmatpush.msra.mxu0 0.0
    %2405 = vmatpush.msra.mxu0 0.0
    %2406 = vmatpush.msra.mxu0 0.0
    %2407 = vmatpush.msra.mxu0 0.0
    %2408 = vmatpush.msra.mxu0 0.0
    %2409 = vmatpush.msra.mxu0 %v2355
    %2410 = vmatpush.msra.mxu0 %v2354
    %2411 = vmatpush.msra.mxu0 %v2353
    %2412 = vmatpush.msra.mxu0 %v2352
    %2413 = vmatmul.f32.gmra.mxu0 %v2392
    %v2414 = vpop.f32.mrf.mxu0
    %v2415 = vadd.f32 %v2386, %v2414
    %2416 = vmatmul.f32.gmra.mxu0 %v2395
    %v2417 = vpop.f32.mrf.mxu0
    %v2418 = vadd.f32 %v2389, %v2417
    %2419 = vdwg.mxu0
    %v2420 = vld [vmem:[#allocation2 + $0x20] sm:$0xff]
    %v2421 = vld [vmem:[#allocation2 + $0x28] sm:$0xff]
    %v2422 = vld [vmem:[#allocation3 + $0x540] sm:$0xff]
    %v2423 = vld [vmem:[#allocation3 + $0x548] sm:$0xff]
    %v2424 = vld [vmem:[#allocation3 + $0x550] sm:$0xff]
    %v2425 = vld [vmem:[#allocation3 + $0x558] sm:$0xff]
    %v2427 = vsel %vm97, %v2420, 0
    %v2430 = vsel %vm97, %v2421, 0
    %2432 = vmatpush.msra.mxu0 0.0
    %2433 = vmatpush.msra.mxu0 0.0
    %2434 = vmatpush.msra.mxu0 0.0
    %2435 = vmatpush.msra.mxu0 0.0
    %2436 = vmatpush.msra.mxu0 0.0
    %2437 = vmatpush.msra.mxu0 0.0
    %2438 = vmatpush.msra.mxu0 0.0
    %2439 = vmatpush.msra.mxu0 0.0
    %2440 = vmatpush.msra.mxu0 0.0
    %2441 = vmatpush.msra.mxu0 0.0
    %2442 = vmatpush.msra.mxu0 0.0
    %2443 = vmatpush.msra.mxu0 0.0
    %2444 = vmatpush.msra.mxu0 %v2425
    %2445 = vmatpush.msra.mxu0 %v2424
    %2446 = vmatpush.msra.mxu0 %v2423
    %2447 = vmatpush.msra.mxu0 %v2422
    %2448 = vmatmul.f32.gmra.mxu0 %v2427
    %v2449 = vpop.f32.mrf.mxu0
    %v2450 = vadd.f32 0.0, %v2449
    %2451 = vmatmul.f32.gmra.mxu0 %v2430
    %v2452 = vpop.f32.mrf.mxu0
    %v2453 = vadd.f32 0.0, %v2452
    %2454 = vdwg.mxu0
    %v2455 = vadd.f32 %v2415, %v2450
    %v2456 = vadd.f32 %v2418, %v2453
    %v2457 = vld [vmem:[#allocation3 + $0x560] sm:$0x1]
    %v2458 = vperm.slane %v2457, 0
    %v2459 = vadd.f32 %v2455, %v2458
    %v2460 = vadd.f32 %v2456, %v2458
    %v2461 = vld [vmem:[#allocation3 + $0x568] sm:$0x1]
    %v2462 = vld [vmem:[#allocation3 + $0x570] sm:$0x1]
    %v2463 = vsel %vm97, %v2459, 0.0
    %2464 = vadd.xlane.f32.xlu0 %v2463
    %v2465 = vpop.xlane.xlu0 %2464
    %v2466 = vsel %vm97, %v2460, 0.0
    %2467 = vadd.xlane.f32.xlu0 %v2466
    %v2468 = vpop.xlane.xlu0 %2467
    %v2469 = vmul.f32 %v2465, %v122
    %v2470 = vmul.f32 %v2468, %v122
    %v2471 = vmul.f32 %v2459, %v2459
    %v2472 = vmul.f32 %v2460, %v2460
    %v2473 = vsel %vm97, %v2471, 0.0
    %2474 = vadd.xlane.f32.xlu0 %v2473
    %v2475 = vpop.xlane.xlu0 %2474
    %v2476 = vsel %vm97, %v2472, 0.0
    %2477 = vadd.xlane.f32.xlu0 %v2476
    %v2478 = vpop.xlane.xlu0 %2477
    %v2479 = vmul.f32 %v2475, %v122
    %v2480 = vmul.f32 %v2478, %v122
    %v2481 = vmul.f32 %v2469, %v2469
    %v2482 = vmul.f32 %v2470, %v2470
    %v2483 = vsub.f32 %v2479, %v2481
    %v2484 = vsub.f32 %v2480, %v2482
    %v2485 = vsub.f32 %v2459, %v2469
    %v2486 = vsub.f32 %v2460, %v2470
    %v2487 = vadd.f32 %v2483, 1e-05
    %v2488 = vadd.f32 %v2484, 1e-05
    %v2489 = vrsqrt.pop %v2487
    %v2490 = vmul.f32 %v2489, %v2487
    %v2491 = vmul.f32 %v2490, %v2489
    %v2492 = vmul.f32 0.5, %v2491
    %v2493 = vsub.f32 1.5, %v2492
    %v2494 = vmul.f32 %v2489, %v2493
    %vm2495 = vweird.f32 %v2487
    %vm2496 = vweird.f32 %v2489
    %vm2497 = vmor %vm2495, %vm2496
    %v2498 = vsel %vm2497, %v2489, %v2494
    %v2499 = vrsqrt.pop %v2488
    %v2500 = vmul.f32 %v2499, %v2488
    %v2501 = vmul.f32 %v2500, %v2499
    %v2502 = vmul.f32 0.5, %v2501
    %v2503 = vsub.f32 1.5, %v2502
    %v2504 = vmul.f32 %v2499, %v2503
    %vm2505 = vweird.f32 %v2488
    %vm2506 = vweird.f32 %v2499
    %vm2507 = vmor %vm2505, %vm2506
    %v2508 = vsel %vm2507, %v2499, %v2504
    %v2509 = vmul.f32 %v2485, %v2498
    %v2510 = vmul.f32 %v2486, %v2508
    %v2511 = vperm.slane %v2461, 0
    %v2512 = vmul.f32 %v2509, %v2511
    %v2513 = vmul.f32 %v2510, %v2511
    %v2514 = vperm.slane %v2462, 0
    %v2515 = vadd.f32 %v2512, %v2514
    %v2516 = vadd.f32 %v2513, %v2514
    %v2517 = vld [vmem:[#allocation3 + $0x578] sm:$0xff]
    %v2518 = vld [vmem:[#allocation3 + $0x580] sm:$0xff]
    %v2519 = vld [vmem:[#allocation3 + $0x588] sm:$0xff]
    %v2520 = vld [vmem:[#allocation3 + $0x590] sm:$0xff]
    %v2521 = vld [vmem:[#allocation3 + $0x598] sm:$0xff]
    %v2522 = vld [vmem:[#allocation3 + $0x5a0] sm:$0xff]
    %v2523 = vld [vmem:[#allocation3 + $0x5a8] sm:$0xff]
    %v2524 = vld [vmem:[#allocation3 + $0x5b0] sm:$0xff]
    %v2525 = vld [vmem:[#allocation3 + $0x5b8] sm:$0xff]
    %v2526 = vld [vmem:[#allocation3 + $0x5c0] sm:$0xff]
    %v2527 = vld [vmem:[#allocation3 + $0x5c8] sm:$0xff]
    %v2528 = vld [vmem:[#allocation3 + $0x5d0] sm:$0xff]
    %v2529 = vld [vmem:[#allocation3 + $0x5d8] sm:$0xff]
    %v2530 = vld [vmem:[#allocation3 + $0x5e0] sm:$0xff]
    %v2531 = vld [vmem:[#allocation3 + $0x5e8] sm:$0xff]
    %v2532 = vld [vmem:[#allocation3 + $0x5f0] sm:$0xff]
    %v2534 = vsel %vm1085, %v2517, 0
    %v2537 = vsel %vm1085, %v2518, 0
    %v2540 = vsel %vm1085, %v2519, 0
    %v2543 = vsel %vm1085, %v2520, 0
    %v2546 = vsel %vm1085, %v2521, 0
    %v2549 = vsel %vm1085, %v2522, 0
    %v2552 = vsel %vm1085, %v2523, 0
    %v2555 = vsel %vm1085, %v2524, 0
    %2557 = vmatpush.msra.mxu0 0.0
    %2558 = vmatpush.msra.mxu0 0.0
    %2559 = vmatpush.msra.mxu0 0.0
    %2560 = vmatpush.msra.mxu0 0.0
    %2561 = vmatpush.msra.mxu0 0.0
    %2562 = vmatpush.msra.mxu0 0.0
    %2563 = vmatpush.msra.mxu0 0.0
    %2564 = vmatpush.msra.mxu0 0.0
    %2565 = vmatpush.msra.mxu0 0.0
    %2566 = vmatpush.msra.mxu0 0.0
    %2567 = vmatpush.msra.mxu0 0.0
    %2568 = vmatpush.msra.mxu0 0.0
    %2569 = vmatpush.msra.mxu0 0.0
    %2570 = vmatpush.msra.mxu0 0.0
    %2571 = vmatpush.msra.mxu0 %v2516
    %2572 = vmatpush.msra.mxu0 %v2515
    %2573 = vmatmul.f32.gmra.mxu0 %v2534
    %v2574 = vpop.f32.mrf.mxu0
    %v2575 = vadd.f32 %v2525, %v2574
    %2576 = vmatmul.f32.gmra.mxu0 %v2537
    %v2577 = vpop.f32.mrf.mxu0
    %v2578 = vadd.f32 %v2526, %v2577
    %2579 = vmatmul.f32.gmra.mxu0 %v2540
    %v2580 = vpop.f32.mrf.mxu0
    %v2581 = vadd.f32 %v2527, %v2580
    %2582 = vmatmul.f32.gmra.mxu0 %v2543
    %v2583 = vpop.f32.mrf.mxu0
    %v2584 = vadd.f32 %v2528, %v2583
    %2585 = vmatmul.f32.gmra.mxu0 %v2546
    %v2586 = vpop.f32.mrf.mxu0
    %v2587 = vadd.f32 %v2529, %v2586
    %2588 = vmatmul.f32.gmra.mxu0 %v2549
    %v2589 = vpop.f32.mrf.mxu0
    %v2590 = vadd.f32 %v2530, %v2589
    %2591 = vmatmul.f32.gmra.mxu0 %v2552
    %v2592 = vpop.f32.mrf.mxu0
    %v2593 = vadd.f32 %v2531, %v2592
    %2594 = vmatmul.f32.gmra.mxu0 %v2555
    %v2595 = vpop.f32.mrf.mxu0
    %v2596 = vadd.f32 %v2532, %v2595
    %2597 = vdwg.mxu0
    %v2598 = vmul.f32 %v2575, 0.5
    %v2599 = vmul.f32 %v2578, 0.5
    %v2600 = vmul.f32 %v2581, 0.5
    %v2601 = vmul.f32 %v2584, 0.5
    %v2602 = vmul.f32 %v2587, 0.5
    %v2603 = vmul.f32 %v2590, 0.5
    %v2604 = vmul.f32 %v2593, 0.5
    %v2605 = vmul.f32 %v2596, 0.5
    %v2606 = vmul.f32 %v2575, 0.044715
    %v2607 = vmul.f32 %v2578, 0.044715
    %v2608 = vmul.f32 %v2581, 0.044715
    %v2609 = vmul.f32 %v2584, 0.044715
    %v2610 = vmul.f32 %v2587, 0.044715
    %v2611 = vmul.f32 %v2590, 0.044715
    %v2612 = vmul.f32 %v2593, 0.044715
    %v2613 = vmul.f32 %v2596, 0.044715
    %v2614 = vmul.f32 %v2606, %v2575
    %v2615 = vmul.f32 %v2607, %v2578
    %v2616 = vmul.f32 %v2608, %v2581
    %v2617 = vmul.f32 %v2609, %v2584
    %v2618 = vmul.f32 %v2610, %v2587
    %v2619 = vmul.f32 %v2611, %v2590
    %v2620 = vmul.f32 %v2612, %v2593
    %v2621 = vmul.f32 %v2613, %v2596
    %v2622 = vmul.f32 %v2614, %v2575
    %v2623 = vmul.f32 %v2615, %v2578
    %v2624 = vmul.f32 %v2616, %v2581
    %v2625 = vmul.f32 %v2617, %v2584
    %v2626 = vmul.f32 %v2618, %v2587
    %v2627 = vmul.f32 %v2619, %v2590
    %v2628 = vmul.f32 %v2620, %v2593
    %v2629 = vmul.f32 %v2621, %v2596
    %v2630 = vadd.f32 %v2575, %v2622
    %v2631 = vadd.f32 %v2578, %v2623
    %v2632 = vadd.f32 %v2581, %v2624
    %v2633 = vadd.f32 %v2584, %v2625
    %v2634 = vadd.f32 %v2587, %v2626
    %v2635 = vadd.f32 %v2590, %v2627
    %v2636 = vadd.f32 %v2593, %v2628
    %v2637 = vadd.f32 %v2596, %v2629
    %v2638 = vmul.f32 %v2630, 0.7978846
    %v2639 = vmul.f32 %v2631, 0.7978846
    %v2640 = vmul.f32 %v2632, 0.7978846
    %v2641 = vmul.f32 %v2633, 0.7978846
    %v2642 = vmul.f32 %v2634, 0.7978846
    %v2643 = vmul.f32 %v2635, 0.7978846
    %v2644 = vmul.f32 %v2636, 0.7978846
    %v2645 = vmul.f32 %v2637, 0.7978846
    %v2646 = vtanh.pop %v2638
    %v2647 = vtanh.pop %v2639
    %v2648 = vtanh.pop %v2640
    %v2649 = vtanh.pop %v2641
    %v2650 = vtanh.pop %v2642
    %v2651 = vtanh.pop %v2643
    %v2652 = vtanh.pop %v2644
    %v2653 = vtanh.pop %v2645
    %v2654 = vadd.f32 %v2646, 1.0
    %v2655 = vadd.f32 %v2647, 1.0
    %v2656 = vadd.f32 %v2648, 1.0
    %v2657 = vadd.f32 %v2649, 1.0
    %v2658 = vadd.f32 %v2650, 1.0
    %v2659 = vadd.f32 %v2651, 1.0
    %v2660 = vadd.f32 %v2652, 1.0
    %v2661 = vadd.f32 %v2653, 1.0
    %v2662 = vmul.f32 %v2598, %v2654
    %v2663 = vmul.f32 %v2599, %v2655
    %v2664 = vmul.f32 %v2600, %v2656
    %v2665 = vmul.f32 %v2601, %v2657
    %v2666 = vmul.f32 %v2602, %v2658
    %v2667 = vmul.f32 %v2603, %v2659
    %v2668 = vmul.f32 %v2604, %v2660
    %v2669 = vmul.f32 %v2605, %v2661
    %v2670 = vld [vmem:[#allocation3 + $0x5f8] sm:$0xff]
    %v2671 = vld [vmem:[#allocation3 + $0x600] sm:$0xff]
    %v2672 = vld [vmem:[#allocation3 + $0x608] sm:$0xff]
    %v2673 = vld [vmem:[#allocation3 + $0x610] sm:$0xff]
    %v2675 = vsel %vm701, %v2670, 0
    %v2678 = vsel %vm701, %v2671, 0
    %2680 = vmatpush.msra.mxu0 0.0
    %2681 = vmatpush.msra.mxu0 0.0
    %2682 = vmatpush.msra.mxu0 0.0
    %2683 = vmatpush.msra.mxu0 0.0
    %2684 = vmatpush.msra.mxu0 0.0
    %2685 = vmatpush.msra.mxu0 0.0
    %2686 = vmatpush.msra.mxu0 0.0
    %2687 = vmatpush.msra.mxu0 0.0
    %2688 = vmatpush.msra.mxu0 %v2669
    %2689 = vmatpush.msra.mxu0 %v2668
    %2690 = vmatpush.msra.mxu0 %v2667
    %2691 = vmatpush.msra.mxu0 %v2666
    %2692 = vmatpush.msra.mxu0 %v2665
    %2693 = vmatpush.msra.mxu0 %v2664
    %2694 = vmatpush.msra.mxu0 %v2663
    %2695 = vmatpush.msra.mxu0 %v2662
    %2696 = vmatmul.f32.gmra.mxu0 %v2675
    %v2697 = vpop.f32.mrf.mxu0
    %v2698 = vadd.f32 %v2672, %v2697
    %2699 = vmatmul.f32.gmra.mxu0 %v2678
    %v2700 = vpop.f32.mrf.mxu0
    %v2701 = vadd.f32 %v2673, %v2700
    %2702 = vdwg.mxu0
    %v2703 = vadd.f32 %v2459, %v2698
    %v2704 = vadd.f32 %v2460, %v2701
    %v2705 = vld [vmem:[#allocation3 + $0x618] sm:$0x1]
    %v2706 = vld [vmem:[#allocation3 + $0x620] sm:$0x1]
    %v2707 = vsel %vm97, %v2703, 0.0
    %2708 = vadd.xlane.f32.xlu0 %v2707
    %v2709 = vpop.xlane.xlu0 %2708
    %v2710 = vsel %vm97, %v2704, 0.0
    %2711 = vadd.xlane.f32.xlu0 %v2710
    %v2712 = vpop.xlane.xlu0 %2711
    %v2713 = vmul.f32 %v2709, %v122
    %v2714 = vmul.f32 %v2712, %v122
    %v2715 = vmul.f32 %v2703, %v2703
    %v2716 = vmul.f32 %v2704, %v2704
    %v2717 = vsel %vm97, %v2715, 0.0
    %2718 = vadd.xlane.f32.xlu0 %v2717
    %v2719 = vpop.xlane.xlu0 %2718
    %v2720 = vsel %vm97, %v2716, 0.0
    %2721 = vadd.xlane.f32.xlu0 %v2720
    %v2722 = vpop.xlane.xlu0 %2721
    %v2723 = vmul.f32 %v2719, %v122
    %v2724 = vmul.f32 %v2722, %v122
    %v2725 = vmul.f32 %v2713, %v2713
    %v2726 = vmul.f32 %v2714, %v2714
    %v2727 = vsub.f32 %v2723, %v2725
    %v2728 = vsub.f32 %v2724, %v2726
    %v2729 = vsub.f32 %v2703, %v2713
    %v2730 = vsub.f32 %v2704, %v2714
    %v2731 = vadd.f32 %v2727, 1e-05
    %v2732 = vadd.f32 %v2728, 1e-05
    %v2733 = vrsqrt.pop %v2731
    %v2734 = vmul.f32 %v2733, %v2731
    %v2735 = vmul.f32 %v2734, %v2733
    %v2736 = vmul.f32 0.5, %v2735
    %v2737 = vsub.f32 1.5, %v2736
    %v2738 = vmul.f32 %v2733, %v2737
    %vm2739 = vweird.f32 %v2731
    %vm2740 = vweird.f32 %v2733
    %vm2741 = vmor %vm2739, %vm2740
    %v2742 = vsel %vm2741, %v2733, %v2738
    %v2743 = vrsqrt.pop %v2732
    %v2744 = vmul.f32 %v2743, %v2732
    %v2745 = vmul.f32 %v2744, %v2743
    %v2746 = vmul.f32 0.5, %v2745
    %v2747 = vsub.f32 1.5, %v2746
    %v2748 = vmul.f32 %v2743, %v2747
    %vm2749 = vweird.f32 %v2732
    %vm2750 = vweird.f32 %v2743
    %vm2751 = vmor %vm2749, %vm2750
    %v2752 = vsel %vm2751, %v2743, %v2748
    %v2753 = vmul.f32 %v2729, %v2742
    %v2754 = vmul.f32 %v2730, %v2752
    %v2755 = vperm.slane %v2705, 0
    %v2756 = vmul.f32 %v2753, %v2755
    %v2757 = vmul.f32 %v2754, %v2755
    %v2758 = vperm.slane %v2706, 0
    %v2759 = vadd.f32 %v2756, %v2758
    %v2760 = vadd.f32 %v2757, %v2758
    %v2761 = vld [vmem:[#allocation3 + $0x628] sm:$0xff]
    %v2762 = vld [vmem:[#allocation3 + $0x630] sm:$0xff]
    %v2763 = vld [vmem:[#allocation3 + $0x638] sm:$0xff]
    %v2764 = vld [vmem:[#allocation3 + $0x640] sm:$0xff]
    %v2765 = vld [vmem:[#allocation3 + $0x648] sm:$0x1]
    %v2766 = vperm.slane %v2765, 0
    %v2768 = vsel %vm97, %v2759, 0
    %v2771 = vsel %vm97, %v2760, 0
    %2773 = vmatpush.msra.mxu0 0.0
    %2774 = vmatpush.msra.mxu0 0.0
    %2775 = vmatpush.msra.mxu0 0.0
    %2776 = vmatpush.msra.mxu0 0.0
    %2777 = vmatpush.msra.mxu0 0.0
    %2778 = vmatpush.msra.mxu0 0.0
    %2779 = vmatpush.msra.mxu0 0.0
    %2780 = vmatpush.msra.mxu0 0.0
    %2781 = vmatpush.msra.mxu0 0.0
    %2782 = vmatpush.msra.mxu0 0.0
    %2783 = vmatpush.msra.mxu0 0.0
    %2784 = vmatpush.msra.mxu0 0.0
    %2785 = vmatpush.msra.mxu0 %v2764
    %2786 = vmatpush.msra.mxu0 %v2763
    %2787 = vmatpush.msra.mxu0 %v2762
    %2788 = vmatpush.msra.mxu0 %v2761
    %2789 = vmatmul.f32.gmra.mxu0 %v2768
    %v2790 = vpop.f32.mrf.mxu0
    %v2791 = vadd.f32 %v2766, %v2790
    %2792 = vmatmul.f32.gmra.mxu0 %v2771
    %v2793 = vpop.f32.mrf.mxu0
    %v2794 = vadd.f32 %v2766, %v2793
    %2795 = vdwg.mxu0
    %v2796 = vmul.f32 %v2791, 0.5
    %v2797 = vmul.f32 %v2794, 0.5
    %v2798 = vmul.f32 %v2791, 0.044715
    %v2799 = vmul.f32 %v2794, 0.044715
    %v2800 = vmul.f32 %v2798, %v2791
    %v2801 = vmul.f32 %v2799, %v2794
    %v2802 = vmul.f32 %v2800, %v2791
    %v2803 = vmul.f32 %v2801, %v2794
    %v2804 = vadd.f32 %v2791, %v2802
    %v2805 = vadd.f32 %v2794, %v2803
    %v2806 = vmul.f32 %v2804, 0.7978846
    %v2807 = vmul.f32 %v2805, 0.7978846
    %v2808 = vtanh.pop %v2806
    %v2809 = vtanh.pop %v2807
    %v2810 = vadd.f32 %v2808, 1.0
    %v2811 = vadd.f32 %v2809, 1.0
    %v2812 = vmul.f32 %v2796, %v2810
    %v2813 = vmul.f32 %v2797, %v2811
    %v2814 = vld [vmem:[#allocation3 + $0x650] sm:$0xff]
    %v2815 = vld [vmem:[#allocation3 + $0x658] sm:$0xff]
    %v2816 = vld [vmem:[#allocation3 + $0x660] sm:$0x1]
    %v2817 = vperm.slane %v2816, 0
    %v2819 = vsel %vm1085, %v2812, 0
    %v2822 = vsel %vm1085, %v2813, 0
    %2824 = vmatpush.msra.mxu0 0.0
    %2825 = vmatpush.msra.mxu0 0.0
    %2826 = vmatpush.msra.mxu0 0.0
    %2827 = vmatpush.msra.mxu0 0.0
    %2828 = vmatpush.msra.mxu0 0.0
    %2829 = vmatpush.msra.mxu0 0.0
    %2830 = vmatpush.msra.mxu0 0.0
    %2831 = vmatpush.msra.mxu0 0.0
    %2832 = vmatpush.msra.mxu0 0.0
    %2833 = vmatpush.msra.mxu0 0.0
    %2834 = vmatpush.msra.mxu0 0.0
    %2835 = vmatpush.msra.mxu0 0.0
    %2836 = vmatpush.msra.mxu0 0.0
    %2837 = vmatpush.msra.mxu0 0.0
    %2838 = vmatpush.msra.mxu0 %v2815
    %2839 = vmatpush.msra.mxu0 %v2814
    %2840 = vmatmul.f32.gmra.mxu0 %v2819
    %v2841 = vpop.f32.mrf.mxu0
    %v2842 = vadd.f32 %v2817, %v2841
    %2843 = vmatmul.f32.gmra.mxu0 %v2822
    %v2844 = vpop.f32.mrf.mxu0
    %v2845 = vadd.f32 %v2817, %v2844
    %2846 = vdwg.mxu0
    %v2847 = vadd.f32 %v2703, %v2842
    %v2848 = vadd.f32 %v2704, %v2845
    %v2849 = vld [vmem:[#allocation3 + $0x668] sm:$0x1]
    %v2850 = vld [vmem:[#allocation3 + $0x670] sm:$0x1]
    %v2851 = vsel %vm97, %v2847, 0.0
    %2852 = vadd.xlane.f32.xlu0 %v2851
    %v2853 = vpop.xlane.xlu0 %2852
    %v2854 = vsel %vm97, %v2848, 0.0
    %2855 = vadd.xlane.f32.xlu0 %v2854
    %v2856 = vpop.xlane.xlu0 %2855
    %v2857 = vmul.f32 %v2853, %v122
    %v2858 = vmul.f32 %v2856, %v122
    %v2859 = vmul.f32 %v2847, %v2847
    %v2860 = vmul.f32 %v2848, %v2848
    %v2861 = vsel %vm97, %v2859, 0.0
    %2862 = vadd.xlane.f32.xlu0 %v2861
    %v2863 = vpop.xlane.xlu0 %2862
    %v2864 = vsel %vm97, %v2860, 0.0
    %2865 = vadd.xlane.f32.xlu0 %v2864
    %v2866 = vpop.xlane.xlu0 %2865
    %v2867 = vmul.f32 %v2863, %v122
    %v2868 = vmul.f32 %v2866, %v122
    %v2869 = vmul.f32 %v2857, %v2857
    %v2870 = vmul.f32 %v2858, %v2858
    %v2871 = vsub.f32 %v2867, %v2869
    %v2872 = vsub.f32 %v2868, %v2870
    %v2873 = vsub.f32 %v2847, %v2857
    %v2874 = vsub.f32 %v2848, %v2858
    %v2875 = vadd.f32 %v2871, 1e-05
    %v2876 = vadd.f32 %v2872, 1e-05
    %v2877 = vrsqrt.pop %v2875
    %v2878 = vmul.f32 %v2877, %v2875
    %v2879 = vmul.f32 %v2878, %v2877
    %v2880 = vmul.f32 0.5, %v2879
    %v2881 = vsub.f32 1.5, %v2880
    %v2882 = vmul.f32 %v2877, %v2881
    %vm2883 = vweird.f32 %v2875
    %vm2884 = vweird.f32 %v2877
    %vm2885 = vmor %vm2883, %vm2884
    %v2886 = vsel %vm2885, %v2877, %v2882
    %v2887 = vrsqrt.pop %v2876
    %v2888 = vmul.f32 %v2887, %v2876
    %v2889 = vmul.f32 %v2888, %v2887
    %v2890 = vmul.f32 0.5, %v2889
    %v2891 = vsub.f32 1.5, %v2890
    %v2892 = vmul.f32 %v2887, %v2891
    %vm2893 = vweird.f32 %v2876
    %vm2894 = vweird.f32 %v2887
    %vm2895 = vmor %vm2893, %vm2894
    %v2896 = vsel %vm2895, %v2887, %v2892
    %v2897 = vmul.f32 %v2873, %v2886
    %v2898 = vmul.f32 %v2874, %v2896
    %v2899 = vperm.slane %v2849, 0
    %v2900 = vmul.f32 %v2897, %v2899
    %v2901 = vmul.f32 %v2898, %v2899
    %v2902 = vperm.slane %v2850, 0
    %v2903 = vadd.f32 %v2900, %v2902
    %v2904 = vadd.f32 %v2901, %v2902
    %v2905 = vld [vmem:[#allocation3 + $0x678] sm:$0xff]
    %v2906 = vld [vmem:[#allocation3 + $0x680] sm:$0xff]
    %v2907 = vld [vmem:[#allocation3 + $0x688] sm:$0xff]
    %v2908 = vld [vmem:[#allocation3 + $0x690] sm:$0xff]
    %v2909 = vld [vmem:[#allocation3 + $0x698] sm:$0xff]
    %v2910 = vld [vmem:[#allocation3 + $0x6a0] sm:$0xff]
    %v2911 = vld [vmem:[#allocation3 + $0x6a8] sm:$0xff]
    %v2912 = vld [vmem:[#allocation3 + $0x6b0] sm:$0xff]
    %v2913 = vld [vmem:[#allocation3 + $0x6b8] sm:$0xff]
    %v2914 = vld [vmem:[#allocation3 + $0x6c0] sm:$0xff]
    %v2915 = vld [vmem:[#allocation3 + $0x6c8] sm:$0xff]
    %v2916 = vld [vmem:[#allocation3 + $0x6d0] sm:$0xff]
    %v2917 = vld [vmem:[#allocation3 + $0x6d8] sm:$0xff]
    %v2918 = vld [vmem:[#allocation3 + $0x6e0] sm:$0xff]
    %v2919 = vld [vmem:[#allocation3 + $0x6e8] sm:$0xff]
    %v2920 = vld [vmem:[#allocation3 + $0x6f0] sm:$0xff]
    %v2922 = vsel %vm1085, %v2905, 0
    %v2925 = vsel %vm1085, %v2906, 0
    %v2928 = vsel %vm1085, %v2907, 0
    %v2931 = vsel %vm1085, %v2908, 0
    %v2934 = vsel %vm1085, %v2909, 0
    %v2937 = vsel %vm1085, %v2910, 0
    %v2940 = vsel %vm1085, %v2911, 0
    %v2943 = vsel %vm1085, %v2912, 0
    %2945 = vmatpush.msra.mxu0 0.0
    %2946 = vmatpush.msra.mxu0 0.0
    %2947 = vmatpush.msra.mxu0 0.0
    %2948 = vmatpush.msra.mxu0 0.0
    %2949 = vmatpush.msra.mxu0 0.0
    %2950 = vmatpush.msra.mxu0 0.0
    %2951 = vmatpush.msra.mxu0 0.0
    %2952 = vmatpush.msra.mxu0 0.0
    %2953 = vmatpush.msra.mxu0 0.0
    %2954 = vmatpush.msra.mxu0 0.0
    %2955 = vmatpush.msra.mxu0 0.0
    %2956 = vmatpush.msra.mxu0 0.0
    %2957 = vmatpush.msra.mxu0 0.0
    %2958 = vmatpush.msra.mxu0 0.0
    %2959 = vmatpush.msra.mxu0 %v2904
    %2960 = vmatpush.msra.mxu0 %v2903
    %2961 = vmatmul.f32.gmra.mxu0 %v2922
    %v2962 = vpop.f32.mrf.mxu0
    %v2963 = vadd.f32 %v2913, %v2962
    %2964 = vmatmul.f32.gmra.mxu0 %v2925
    %v2965 = vpop.f32.mrf.mxu0
    %v2966 = vadd.f32 %v2914, %v2965
    %2967 = vmatmul.f32.gmra.mxu0 %v2928
    %v2968 = vpop.f32.mrf.mxu0
    %v2969 = vadd.f32 %v2915, %v2968
    %2970 = vmatmul.f32.gmra.mxu0 %v2931
    %v2971 = vpop.f32.mrf.mxu0
    %v2972 = vadd.f32 %v2916, %v2971
    %2973 = vmatmul.f32.gmra.mxu0 %v2934
    %v2974 = vpop.f32.mrf.mxu0
    %v2975 = vadd.f32 %v2917, %v2974
    %2976 = vmatmul.f32.gmra.mxu0 %v2937
    %v2977 = vpop.f32.mrf.mxu0
    %v2978 = vadd.f32 %v2918, %v2977
    %2979 = vmatmul.f32.gmra.mxu0 %v2940
    %v2980 = vpop.f32.mrf.mxu0
    %v2981 = vadd.f32 %v2919, %v2980
    %2982 = vmatmul.f32.gmra.mxu0 %v2943
    %v2983 = vpop.f32.mrf.mxu0
    %v2984 = vadd.f32 %v2920, %v2983
    %2985 = vdwg.mxu0
    %v2986 = vmul.f32 %v2963, 0.5
    %v2987 = vmul.f32 %v2966, 0.5
    %v2988 = vmul.f32 %v2969, 0.5
    %v2989 = vmul.f32 %v2972, 0.5
    %v2990 = vmul.f32 %v2975, 0.5
    %v2991 = vmul.f32 %v2978, 0.5
    %v2992 = vmul.f32 %v2981, 0.5
    %v2993 = vmul.f32 %v2984, 0.5
    %v2994 = vmul.f32 %v2963, 0.044715
    %v2995 = vmul.f32 %v2966, 0.044715
    %v2996 = vmul.f32 %v2969, 0.044715
    %v2997 = vmul.f32 %v2972, 0.044715
    %v2998 = vmul.f32 %v2975, 0.044715
    %v2999 = vmul.f32 %v2978, 0.044715
    %v3000 = vmul.f32 %v2981, 0.044715
    %v3001 = vmul.f32 %v2984, 0.044715
    %v3002 = vmul.f32 %v2994, %v2963
    %v3003 = vmul.f32 %v2995, %v2966
    %v3004 = vmul.f32 %v2996, %v2969
    %v3005 = vmul.f32 %v2997, %v2972
    %v3006 = vmul.f32 %v2998, %v2975
    %v3007 = vmul.f32 %v2999, %v2978
    %v3008 = vmul.f32 %v3000, %v2981
    %v3009 = vmul.f32 %v3001, %v2984
    %v3010 = vmul.f32 %v3002, %v2963
    %v3011 = vmul.f32 %v3003, %v2966
    %v3012 = vmul.f32 %v3004, %v2969
    %v3013 = vmul.f32 %v3005, %v2972
    %v3014 = vmul.f32 %v3006, %v2975
    %v3015 = vmul.f32 %v3007, %v2978
    %v3016 = vmul.f32 %v3008, %v2981
    %v3017 = vmul.f32 %v3009, %v2984
    %v3018 = vadd.f32 %v2963, %v3010
    %v3019 = vadd.f32 %v2966, %v3011
    %v3020 = vadd.f32 %v2969, %v3012
    %v3021 = vadd.f32 %v2972, %v3013
    %v3022 = vadd.f32 %v2975, %v3014
    %v3023 = vadd.f32 %v2978, %v3015
    %v3024 = vadd.f32 %v2981, %v3016
    %v3025 = vadd.f32 %v2984, %v3017
    %v3026 = vmul.f32 %v3018, 0.7978846
    %v3027 = vmul.f32 %v3019, 0.7978846
    %v3028 = vmul.f32 %v3020, 0.7978846
    %v3029 = vmul.f32 %v3021, 0.7978846
    %v3030 = vmul.f32 %v3022, 0.7978846
    %v3031 = vmul.f32 %v3023, 0.7978846
    %v3032 = vmul.f32 %v3024, 0.7978846
    %v3033 = vmul.f32 %v3025, 0.7978846
    %v3034 = vtanh.pop %v3026
    %v3035 = vtanh.pop %v3027
    %v3036 = vtanh.pop %v3028
    %v3037 = vtanh.pop %v3029
    %v3038 = vtanh.pop %v3030
    %v3039 = vtanh.pop %v3031
    %v3040 = vtanh.pop %v3032
    %v3041 = vtanh.pop %v3033
    %v3042 = vadd.f32 %v3034, 1.0
    %v3043 = vadd.f32 %v3035, 1.0
    %v3044 = vadd.f32 %v3036, 1.0
    %v3045 = vadd.f32 %v3037, 1.0
    %v3046 = vadd.f32 %v3038, 1.0
    %v3047 = vadd.f32 %v3039, 1.0
    %v3048 = vadd.f32 %v3040, 1.0
    %v3049 = vadd.f32 %v3041, 1.0
    %v3050 = vmul.f32 %v2986, %v3042
    %v3051 = vmul.f32 %v2987, %v3043
    %v3052 = vmul.f32 %v2988, %v3044
    %v3053 = vmul.f32 %v2989, %v3045
    %v3054 = vmul.f32 %v2990, %v3046
    %v3055 = vmul.f32 %v2991, %v3047
    %v3056 = vmul.f32 %v2992, %v3048
    %v3057 = vmul.f32 %v2993, %v3049
    %v3058 = vld [vmem:[#allocation3 + $0x6f8] sm:$0xff]
    %v3059 = vld [vmem:[#allocation3 + $0x700] sm:$0xff]
    %v3060 = vld [vmem:[#allocation3 + $0x708] sm:$0xff]
    %v3061 = vld [vmem:[#allocation3 + $0x710] sm:$0xff]
    %v3063 = vsel %vm701, %v3058, 0
    %v3066 = vsel %vm701, %v3059, 0
    %3068 = vmatpush.msra.mxu0 0.0
    %3069 = vmatpush.msra.mxu0 0.0
    %3070 = vmatpush.msra.mxu0 0.0
    %3071 = vmatpush.msra.mxu0 0.0
    %3072 = vmatpush.msra.mxu0 0.0
    %3073 = vmatpush.msra.mxu0 0.0
    %3074 = vmatpush.msra.mxu0 0.0
    %3075 = vmatpush.msra.mxu0 0.0
    %3076 = vmatpush.msra.mxu0 %v3057
    %3077 = vmatpush.msra.mxu0 %v3056
    %3078 = vmatpush.msra.mxu0 %v3055
    %3079 = vmatpush.msra.mxu0 %v3054
    %3080 = vmatpush.msra.mxu0 %v3053
    %3081 = vmatpush.msra.mxu0 %v3052
    %3082 = vmatpush.msra.mxu0 %v3051
    %3083 = vmatpush.msra.mxu0 %v3050
    %3084 = vmatmul.f32.gmra.mxu0 %v3063
    %v3085 = vpop.f32.mrf.mxu0
    %v3086 = vadd.f32 %v3060, %v3085
    %3087 = vmatmul.f32.gmra.mxu0 %v3066
    %v3088 = vpop.f32.mrf.mxu0
    %v3089 = vadd.f32 %v3061, %v3088
    %3090 = vdwg.mxu0
    %v3091 = vadd.f32 %v2847, %v3086
    %v3092 = vadd.f32 %v2848, %v3089
    %v3093 = vld [vmem:[#allocation3 + $0x718] sm:$0x1]
    %v3094 = vld [vmem:[#allocation3 + $0x720] sm:$0x1]
    %v3095 = vsel %vm97, %v3091, 0.0
    %3096 = vadd.xlane.f32.xlu0 %v3095
    %v3097 = vpop.xlane.xlu0 %3096
    %v3098 = vsel %vm97, %v3092, 0.0
    %3099 = vadd.xlane.f32.xlu0 %v3098
    %v3100 = vpop.xlane.xlu0 %3099
    %v3101 = vmul.f32 %v3097, %v122
    %v3102 = vmul.f32 %v3100, %v122
    %v3103 = vmul.f32 %v3091, %v3091
    %v3104 = vmul.f32 %v3092, %v3092
    %v3105 = vsel %vm97, %v3103, 0.0
    %3106 = vadd.xlane.f32.xlu0 %v3105
    %v3107 = vpop.xlane.xlu0 %3106
    %v3108 = vsel %vm97, %v3104, 0.0
    %3109 = vadd.xlane.f32.xlu0 %v3108
    %v3110 = vpop.xlane.xlu0 %3109
    %v3111 = vmul.f32 %v3107, %v122
    %v3112 = vmul.f32 %v3110, %v122
    %v3113 = vmul.f32 %v3101, %v3101
    %v3114 = vmul.f32 %v3102, %v3102
    %v3115 = vsub.f32 %v3111, %v3113
    %v3116 = vsub.f32 %v3112, %v3114
    %v3117 = vsub.f32 %v3091, %v3101
    %v3118 = vsub.f32 %v3092, %v3102
    %v3119 = vadd.f32 %v3115, 1e-05
    %v3120 = vadd.f32 %v3116, 1e-05
    %v3121 = vrsqrt.pop %v3119
    %v3122 = vmul.f32 %v3121, %v3119
    %v3123 = vmul.f32 %v3122, %v3121
    %v3124 = vmul.f32 0.5, %v3123
    %v3125 = vsub.f32 1.5, %v3124
    %v3126 = vmul.f32 %v3121, %v3125
    %vm3127 = vweird.f32 %v3119
    %vm3128 = vweird.f32 %v3121
    %vm3129 = vmor %vm3127, %vm3128
    %v3130 = vsel %vm3129, %v3121, %v3126
    %v3131 = vrsqrt.pop %v3120
    %v3132 = vmul.f32 %v3131, %v3120
    %v3133 = vmul.f32 %v3132, %v3131
    %v3134 = vmul.f32 0.5, %v3133
    %v3135 = vsub.f32 1.5, %v3134
    %v3136 = vmul.f32 %v3131, %v3135
    %vm3137 = vweird.f32 %v3120
    %vm3138 = vweird.f32 %v3131
    %vm3139 = vmor %vm3137, %vm3138
    %v3140 = vsel %vm3139, %v3131, %v3136
    %v3141 = vmul.f32 %v3117, %v3130
    %v3142 = vmul.f32 %v3118, %v3140
    %v3143 = vperm.slane %v3093, 0
    %v3144 = vmul.f32 %v3141, %v3143
    %v3145 = vmul.f32 %v3142, %v3143
    %v3146 = vperm.slane %v3094, 0
    %v3147 = vadd.f32 %v3144, %v3146
    %v3148 = vadd.f32 %v3145, %v3146
    %v3149 = vld [vmem:[#allocation3 + $0x728] sm:$0xff]
    %v3150 = vld [vmem:[#allocation3 + $0x730] sm:$0xff]
    %v3151 = vld [vmem:[#allocation3 + $0x738] sm:$0xff]
    %v3152 = vld [vmem:[#allocation3 + $0x740] sm:$0xff]
    %v3153 = vld [vmem:[#allocation3 + $0x748] sm:$0x1]
    %v3154 = vperm.slane %v3153, 0
    %v3156 = vsel %vm97, %v3147, 0
    %v3159 = vsel %vm97, %v3148, 0
    %3161 = vmatpush.msra.mxu0 0.0
    %3162 = vmatpush.msra.mxu0 0.0
    %3163 = vmatpush.msra.mxu0 0.0
    %3164 = vmatpush.msra.mxu0 0.0
    %3165 = vmatpush.msra.mxu0 0.0
    %3166 = vmatpush.msra.mxu0 0.0
    %3167 = vmatpush.msra.mxu0 0.0
    %3168 = vmatpush.msra.mxu0 0.0
    %3169 = vmatpush.msra.mxu0 0.0
    %3170 = vmatpush.msra.mxu0 0.0
    %3171 = vmatpush.msra.mxu0 0.0
    %3172 = vmatpush.msra.mxu0 0.0
    %3173 = vmatpush.msra.mxu0 %v3152
    %3174 = vmatpush.msra.mxu0 %v3151
    %3175 = vmatpush.msra.mxu0 %v3150
    %3176 = vmatpush.msra.mxu0 %v3149
    %3177 = vmatmul.f32.gmra.mxu0 %v3156
    %v3178 = vpop.f32.mrf.mxu0
    %v3179 = vadd.f32 %v3154, %v3178
    %3180 = vmatmul.f32.gmra.mxu0 %v3159
    %v3181 = vpop.f32.mrf.mxu0
    %v3182 = vadd.f32 %v3154, %v3181
    %3183 = vdwg.mxu0
    %v3184 = vmul.f32 %v3179, 0.5
    %v3185 = vmul.f32 %v3182, 0.5
    %v3186 = vmul.f32 %v3179, 0.044715
    %v3187 = vmul.f32 %v3182, 0.044715
    %v3188 = vmul.f32 %v3186, %v3179
    %v3189 = vmul.f32 %v3187, %v3182
    %v3190 = vmul.f32 %v3188, %v3179
    %v3191 = vmul.f32 %v3189, %v3182
    %v3192 = vadd.f32 %v3179, %v3190
    %v3193 = vadd.f32 %v3182, %v3191
    %v3194 = vmul.f32 %v3192, 0.7978846
    %v3195 = vmul.f32 %v3193, 0.7978846
    %v3196 = vtanh.pop %v3194
    %v3197 = vtanh.pop %v3195
    %v3198 = vadd.f32 %v3196, 1.0
    %v3199 = vadd.f32 %v3197, 1.0
    %v3200 = vmul.f32 %v3184, %v3198
    %v3201 = vmul.f32 %v3185, %v3199
    %v3202 = vld [vmem:[#allocation3 + $0x750] sm:$0xff]
    %v3203 = vld [vmem:[#allocation3 + $0x758] sm:$0xff]
    %v3204 = vld [vmem:[#allocation3 + $0x760] sm:$0x1]
    %v3205 = vperm.slane %v3204, 0
    %v3207 = vsel %vm1085, %v3200, 0
    %v3210 = vsel %vm1085, %v3201, 0
    %3212 = vmatpush.msra.mxu0 0.0
    %3213 = vmatpush.msra.mxu0 0.0
    %3214 = vmatpush.msra.mxu0 0.0
    %3215 = vmatpush.msra.mxu0 0.0
    %3216 = vmatpush.msra.mxu0 0.0
    %3217 = vmatpush.msra.mxu0 0.0
    %3218 = vmatpush.msra.mxu0 0.0
    %3219 = vmatpush.msra.mxu0 0.0
    %3220 = vmatpush.msra.mxu0 0.0
    %3221 = vmatpush.msra.mxu0 0.0
    %3222 = vmatpush.msra.mxu0 0.0
    %3223 = vmatpush.msra.mxu0 0.0
    %3224 = vmatpush.msra.mxu0 0.0
    %3225 = vmatpush.msra.mxu0 0.0
    %3226 = vmatpush.msra.mxu0 %v3203
    %3227 = vmatpush.msra.mxu0 %v3202
    %3228 = vmatmul.f32.gmra.mxu0 %v3207
    %v3229 = vpop.f32.mrf.mxu0
    %v3230 = vadd.f32 %v3205, %v3229
    %3231 = vmatmul.f32.gmra.mxu0 %v3210
    %v3232 = vpop.f32.mrf.mxu0
    %v3233 = vadd.f32 %v3205, %v3232
    %3234 = vdwg.mxu0
    %v3235 = vadd.f32 %v3091, %v3230
    %v3236 = vadd.f32 %v3092, %v3233
    %v3237 = vld [vmem:[#allocation3 + $0x768] sm:$0x1]
    %v3238 = vld [vmem:[#allocation3 + $0x770] sm:$0x1]
    %v3239 = vsel %vm97, %v3235, 0.0
    %3240 = vadd.xlane.f32.xlu0 %v3239
    %v3241 = vpop.xlane.xlu0 %3240
    %v3242 = vsel %vm97, %v3236, 0.0
    %3243 = vadd.xlane.f32.xlu0 %v3242
    %v3244 = vpop.xlane.xlu0 %3243
    %v3245 = vmul.f32 %v3241, %v122
    %v3246 = vmul.f32 %v3244, %v122
    %v3247 = vmul.f32 %v3235, %v3235
    %v3248 = vmul.f32 %v3236, %v3236
    %v3249 = vsel %vm97, %v3247, 0.0
    %3250 = vadd.xlane.f32.xlu0 %v3249
    %v3251 = vpop.xlane.xlu0 %3250
    %v3252 = vsel %vm97, %v3248, 0.0
    %3253 = vadd.xlane.f32.xlu0 %v3252
    %v3254 = vpop.xlane.xlu0 %3253
    %v3255 = vmul.f32 %v3251, %v122
    %v3256 = vmul.f32 %v3254, %v122
    %v3257 = vmul.f32 %v3245, %v3245
    %v3258 = vmul.f32 %v3246, %v3246
    %v3259 = vsub.f32 %v3255, %v3257
    %v3260 = vsub.f32 %v3256, %v3258
    %v3261 = vsub.f32 %v3235, %v3245
    %v3262 = vsub.f32 %v3236, %v3246
    %v3263 = vadd.f32 %v3259, 1e-05
    %v3264 = vadd.f32 %v3260, 1e-05
    %v3265 = vrsqrt.pop %v3263
    %v3266 = vmul.f32 %v3265, %v3263
    %v3267 = vmul.f32 %v3266, %v3265
    %v3268 = vmul.f32 0.5, %v3267
    %v3269 = vsub.f32 1.5, %v3268
    %v3270 = vmul.f32 %v3265, %v3269
    %vm3271 = vweird.f32 %v3263
    %vm3272 = vweird.f32 %v3265
    %vm3273 = vmor %vm3271, %vm3272
    %v3274 = vsel %vm3273, %v3265, %v3270
    %v3275 = vrsqrt.pop %v3264
    %v3276 = vmul.f32 %v3275, %v3264
    %v3277 = vmul.f32 %v3276, %v3275
    %v3278 = vmul.f32 0.5, %v3277
    %v3279 = vsub.f32 1.5, %v3278
    %v3280 = vmul.f32 %v3275, %v3279
    %vm3281 = vweird.f32 %v3264
    %vm3282 = vweird.f32 %v3275
    %vm3283 = vmor %vm3281, %vm3282
    %v3284 = vsel %vm3283, %v3275, %v3280
    %v3285 = vmul.f32 %v3261, %v3274
    %v3286 = vmul.f32 %v3262, %v3284
    %v3287 = vperm.slane %v3237, 0
    %v3288 = vmul.f32 %v3285, %v3287
    %v3289 = vmul.f32 %v3286, %v3287
    %v3290 = vperm.slane %v3238, 0
    %v3291 = vadd.f32 %v3288, %v3290
    %v3292 = vadd.f32 %v3289, %v3290
    %v3293 = vld [vmem:[#allocation3 + $0x778] sm:$0xff]
    %v3294 = vld [vmem:[#allocation3 + $0x780] sm:$0xff]
    %v3295 = vld [vmem:[#allocation3 + $0x788] sm:$0xff]
    %v3296 = vld [vmem:[#allocation3 + $0x790] sm:$0xff]
    %v3297 = vld [vmem:[#allocation3 + $0x798] sm:$0x1]
    %v3298 = vperm.slane %v3297, 0
    %v3300 = vsel %vm97, %v3291, 0
    %v3303 = vsel %vm97, %v3292, 0
    %3305 = vmatpush.msra.mxu0 0.0
    %3306 = vmatpush.msra.mxu0 0.0
    %3307 = vmatpush.msra.mxu0 0.0
    %3308 = vmatpush.msra.mxu0 0.0
    %3309 = vmatpush.msra.mxu0 0.0
    %3310 = vmatpush.msra.mxu0 0.0
    %3311 = vmatpush.msra.mxu0 0.0
    %3312 = vmatpush.msra.mxu0 0.0
    %3313 = vmatpush.msra.mxu0 0.0
    %3314 = vmatpush.msra.mxu0 0.0
    %3315 = vmatpush.msra.mxu0 0.0
    %3316 = vmatpush.msra.mxu0 0.0
    %3317 = vmatpush.msra.mxu0 %v3296
    %3318 = vmatpush.msra.mxu0 %v3295
    %3319 = vmatpush.msra.mxu0 %v3294
    %3320 = vmatpush.msra.mxu0 %v3293
    %3321 = vmatmul.f32.gmra.mxu0 %v3300
    %v3322 = vpop.f32.mrf.mxu0
    %v3323 = vadd.f32 %v3298, %v3322
    %3324 = vmatmul.f32.gmra.mxu0 %v3303
    %v3325 = vpop.f32.mrf.mxu0
    %v3326 = vadd.f32 %v3298, %v3325
    %3327 = vdwg.mxu0
    %v3328 = vmax.f32 %v3323, 0.0
    %v3329 = vmax.f32 %v3326, 0.0
    %v3330 = vand.u32 2147483647, %v3323
    %v3331 = vand.u32 2147483647, %v3326
    %v3332 = vsub.f32 0.0, %v3330
    %v3333 = vsub.f32 0.0, %v3331
    %v3334 = vmul.f32 %v3332, 1.442695
    %v3335 = vpow.pop %v3334
    %v3336 = vmul.f32 %v3333, 1.442695
    %v3337 = vpow.pop %v3336
    %v3338 = vadd.f32 %v3335, 1.0
    %v3339 = vlog2.pop %v3338
    %v3340 = vmul.f32 %v3339, 0.6931472
    %v3341 = vmul.f32 -0.5, %v3335
    %v3342 = vadd.f32 %v3341, 1.0
    %v3343 = vmul.f32 %v3342, %v3335
    %v3344 = vand.u32 2147483647, %v3335
    %vm3345 = vcmp.lt.f32.partialorder %v3344, 0.0004427343
    %v3346 = vsel %vm3345, %v3343, %v3340
    %v3347 = vadd.f32 %v3337, 1.0
    %v3348 = vlog2.pop %v3347
    %v3349 = vmul.f32 %v3348, 0.6931472
    %v3350 = vmul.f32 -0.5, %v3337
    %v3351 = vadd.f32 %v3350, 1.0
    %v3352 = vmul.f32 %v3351, %v3337
    %v3353 = vand.u32 2147483647, %v3337
    %vm3354 = vcmp.lt.f32.partialorder %v3353, 0.0004427343
    %v3355 = vsel %vm3354, %v3352, %v3349
    %v3356 = vadd.f32 %v3328, %v3346
    %v3357 = vadd.f32 %v3329, %v3355
    %vm3358 = vcmp.gt.f32.partialorder %v3323, 20.0
    %vm3359 = vcmp.gt.f32.partialorder %v3326, 20.0
    %v3360 = vsel %vm3358, %v3323, %v3356
    %v3361 = vsel %vm3359, %v3326, %v3357
    %3362 = vst [vmem:[#allocation6] sm:$0xff] %v3360
    %3363 = vst [vmem:[#allocation6 + $0x8] sm:$0xff] %v3361
    // Predicated region
    $region14: #{tpu_custom_call.1} parent=1 // pred_check
      _
    $region15: #{tpu_custom_call.1} parent=1 // pred_check_branch
      %3365 = sbr.rel (0) target = $region17
    $region16: #{tpu_custom_call.1} parent=1 // pred_region
      %3367 = vsyncadd [#allocation5], 0
      %s3368 = sshll.u32 [#allocation6], 4
      %s3369 = int_to_ptr.vmem [resolvable:$true] %s3368
      %s3370 = sshll.u32 %s2, 4
      %s3371 = int_to_ptr.hbm [resolvable:$true] %s3370
      %3376 = dma.vmem_to_hbm [thread:$0]  %s3369, 256, %s3371, [#allocation5], 128, 128, 8
    $region17: #{tpu_custom_call.1} parent=1 // pred_fallthru
      _
    // Predicated region
    $region18: #{tpu_custom_call.1} parent=1 // pred_check
      _
    $region19: #{tpu_custom_call.1} parent=1 // pred_check_branch
      %3378 = sbr.rel (0) target = $region21
    $region20: #{tpu_custom_call.1} parent=1 // pred_region
      %3380 = dma.done [#allocation5], 256
    $region21: #{tpu_custom_call.1} parent=1 // pred_fallthru
      _
    %3381 = vsyncpa [#allocation4], 1
    %3382 = vsyncpa [#allocation5], 1

</llo_original>
